<compile_context>
chip_gen: v5e
topology: v5e:2x2
jax: 0.10.0
libtpu: 0.0.40
codegen_flags: <defaults>
</compile_context>

<pallas_src>
import functools

import jax
import jax.numpy as jnp
from jax.experimental import pallas as pl
from jax.experimental.pallas import tpu as pltpu


CHANS = (1, 32, 64, 128, 256)
ROW_CHUNK = 128   # bounds vreg pressure of the register-accumulated conv taps (layer 1)


def layer_dims(input_size):
    """Per-image static geometry of each conv block in flat zero-padded-row coordinates."""
    H, W = input_size
    dims = []
    for l in range(4):
        h, w = H >> l, W >> l
        P, Q = h + 2, w + 2
        Mi = P * Q                       # rows of the flat zero-padded activation (one image)
        dims.append(dict(H=h, W=w, P=P, Q=Q, Mi=Mi,
                         Tlen=Mi - 2 * Q - 2,     # conv-output rows computed (covers all real pixels)
                         Ho=h // 2, Wo=w // 2,
                         Cin=CHANS[l], Cout=CHANS[l + 1]))
    return tuple(dims)


# ---------------------------------------------------------------------------
# The single fused Pallas kernel (one grid step == one image)
# ---------------------------------------------------------------------------

def _fused_forward_kernel(a1_ref,
                          w1_ref, w2_ref, w3_ref, w4_ref,
                          b1_ref, b2_ref, b3_ref, b4_ref,
                          fw1_ref, fw2_ref, fw3_ref,
                          fb1_ref, fb2_ref, fb3_ref,
                          out_ref,
                          y1_ref, y2_ref, y3_ref, y4_ref,
                          s2_ref, s3_ref, s4_ref,
                          a2_ref, a3_ref, a4_ref,
                          *, dims):
    w_refs = (w1_ref, w2_ref, w3_ref, w4_ref)
    b_refs = (b1_ref, b2_ref, b3_ref, b4_ref)
    y_refs = (y1_ref, y2_ref, y3_ref, y4_ref)
    a_refs = (a1_ref, a2_ref, a3_ref, a4_ref)
    stage_refs = (None, s2_ref, s3_ref, s4_ref)

    # conv1 weight (9, 32): read once and pre-slice its rows (hoisted out of the tap loops)
    w1v = w1_ref[...]
    w1_rows = [w1v[k:k + 1, :] for k in range(9)]

    feat = None
    for l in range(4):
        d = dims[l]
        Q, Tlen, Cin, Cout = d["Q"], d["Tlen"], d["Cin"], d["Cout"]
        Ho, Wo = d["Ho"], d["Wo"]
        a_ref, y_ref, w_ref = a_refs[l], y_refs[l], w_refs[l]
        bias = b_refs[l][...]            # (1, Cout) f32, hoisted per layer
        T0 = Q + 1                       # flat coord of the first computed conv-output row

        # ---- conv3x3(pad=1): 9 statically row-shifted taps, register accumulation, chunked rows
        for s in range(0, Tlen, ROW_CHUNK):
            ln = min(ROW_CHUNK, Tlen - s)
            acc = None
            for ky in range(3):
                for kx in range(3):
                    k = ky * 3 + kx
                    start = T0 + s + (ky - 1) * Q + (kx - 1)   # static, always in [0, Mi)
                    lhs = a_ref[start:start + ln, :]
                    if Cin == 1:
                        term = lhs * w1_rows[k]                # VPU broadcast FMA (K=1 matmul wastes MXU)
                    else:
                        term = jnp.dot(lhs, w_ref[k * Cin:(k + 1) * Cin, :],
                                       preferred_element_type=jnp.float32)
                    acc = term if acc is None else acc + term
            # folded-BN bias + ReLU epilogue in f32; ONE store per chunk (no RMW accumulation)
            y_ref[s:s + ln, :] = jnp.maximum(acc + bias, 0.0)

        # ---- 2x2/stride-2 max-pool via stride-2 row gathers, scattered straight into the next
        #      layer's zero-padded flat layout (replaces the old O(batch^2) select matmuls).
        if l < 3:
            stage = stage_refs[l + 1]                          # f32 staging, same layout as a_{l+1}
            stage[...] = jnp.zeros(stage.shape, stage.dtype)   # pad rows must stay zero
            Qn = dims[l + 1]["Q"]
        for i in range(Ho):
            r0, r1 = 2 * i * Q, (2 * i + 1) * Q
            if Wo == 1:
                q00 = y_ref[r0:r0 + 1, :]
                q01 = y_ref[r0 + 1:r0 + 2, :]
                q10 = y_ref[r1:r1 + 1, :]
                q11 = y_ref[r1 + 1:r1 + 2, :]
            else:
                q00 = y_ref[pl.ds(r0, Wo, stride=2), :]
                q01 = y_ref[pl.ds(r0 + 1, Wo, stride=2), :]
                q10 = y_ref[pl.ds(r1, Wo, stride=2), :]
                q11 = y_ref[pl.ds(r1 + 1, Wo, stride=2), :]
            pooled = jnp.maximum(jnp.maximum(q00, q01), jnp.maximum(q10, q11))   # (Wo, Cout) f32
            if l < 3:
                dst = (i + 1) * Qn + 1
                stage[dst:dst + Wo, :] = pooled
            else:
                feat = pooled.astype(jnp.bfloat16)             # (1, 256): final spatial is 1x1

        if l < 3:
            # single aligned full-buffer cast: the next conv's 9 taps read bf16 straight into the MXU
            a_refs[l + 1][...] = stage[...].astype(jnp.bfloat16)

    # ---- fc1 -> ReLU -> (dropout: identity in eval) -> fc2 -> ReLU -> fc3
    # TODO(synk): nn.Dropout(0.5) is identity in eval mode; training-mode dropout not implemented.
    h = jnp.dot(feat, fw1_ref[...], preferred_element_type=jnp.float32) + fb1_ref[...]
    h = jnp.maximum(h, 0.0).astype(jnp.bfloat16)
    h = jnp.dot(h, fw2_ref[...], preferred_element_type=jnp.float32) + fb2_ref[...]
    h = jnp.maximum(h, 0.0).astype(jnp.bfloat16)
    out = jnp.dot(h, fw3_ref[...], preferred_element_type=jnp.float32) + fb3_ref[...]
    out_ref[0] = out                                            # (1, 128) lane-dense store


# ---------------------------------------------------------------------------
# Wrapper: one pallas_call, grid = (batch,), "parallel" for v7x megacore
# ---------------------------------------------------------------------------

def forward(x_nchw, params, dims):
    N = x_nchw.shape[0]
    d1 = dims[0]
    Mi = d1["Mi"]
    Mi_pad = ((Mi + 7) // 8) * 8          # 8-row-aligned per-image slab so the batch axis can block

    # Tiny glue: zero-pad spatially and flatten each image to the kernel's flat-row layout.
    x = jnp.transpose(x_nchw, (0, 2, 3, 1)).astype(jnp.float32)          # NCHW -> NHWC
    xpad = jnp.pad(x, ((0, 0), (1, 1), (1, 1), (0, 0)))                  # (N, H+2, W+2, 1)
    a1 = xpad.reshape(N, Mi, 1)
    a1 = jnp.pad(a1, ((0, 0), (0, Mi_pad - Mi), (0, 0))).reshape(N * Mi_pad, 1)

    param_keys = (["conv%d_w" % i for i in (1, 2, 3, 4)]
                  + ["conv%d_b" % i for i in (1, 2, 3, 4)]
                  + ["fc%d_w" % i for i in (1, 2, 3)]
                  + ["fc%d_b" % i for i in (1, 2, 3)])

    def full_spec(shape):
        return pl.BlockSpec(shape, lambda n: (0,) * len(shape))          # whole array, resident

    in_specs = [pl.BlockSpec((Mi_pad, 1), lambda n: (n, 0))]             # one image per grid step
    in_specs += [full_spec(params[k].shape) for k in param_keys]

    scratch = [pltpu.VMEM((d["Tlen"], d["Cout"]), jnp.float32) for d in dims]              # conv+ReLU
    scratch += [pltpu.VMEM((dims[i]["Mi"], dims[i]["Cin"]), jnp.float32) for i in (1, 2, 3)]   # pool staging
    scratch += [pltpu.VMEM((dims[i]["Mi"], dims[i]["Cin"]), jnp.bfloat16) for i in (1, 2, 3)]  # bf16 conv inputs

    flops = 0
    for d in dims:
        flops += 2 * 9 * d["H"] * d["W"] * d["Cin"] * d["Cout"]
    flops += 2 * sum(int(params["fc%d_w" % i].size) for i in (1, 2, 3))
    flops *= N
    bytes_accessed = int(a1.size) * 4 + N * 128 * 4
    bytes_accessed += sum(int(v.size) * v.dtype.itemsize for v in params.values())

    kernel = functools.partial(_fused_forward_kernel, dims=dims)
    out3 = pl.pallas_call(
        kernel,
        out_shape=jax.ShapeDtypeStruct((N, 1, 128), jnp.float32),
        grid=(N,),
        in_specs=in_specs,
        out_specs=pl.BlockSpec((1, 1, 128), lambda n: (n, 0, 0)),
        scratch_shapes=scratch,
        compiler_params=pltpu.CompilerParams(
            dimension_semantics=("parallel",),            # shards the batch across v7x's 2 TCs
            vmem_limit_bytes=32 * 1024 * 1024),
        cost_estimate=pl.CostEstimate(flops=int(flops), transcendentals=0,
                                      bytes_accessed=int(bytes_accessed)),
    )(a1, *[params[k] for k in param_keys])

    return out3.reshape(N, 128)[:, :10]   # fc3 has 10 real outputs; lanes 10..127 are zero padding


# ---------------------------------------------------------------------------
# Deterministic parameter construction (synthetic weights, BN folded at init)
# ---------------------------------------------------------------------------

def init_params(key, input_size=(16, 16)):
    # 16x16 input -> 4 pools -> 1x1x256 -> to_linear = 256 (matches _initialize_to_linear)
    assert input_size == (16, 16), "demo config; the final flatten assumes 1x1 spatial"
    dims = layer_dims(input_size)
    params = {}
    keys = jax.random.split(key, 32)
    ki = 0
    eps = 1e-5
    for i in range(4):
        cin, cout = CHANS[i], CHANS[i + 1]
        w = jax.random.normal(keys[ki], (cout, cin, 3, 3), jnp.float32) * 0.05; ki += 1
        b = jax.random.normal(keys[ki], (cout,), jnp.float32) * 0.05; ki += 1
        gamma = 1.0 + 0.1 * jax.random.normal(keys[ki], (cout,), jnp.float32); ki += 1
        beta = 0.1 * jax.random.normal(keys[ki], (cout,), jnp.float32); ki += 1
        mean = 0.1 * jax.random.normal(keys[ki], (cout,), jnp.float32); ki += 1
        var = jnp.abs(jax.random.normal(keys[ki], (cout,), jnp.float32)) + 0.5; ki += 1
        # fold eval-mode BatchNorm into the conv weight & bias
        scale = gamma / jnp.sqrt(var + eps)
        w_fold = w * scale[:, None, None, None]
        b_fold = (b - mean) * scale + beta
        # (Cout,Cin,3,3) -> (ky,kx,Cin,Cout) -> (9*Cin, Cout), matching the kernel's tap order
        w_mat = jnp.transpose(w_fold, (2, 3, 1, 0)).reshape(9 * cin, cout)
        params[f"conv{i+1}_w"] = w_mat if cin == 1 else w_mat.astype(jnp.bfloat16)
        params[f"conv{i+1}_b"] = b_fold.reshape(1, cout)

    to_linear = 256 * (input_size[0] // 16) * (input_size[1] // 16)
    fdims = [to_linear, 512, 256, 10]
    for i in range(3):
        Wf = jax.random.normal(keys[ki], (fdims[i], fdims[i + 1]), jnp.float32) * 0.02; ki += 1
        bf = jax.random.normal(keys[ki], (fdims[i + 1],), jnp.float32) * 0.02; ki += 1
        if i == 2:
            # lane-densify fc3: pad the 10 outputs to 128 lanes (pads are exactly zero)
            Wp = jnp.zeros((fdims[i], 128), jnp.float32).at[:, :10].set(Wf)
            bp = jnp.zeros((128,), jnp.float32).at[:10].set(bf)
            params["fc3_w"] = Wp.astype(jnp.bfloat16)
            params["fc3_b"] = bp.reshape(1, 128)
        else:
            params[f"fc{i+1}_w"] = Wf.astype(jnp.bfloat16)
            params[f"fc{i+1}_b"] = bf.reshape(1, fdims[i + 1])
    return params, dims


if __name__ == "__main__":
    key = jax.random.PRNGKey(0)
    k_param, k_x = jax.random.split(key)
    batch, input_size = 2, (16, 16)
    params, dims = init_params(k_param, input_size=input_size)
    x = jax.random.normal(k_x, (batch, 1, *input_size), jnp.float32)   # NCHW, 1 channel

    fwd = jax.jit(lambda xx, pp: forward(xx, pp, dims))
    out = jax.block_until_ready(fwd(x, params))

    assert out.shape == (batch, 10), out.shape
    assert bool(jnp.all(jnp.isfinite(out)))
    print("KERNEL_OK")
</pallas_src>

<mosaic_0001>
module attributes {stable_mosaic.version = 11 : i64} {
  func.func @_fused_forward_kernel(%arg0: i32, %arg1: memref<328x1xf32, #tpu.memory_space<vmem>>, %arg2: memref<9x32xf32, #tpu.memory_space<vmem>>, %arg3: memref<288x64xbf16, #tpu.memory_space<vmem>>, %arg4: memref<576x128xbf16, #tpu.memory_space<vmem>>, %arg5: memref<1152x256xbf16, #tpu.memory_space<vmem>>, %arg6: memref<1x32xf32, #tpu.memory_space<vmem>>, %arg7: memref<1x64xf32, #tpu.memory_space<vmem>>, %arg8: memref<1x128xf32, #tpu.memory_space<vmem>>, %arg9: memref<1x256xf32, #tpu.memory_space<vmem>>, %arg10: memref<256x512xbf16, #tpu.memory_space<vmem>>, %arg11: memref<512x256xbf16, #tpu.memory_space<vmem>>, %arg12: memref<256x128xbf16, #tpu.memory_space<vmem>>, %arg13: memref<1x512xf32, #tpu.memory_space<vmem>>, %arg14: memref<1x256xf32, #tpu.memory_space<vmem>>, %arg15: memref<1x128xf32, #tpu.memory_space<vmem>>, %arg16: memref<1x1x128xf32, #tpu.memory_space<vmem>>, %arg17: memref<286x32xf32, #tpu.memory_space<vmem>>, %arg18: memref<78x64xf32, #tpu.memory_space<vmem>>, %arg19: memref<22x128xf32, #tpu.memory_space<vmem>>, %arg20: memref<6x256xf32, #tpu.memory_space<vmem>>, %arg21: memref<100x32xf32, #tpu.memory_space<vmem>>, %arg22: memref<36x64xf32, #tpu.memory_space<vmem>>, %arg23: memref<16x128xf32, #tpu.memory_space<vmem>>, %arg24: memref<100x32xbf16, #tpu.memory_space<vmem>>, %arg25: memref<36x64xbf16, #tpu.memory_space<vmem>>, %arg26: memref<16x128xbf16, #tpu.memory_space<vmem>>) attributes {dimension_semantics = [#tpu.dimension_semantics<parallel>], iteration_bounds = array<i64: 2>, scalar_prefetch = 0 : i64, scratch_operands = 10 : i64, tpu.core_type = #tpu.core_type<tc>, window_params = [{transform_indices = @transform_0, window_bounds = array<i64: 328, 1>}, {pipeline_mode = #tpu.pipeline_mode<synchronous>, transform_indices = @transform_1, window_bounds = array<i64: 9, 32>}, {pipeline_mode = #tpu.pipeline_mode<synchronous>, transform_indices = @transform_2, window_bounds = array<i64: 288, 64>}, {pipeline_mode = #tpu.pipeline_mode<synchronous>, transform_indices = @transform_3, window_bounds = array<i64: 576, 128>}, {pipeline_mode = #tpu.pipeline_mode<synchronous>, transform_indices = @transform_4, window_bounds = array<i64: 1152, 256>}, {pipeline_mode = #tpu.pipeline_mode<synchronous>, transform_indices = @transform_5, window_bounds = array<i64: 1, 32>}, {pipeline_mode = #tpu.pipeline_mode<synchronous>, transform_indices = @transform_6, window_bounds = array<i64: 1, 64>}, {pipeline_mode = #tpu.pipeline_mode<synchronous>, transform_indices = @transform_7, window_bounds = array<i64: 1, 128>}, {pipeline_mode = #tpu.pipeline_mode<synchronous>, transform_indices = @transform_8, window_bounds = array<i64: 1, 256>}, {pipeline_mode = #tpu.pipeline_mode<synchronous>, transform_indices = @transform_9, window_bounds = array<i64: 256, 512>}, {pipeline_mode = #tpu.pipeline_mode<synchronous>, transform_indices = @transform_10, window_bounds = array<i64: 512, 256>}, {pipeline_mode = #tpu.pipeline_mode<synchronous>, transform_indices = @transform_11, window_bounds = array<i64: 256, 128>}, {pipeline_mode = #tpu.pipeline_mode<synchronous>, transform_indices = @transform_12, window_bounds = array<i64: 1, 512>}, {pipeline_mode = #tpu.pipeline_mode<synchronous>, transform_indices = @transform_13, window_bounds = array<i64: 1, 256>}, {pipeline_mode = #tpu.pipeline_mode<synchronous>, transform_indices = @transform_14, window_bounds = array<i64: 1, 128>}, {transform_indices = @transform_15, window_bounds = array<i64: 1, 1, 128>}]} {
    %c0 = arith.constant 0 : index
    %c0_0 = arith.constant 0 : index
    %0 = vector.load %arg2[%c0, %c0_0] : memref<9x32xf32, #tpu.memory_space<vmem>>, vector<9x32xf32>
    %1 = vector.extract_strided_slice %0 {offsets = [0, 0], sizes = [1, 32], strides = [1, 1]} : vector<9x32xf32> to vector<1x32xf32>
    %2 = vector.extract_strided_slice %0 {offsets = [1, 0], sizes = [1, 32], strides = [1, 1]} : vector<9x32xf32> to vector<1x32xf32>
    %3 = vector.extract_strided_slice %0 {offsets = [2, 0], sizes = [1, 32], strides = [1, 1]} : vector<9x32xf32> to vector<1x32xf32>
    %4 = vector.extract_strided_slice %0 {offsets = [3, 0], sizes = [1, 32], strides = [1, 1]} : vector<9x32xf32> to vector<1x32xf32>
    %5 = vector.extract_strided_slice %0 {offsets = [4, 0], sizes = [1, 32], strides = [1, 1]} : vector<9x32xf32> to vector<1x32xf32>
    %6 = vector.extract_strided_slice %0 {offsets = [5, 0], sizes = [1, 32], strides = [1, 1]} : vector<9x32xf32> to vector<1x32xf32>
    %7 = vector.extract_strided_slice %0 {offsets = [6, 0], sizes = [1, 32], strides = [1, 1]} : vector<9x32xf32> to vector<1x32xf32>
    %8 = vector.extract_strided_slice %0 {offsets = [7, 0], sizes = [1, 32], strides = [1, 1]} : vector<9x32xf32> to vector<1x32xf32>
    %9 = vector.extract_strided_slice %0 {offsets = [8, 0], sizes = [1, 32], strides = [1, 1]} : vector<9x32xf32> to vector<1x32xf32>
    %c0_1 = arith.constant 0 : index
    %c0_2 = arith.constant 0 : index
    %10 = vector.load %arg6[%c0_1, %c0_2] : memref<1x32xf32, #tpu.memory_space<vmem>>, vector<1x32xf32>
    %c0_3 = arith.constant 0 : index
    %c0_4 = arith.constant 0 : index
    %11 = vector.load %arg1[%c0_3, %c0_4] : memref<328x1xf32, #tpu.memory_space<vmem>>, vector<128x1xf32>
    %12 = vector.broadcast %11 : vector<128x1xf32> to vector<128x32xf32>
    %13 = vector.broadcast %1 : vector<1x32xf32> to vector<128x32xf32>
    %14 = arith.mulf %12, %13 : vector<128x32xf32>
    %c1 = arith.constant 1 : index
    %c0_5 = arith.constant 0 : index
    %15 = vector.load %arg1[%c1, %c0_5] : memref<328x1xf32, #tpu.memory_space<vmem>>, vector<128x1xf32>
    %16 = vector.broadcast %15 : vector<128x1xf32> to vector<128x32xf32>
    %17 = vector.broadcast %2 : vector<1x32xf32> to vector<128x32xf32>
    %18 = arith.mulf %16, %17 : vector<128x32xf32>
    %19 = arith.addf %14, %18 : vector<128x32xf32>
    %c2 = arith.constant 2 : index
    %c0_6 = arith.constant 0 : index
    %20 = vector.load %arg1[%c2, %c0_6] : memref<328x1xf32, #tpu.memory_space<vmem>>, vector<128x1xf32>
    %21 = vector.broadcast %20 : vector<128x1xf32> to vector<128x32xf32>
    %22 = vector.broadcast %3 : vector<1x32xf32> to vector<128x32xf32>
    %23 = arith.mulf %21, %22 : vector<128x32xf32>
    %24 = arith.addf %19, %23 : vector<128x32xf32>
    %c18 = arith.constant 18 : index
    %c0_7 = arith.constant 0 : index
    %25 = vector.load %arg1[%c18, %c0_7] : memref<328x1xf32, #tpu.memory_space<vmem>>, vector<128x1xf32>
    %26 = vector.broadcast %25 : vector<128x1xf32> to vector<128x32xf32>
    %27 = vector.broadcast %4 : vector<1x32xf32> to vector<128x32xf32>
    %28 = arith.mulf %26, %27 : vector<128x32xf32>
    %29 = arith.addf %24, %28 : vector<128x32xf32>
    %c19 = arith.constant 19 : index
    %c0_8 = arith.constant 0 : index
    %30 = vector.load %arg1[%c19, %c0_8] : memref<328x1xf32, #tpu.memory_space<vmem>>, vector<128x1xf32>
    %31 = vector.broadcast %30 : vector<128x1xf32> to vector<128x32xf32>
    %32 = vector.broadcast %5 : vector<1x32xf32> to vector<128x32xf32>
    %33 = arith.mulf %31, %32 : vector<128x32xf32>
    %34 = arith.addf %29, %33 : vector<128x32xf32>
    %c20 = arith.constant 20 : index
    %c0_9 = arith.constant 0 : index
    %35 = vector.load %arg1[%c20, %c0_9] : memref<328x1xf32, #tpu.memory_space<vmem>>, vector<128x1xf32>
    %36 = vector.broadcast %35 : vector<128x1xf32> to vector<128x32xf32>
    %37 = vector.broadcast %6 : vector<1x32xf32> to vector<128x32xf32>
    %38 = arith.mulf %36, %37 : vector<128x32xf32>
    %39 = arith.addf %34, %38 : vector<128x32xf32>
    %c36 = arith.constant 36 : index
    %c0_10 = arith.constant 0 : index
    %40 = vector.load %arg1[%c36, %c0_10] : memref<328x1xf32, #tpu.memory_space<vmem>>, vector<128x1xf32>
    %41 = vector.broadcast %40 : vector<128x1xf32> to vector<128x32xf32>
    %42 = vector.broadcast %7 : vector<1x32xf32> to vector<128x32xf32>
    %43 = arith.mulf %41, %42 : vector<128x32xf32>
    %44 = arith.addf %39, %43 : vector<128x32xf32>
    %c37 = arith.constant 37 : index
    %c0_11 = arith.constant 0 : index
    %45 = vector.load %arg1[%c37, %c0_11] : memref<328x1xf32, #tpu.memory_space<vmem>>, vector<128x1xf32>
    %46 = vector.broadcast %45 : vector<128x1xf32> to vector<128x32xf32>
    %47 = vector.broadcast %8 : vector<1x32xf32> to vector<128x32xf32>
    %48 = arith.mulf %46, %47 : vector<128x32xf32>
    %49 = arith.addf %44, %48 : vector<128x32xf32>
    %c38 = arith.constant 38 : index
    %c0_12 = arith.constant 0 : index
    %50 = vector.load %arg1[%c38, %c0_12] : memref<328x1xf32, #tpu.memory_space<vmem>>, vector<128x1xf32>
    %51 = vector.broadcast %50 : vector<128x1xf32> to vector<128x32xf32>
    %52 = vector.broadcast %9 : vector<1x32xf32> to vector<128x32xf32>
    %53 = arith.mulf %51, %52 : vector<128x32xf32>
    %54 = arith.addf %49, %53 : vector<128x32xf32>
    %55 = vector.broadcast %10 : vector<1x32xf32> to vector<128x32xf32>
    %56 = arith.addf %54, %55 : vector<128x32xf32>
    %cst = arith.constant 0.000000e+00 : f32
    %57 = vector.broadcast %cst : f32 to vector<128x32xf32>
    %58 = arith.maximumf %56, %57 : vector<128x32xf32>
    %c0_13 = arith.constant 0 : index
    %c0_14 = arith.constant 0 : index
    %59 = vector.load %arg17[%c0_13, %c0_14] : memref<286x32xf32, #tpu.memory_space<vmem>>, vector<128x32xf32>
    tpu.vector_store %arg17[%c0_13, %c0_14], %58 {strides = array<i32>} : memref<286x32xf32, #tpu.memory_space<vmem>>, vector<128x32xf32>,
    %c128 = arith.constant 128 : index
    %c0_15 = arith.constant 0 : index
    %60 = vector.load %arg1[%c128, %c0_15] : memref<328x1xf32, #tpu.memory_space<vmem>>, vector<128x1xf32>
    %61 = vector.broadcast %60 : vector<128x1xf32> to vector<128x32xf32>
    %62 = vector.broadcast %1 : vector<1x32xf32> to vector<128x32xf32>
    %63 = arith.mulf %61, %62 : vector<128x32xf32>
    %c129 = arith.constant 129 : index
    %c0_16 = arith.constant 0 : index
    %64 = vector.load %arg1[%c129, %c0_16] : memref<328x1xf32, #tpu.memory_space<vmem>>, vector<128x1xf32>
    %65 = vector.broadcast %64 : vector<128x1xf32> to vector<128x32xf32>
    %66 = vector.broadcast %2 : vector<1x32xf32> to vector<128x32xf32>
    %67 = arith.mulf %65, %66 : vector<128x32xf32>
    %68 = arith.addf %63, %67 : vector<128x32xf32>
    %c130 = arith.constant 130 : index
    %c0_17 = arith.constant 0 : index
    %69 = vector.load %arg1[%c130, %c0_17] : memref<328x1xf32, #tpu.memory_space<vmem>>, vector<128x1xf32>
    %70 = vector.broadcast %69 : vector<128x1xf32> to vector<128x32xf32>
    %71 = vector.broadcast %3 : vector<1x32xf32> to vector<128x32xf32>
    %72 = arith.mulf %70, %71 : vector<128x32xf32>
    %73 = arith.addf %68, %72 : vector<128x32xf32>
    %c146 = arith.constant 146 : index
    %c0_18 = arith.constant 0 : index
    %74 = vector.load %arg1[%c146, %c0_18] : memref<328x1xf32, #tpu.memory_space<vmem>>, vector<128x1xf32>
    %75 = vector.broadcast %74 : vector<128x1xf32> to vector<128x32xf32>
    %76 = vector.broadcast %4 : vector<1x32xf32> to vector<128x32xf32>
    %77 = arith.mulf %75, %76 : vector<128x32xf32>
    %78 = arith.addf %73, %77 : vector<128x32xf32>
    %c147 = arith.constant 147 : index
    %c0_19 = arith.constant 0 : index
    %79 = vector.load %arg1[%c147, %c0_19] : memref<328x1xf32, #tpu.memory_space<vmem>>, vector<128x1xf32>
    %80 = vector.broadcast %79 : vector<128x1xf32> to vector<128x32xf32>
    %81 = vector.broadcast %5 : vector<1x32xf32> to vector<128x32xf32>
    %82 = arith.mulf %80, %81 : vector<128x32xf32>
    %83 = arith.addf %78, %82 : vector<128x32xf32>
    %c148 = arith.constant 148 : index
    %c0_20 = arith.constant 0 : index
    %84 = vector.load %arg1[%c148, %c0_20] : memref<328x1xf32, #tpu.memory_space<vmem>>, vector<128x1xf32>
    %85 = vector.broadcast %84 : vector<128x1xf32> to vector<128x32xf32>
    %86 = vector.broadcast %6 : vector<1x32xf32> to vector<128x32xf32>
    %87 = arith.mulf %85, %86 : vector<128x32xf32>
    %88 = arith.addf %83, %87 : vector<128x32xf32>
    %c164 = arith.constant 164 : index
    %c0_21 = arith.constant 0 : index
    %89 = vector.load %arg1[%c164, %c0_21] : memref<328x1xf32, #tpu.memory_space<vmem>>, vector<128x1xf32>
    %90 = vector.broadcast %89 : vector<128x1xf32> to vector<128x32xf32>
    %91 = vector.broadcast %7 : vector<1x32xf32> to vector<128x32xf32>
    %92 = arith.mulf %90, %91 : vector<128x32xf32>
    %93 = arith.addf %88, %92 : vector<128x32xf32>
    %c165 = arith.constant 165 : index
    %c0_22 = arith.constant 0 : index
    %94 = vector.load %arg1[%c165, %c0_22] : memref<328x1xf32, #tpu.memory_space<vmem>>, vector<128x1xf32>
    %95 = vector.broadcast %94 : vector<128x1xf32> to vector<128x32xf32>
    %96 = vector.broadcast %8 : vector<1x32xf32> to vector<128x32xf32>
    %97 = arith.mulf %95, %96 : vector<128x32xf32>
    %98 = arith.addf %93, %97 : vector<128x32xf32>
    %c166 = arith.constant 166 : index
    %c0_23 = arith.constant 0 : index
    %99 = vector.load %arg1[%c166, %c0_23] : memref<328x1xf32, #tpu.memory_space<vmem>>, vector<128x1xf32>
    %100 = vector.broadcast %99 : vector<128x1xf32> to vector<128x32xf32>
    %101 = vector.broadcast %9 : vector<1x32xf32> to vector<128x32xf32>
    %102 = arith.mulf %100, %101 : vector<128x32xf32>
    %103 = arith.addf %98, %102 : vector<128x32xf32>
    %104 = vector.broadcast %10 : vector<1x32xf32> to vector<128x32xf32>
    %105 = arith.addf %103, %104 : vector<128x32xf32>
    %cst_24 = arith.constant 0.000000e+00 : f32
    %106 = vector.broadcast %cst_24 : f32 to vector<128x32xf32>
    %107 = arith.maximumf %105, %106 : vector<128x32xf32>
    %c128_25 = arith.constant 128 : index
    %c0_26 = arith.constant 0 : index
    %108 = vector.load %arg17[%c128_25, %c0_26] : memref<286x32xf32, #tpu.memory_space<vmem>>, vector<128x32xf32>
    tpu.vector_store %arg17[%c128_25, %c0_26], %107 {strides = array<i32>} : memref<286x32xf32, #tpu.memory_space<vmem>>, vector<128x32xf32>,
    %c256 = arith.constant 256 : index
    %c0_27 = arith.constant 0 : index
    %109 = vector.load %arg1[%c256, %c0_27] : memref<328x1xf32, #tpu.memory_space<vmem>>, vector<30x1xf32>
    %110 = vector.broadcast %109 : vector<30x1xf32> to vector<30x32xf32>
    %111 = vector.broadcast %1 : vector<1x32xf32> to vector<30x32xf32>
    %112 = arith.mulf %110, %111 : vector<30x32xf32>
    %c257 = arith.constant 257 : index
    %c0_28 = arith.constant 0 : index
    %113 = vector.load %arg1[%c257, %c0_28] : memref<328x1xf32, #tpu.memory_space<vmem>>, vector<30x1xf32>
    %114 = vector.broadcast %113 : vector<30x1xf32> to vector<30x32xf32>
    %115 = vector.broadcast %2 : vector<1x32xf32> to vector<30x32xf32>
    %116 = arith.mulf %114, %115 : vector<30x32xf32>
    %117 = arith.addf %112, %116 : vector<30x32xf32>
    %c258 = arith.constant 258 : index
    %c0_29 = arith.constant 0 : index
    %118 = vector.load %arg1[%c258, %c0_29] : memref<328x1xf32, #tpu.memory_space<vmem>>, vector<30x1xf32>
    %119 = vector.broadcast %118 : vector<30x1xf32> to vector<30x32xf32>
    %120 = vector.broadcast %3 : vector<1x32xf32> to vector<30x32xf32>
    %121 = arith.mulf %119, %120 : vector<30x32xf32>
    %122 = arith.addf %117, %121 : vector<30x32xf32>
    %c274 = arith.constant 274 : index
    %c0_30 = arith.constant 0 : index
    %123 = vector.load %arg1[%c274, %c0_30] : memref<328x1xf32, #tpu.memory_space<vmem>>, vector<30x1xf32>
    %124 = vector.broadcast %123 : vector<30x1xf32> to vector<30x32xf32>
    %125 = vector.broadcast %4 : vector<1x32xf32> to vector<30x32xf32>
    %126 = arith.mulf %124, %125 : vector<30x32xf32>
    %127 = arith.addf %122, %126 : vector<30x32xf32>
    %c275 = arith.constant 275 : index
    %c0_31 = arith.constant 0 : index
    %128 = vector.load %arg1[%c275, %c0_31] : memref<328x1xf32, #tpu.memory_space<vmem>>, vector<30x1xf32>
    %129 = vector.broadcast %128 : vector<30x1xf32> to vector<30x32xf32>
    %130 = vector.broadcast %5 : vector<1x32xf32> to vector<30x32xf32>
    %131 = arith.mulf %129, %130 : vector<30x32xf32>
    %132 = arith.addf %127, %131 : vector<30x32xf32>
    %c276 = arith.constant 276 : index
    %c0_32 = arith.constant 0 : index
    %133 = vector.load %arg1[%c276, %c0_32] : memref<328x1xf32, #tpu.memory_space<vmem>>, vector<30x1xf32>
    %134 = vector.broadcast %133 : vector<30x1xf32> to vector<30x32xf32>
    %135 = vector.broadcast %6 : vector<1x32xf32> to vector<30x32xf32>
    %136 = arith.mulf %134, %135 : vector<30x32xf32>
    %137 = arith.addf %132, %136 : vector<30x32xf32>
    %c292 = arith.constant 292 : index
    %c0_33 = arith.constant 0 : index
    %138 = vector.load %arg1[%c292, %c0_33] : memref<328x1xf32, #tpu.memory_space<vmem>>, vector<30x1xf32>
    %139 = vector.broadcast %138 : vector<30x1xf32> to vector<30x32xf32>
    %140 = vector.broadcast %7 : vector<1x32xf32> to vector<30x32xf32>
    %141 = arith.mulf %139, %140 : vector<30x32xf32>
    %142 = arith.addf %137, %141 : vector<30x32xf32>
    %c293 = arith.constant 293 : index
    %c0_34 = arith.constant 0 : index
    %143 = vector.load %arg1[%c293, %c0_34] : memref<328x1xf32, #tpu.memory_space<vmem>>, vector<30x1xf32>
    %144 = vector.broadcast %143 : vector<30x1xf32> to vector<30x32xf32>
    %145 = vector.broadcast %8 : vector<1x32xf32> to vector<30x32xf32>
    %146 = arith.mulf %144, %145 : vector<30x32xf32>
    %147 = arith.addf %142, %146 : vector<30x32xf32>
    %c294 = arith.constant 294 : index
    %c0_35 = arith.constant 0 : index
    %148 = vector.load %arg1[%c294, %c0_35] : memref<328x1xf32, #tpu.memory_space<vmem>>, vector<30x1xf32>
    %149 = vector.broadcast %148 : vector<30x1xf32> to vector<30x32xf32>
    %150 = vector.broadcast %9 : vector<1x32xf32> to vector<30x32xf32>
    %151 = arith.mulf %149, %150 : vector<30x32xf32>
    %152 = arith.addf %147, %151 : vector<30x32xf32>
    %153 = vector.broadcast %10 : vector<1x32xf32> to vector<30x32xf32>
    %154 = arith.addf %152, %153 : vector<30x32xf32>
    %cst_36 = arith.constant 0.000000e+00 : f32
    %155 = vector.broadcast %cst_36 : f32 to vector<30x32xf32>
    %156 = arith.maximumf %154, %155 : vector<30x32xf32>
    %c256_37 = arith.constant 256 : index
    %c0_38 = arith.constant 0 : index
    %157 = vector.load %arg17[%c256_37, %c0_38] : memref<286x32xf32, #tpu.memory_space<vmem>>, vector<30x32xf32>
    tpu.vector_store %arg17[%c256_37, %c0_38], %156 {strides = array<i32>} : memref<286x32xf32, #tpu.memory_space<vmem>>, vector<30x32xf32>,
    %cst_39 = arith.constant 0.000000e+00 : f32
    %158 = vector.broadcast %cst_39 : f32 to vector<100x32xf32>
    %c0_40 = arith.constant 0 : index
    %c0_41 = arith.constant 0 : index
    %159 = vector.load %arg21[%c0_40, %c0_41] : memref<100x32xf32, #tpu.memory_space<vmem>>, vector<100x32xf32>
    tpu.vector_store %arg21[%c0_40, %c0_41], %158 {strides = array<i32>} : memref<100x32xf32, #tpu.memory_space<vmem>>, vector<100x32xf32>,
    %c0_42 = arith.constant 0 : index
    %c0_43 = arith.constant 0 : index
    %160 = tpu.strided_load %arg17[%c0_42, %c0_43] {strides = array<i32: 2, 1>} : memref<286x32xf32, #tpu.memory_space<vmem>>, vector<8x32xf32>
    %c1_44 = arith.constant 1 : index
    %c0_45 = arith.constant 0 : index
    %161 = tpu.strided_load %arg17[%c1_44, %c0_45] {strides = array<i32: 2, 1>} : memref<286x32xf32, #tpu.memory_space<vmem>>, vector<8x32xf32>
    %c18_46 = arith.constant 18 : index
    %c0_47 = arith.constant 0 : index
    %162 = tpu.strided_load %arg17[%c18_46, %c0_47] {strides = array<i32: 2, 1>} : memref<286x32xf32, #tpu.memory_space<vmem>>, vector<8x32xf32>
    %c19_48 = arith.constant 19 : index
    %c0_49 = arith.constant 0 : index
    %163 = tpu.strided_load %arg17[%c19_48, %c0_49] {strides = array<i32: 2, 1>} : memref<286x32xf32, #tpu.memory_space<vmem>>, vector<8x32xf32>
    %164 = arith.maximumf %160, %161 : vector<8x32xf32>
    %165 = arith.maximumf %162, %163 : vector<8x32xf32>
    %166 = arith.maximumf %164, %165 : vector<8x32xf32>
    %c11 = arith.constant 11 : index
    %c0_50 = arith.constant 0 : index
    %167 = vector.load %arg21[%c11, %c0_50] : memref<100x32xf32, #tpu.memory_space<vmem>>, vector<8x32xf32>
    tpu.vector_store %arg21[%c11, %c0_50], %166 {strides = array<i32>} : memref<100x32xf32, #tpu.memory_space<vmem>>, vector<8x32xf32>,
    %c36_51 = arith.constant 36 : index
    %c0_52 = arith.constant 0 : index
    %168 = tpu.strided_load %arg17[%c36_51, %c0_52] {strides = array<i32: 2, 1>} : memref<286x32xf32, #tpu.memory_space<vmem>>, vector<8x32xf32>
    %c37_53 = arith.constant 37 : index
    %c0_54 = arith.constant 0 : index
    %169 = tpu.strided_load %arg17[%c37_53, %c0_54] {strides = array<i32: 2, 1>} : memref<286x32xf32, #tpu.memory_space<vmem>>, vector<8x32xf32>
    %c54 = arith.constant 54 : index
    %c0_55 = arith.constant 0 : index
    %170 = tpu.strided_load %arg17[%c54, %c0_55] {strides = array<i32: 2, 1>} : memref<286x32xf32, #tpu.memory_space<vmem>>, vector<8x32xf32>
    %c55 = arith.constant 55 : index
    %c0_56 = arith.constant 0 : index
    %171 = tpu.strided_load %arg17[%c55, %c0_56] {strides = array<i32: 2, 1>} : memref<286x32xf32, #tpu.memory_space<vmem>>, vector<8x32xf32>
    %172 = arith.maximumf %168, %169 : vector<8x32xf32>
    %173 = arith.maximumf %170, %171 : vector<8x32xf32>
    %174 = arith.maximumf %172, %173 : vector<8x32xf32>
    %c21 = arith.constant 21 : index
    %c0_57 = arith.constant 0 : index
    %175 = vector.load %arg21[%c21, %c0_57] : memref<100x32xf32, #tpu.memory_space<vmem>>, vector<8x32xf32>
    tpu.vector_store %arg21[%c21, %c0_57], %174 {strides = array<i32>} : memref<100x32xf32, #tpu.memory_space<vmem>>, vector<8x32xf32>,
    %c72 = arith.constant 72 : index
    %c0_58 = arith.constant 0 : index
    %176 = tpu.strided_load %arg17[%c72, %c0_58] {strides = array<i32: 2, 1>} : memref<286x32xf32, #tpu.memory_space<vmem>>, vector<8x32xf32>
    %c73 = arith.constant 73 : index
    %c0_59 = arith.constant 0 : index
    %177 = tpu.strided_load %arg17[%c73, %c0_59] {strides = array<i32: 2, 1>} : memref<286x32xf32, #tpu.memory_space<vmem>>, vector<8x32xf32>
    %c90 = arith.constant 90 : index
    %c0_60 = arith.constant 0 : index
    %178 = tpu.strided_load %arg17[%c90, %c0_60] {strides = array<i32: 2, 1>} : memref<286x32xf32, #tpu.memory_space<vmem>>, vector<8x32xf32>
    %c91 = arith.constant 91 : index
    %c0_61 = arith.constant 0 : index
    %179 = tpu.strided_load %arg17[%c91, %c0_61] {strides = array<i32: 2, 1>} : memref<286x32xf32, #tpu.memory_space<vmem>>, vector<8x32xf32>
    %180 = arith.maximumf %176, %177 : vector<8x32xf32>
    %181 = arith.maximumf %178, %179 : vector<8x32xf32>
    %182 = arith.maximumf %180, %181 : vector<8x32xf32>
    %c31 = arith.constant 31 : index
    %c0_62 = arith.constant 0 : index
    %183 = vector.load %arg21[%c31, %c0_62] : memref<100x32xf32, #tpu.memory_space<vmem>>, vector<8x32xf32>
    tpu.vector_store %arg21[%c31, %c0_62], %182 {strides = array<i32>} : memref<100x32xf32, #tpu.memory_space<vmem>>, vector<8x32xf32>,
    %c108 = arith.constant 108 : index
    %c0_63 = arith.constant 0 : index
    %184 = tpu.strided_load %arg17[%c108, %c0_63] {strides = array<i32: 2, 1>} : memref<286x32xf32, #tpu.memory_space<vmem>>, vector<8x32xf32>
    %c109 = arith.constant 109 : index
    %c0_64 = arith.constant 0 : index
    %185 = tpu.strided_load %arg17[%c109, %c0_64] {strides = array<i32: 2, 1>} : memref<286x32xf32, #tpu.memory_space<vmem>>, vector<8x32xf32>
    %c126 = arith.constant 126 : index
    %c0_65 = arith.constant 0 : index
    %186 = tpu.strided_load %arg17[%c126, %c0_65] {strides = array<i32: 2, 1>} : memref<286x32xf32, #tpu.memory_space<vmem>>, vector<8x32xf32>
    %c127 = arith.constant 127 : index
    %c0_66 = arith.constant 0 : index
    %187 = tpu.strided_load %arg17[%c127, %c0_66] {strides = array<i32: 2, 1>} : memref<286x32xf32, #tpu.memory_space<vmem>>, vector<8x32xf32>
    %188 = arith.maximumf %184, %185 : vector<8x32xf32>
    %189 = arith.maximumf %186, %187 : vector<8x32xf32>
    %190 = arith.maximumf %188, %189 : vector<8x32xf32>
    %c41 = arith.constant 41 : index
    %c0_67 = arith.constant 0 : index
    %191 = vector.load %arg21[%c41, %c0_67] : memref<100x32xf32, #tpu.memory_space<vmem>>, vector<8x32xf32>
    tpu.vector_store %arg21[%c41, %c0_67], %190 {strides = array<i32>} : memref<100x32xf32, #tpu.memory_space<vmem>>, vector<8x32xf32>,
    %c144 = arith.constant 144 : index
    %c0_68 = arith.constant 0 : index
    %192 = tpu.strided_load %arg17[%c144, %c0_68] {strides = array<i32: 2, 1>} : memref<286x32xf32, #tpu.memory_space<vmem>>, vector<8x32xf32>
    %c145 = arith.constant 145 : index
    %c0_69 = arith.constant 0 : index
    %193 = tpu.strided_load %arg17[%c145, %c0_69] {strides = array<i32: 2, 1>} : memref<286x32xf32, #tpu.memory_space<vmem>>, vector<8x32xf32>
    %c162 = arith.constant 162 : index
    %c0_70 = arith.constant 0 : index
    %194 = tpu.strided_load %arg17[%c162, %c0_70] {strides = array<i32: 2, 1>} : memref<286x32xf32, #tpu.memory_space<vmem>>, vector<8x32xf32>
    %c163 = arith.constant 163 : index
    %c0_71 = arith.constant 0 : index
    %195 = tpu.strided_load %arg17[%c163, %c0_71] {strides = array<i32: 2, 1>} : memref<286x32xf32, #tpu.memory_space<vmem>>, vector<8x32xf32>
    %196 = arith.maximumf %192, %193 : vector<8x32xf32>
    %197 = arith.maximumf %194, %195 : vector<8x32xf32>
    %198 = arith.maximumf %196, %197 : vector<8x32xf32>
    %c51 = arith.constant 51 : index
    %c0_72 = arith.constant 0 : index
    %199 = vector.load %arg21[%c51, %c0_72] : memref<100x32xf32, #tpu.memory_space<vmem>>, vector<8x32xf32>
    tpu.vector_store %arg21[%c51, %c0_72], %198 {strides = array<i32>} : memref<100x32xf32, #tpu.memory_space<vmem>>, vector<8x32xf32>,
    %c180 = arith.constant 180 : index
    %c0_73 = arith.constant 0 : index
    %200 = tpu.strided_load %arg17[%c180, %c0_73] {strides = array<i32: 2, 1>} : memref<286x32xf32, #tpu.memory_space<vmem>>, vector<8x32xf32>
    %c181 = arith.constant 181 : index
    %c0_74 = arith.constant 0 : index
    %201 = tpu.strided_load %arg17[%c181, %c0_74] {strides = array<i32: 2, 1>} : memref<286x32xf32, #tpu.memory_space<vmem>>, vector<8x32xf32>
    %c198 = arith.constant 198 : index
    %c0_75 = arith.constant 0 : index
    %202 = tpu.strided_load %arg17[%c198, %c0_75] {strides = array<i32: 2, 1>} : memref<286x32xf32, #tpu.memory_space<vmem>>, vector<8x32xf32>
    %c199 = arith.constant 199 : index
    %c0_76 = arith.constant 0 : index
    %203 = tpu.strided_load %arg17[%c199, %c0_76] {strides = array<i32: 2, 1>} : memref<286x32xf32, #tpu.memory_space<vmem>>, vector<8x32xf32>
    %204 = arith.maximumf %200, %201 : vector<8x32xf32>
    %205 = arith.maximumf %202, %203 : vector<8x32xf32>
    %206 = arith.maximumf %204, %205 : vector<8x32xf32>
    %c61 = arith.constant 61 : index
    %c0_77 = arith.constant 0 : index
    %207 = vector.load %arg21[%c61, %c0_77] : memref<100x32xf32, #tpu.memory_space<vmem>>, vector<8x32xf32>
    tpu.vector_store %arg21[%c61, %c0_77], %206 {strides = array<i32>} : memref<100x32xf32, #tpu.memory_space<vmem>>, vector<8x32xf32>,
    %c216 = arith.constant 216 : index
    %c0_78 = arith.constant 0 : index
    %208 = tpu.strided_load %arg17[%c216, %c0_78] {strides = array<i32: 2, 1>} : memref<286x32xf32, #tpu.memory_space<vmem>>, vector<8x32xf32>
    %c217 = arith.constant 217 : index
    %c0_79 = arith.constant 0 : index
    %209 = tpu.strided_load %arg17[%c217, %c0_79] {strides = array<i32: 2, 1>} : memref<286x32xf32, #tpu.memory_space<vmem>>, vector<8x32xf32>
    %c234 = arith.constant 234 : index
    %c0_80 = arith.constant 0 : index
    %210 = tpu.strided_load %arg17[%c234, %c0_80] {strides = array<i32: 2, 1>} : memref<286x32xf32, #tpu.memory_space<vmem>>, vector<8x32xf32>
    %c235 = arith.constant 235 : index
    %c0_81 = arith.constant 0 : index
    %211 = tpu.strided_load %arg17[%c235, %c0_81] {strides = array<i32: 2, 1>} : memref<286x32xf32, #tpu.memory_space<vmem>>, vector<8x32xf32>
    %212 = arith.maximumf %208, %209 : vector<8x32xf32>
    %213 = arith.maximumf %210, %211 : vector<8x32xf32>
    %214 = arith.maximumf %212, %213 : vector<8x32xf32>
    %c71 = arith.constant 71 : index
    %c0_82 = arith.constant 0 : index
    %215 = vector.load %arg21[%c71, %c0_82] : memref<100x32xf32, #tpu.memory_space<vmem>>, vector<8x32xf32>
    tpu.vector_store %arg21[%c71, %c0_82], %214 {strides = array<i32>} : memref<100x32xf32, #tpu.memory_space<vmem>>, vector<8x32xf32>,
    %c252 = arith.constant 252 : index
    %c0_83 = arith.constant 0 : index
    %216 = tpu.strided_load %arg17[%c252, %c0_83] {strides = array<i32: 2, 1>} : memref<286x32xf32, #tpu.memory_space<vmem>>, vector<8x32xf32>
    %c253 = arith.constant 253 : index
    %c0_84 = arith.constant 0 : index
    %217 = tpu.strided_load %arg17[%c253, %c0_84] {strides = array<i32: 2, 1>} : memref<286x32xf32, #tpu.memory_space<vmem>>, vector<8x32xf32>
    %c270 = arith.constant 270 : index
    %c0_85 = arith.constant 0 : index
    %218 = tpu.strided_load %arg17[%c270, %c0_85] {strides = array<i32: 2, 1>} : memref<286x32xf32, #tpu.memory_space<vmem>>, vector<8x32xf32>
    %c271 = arith.constant 271 : index
    %c0_86 = arith.constant 0 : index
    %219 = tpu.strided_load %arg17[%c271, %c0_86] {strides = array<i32: 2, 1>} : memref<286x32xf32, #tpu.memory_space<vmem>>, vector<8x32xf32>
    %220 = arith.maximumf %216, %217 : vector<8x32xf32>
    %221 = arith.maximumf %218, %219 : vector<8x32xf32>
    %222 = arith.maximumf %220, %221 : vector<8x32xf32>
    %c81 = arith.constant 81 : index
    %c0_87 = arith.constant 0 : index
    %223 = vector.load %arg21[%c81, %c0_87] : memref<100x32xf32, #tpu.memory_space<vmem>>, vector<8x32xf32>
    tpu.vector_store %arg21[%c81, %c0_87], %222 {strides = array<i32>} : memref<100x32xf32, #tpu.memory_space<vmem>>, vector<8x32xf32>,
    %c0_88 = arith.constant 0 : index
    %c0_89 = arith.constant 0 : index
    %224 = vector.load %arg21[%c0_88, %c0_89] : memref<100x32xf32, #tpu.memory_space<vmem>>, vector<100x32xf32>
    %225 = arith.truncf %224 : vector<100x32xf32> to vector<100x32xbf16>
    %c0_90 = arith.constant 0 : index
    %c0_91 = arith.constant 0 : index
    %226 = vector.load %arg24[%c0_90, %c0_91] : memref<100x32xbf16, #tpu.memory_space<vmem>>, vector<100x32xbf16>
    tpu.vector_store %arg24[%c0_90, %c0_91], %225 {strides = array<i32>} : memref<100x32xbf16, #tpu.memory_space<vmem>>, vector<100x32xbf16>,
    %c0_92 = arith.constant 0 : index
    %c0_93 = arith.constant 0 : index
    %227 = vector.load %arg7[%c0_92, %c0_93] : memref<1x64xf32, #tpu.memory_space<vmem>>, vector<1x64xf32>
    %c0_94 = arith.constant 0 : index
    %c0_95 = arith.constant 0 : index
    %228 = vector.load %arg24[%c0_94, %c0_95] : memref<100x32xbf16, #tpu.memory_space<vmem>>, vector<78x32xbf16>
    %c0_96 = arith.constant 0 : index
    %c0_97 = arith.constant 0 : index
    %229 = vector.load %arg3[%c0_96, %c0_97] : memref<288x64xbf16, #tpu.memory_space<vmem>>, vector<32x64xbf16>
    %cst_98 = arith.constant dense<0.000000e+00> : vector<78x64xf32>
    %230 = tpu.matmul %228, %229, %cst_98 {dimension_numbers = #tpu.dot_dimension_numbers<[1], [0], [0], [1], [0, 0, 1, 1], [], []>} : vector<78x32xbf16>, vector<32x64xbf16>, vector<78x64xf32> -> vector<78x64xf32>
    %c1_99 = arith.constant 1 : index
    %c0_100 = arith.constant 0 : index
    %231 = vector.load %arg24[%c1_99, %c0_100] : memref<100x32xbf16, #tpu.memory_space<vmem>>, vector<78x32xbf16>
    %c32 = arith.constant 32 : index
    %c0_101 = arith.constant 0 : index
    %232 = vector.load %arg3[%c32, %c0_101] : memref<288x64xbf16, #tpu.memory_space<vmem>>, vector<32x64xbf16>
    %cst_102 = arith.constant dense<0.000000e+00> : vector<78x64xf32>
    %233 = tpu.matmul %231, %232, %cst_102 {dimension_numbers = #tpu.dot_dimension_numbers<[1], [0], [0], [1], [0, 0, 1, 1], [], []>} : vector<78x32xbf16>, vector<32x64xbf16>, vector<78x64xf32> -> vector<78x64xf32>
    %234 = arith.addf %230, %233 : vector<78x64xf32>
    %c2_103 = arith.constant 2 : index
    %c0_104 = arith.constant 0 : index
    %235 = vector.load %arg24[%c2_103, %c0_104] : memref<100x32xbf16, #tpu.memory_space<vmem>>, vector<78x32xbf16>
    %c64 = arith.constant 64 : index
    %c0_105 = arith.constant 0 : index
    %236 = vector.load %arg3[%c64, %c0_105] : memref<288x64xbf16, #tpu.memory_space<vmem>>, vector<32x64xbf16>
    %cst_106 = arith.constant dense<0.000000e+00> : vector<78x64xf32>
    %237 = tpu.matmul %235, %236, %cst_106 {dimension_numbers = #tpu.dot_dimension_numbers<[1], [0], [0], [1], [0, 0, 1, 1], [], []>} : vector<78x32xbf16>, vector<32x64xbf16>, vector<78x64xf32> -> vector<78x64xf32>
    %238 = arith.addf %234, %237 : vector<78x64xf32>
    %c10 = arith.constant 10 : index
    %c0_107 = arith.constant 0 : index
    %239 = vector.load %arg24[%c10, %c0_107] : memref<100x32xbf16, #tpu.memory_space<vmem>>, vector<78x32xbf16>
    %c96 = arith.constant 96 : index
    %c0_108 = arith.constant 0 : index
    %240 = vector.load %arg3[%c96, %c0_108] : memref<288x64xbf16, #tpu.memory_space<vmem>>, vector<32x64xbf16>
    %cst_109 = arith.constant dense<0.000000e+00> : vector<78x64xf32>
    %241 = tpu.matmul %239, %240, %cst_109 {dimension_numbers = #tpu.dot_dimension_numbers<[1], [0], [0], [1], [0, 0, 1, 1], [], []>} : vector<78x32xbf16>, vector<32x64xbf16>, vector<78x64xf32> -> vector<78x64xf32>
    %242 = arith.addf %238, %241 : vector<78x64xf32>
    %c11_110 = arith.constant 11 : index
    %c0_111 = arith.constant 0 : index
    %243 = vector.load %arg24[%c11_110, %c0_111] : memref<100x32xbf16, #tpu.memory_space<vmem>>, vector<78x32xbf16>
    %c128_112 = arith.constant 128 : index
    %c0_113 = arith.constant 0 : index
    %244 = vector.load %arg3[%c128_112, %c0_113] : memref<288x64xbf16, #tpu.memory_space<vmem>>, vector<32x64xbf16>
    %cst_114 = arith.constant dense<0.000000e+00> : vector<78x64xf32>
    %245 = tpu.matmul %243, %244, %cst_114 {dimension_numbers = #tpu.dot_dimension_numbers<[1], [0], [0], [1], [0, 0, 1, 1], [], []>} : vector<78x32xbf16>, vector<32x64xbf16>, vector<78x64xf32> -> vector<78x64xf32>
    %246 = arith.addf %242, %245 : vector<78x64xf32>
    %c12 = arith.constant 12 : index
    %c0_115 = arith.constant 0 : index
    %247 = vector.load %arg24[%c12, %c0_115] : memref<100x32xbf16, #tpu.memory_space<vmem>>, vector<78x32xbf16>
    %c160 = arith.constant 160 : index
    %c0_116 = arith.constant 0 : index
    %248 = vector.load %arg3[%c160, %c0_116] : memref<288x64xbf16, #tpu.memory_space<vmem>>, vector<32x64xbf16>
    %cst_117 = arith.constant dense<0.000000e+00> : vector<78x64xf32>
    %249 = tpu.matmul %247, %248, %cst_117 {dimension_numbers = #tpu.dot_dimension_numbers<[1], [0], [0], [1], [0, 0, 1, 1], [], []>} : vector<78x32xbf16>, vector<32x64xbf16>, vector<78x64xf32> -> vector<78x64xf32>
    %250 = arith.addf %246, %249 : vector<78x64xf32>
    %c20_118 = arith.constant 20 : index
    %c0_119 = arith.constant 0 : index
    %251 = vector.load %arg24[%c20_118, %c0_119] : memref<100x32xbf16, #tpu.memory_space<vmem>>, vector<78x32xbf16>
    %c192 = arith.constant 192 : index
    %c0_120 = arith.constant 0 : index
    %252 = vector.load %arg3[%c192, %c0_120] : memref<288x64xbf16, #tpu.memory_space<vmem>>, vector<32x64xbf16>
    %cst_121 = arith.constant dense<0.000000e+00> : vector<78x64xf32>
    %253 = tpu.matmul %251, %252, %cst_121 {dimension_numbers = #tpu.dot_dimension_numbers<[1], [0], [0], [1], [0, 0, 1, 1], [], []>} : vector<78x32xbf16>, vector<32x64xbf16>, vector<78x64xf32> -> vector<78x64xf32>
    %254 = arith.addf %250, %253 : vector<78x64xf32>
    %c21_122 = arith.constant 21 : index
    %c0_123 = arith.constant 0 : index
    %255 = vector.load %arg24[%c21_122, %c0_123] : memref<100x32xbf16, #tpu.memory_space<vmem>>, vector<78x32xbf16>
    %c224 = arith.constant 224 : index
    %c0_124 = arith.constant 0 : index
    %256 = vector.load %arg3[%c224, %c0_124] : memref<288x64xbf16, #tpu.memory_space<vmem>>, vector<32x64xbf16>
    %cst_125 = arith.constant dense<0.000000e+00> : vector<78x64xf32>
    %257 = tpu.matmul %255, %256, %cst_125 {dimension_numbers = #tpu.dot_dimension_numbers<[1], [0], [0], [1], [0, 0, 1, 1], [], []>} : vector<78x32xbf16>, vector<32x64xbf16>, vector<78x64xf32> -> vector<78x64xf32>
    %258 = arith.addf %254, %257 : vector<78x64xf32>
    %c22 = arith.constant 22 : index
    %c0_126 = arith.constant 0 : index
    %259 = vector.load %arg24[%c22, %c0_126] : memref<100x32xbf16, #tpu.memory_space<vmem>>, vector<78x32xbf16>
    %c256_127 = arith.constant 256 : index
    %c0_128 = arith.constant 0 : index
    %260 = vector.load %arg3[%c256_127, %c0_128] : memref<288x64xbf16, #tpu.memory_space<vmem>>, vector<32x64xbf16>
    %cst_129 = arith.constant dense<0.000000e+00> : vector<78x64xf32>
    %261 = tpu.matmul %259, %260, %cst_129 {dimension_numbers = #tpu.dot_dimension_numbers<[1], [0], [0], [1], [0, 0, 1, 1], [], []>} : vector<78x32xbf16>, vector<32x64xbf16>, vector<78x64xf32> -> vector<78x64xf32>
    %262 = arith.addf %258, %261 : vector<78x64xf32>
    %263 = vector.broadcast %227 : vector<1x64xf32> to vector<78x64xf32>
    %264 = arith.addf %262, %263 : vector<78x64xf32>
    %cst_130 = arith.constant 0.000000e+00 : f32
    %265 = vector.broadcast %cst_130 : f32 to vector<78x64xf32>
    %266 = arith.maximumf %264, %265 : vector<78x64xf32>
    %c0_131 = arith.constant 0 : index
    %c0_132 = arith.constant 0 : index
    %267 = vector.load %arg18[%c0_131, %c0_132] : memref<78x64xf32, #tpu.memory_space<vmem>>, vector<78x64xf32>
    tpu.vector_store %arg18[%c0_131, %c0_132], %266 {strides = array<i32>} : memref<78x64xf32, #tpu.memory_space<vmem>>, vector<78x64xf32>,
    %cst_133 = arith.constant 0.000000e+00 : f32
    %268 = vector.broadcast %cst_133 : f32 to vector<36x64xf32>
    %c0_134 = arith.constant 0 : index
    %c0_135 = arith.constant 0 : index
    %269 = vector.load %arg22[%c0_134, %c0_135] : memref<36x64xf32, #tpu.memory_space<vmem>>, vector<36x64xf32>
    tpu.vector_store %arg22[%c0_134, %c0_135], %268 {strides = array<i32>} : memref<36x64xf32, #tpu.memory_space<vmem>>, vector<36x64xf32>,
    %c0_136 = arith.constant 0 : index
    %c0_137 = arith.constant 0 : index
    %270 = tpu.strided_load %arg18[%c0_136, %c0_137] {strides = array<i32: 2, 1>} : memref<78x64xf32, #tpu.memory_space<vmem>>, vector<4x64xf32>
    %c1_138 = arith.constant 1 : index
    %c0_139 = arith.constant 0 : index
    %271 = tpu.strided_load %arg18[%c1_138, %c0_139] {strides = array<i32: 2, 1>} : memref<78x64xf32, #tpu.memory_space<vmem>>, vector<4x64xf32>
    %c10_140 = arith.constant 10 : index
    %c0_141 = arith.constant 0 : index
    %272 = tpu.strided_load %arg18[%c10_140, %c0_141] {strides = array<i32: 2, 1>} : memref<78x64xf32, #tpu.memory_space<vmem>>, vector<4x64xf32>
    %c11_142 = arith.constant 11 : index
    %c0_143 = arith.constant 0 : index
    %273 = tpu.strided_load %arg18[%c11_142, %c0_143] {strides = array<i32: 2, 1>} : memref<78x64xf32, #tpu.memory_space<vmem>>, vector<4x64xf32>
    %274 = arith.maximumf %270, %271 : vector<4x64xf32>
    %275 = arith.maximumf %272, %273 : vector<4x64xf32>
    %276 = arith.maximumf %274, %275 : vector<4x64xf32>
    %c7 = arith.constant 7 : index
    %c0_144 = arith.constant 0 : index
    %277 = vector.load %arg22[%c7, %c0_144] : memref<36x64xf32, #tpu.memory_space<vmem>>, vector<4x64xf32>
    tpu.vector_store %arg22[%c7, %c0_144], %276 {strides = array<i32>} : memref<36x64xf32, #tpu.memory_space<vmem>>, vector<4x64xf32>,
    %c20_145 = arith.constant 20 : index
    %c0_146 = arith.constant 0 : index
    %278 = tpu.strided_load %arg18[%c20_145, %c0_146] {strides = array<i32: 2, 1>} : memref<78x64xf32, #tpu.memory_space<vmem>>, vector<4x64xf32>
    %c21_147 = arith.constant 21 : index
    %c0_148 = arith.constant 0 : index
    %279 = tpu.strided_load %arg18[%c21_147, %c0_148] {strides = array<i32: 2, 1>} : memref<78x64xf32, #tpu.memory_space<vmem>>, vector<4x64xf32>
    %c30 = arith.constant 30 : index
    %c0_149 = arith.constant 0 : index
    %280 = tpu.strided_load %arg18[%c30, %c0_149] {strides = array<i32: 2, 1>} : memref<78x64xf32, #tpu.memory_space<vmem>>, vector<4x64xf32>
    %c31_150 = arith.constant 31 : index
    %c0_151 = arith.constant 0 : index
    %281 = tpu.strided_load %arg18[%c31_150, %c0_151] {strides = array<i32: 2, 1>} : memref<78x64xf32, #tpu.memory_space<vmem>>, vector<4x64xf32>
    %282 = arith.maximumf %278, %279 : vector<4x64xf32>
    %283 = arith.maximumf %280, %281 : vector<4x64xf32>
    %284 = arith.maximumf %282, %283 : vector<4x64xf32>
    %c13 = arith.constant 13 : index
    %c0_152 = arith.constant 0 : index
    %285 = vector.load %arg22[%c13, %c0_152] : memref<36x64xf32, #tpu.memory_space<vmem>>, vector<4x64xf32>
    tpu.vector_store %arg22[%c13, %c0_152], %284 {strides = array<i32>} : memref<36x64xf32, #tpu.memory_space<vmem>>, vector<4x64xf32>,
    %c40 = arith.constant 40 : index
    %c0_153 = arith.constant 0 : index
    %286 = tpu.strided_load %arg18[%c40, %c0_153] {strides = array<i32: 2, 1>} : memref<78x64xf32, #tpu.memory_space<vmem>>, vector<4x64xf32>
    %c41_154 = arith.constant 41 : index
    %c0_155 = arith.constant 0 : index
    %287 = tpu.strided_load %arg18[%c41_154, %c0_155] {strides = array<i32: 2, 1>} : memref<78x64xf32, #tpu.memory_space<vmem>>, vector<4x64xf32>
    %c50 = arith.constant 50 : index
    %c0_156 = arith.constant 0 : index
    %288 = tpu.strided_load %arg18[%c50, %c0_156] {strides = array<i32: 2, 1>} : memref<78x64xf32, #tpu.memory_space<vmem>>, vector<4x64xf32>
    %c51_157 = arith.constant 51 : index
    %c0_158 = arith.constant 0 : index
    %289 = tpu.strided_load %arg18[%c51_157, %c0_158] {strides = array<i32: 2, 1>} : memref<78x64xf32, #tpu.memory_space<vmem>>, vector<4x64xf32>
    %290 = arith.maximumf %286, %287 : vector<4x64xf32>
    %291 = arith.maximumf %288, %289 : vector<4x64xf32>
    %292 = arith.maximumf %290, %291 : vector<4x64xf32>
    %c19_159 = arith.constant 19 : index
    %c0_160 = arith.constant 0 : index
    %293 = vector.load %arg22[%c19_159, %c0_160] : memref<36x64xf32, #tpu.memory_space<vmem>>, vector<4x64xf32>
    tpu.vector_store %arg22[%c19_159, %c0_160], %292 {strides = array<i32>} : memref<36x64xf32, #tpu.memory_space<vmem>>, vector<4x64xf32>,
    %c60 = arith.constant 60 : index
    %c0_161 = arith.constant 0 : index
    %294 = tpu.strided_load %arg18[%c60, %c0_161] {strides = array<i32: 2, 1>} : memref<78x64xf32, #tpu.memory_space<vmem>>, vector<4x64xf32>
    %c61_162 = arith.constant 61 : index
    %c0_163 = arith.constant 0 : index
    %295 = tpu.strided_load %arg18[%c61_162, %c0_163] {strides = array<i32: 2, 1>} : memref<78x64xf32, #tpu.memory_space<vmem>>, vector<4x64xf32>
    %c70 = arith.constant 70 : index
    %c0_164 = arith.constant 0 : index
    %296 = tpu.strided_load %arg18[%c70, %c0_164] {strides = array<i32: 2, 1>} : memref<78x64xf32, #tpu.memory_space<vmem>>, vector<4x64xf32>
    %c71_165 = arith.constant 71 : index
    %c0_166 = arith.constant 0 : index
    %297 = tpu.strided_load %arg18[%c71_165, %c0_166] {strides = array<i32: 2, 1>} : memref<78x64xf32, #tpu.memory_space<vmem>>, vector<4x64xf32>
    %298 = arith.maximumf %294, %295 : vector<4x64xf32>
    %299 = arith.maximumf %296, %297 : vector<4x64xf32>
    %300 = arith.maximumf %298, %299 : vector<4x64xf32>
    %c25 = arith.constant 25 : index
    %c0_167 = arith.constant 0 : index
    %301 = vector.load %arg22[%c25, %c0_167] : memref<36x64xf32, #tpu.memory_space<vmem>>, vector<4x64xf32>
    tpu.vector_store %arg22[%c25, %c0_167], %300 {strides = array<i32>} : memref<36x64xf32, #tpu.memory_space<vmem>>, vector<4x64xf32>,
    %c0_168 = arith.constant 0 : index
    %c0_169 = arith.constant 0 : index
    %302 = vector.load %arg22[%c0_168, %c0_169] : memref<36x64xf32, #tpu.memory_space<vmem>>, vector<36x64xf32>
    %303 = arith.truncf %302 : vector<36x64xf32> to vector<36x64xbf16>
    %c0_170 = arith.constant 0 : index
    %c0_171 = arith.constant 0 : index
    %304 = vector.load %arg25[%c0_170, %c0_171] : memref<36x64xbf16, #tpu.memory_space<vmem>>, vector<36x64xbf16>
    tpu.vector_store %arg25[%c0_170, %c0_171], %303 {strides = array<i32>} : memref<36x64xbf16, #tpu.memory_space<vmem>>, vector<36x64xbf16>,
    %c0_172 = arith.constant 0 : index
    %c0_173 = arith.constant 0 : index
    %305 = vector.load %arg8[%c0_172, %c0_173] : memref<1x128xf32, #tpu.memory_space<vmem>>, vector<1x128xf32>
    %c0_174 = arith.constant 0 : index
    %c0_175 = arith.constant 0 : index
    %306 = vector.load %arg25[%c0_174, %c0_175] : memref<36x64xbf16, #tpu.memory_space<vmem>>, vector<22x64xbf16>
    %c0_176 = arith.constant 0 : index
    %c0_177 = arith.constant 0 : index
    %307 = vector.load %arg4[%c0_176, %c0_177] : memref<576x128xbf16, #tpu.memory_space<vmem>>, vector<64x128xbf16>
    %cst_178 = arith.constant dense<0.000000e+00> : vector<22x128xf32>
    %308 = tpu.matmul %306, %307, %cst_178 {dimension_numbers = #tpu.dot_dimension_numbers<[1], [0], [0], [1], [0, 0, 1, 1], [], []>} : vector<22x64xbf16>, vector<64x128xbf16>, vector<22x128xf32> -> vector<22x128xf32>
    %c1_179 = arith.constant 1 : index
    %c0_180 = arith.constant 0 : index
    %309 = vector.load %arg25[%c1_179, %c0_180] : memref<36x64xbf16, #tpu.memory_space<vmem>>, vector<22x64xbf16>
    %c64_181 = arith.constant 64 : index
    %c0_182 = arith.constant 0 : index
    %310 = vector.load %arg4[%c64_181, %c0_182] : memref<576x128xbf16, #tpu.memory_space<vmem>>, vector<64x128xbf16>
    %cst_183 = arith.constant dense<0.000000e+00> : vector<22x128xf32>
    %311 = tpu.matmul %309, %310, %cst_183 {dimension_numbers = #tpu.dot_dimension_numbers<[1], [0], [0], [1], [0, 0, 1, 1], [], []>} : vector<22x64xbf16>, vector<64x128xbf16>, vector<22x128xf32> -> vector<22x128xf32>
    %312 = arith.addf %308, %311 : vector<22x128xf32>
    %c2_184 = arith.constant 2 : index
    %c0_185 = arith.constant 0 : index
    %313 = vector.load %arg25[%c2_184, %c0_185] : memref<36x64xbf16, #tpu.memory_space<vmem>>, vector<22x64xbf16>
    %c128_186 = arith.constant 128 : index
    %c0_187 = arith.constant 0 : index
    %314 = vector.load %arg4[%c128_186, %c0_187] : memref<576x128xbf16, #tpu.memory_space<vmem>>, vector<64x128xbf16>
    %cst_188 = arith.constant dense<0.000000e+00> : vector<22x128xf32>
    %315 = tpu.matmul %313, %314, %cst_188 {dimension_numbers = #tpu.dot_dimension_numbers<[1], [0], [0], [1], [0, 0, 1, 1], [], []>} : vector<22x64xbf16>, vector<64x128xbf16>, vector<22x128xf32> -> vector<22x128xf32>
    %316 = arith.addf %312, %315 : vector<22x128xf32>
    %c6 = arith.constant 6 : index
    %c0_189 = arith.constant 0 : index
    %317 = vector.load %arg25[%c6, %c0_189] : memref<36x64xbf16, #tpu.memory_space<vmem>>, vector<22x64xbf16>
    %c192_190 = arith.constant 192 : index
    %c0_191 = arith.constant 0 : index
    %318 = vector.load %arg4[%c192_190, %c0_191] : memref<576x128xbf16, #tpu.memory_space<vmem>>, vector<64x128xbf16>
    %cst_192 = arith.constant dense<0.000000e+00> : vector<22x128xf32>
    %319 = tpu.matmul %317, %318, %cst_192 {dimension_numbers = #tpu.dot_dimension_numbers<[1], [0], [0], [1], [0, 0, 1, 1], [], []>} : vector<22x64xbf16>, vector<64x128xbf16>, vector<22x128xf32> -> vector<22x128xf32>
    %320 = arith.addf %316, %319 : vector<22x128xf32>
    %c7_193 = arith.constant 7 : index
    %c0_194 = arith.constant 0 : index
    %321 = vector.load %arg25[%c7_193, %c0_194] : memref<36x64xbf16, #tpu.memory_space<vmem>>, vector<22x64xbf16>
    %c256_195 = arith.constant 256 : index
    %c0_196 = arith.constant 0 : index
    %322 = vector.load %arg4[%c256_195, %c0_196] : memref<576x128xbf16, #tpu.memory_space<vmem>>, vector<64x128xbf16>
    %cst_197 = arith.constant dense<0.000000e+00> : vector<22x128xf32>
    %323 = tpu.matmul %321, %322, %cst_197 {dimension_numbers = #tpu.dot_dimension_numbers<[1], [0], [0], [1], [0, 0, 1, 1], [], []>} : vector<22x64xbf16>, vector<64x128xbf16>, vector<22x128xf32> -> vector<22x128xf32>
    %324 = arith.addf %320, %323 : vector<22x128xf32>
    %c8 = arith.constant 8 : index
    %c0_198 = arith.constant 0 : index
    %325 = vector.load %arg25[%c8, %c0_198] : memref<36x64xbf16, #tpu.memory_space<vmem>>, vector<22x64xbf16>
    %c320 = arith.constant 320 : index
    %c0_199 = arith.constant 0 : index
    %326 = vector.load %arg4[%c320, %c0_199] : memref<576x128xbf16, #tpu.memory_space<vmem>>, vector<64x128xbf16>
    %cst_200 = arith.constant dense<0.000000e+00> : vector<22x128xf32>
    %327 = tpu.matmul %325, %326, %cst_200 {dimension_numbers = #tpu.dot_dimension_numbers<[1], [0], [0], [1], [0, 0, 1, 1], [], []>} : vector<22x64xbf16>, vector<64x128xbf16>, vector<22x128xf32> -> vector<22x128xf32>
    %328 = arith.addf %324, %327 : vector<22x128xf32>
    %c12_201 = arith.constant 12 : index
    %c0_202 = arith.constant 0 : index
    %329 = vector.load %arg25[%c12_201, %c0_202] : memref<36x64xbf16, #tpu.memory_space<vmem>>, vector<22x64xbf16>
    %c384 = arith.constant 384 : index
    %c0_203 = arith.constant 0 : index
    %330 = vector.load %arg4[%c384, %c0_203] : memref<576x128xbf16, #tpu.memory_space<vmem>>, vector<64x128xbf16>
    %cst_204 = arith.constant dense<0.000000e+00> : vector<22x128xf32>
    %331 = tpu.matmul %329, %330, %cst_204 {dimension_numbers = #tpu.dot_dimension_numbers<[1], [0], [0], [1], [0, 0, 1, 1], [], []>} : vector<22x64xbf16>, vector<64x128xbf16>, vector<22x128xf32> -> vector<22x128xf32>
    %332 = arith.addf %328, %331 : vector<22x128xf32>
    %c13_205 = arith.constant 13 : index
    %c0_206 = arith.constant 0 : index
    %333 = vector.load %arg25[%c13_205, %c0_206] : memref<36x64xbf16, #tpu.memory_space<vmem>>, vector<22x64xbf16>
    %c448 = arith.constant 448 : index
    %c0_207 = arith.constant 0 : index
    %334 = vector.load %arg4[%c448, %c0_207] : memref<576x128xbf16, #tpu.memory_space<vmem>>, vector<64x128xbf16>
    %cst_208 = arith.constant dense<0.000000e+00> : vector<22x128xf32>
    %335 = tpu.matmul %333, %334, %cst_208 {dimension_numbers = #tpu.dot_dimension_numbers<[1], [0], [0], [1], [0, 0, 1, 1], [], []>} : vector<22x64xbf16>, vector<64x128xbf16>, vector<22x128xf32> -> vector<22x128xf32>
    %336 = arith.addf %332, %335 : vector<22x128xf32>
    %c14 = arith.constant 14 : index
    %c0_209 = arith.constant 0 : index
    %337 = vector.load %arg25[%c14, %c0_209] : memref<36x64xbf16, #tpu.memory_space<vmem>>, vector<22x64xbf16>
    %c512 = arith.constant 512 : index
    %c0_210 = arith.constant 0 : index
    %338 = vector.load %arg4[%c512, %c0_210] : memref<576x128xbf16, #tpu.memory_space<vmem>>, vector<64x128xbf16>
    %cst_211 = arith.constant dense<0.000000e+00> : vector<22x128xf32>
    %339 = tpu.matmul %337, %338, %cst_211 {dimension_numbers = #tpu.dot_dimension_numbers<[1], [0], [0], [1], [0, 0, 1, 1], [], []>} : vector<22x64xbf16>, vector<64x128xbf16>, vector<22x128xf32> -> vector<22x128xf32>
    %340 = arith.addf %336, %339 : vector<22x128xf32>
    %341 = vector.broadcast %305 : vector<1x128xf32> to vector<22x128xf32>
    %342 = arith.addf %340, %341 : vector<22x128xf32>
    %cst_212 = arith.constant 0.000000e+00 : f32
    %343 = vector.broadcast %cst_212 : f32 to vector<22x128xf32>
    %344 = arith.maximumf %342, %343 : vector<22x128xf32>
    %c0_213 = arith.constant 0 : index
    %c0_214 = arith.constant 0 : index
    %345 = vector.load %arg19[%c0_213, %c0_214] : memref<22x128xf32, #tpu.memory_space<vmem>>, vector<22x128xf32>
    tpu.vector_store %arg19[%c0_213, %c0_214], %344 {strides = array<i32>} : memref<22x128xf32, #tpu.memory_space<vmem>>, vector<22x128xf32>,
    %cst_215 = arith.constant 0.000000e+00 : f32
    %346 = vector.broadcast %cst_215 : f32 to vector<16x128xf32>
    %c0_216 = arith.constant 0 : index
    %c0_217 = arith.constant 0 : index
    %347 = vector.load %arg23[%c0_216, %c0_217] : memref<16x128xf32, #tpu.memory_space<vmem>>, vector<16x128xf32>
    tpu.vector_store %arg23[%c0_216, %c0_217], %346 {strides = array<i32>} : memref<16x128xf32, #tpu.memory_space<vmem>>, vector<16x128xf32>,
    %c0_218 = arith.constant 0 : index
    %c0_219 = arith.constant 0 : index
    %348 = tpu.strided_load %arg19[%c0_218, %c0_219] {strides = array<i32: 2, 1>} : memref<22x128xf32, #tpu.memory_space<vmem>>, vector<2x128xf32>
    %c1_220 = arith.constant 1 : index
    %c0_221 = arith.constant 0 : index
    %349 = tpu.strided_load %arg19[%c1_220, %c0_221] {strides = array<i32: 2, 1>} : memref<22x128xf32, #tpu.memory_space<vmem>>, vector<2x128xf32>
    %c6_222 = arith.constant 6 : index
    %c0_223 = arith.constant 0 : index
    %350 = tpu.strided_load %arg19[%c6_222, %c0_223] {strides = array<i32: 2, 1>} : memref<22x128xf32, #tpu.memory_space<vmem>>, vector<2x128xf32>
    %c7_224 = arith.constant 7 : index
    %c0_225 = arith.constant 0 : index
    %351 = tpu.strided_load %arg19[%c7_224, %c0_225] {strides = array<i32: 2, 1>} : memref<22x128xf32, #tpu.memory_space<vmem>>, vector<2x128xf32>
    %352 = arith.maximumf %348, %349 : vector<2x128xf32>
    %353 = arith.maximumf %350, %351 : vector<2x128xf32>
    %354 = arith.maximumf %352, %353 : vector<2x128xf32>
    %c5 = arith.constant 5 : index
    %c0_226 = arith.constant 0 : index
    %355 = vector.load %arg23[%c5, %c0_226] : memref<16x128xf32, #tpu.memory_space<vmem>>, vector<2x128xf32>
    tpu.vector_store %arg23[%c5, %c0_226], %354 {strides = array<i32>} : memref<16x128xf32, #tpu.memory_space<vmem>>, vector<2x128xf32>,
    %c12_227 = arith.constant 12 : index
    %c0_228 = arith.constant 0 : index
    %356 = tpu.strided_load %arg19[%c12_227, %c0_228] {strides = array<i32: 2, 1>} : memref<22x128xf32, #tpu.memory_space<vmem>>, vector<2x128xf32>
    %c13_229 = arith.constant 13 : index
    %c0_230 = arith.constant 0 : index
    %357 = tpu.strided_load %arg19[%c13_229, %c0_230] {strides = array<i32: 2, 1>} : memref<22x128xf32, #tpu.memory_space<vmem>>, vector<2x128xf32>
    %c18_231 = arith.constant 18 : index
    %c0_232 = arith.constant 0 : index
    %358 = tpu.strided_load %arg19[%c18_231, %c0_232] {strides = array<i32: 2, 1>} : memref<22x128xf32, #tpu.memory_space<vmem>>, vector<2x128xf32>
    %c19_233 = arith.constant 19 : index
    %c0_234 = arith.constant 0 : index
    %359 = tpu.strided_load %arg19[%c19_233, %c0_234] {strides = array<i32: 2, 1>} : memref<22x128xf32, #tpu.memory_space<vmem>>, vector<2x128xf32>
    %360 = arith.maximumf %356, %357 : vector<2x128xf32>
    %361 = arith.maximumf %358, %359 : vector<2x128xf32>
    %362 = arith.maximumf %360, %361 : vector<2x128xf32>
    %c9 = arith.constant 9 : index
    %c0_235 = arith.constant 0 : index
    %363 = vector.load %arg23[%c9, %c0_235] : memref<16x128xf32, #tpu.memory_space<vmem>>, vector<2x128xf32>
    tpu.vector_store %arg23[%c9, %c0_235], %362 {strides = array<i32>} : memref<16x128xf32, #tpu.memory_space<vmem>>, vector<2x128xf32>,
    %c0_236 = arith.constant 0 : index
    %c0_237 = arith.constant 0 : index
    %364 = vector.load %arg23[%c0_236, %c0_237] : memref<16x128xf32, #tpu.memory_space<vmem>>, vector<16x128xf32>
    %365 = arith.truncf %364 : vector<16x128xf32> to vector<16x128xbf16>
    %c0_238 = arith.constant 0 : index
    %c0_239 = arith.constant 0 : index
    %366 = vector.load %arg26[%c0_238, %c0_239] : memref<16x128xbf16, #tpu.memory_space<vmem>>, vector<16x128xbf16>
    tpu.vector_store %arg26[%c0_238, %c0_239], %365 {strides = array<i32>} : memref<16x128xbf16, #tpu.memory_space<vmem>>, vector<16x128xbf16>,
    %c0_240 = arith.constant 0 : index
    %c0_241 = arith.constant 0 : index
    %367 = vector.load %arg9[%c0_240, %c0_241] : memref<1x256xf32, #tpu.memory_space<vmem>>, vector<1x256xf32>
    %c0_242 = arith.constant 0 : index
    %c0_243 = arith.constant 0 : index
    %368 = vector.load %arg26[%c0_242, %c0_243] : memref<16x128xbf16, #tpu.memory_space<vmem>>, vector<6x128xbf16>
    %c0_244 = arith.constant 0 : index
    %c0_245 = arith.constant 0 : index
    %369 = vector.load %arg5[%c0_244, %c0_245] : memref<1152x256xbf16, #tpu.memory_space<vmem>>, vector<128x256xbf16>
    %cst_246 = arith.constant dense<0.000000e+00> : vector<6x256xf32>
    %370 = tpu.matmul %368, %369, %cst_246 {dimension_numbers = #tpu.dot_dimension_numbers<[1], [0], [0], [1], [0, 0, 1, 1], [], []>} : vector<6x128xbf16>, vector<128x256xbf16>, vector<6x256xf32> -> vector<6x256xf32>
    %c1_247 = arith.constant 1 : index
    %c0_248 = arith.constant 0 : index
    %371 = vector.load %arg26[%c1_247, %c0_248] : memref<16x128xbf16, #tpu.memory_space<vmem>>, vector<6x128xbf16>
    %c128_249 = arith.constant 128 : index
    %c0_250 = arith.constant 0 : index
    %372 = vector.load %arg5[%c128_249, %c0_250] : memref<1152x256xbf16, #tpu.memory_space<vmem>>, vector<128x256xbf16>
    %cst_251 = arith.constant dense<0.000000e+00> : vector<6x256xf32>
    %373 = tpu.matmul %371, %372, %cst_251 {dimension_numbers = #tpu.dot_dimension_numbers<[1], [0], [0], [1], [0, 0, 1, 1], [], []>} : vector<6x128xbf16>, vector<128x256xbf16>, vector<6x256xf32> -> vector<6x256xf32>
    %374 = arith.addf %370, %373 : vector<6x256xf32>
    %c2_252 = arith.constant 2 : index
    %c0_253 = arith.constant 0 : index
    %375 = vector.load %arg26[%c2_252, %c0_253] : memref<16x128xbf16, #tpu.memory_space<vmem>>, vector<6x128xbf16>
    %c256_254 = arith.constant 256 : index
    %c0_255 = arith.constant 0 : index
    %376 = vector.load %arg5[%c256_254, %c0_255] : memref<1152x256xbf16, #tpu.memory_space<vmem>>, vector<128x256xbf16>
    %cst_256 = arith.constant dense<0.000000e+00> : vector<6x256xf32>
    %377 = tpu.matmul %375, %376, %cst_256 {dimension_numbers = #tpu.dot_dimension_numbers<[1], [0], [0], [1], [0, 0, 1, 1], [], []>} : vector<6x128xbf16>, vector<128x256xbf16>, vector<6x256xf32> -> vector<6x256xf32>
    %378 = arith.addf %374, %377 : vector<6x256xf32>
    %c4 = arith.constant 4 : index
    %c0_257 = arith.constant 0 : index
    %379 = vector.load %arg26[%c4, %c0_257] : memref<16x128xbf16, #tpu.memory_space<vmem>>, vector<6x128xbf16>
    %c384_258 = arith.constant 384 : index
    %c0_259 = arith.constant 0 : index
    %380 = vector.load %arg5[%c384_258, %c0_259] : memref<1152x256xbf16, #tpu.memory_space<vmem>>, vector<128x256xbf16>
    %cst_260 = arith.constant dense<0.000000e+00> : vector<6x256xf32>
    %381 = tpu.matmul %379, %380, %cst_260 {dimension_numbers = #tpu.dot_dimension_numbers<[1], [0], [0], [1], [0, 0, 1, 1], [], []>} : vector<6x128xbf16>, vector<128x256xbf16>, vector<6x256xf32> -> vector<6x256xf32>
    %382 = arith.addf %378, %381 : vector<6x256xf32>
    %c5_261 = arith.constant 5 : index
    %c0_262 = arith.constant 0 : index
    %383 = vector.load %arg26[%c5_261, %c0_262] : memref<16x128xbf16, #tpu.memory_space<vmem>>, vector<6x128xbf16>
    %c512_263 = arith.constant 512 : index
    %c0_264 = arith.constant 0 : index
    %384 = vector.load %arg5[%c512_263, %c0_264] : memref<1152x256xbf16, #tpu.memory_space<vmem>>, vector<128x256xbf16>
    %cst_265 = arith.constant dense<0.000000e+00> : vector<6x256xf32>
    %385 = tpu.matmul %383, %384, %cst_265 {dimension_numbers = #tpu.dot_dimension_numbers<[1], [0], [0], [1], [0, 0, 1, 1], [], []>} : vector<6x128xbf16>, vector<128x256xbf16>, vector<6x256xf32> -> vector<6x256xf32>
    %386 = arith.addf %382, %385 : vector<6x256xf32>
    %c6_266 = arith.constant 6 : index
    %c0_267 = arith.constant 0 : index
    %387 = vector.load %arg26[%c6_266, %c0_267] : memref<16x128xbf16, #tpu.memory_space<vmem>>, vector<6x128xbf16>
    %c640 = arith.constant 640 : index
    %c0_268 = arith.constant 0 : index
    %388 = vector.load %arg5[%c640, %c0_268] : memref<1152x256xbf16, #tpu.memory_space<vmem>>, vector<128x256xbf16>
    %cst_269 = arith.constant dense<0.000000e+00> : vector<6x256xf32>
    %389 = tpu.matmul %387, %388, %cst_269 {dimension_numbers = #tpu.dot_dimension_numbers<[1], [0], [0], [1], [0, 0, 1, 1], [], []>} : vector<6x128xbf16>, vector<128x256xbf16>, vector<6x256xf32> -> vector<6x256xf32>
    %390 = arith.addf %386, %389 : vector<6x256xf32>
    %c8_270 = arith.constant 8 : index
    %c0_271 = arith.constant 0 : index
    %391 = vector.load %arg26[%c8_270, %c0_271] : memref<16x128xbf16, #tpu.memory_space<vmem>>, vector<6x128xbf16>
    %c768 = arith.constant 768 : index
    %c0_272 = arith.constant 0 : index
    %392 = vector.load %arg5[%c768, %c0_272] : memref<1152x256xbf16, #tpu.memory_space<vmem>>, vector<128x256xbf16>
    %cst_273 = arith.constant dense<0.000000e+00> : vector<6x256xf32>
    %393 = tpu.matmul %391, %392, %cst_273 {dimension_numbers = #tpu.dot_dimension_numbers<[1], [0], [0], [1], [0, 0, 1, 1], [], []>} : vector<6x128xbf16>, vector<128x256xbf16>, vector<6x256xf32> -> vector<6x256xf32>
    %394 = arith.addf %390, %393 : vector<6x256xf32>
    %c9_274 = arith.constant 9 : index
    %c0_275 = arith.constant 0 : index
    %395 = vector.load %arg26[%c9_274, %c0_275] : memref<16x128xbf16, #tpu.memory_space<vmem>>, vector<6x128xbf16>
    %c896 = arith.constant 896 : index
    %c0_276 = arith.constant 0 : index
    %396 = vector.load %arg5[%c896, %c0_276] : memref<1152x256xbf16, #tpu.memory_space<vmem>>, vector<128x256xbf16>
    %cst_277 = arith.constant dense<0.000000e+00> : vector<6x256xf32>
    %397 = tpu.matmul %395, %396, %cst_277 {dimension_numbers = #tpu.dot_dimension_numbers<[1], [0], [0], [1], [0, 0, 1, 1], [], []>} : vector<6x128xbf16>, vector<128x256xbf16>, vector<6x256xf32> -> vector<6x256xf32>
    %398 = arith.addf %394, %397 : vector<6x256xf32>
    %c10_278 = arith.constant 10 : index
    %c0_279 = arith.constant 0 : index
    %399 = vector.load %arg26[%c10_278, %c0_279] : memref<16x128xbf16, #tpu.memory_space<vmem>>, vector<6x128xbf16>
    %c1024 = arith.constant 1024 : index
    %c0_280 = arith.constant 0 : index
    %400 = vector.load %arg5[%c1024, %c0_280] : memref<1152x256xbf16, #tpu.memory_space<vmem>>, vector<128x256xbf16>
    %cst_281 = arith.constant dense<0.000000e+00> : vector<6x256xf32>
    %401 = tpu.matmul %399, %400, %cst_281 {dimension_numbers = #tpu.dot_dimension_numbers<[1], [0], [0], [1], [0, 0, 1, 1], [], []>} : vector<6x128xbf16>, vector<128x256xbf16>, vector<6x256xf32> -> vector<6x256xf32>
    %402 = arith.addf %398, %401 : vector<6x256xf32>
    %403 = vector.broadcast %367 : vector<1x256xf32> to vector<6x256xf32>
    %404 = arith.addf %402, %403 : vector<6x256xf32>
    %cst_282 = arith.constant 0.000000e+00 : f32
    %405 = vector.broadcast %cst_282 : f32 to vector<6x256xf32>
    %406 = arith.maximumf %404, %405 : vector<6x256xf32>
    %c0_283 = arith.constant 0 : index
    %c0_284 = arith.constant 0 : index
    %407 = vector.load %arg20[%c0_283, %c0_284] : memref<6x256xf32, #tpu.memory_space<vmem>>, vector<6x256xf32>
    tpu.vector_store %arg20[%c0_283, %c0_284], %406 {strides = array<i32>} : memref<6x256xf32, #tpu.memory_space<vmem>>, vector<6x256xf32>,
    %c0_285 = arith.constant 0 : index
    %c0_286 = arith.constant 0 : index
    %408 = vector.load %arg20[%c0_285, %c0_286] : memref<6x256xf32, #tpu.memory_space<vmem>>, vector<1x256xf32>
    %c1_287 = arith.constant 1 : index
    %c0_288 = arith.constant 0 : index
    %409 = vector.load %arg20[%c1_287, %c0_288] : memref<6x256xf32, #tpu.memory_space<vmem>>, vector<1x256xf32>
    %c4_289 = arith.constant 4 : index
    %c0_290 = arith.constant 0 : index
    %410 = vector.load %arg20[%c4_289, %c0_290] : memref<6x256xf32, #tpu.memory_space<vmem>>, vector<1x256xf32>
    %c5_291 = arith.constant 5 : index
    %c0_292 = arith.constant 0 : index
    %411 = vector.load %arg20[%c5_291, %c0_292] : memref<6x256xf32, #tpu.memory_space<vmem>>, vector<1x256xf32>
    %412 = arith.maximumf %408, %409 : vector<1x256xf32>
    %413 = arith.maximumf %410, %411 : vector<1x256xf32>
    %414 = arith.maximumf %412, %413 : vector<1x256xf32>
    %415 = arith.truncf %414 : vector<1x256xf32> to vector<1x256xbf16>
    %c0_293 = arith.constant 0 : index
    %c0_294 = arith.constant 0 : index
    %416 = vector.load %arg10[%c0_293, %c0_294] : memref<256x512xbf16, #tpu.memory_space<vmem>>, vector<256x512xbf16>
    %cst_295 = arith.constant dense<0.000000e+00> : vector<1x512xf32>
    %417 = tpu.matmul %415, %416, %cst_295 {dimension_numbers = #tpu.dot_dimension_numbers<[1], [0], [0], [1], [0, 0, 1, 1], [], []>} : vector<1x256xbf16>, vector<256x512xbf16>, vector<1x512xf32> -> vector<1x512xf32>
    %c0_296 = arith.constant 0 : index
    %c0_297 = arith.constant 0 : index
    %418 = vector.load %arg13[%c0_296, %c0_297] : memref<1x512xf32, #tpu.memory_space<vmem>>, vector<1x512xf32>
    %419 = arith.addf %417, %418 : vector<1x512xf32>
    %cst_298 = arith.constant 0.000000e+00 : f32
    %420 = vector.broadcast %cst_298 : f32 to vector<1x512xf32>
    %421 = arith.maximumf %419, %420 : vector<1x512xf32>
    %422 = arith.truncf %421 : vector<1x512xf32> to vector<1x512xbf16>
    %c0_299 = arith.constant 0 : index
    %c0_300 = arith.constant 0 : index
    %423 = vector.load %arg11[%c0_299, %c0_300] : memref<512x256xbf16, #tpu.memory_space<vmem>>, vector<512x256xbf16>
    %cst_301 = arith.constant dense<0.000000e+00> : vector<1x256xf32>
    %424 = tpu.matmul %422, %423, %cst_301 {dimension_numbers = #tpu.dot_dimension_numbers<[1], [0], [0], [1], [0, 0, 1, 1], [], []>} : vector<1x512xbf16>, vector<512x256xbf16>, vector<1x256xf32> -> vector<1x256xf32>
    %c0_302 = arith.constant 0 : index
    %c0_303 = arith.constant 0 : index
    %425 = vector.load %arg14[%c0_302, %c0_303] : memref<1x256xf32, #tpu.memory_space<vmem>>, vector<1x256xf32>
    %426 = arith.addf %424, %425 : vector<1x256xf32>
    %cst_304 = arith.constant 0.000000e+00 : f32
    %427 = vector.broadcast %cst_304 : f32 to vector<1x256xf32>
    %428 = arith.maximumf %426, %427 : vector<1x256xf32>
    %429 = arith.truncf %428 : vector<1x256xf32> to vector<1x256xbf16>
    %c0_305 = arith.constant 0 : index
    %c0_306 = arith.constant 0 : index
    %430 = vector.load %arg12[%c0_305, %c0_306] : memref<256x128xbf16, #tpu.memory_space<vmem>>, vector<256x128xbf16>
    %cst_307 = arith.constant dense<0.000000e+00> : vector<1x128xf32>
    %431 = tpu.matmul %429, %430, %cst_307 {dimension_numbers = #tpu.dot_dimension_numbers<[1], [0], [0], [1], [0, 0, 1, 1], [], []>} : vector<1x256xbf16>, vector<256x128xbf16>, vector<1x128xf32> -> vector<1x128xf32>
    %c0_308 = arith.constant 0 : index
    %c0_309 = arith.constant 0 : index
    %432 = vector.load %arg15[%c0_308, %c0_309] : memref<1x128xf32, #tpu.memory_space<vmem>>, vector<1x128xf32>
    %433 = arith.addf %431, %432 : vector<1x128xf32>
    %c0_310 = arith.constant 0 : index
    %c0_311 = arith.constant 0 : index
    %c0_312 = arith.constant 0 : index
    %434 = vector.load %arg16[%c0_310, %c0_311, %c0_312] : memref<1x1x128xf32, #tpu.memory_space<vmem>>, vector<1x1x128xf32>
    %435 = vector.shape_cast %434 : vector<1x1x128xf32> to vector<1x128xf32>
    %436 = vector.shape_cast %433 : vector<1x128xf32> to vector<1x1x128xf32>
    tpu.vector_store %arg16[%c0_310, %c0_311, %c0_312], %436 {strides = array<i32>} : memref<1x1x128xf32, #tpu.memory_space<vmem>>, vector<1x1x128xf32>,
    return
  }
  func.func @transform_0(%arg0: i32) -> (i32, i32) {
    %c0_i32 = arith.constant 0 : i32
    %c0_i32_0 = arith.constant 0 : i32
    return %arg0, %c0_i32 : i32, i32
  }
  func.func @transform_1(%arg0: i32) -> (i32, i32) {
    %c0_i32 = arith.constant 0 : i32
    %c0_i32_0 = arith.constant 0 : i32
    %c0_i32_1 = arith.constant 0 : i32
    return %c0_i32, %c0_i32_0 : i32, i32
  }
  func.func @transform_2(%arg0: i32) -> (i32, i32) {
    %c0_i32 = arith.constant 0 : i32
    %c0_i32_0 = arith.constant 0 : i32
    %c0_i32_1 = arith.constant 0 : i32
    return %c0_i32, %c0_i32_0 : i32, i32
  }
  func.func @transform_3(%arg0: i32) -> (i32, i32) {
    %c0_i32 = arith.constant 0 : i32
    %c0_i32_0 = arith.constant 0 : i32
    %c0_i32_1 = arith.constant 0 : i32
    return %c0_i32, %c0_i32_0 : i32, i32
  }
  func.func @transform_4(%arg0: i32) -> (i32, i32) {
    %c0_i32 = arith.constant 0 : i32
    %c0_i32_0 = arith.constant 0 : i32
    %c0_i32_1 = arith.constant 0 : i32
    return %c0_i32, %c0_i32_0 : i32, i32
  }
  func.func @transform_5(%arg0: i32) -> (i32, i32) {
    %c0_i32 = arith.constant 0 : i32
    %c0_i32_0 = arith.constant 0 : i32
    %c0_i32_1 = arith.constant 0 : i32
    return %c0_i32, %c0_i32_0 : i32, i32
  }
  func.func @transform_6(%arg0: i32) -> (i32, i32) {
    %c0_i32 = arith.constant 0 : i32
    %c0_i32_0 = arith.constant 0 : i32
    %c0_i32_1 = arith.constant 0 : i32
    return %c0_i32, %c0_i32_0 : i32, i32
  }
  func.func @transform_7(%arg0: i32) -> (i32, i32) {
    %c0_i32 = arith.constant 0 : i32
    %c0_i32_0 = arith.constant 0 : i32
    %c0_i32_1 = arith.constant 0 : i32
    return %c0_i32, %c0_i32_0 : i32, i32
  }
  func.func @transform_8(%arg0: i32) -> (i32, i32) {
    %c0_i32 = arith.constant 0 : i32
    %c0_i32_0 = arith.constant 0 : i32
    %c0_i32_1 = arith.constant 0 : i32
    return %c0_i32, %c0_i32_0 : i32, i32
  }
  func.func @transform_9(%arg0: i32) -> (i32, i32) {
    %c0_i32 = arith.constant 0 : i32
    %c0_i32_0 = arith.constant 0 : i32
    %c0_i32_1 = arith.constant 0 : i32
    return %c0_i32, %c0_i32_0 : i32, i32
  }
  func.func @transform_10(%arg0: i32) -> (i32, i32) {
    %c0_i32 = arith.constant 0 : i32
    %c0_i32_0 = arith.constant 0 : i32
    %c0_i32_1 = arith.constant 0 : i32
    return %c0_i32, %c0_i32_0 : i32, i32
  }
  func.func @transform_11(%arg0: i32) -> (i32, i32) {
    %c0_i32 = arith.constant 0 : i32
    %c0_i32_0 = arith.constant 0 : i32
    %c0_i32_1 = arith.constant 0 : i32
    return %c0_i32, %c0_i32_0 : i32, i32
  }
  func.func @transform_12(%arg0: i32) -> (i32, i32) {
    %c0_i32 = arith.constant 0 : i32
    %c0_i32_0 = arith.constant 0 : i32
    %c0_i32_1 = arith.constant 0 : i32
    return %c0_i32, %c0_i32_0 : i32, i32
  }
  func.func @transform_13(%arg0: i32) -> (i32, i32) {
    %c0_i32 = arith.constant 0 : i32
    %c0_i32_0 = arith.constant 0 : i32
    %c0_i32_1 = arith.constant 0 : i32
    return %c0_i32, %c0_i32_0 : i32, i32
  }
  func.func @transform_14(%arg0: i32) -> (i32, i32) {
    %c0_i32 = arith.constant 0 : i32
    %c0_i32_0 = arith.constant 0 : i32
    %c0_i32_1 = arith.constant 0 : i32
    return %c0_i32, %c0_i32_0 : i32, i32
  }
  func.func @transform_15(%arg0: i32) -> (i32, i32, i32) {
    %c0_i32 = arith.constant 0 : i32
    %c0_i32_0 = arith.constant 0 : i32
    %c0_i32_1 = arith.constant 0 : i32
    return %arg0, %c0_i32, %c0_i32_0 : i32, i32, i32
  }
}

</mosaic_0001>

<llo_original>
// kernel: _lambda_.1
$region0: #{_lambda_.1}
  #allocation0 [shape = 'u32[]', space=smem, size = 0x4, offset = 0x4, fixed_abs, tag = 'smem constant byte address 0x4 - core index']
  #allocation1 [shape = 'u32[72,128]{1,0:T(1,128)}', space=vmem, size = 0x9000, scoped, tag = 'internal scratch']
  #allocation2 [shape = 'f32[286,32]{1,0:T(8,128)}', space=vmem, size = 0x24000, scoped, tag = 'scratch operand']
  #allocation3 [shape = 'f32[78,64]{1,0:T(8,128)}', space=vmem, size = 0xa000, scoped, tag = 'scratch operand']
  #allocation4 [shape = 'f32[22,128]{1,0:T(8,128)}', space=vmem, size = 0x3000, scoped, tag = 'scratch operand']
  #allocation5 [shape = 'f32[6,256]{1,0:T(8,128)}', space=vmem, size = 0x2000, scoped, tag = 'scratch operand']
  #allocation6 [shape = 'f32[100,32]{1,0:T(8,128)}', space=vmem, size = 0xd000, scoped, tag = 'scratch operand']
  #allocation7 [shape = 'f32[36,64]{1,0:T(8,128)}', space=vmem, size = 0x5000, scoped, tag = 'scratch operand']
  #allocation8 [shape = 'f32[16,128]{1,0:T(8,128)}', space=vmem, size = 0x2000, scoped, tag = 'scratch operand']
  #allocation9 [shape = 'bf16[100,32]{1,0:T(8,128)(2,1)}', space=vmem, size = 0x6800, scoped, tag = 'scratch operand']
  #allocation10 [shape = 'bf16[36,64]{1,0:T(8,128)(2,1)}', space=vmem, size = 0x2800, scoped, tag = 'scratch operand']
  #allocation11 [shape = 'bf16[16,128]{1,0:T(8,128)(2,1)}', space=vmem, size = 0x1000, scoped, tag = 'scratch operand']
  %s0 = inlined_call_operand.vmem [shape: f32[656,1], index: 0, kind: input, shape index: {}]
  %s1 = inlined_call_operand.vmem [shape: f32[9,32], index: 1, kind: input, shape index: {}]
  %s2 = inlined_call_operand.vmem [shape: bf16[288,64], index: 2, kind: input, shape index: {}]
  %s3 = inlined_call_operand.hbm [shape: bf16[576,128], index: 3, kind: input, shape index: {}]
  %s4 = inlined_call_operand.hbm [shape: bf16[1152,256], index: 4, kind: input, shape index: {}]
  %s5 = inlined_call_operand.vmem [shape: f32[1,32], index: 5, kind: input, shape index: {}]
  %s6 = inlined_call_operand.vmem [shape: f32[1,64], index: 6, kind: input, shape index: {}]
  %s7 = inlined_call_operand.hbm [shape: f32[1,128], index: 7, kind: input, shape index: {}]
  %s8 = inlined_call_operand.vmem [shape: f32[1,256], index: 8, kind: input, shape index: {}]
  %s9 = inlined_call_operand.vmem [shape: bf16[256,512], index: 9, kind: input, shape index: {}]
  %s10 = inlined_call_operand.vmem [shape: bf16[512,256], index: 10, kind: input, shape index: {}]
  %s11 = inlined_call_operand.hbm [shape: bf16[256,128], index: 11, kind: input, shape index: {}]
  %s12 = inlined_call_operand.vmem [shape: f32[1,512], index: 12, kind: input, shape index: {}]
  %s13 = inlined_call_operand.vmem [shape: f32[1,256], index: 13, kind: input, shape index: {}]
  %s14 = inlined_call_operand.hbm [shape: f32[1,128], index: 14, kind: input, shape index: {}]
  %s15 = inlined_call_operand.hbm [shape: f32[2,1,128], index: 15, kind: output, shape index: {}]
  %s16 = sld [smem:[#allocation0]]
  $region113: #{_lambda_.1} parent=0
    _
  %s18 = ssub.s32 1, %s16
  %s19 = scalar_select 0, %s18, %s16
  $region1: #{_lambda_.1} parent=0
    #allocation12 [shape = 'u8[147456]{0}', space=vmem, size = 0x24000, scoped, tag = 'input window, operand 3, single buffered']
    #allocation13 [shape = 's32[2]{0}', space=sflag, size = 0x8, scoped, tag = 'scoped memory for _lambda_.1']
    #allocation14 [shape = 's32[2]{0}', space=sflag, size = 0x8, scoped, tag = 'scoped memory for _lambda_.1']
    #allocation15 [shape = 'u8[589824]{0}', space=vmem, size = 0x90000, scoped, tag = 'input window, operand 4, single buffered']
    #allocation16 [shape = 's32[1]{0}', space=sflag, size = 0x4, scoped, tag = 'scoped memory for _lambda_.1']
    #allocation17 [shape = 'u8[512]{0}', space=vmem, size = 0x400, scoped, tag = 'input window, operand 7, single buffered']
    #allocation18 [shape = 'u8[65536]{0}', space=vmem, size = 0x10000, scoped, tag = 'input window, operand 11, single buffered']
    #allocation19 [shape = 's32[1]{0}', space=sflag, size = 0x4, scoped, tag = 'scoped memory for _lambda_.1']
    #allocation20 [shape = 'u8[512]{0}', space=vmem, size = 0x400, scoped, tag = 'input window, operand 14, single buffered']
    #allocation21 [shape = 'u8[1024]{0}', space=vmem, size = 0x400, scoped, tag = 'output window, operand 0']
    %20 = vsyncpa [#allocation13], 0
    %21 = vsyncpa [#allocation16], 0
    %22 = vsyncpa [#allocation19], 0
    %23 = vsyncpa [#allocation14], 0
    %s24 = scalar_lea.sflag [#allocation14], 1
    %25 = vsyncpa %s24, 0
    loop: start=0, step=1, limit=4
    $region2: #{_lambda_.1} parent=1 // loop_pre_header
      _
    $region3: #{_lambda_.1} parent=1 // loop_header
      %s27 = sphi 0, %s31
      %p28 = scmp.ge.s32.totalorder %s27, 4
      %s37 = sphi 0, %s39
      %s40 = sphi 0, %s37
      %s41 = sphi 0, %s40
      %s57 = sphi 0, %s41
      %s61 = sphi 0, %s61
      %s63 = sphi 0, %s61
      %s64 = sphi 0, %s63
      %s78 = sphi 0, %s64
      %s82 = sphi 0, %s82
      %s84 = sphi 0, %s82
      %s85 = sphi 0, %s84
      %s99 = sphi 0, %s85
      %s103 = sphi 0, %s103
      %s105 = sphi 0, %s103
      %s106 = sphi 0, %s105
      %s120 = sphi 0, %s106
      %s124 = sphi 0, %s124
      %s126 = sphi 0, %s124
      %s127 = sphi 0, %s126
      %s141 = sphi 0, %s127
      %s145 = sphi 0, %s145
      %s147 = sphi 0, %s145
      %s148 = sphi 0, %s147
      %s162 = sphi 0, %s148
      %s166 = sphi 0, %s166
      %s168 = sphi 0, %s166
      %s169 = sphi 0, %s168
      %s183 = sphi 0, %s169
      %s187 = sphi 0, %s187
      %s189 = sphi 0, %s187
      %s190 = sphi 0, %s189
      %s204 = sphi 0, %s190
      %s208 = sphi 0, %s208
      %s210 = sphi 0, %s208
      %s211 = sphi 0, %s210
      %s225 = sphi 0, %s211
      %s229 = sphi 0, %s229
      %s231 = sphi 0, %s229
      %s232 = sphi 0, %s231
      %s246 = sphi 0, %s232
      %s250 = sphi 0, %s250
      %s252 = sphi 0, %s250
      %s253 = sphi 0, %s252
      %s267 = sphi 0, %s253
      %s271 = sphi 0, %s271
      %s273 = sphi 0, %s271
      %s274 = sphi 0, %s273
      %s288 = sphi 0, %s274
      %s292 = sphi 0, %s292
      %s294 = sphi 0, %s292
      %s295 = sphi 0, %s294
      %s309 = sphi 0, %s295
      %s313 = sphi 0, %s313
      %s315 = sphi 0, %s313
      %s316 = sphi 0, %s315
      %s330 = sphi 0, %s316
      %s334 = sphi 0, %s334
      %s336 = sphi 0, %s334
      %s337 = sphi 0, %s336
      %s351 = sphi 0, %s337
      %s357 = sphi 0, %s359
      %s360 = sphi 0, %s357
      %s361 = sphi 0, %s360
      %s377 = sphi 0, %s361
    $region4: #{_lambda_.1} parent=1 // loop_header_branch
      %30 = sbr.rel (%p28) target = $region8
    $region5: #{_lambda_.1} parent=1 // loop_body
      %s32 = ssub.s32 %s27, 1
      %s33 = ssub.s32 %s27, 2
      %s34 = sadd.s32 %s27, 1
      %s35 = ssub.s32 %s27, %s34
      %p36 = scmp.eq.s32.totalorder %s35, 0
      %s38 = sadd.s32 %s37, 1
      %s39 = scalar_select %p36, %s37, %s38
      %p42 = pneg %p36
      %p43 = scmp.eq.s32.totalorder %s27, 1
      %p44 = por %p42, %p43
      %p45 = scmp.ne.s32.totalorder %s37, %s40
      %p46 = scmp.eq.s32.totalorder %s27, 0
      %p47 = por %p45, %p46
      %p48 = scmp.ne.s32.totalorder %s37, %s40
      %p49 = scmp.eq.s32.totalorder %s32, 1
      %p50 = por %p48, %p49
      %p51 = scmp.ne.s32.totalorder %s40, %s41
      %p52 = scmp.eq.s32.totalorder %s32, 0
      %p53 = por %p51, %p52
      %p54 = scmp.ne.s32.totalorder %s40, %s41
      %p55 = scmp.eq.s32.totalorder %s33, 1
      %p56 = por %p54, %p55
      %p58 = scmp.ne.s32.totalorder %s41, %s57
      %p59 = scmp.eq.s32.totalorder %s33, 0
      %p60 = por %p58, %p59
      %s62 = sadd.s32 %s61, 1
      %p65 = scmp.eq.s32.totalorder %s27, 1
      %p66 = scmp.ne.s32.totalorder %s61, %s63
      %p67 = scmp.eq.s32.totalorder %s27, 0
      %p68 = por %p66, %p67
      %p69 = scmp.ne.s32.totalorder %s61, %s63
      %p70 = scmp.eq.s32.totalorder %s32, 1
      %p71 = por %p69, %p70
      %p72 = scmp.ne.s32.totalorder %s63, %s64
      %p73 = scmp.eq.s32.totalorder %s32, 0
      %p74 = por %p72, %p73
      %p75 = scmp.ne.s32.totalorder %s63, %s64
      %p76 = scmp.eq.s32.totalorder %s33, 1
      %p77 = por %p75, %p76
      %p79 = scmp.ne.s32.totalorder %s64, %s78
      %p80 = scmp.eq.s32.totalorder %s33, 0
      %p81 = por %p79, %p80
      %s83 = sadd.s32 %s82, 1
      %p86 = scmp.eq.s32.totalorder %s27, 1
      %p87 = scmp.ne.s32.totalorder %s82, %s84
      %p88 = scmp.eq.s32.totalorder %s27, 0
      %p89 = por %p87, %p88
      %p90 = scmp.ne.s32.totalorder %s82, %s84
      %p91 = scmp.eq.s32.totalorder %s32, 1
      %p92 = por %p90, %p91
      %p93 = scmp.ne.s32.totalorder %s84, %s85
      %p94 = scmp.eq.s32.totalorder %s32, 0
      %p95 = por %p93, %p94
      %p96 = scmp.ne.s32.totalorder %s84, %s85
      %p97 = scmp.eq.s32.totalorder %s33, 1
      %p98 = por %p96, %p97
      %p100 = scmp.ne.s32.totalorder %s85, %s99
      %p101 = scmp.eq.s32.totalorder %s33, 0
      %p102 = por %p100, %p101
      %s104 = sadd.s32 %s103, 1
      %p107 = scmp.eq.s32.totalorder %s27, 1
      %p108 = scmp.ne.s32.totalorder %s103, %s105
      %p109 = scmp.eq.s32.totalorder %s27, 0
      %p110 = por %p108, %p109
      %p111 = scmp.ne.s32.totalorder %s103, %s105
      %p112 = scmp.eq.s32.totalorder %s32, 1
      %p113 = por %p111, %p112
      %p114 = scmp.ne.s32.totalorder %s105, %s106
      %p115 = scmp.eq.s32.totalorder %s32, 0
      %p116 = por %p114, %p115
      %p117 = scmp.ne.s32.totalorder %s105, %s106
      %p118 = scmp.eq.s32.totalorder %s33, 1
      %p119 = por %p117, %p118
      %p121 = scmp.ne.s32.totalorder %s106, %s120
      %p122 = scmp.eq.s32.totalorder %s33, 0
      %p123 = por %p121, %p122
      %s125 = sadd.s32 %s124, 1
      %p128 = scmp.eq.s32.totalorder %s27, 1
      %p129 = scmp.ne.s32.totalorder %s124, %s126
      %p130 = scmp.eq.s32.totalorder %s27, 0
      %p131 = por %p129, %p130
      %p132 = scmp.ne.s32.totalorder %s124, %s126
      %p133 = scmp.eq.s32.totalorder %s32, 1
      %p134 = por %p132, %p133
      %p135 = scmp.ne.s32.totalorder %s126, %s127
      %p136 = scmp.eq.s32.totalorder %s32, 0
      %p137 = por %p135, %p136
      %p138 = scmp.ne.s32.totalorder %s126, %s127
      %p139 = scmp.eq.s32.totalorder %s33, 1
      %p140 = por %p138, %p139
      %p142 = scmp.ne.s32.totalorder %s127, %s141
      %p143 = scmp.eq.s32.totalorder %s33, 0
      %p144 = por %p142, %p143
      %s146 = sadd.s32 %s145, 1
      %p149 = scmp.eq.s32.totalorder %s27, 1
      %p150 = scmp.ne.s32.totalorder %s145, %s147
      %p151 = scmp.eq.s32.totalorder %s27, 0
      %p152 = por %p150, %p151
      %p153 = scmp.ne.s32.totalorder %s145, %s147
      %p154 = scmp.eq.s32.totalorder %s32, 1
      %p155 = por %p153, %p154
      %p156 = scmp.ne.s32.totalorder %s147, %s148
      %p157 = scmp.eq.s32.totalorder %s32, 0
      %p158 = por %p156, %p157
      %p159 = scmp.ne.s32.totalorder %s147, %s148
      %p160 = scmp.eq.s32.totalorder %s33, 1
      %p161 = por %p159, %p160
      %p163 = scmp.ne.s32.totalorder %s148, %s162
      %p164 = scmp.eq.s32.totalorder %s33, 0
      %p165 = por %p163, %p164
      %s167 = sadd.s32 %s166, 1
      %p170 = scmp.eq.s32.totalorder %s27, 1
      %p171 = scmp.ne.s32.totalorder %s166, %s168
      %p172 = scmp.eq.s32.totalorder %s27, 0
      %p173 = por %p171, %p172
      %p174 = scmp.ne.s32.totalorder %s166, %s168
      %p175 = scmp.eq.s32.totalorder %s32, 1
      %p176 = por %p174, %p175
      %p177 = scmp.ne.s32.totalorder %s168, %s169
      %p178 = scmp.eq.s32.totalorder %s32, 0
      %p179 = por %p177, %p178
      %p180 = scmp.ne.s32.totalorder %s168, %s169
      %p181 = scmp.eq.s32.totalorder %s33, 1
      %p182 = por %p180, %p181
      %p184 = scmp.ne.s32.totalorder %s169, %s183
      %p185 = scmp.eq.s32.totalorder %s33, 0
      %p186 = por %p184, %p185
      %s188 = sadd.s32 %s187, 1
      %p191 = scmp.eq.s32.totalorder %s27, 1
      %p192 = scmp.ne.s32.totalorder %s187, %s189
      %p193 = scmp.eq.s32.totalorder %s27, 0
      %p194 = por %p192, %p193
      %p195 = scmp.ne.s32.totalorder %s187, %s189
      %p196 = scmp.eq.s32.totalorder %s32, 1
      %p197 = por %p195, %p196
      %p198 = scmp.ne.s32.totalorder %s189, %s190
      %p199 = scmp.eq.s32.totalorder %s32, 0
      %p200 = por %p198, %p199
      %p201 = scmp.ne.s32.totalorder %s189, %s190
      %p202 = scmp.eq.s32.totalorder %s33, 1
      %p203 = por %p201, %p202
      %p205 = scmp.ne.s32.totalorder %s190, %s204
      %p206 = scmp.eq.s32.totalorder %s33, 0
      %p207 = por %p205, %p206
      %s209 = sadd.s32 %s208, 1
      %p212 = scmp.eq.s32.totalorder %s27, 1
      %p213 = scmp.ne.s32.totalorder %s208, %s210
      %p214 = scmp.eq.s32.totalorder %s27, 0
      %p215 = por %p213, %p214
      %p216 = scmp.ne.s32.totalorder %s208, %s210
      %p217 = scmp.eq.s32.totalorder %s32, 1
      %p218 = por %p216, %p217
      %p219 = scmp.ne.s32.totalorder %s210, %s211
      %p220 = scmp.eq.s32.totalorder %s32, 0
      %p221 = por %p219, %p220
      %p222 = scmp.ne.s32.totalorder %s210, %s211
      %p223 = scmp.eq.s32.totalorder %s33, 1
      %p224 = por %p222, %p223
      %p226 = scmp.ne.s32.totalorder %s211, %s225
      %p227 = scmp.eq.s32.totalorder %s33, 0
      %p228 = por %p226, %p227
      %s230 = sadd.s32 %s229, 1
      %p233 = scmp.eq.s32.totalorder %s27, 1
      %p234 = scmp.ne.s32.totalorder %s229, %s231
      %p235 = scmp.eq.s32.totalorder %s27, 0
      %p236 = por %p234, %p235
      %p237 = scmp.ne.s32.totalorder %s229, %s231
      %p238 = scmp.eq.s32.totalorder %s32, 1
      %p239 = por %p237, %p238
      %p240 = scmp.ne.s32.totalorder %s231, %s232
      %p241 = scmp.eq.s32.totalorder %s32, 0
      %p242 = por %p240, %p241
      %p243 = scmp.ne.s32.totalorder %s231, %s232
      %p244 = scmp.eq.s32.totalorder %s33, 1
      %p245 = por %p243, %p244
      %p247 = scmp.ne.s32.totalorder %s232, %s246
      %p248 = scmp.eq.s32.totalorder %s33, 0
      %p249 = por %p247, %p248
      %s251 = sadd.s32 %s250, 1
      %p254 = scmp.eq.s32.totalorder %s27, 1
      %p255 = scmp.ne.s32.totalorder %s250, %s252
      %p256 = scmp.eq.s32.totalorder %s27, 0
      %p257 = por %p255, %p256
      %p258 = scmp.ne.s32.totalorder %s250, %s252
      %p259 = scmp.eq.s32.totalorder %s32, 1
      %p260 = por %p258, %p259
      %p261 = scmp.ne.s32.totalorder %s252, %s253
      %p262 = scmp.eq.s32.totalorder %s32, 0
      %p263 = por %p261, %p262
      %p264 = scmp.ne.s32.totalorder %s252, %s253
      %p265 = scmp.eq.s32.totalorder %s33, 1
      %p266 = por %p264, %p265
      %p268 = scmp.ne.s32.totalorder %s253, %s267
      %p269 = scmp.eq.s32.totalorder %s33, 0
      %p270 = por %p268, %p269
      %s272 = sadd.s32 %s271, 1
      %p275 = scmp.eq.s32.totalorder %s27, 1
      %p276 = scmp.ne.s32.totalorder %s271, %s273
      %p277 = scmp.eq.s32.totalorder %s27, 0
      %p278 = por %p276, %p277
      %p279 = scmp.ne.s32.totalorder %s271, %s273
      %p280 = scmp.eq.s32.totalorder %s32, 1
      %p281 = por %p279, %p280
      %p282 = scmp.ne.s32.totalorder %s273, %s274
      %p283 = scmp.eq.s32.totalorder %s32, 0
      %p284 = por %p282, %p283
      %p285 = scmp.ne.s32.totalorder %s273, %s274
      %p286 = scmp.eq.s32.totalorder %s33, 1
      %p287 = por %p285, %p286
      %p289 = scmp.ne.s32.totalorder %s274, %s288
      %p290 = scmp.eq.s32.totalorder %s33, 0
      %p291 = por %p289, %p290
      %s293 = sadd.s32 %s292, 1
      %p296 = scmp.eq.s32.totalorder %s27, 1
      %p297 = scmp.ne.s32.totalorder %s292, %s294
      %p298 = scmp.eq.s32.totalorder %s27, 0
      %p299 = por %p297, %p298
      %p300 = scmp.ne.s32.totalorder %s292, %s294
      %p301 = scmp.eq.s32.totalorder %s32, 1
      %p302 = por %p300, %p301
      %p303 = scmp.ne.s32.totalorder %s294, %s295
      %p304 = scmp.eq.s32.totalorder %s32, 0
      %p305 = por %p303, %p304
      %p306 = scmp.ne.s32.totalorder %s294, %s295
      %p307 = scmp.eq.s32.totalorder %s33, 1
      %p308 = por %p306, %p307
      %p310 = scmp.ne.s32.totalorder %s295, %s309
      %p311 = scmp.eq.s32.totalorder %s33, 0
      %p312 = por %p310, %p311
      %s314 = sadd.s32 %s313, 1
      %p317 = scmp.eq.s32.totalorder %s27, 1
      %p318 = scmp.ne.s32.totalorder %s313, %s315
      %p319 = scmp.eq.s32.totalorder %s27, 0
      %p320 = por %p318, %p319
      %p321 = scmp.ne.s32.totalorder %s313, %s315
      %p322 = scmp.eq.s32.totalorder %s32, 1
      %p323 = por %p321, %p322
      %p324 = scmp.ne.s32.totalorder %s315, %s316
      %p325 = scmp.eq.s32.totalorder %s32, 0
      %p326 = por %p324, %p325
      %p327 = scmp.ne.s32.totalorder %s315, %s316
      %p328 = scmp.eq.s32.totalorder %s33, 1
      %p329 = por %p327, %p328
      %p331 = scmp.ne.s32.totalorder %s316, %s330
      %p332 = scmp.eq.s32.totalorder %s33, 0
      %p333 = por %p331, %p332
      %s335 = sadd.s32 %s334, 1
      %p338 = scmp.eq.s32.totalorder %s27, 1
      %p339 = scmp.ne.s32.totalorder %s334, %s336
      %p340 = scmp.eq.s32.totalorder %s27, 0
      %p341 = por %p339, %p340
      %p342 = scmp.ne.s32.totalorder %s334, %s336
      %p343 = scmp.eq.s32.totalorder %s32, 1
      %p344 = por %p342, %p343
      %p345 = scmp.ne.s32.totalorder %s336, %s337
      %p346 = scmp.eq.s32.totalorder %s32, 0
      %p347 = por %p345, %p346
      %p348 = scmp.ne.s32.totalorder %s336, %s337
      %p349 = scmp.eq.s32.totalorder %s33, 1
      %p350 = por %p348, %p349
      %p352 = scmp.ne.s32.totalorder %s337, %s351
      %p353 = scmp.eq.s32.totalorder %s33, 0
      %p354 = por %p352, %p353
      %s355 = ssub.s32 %s27, %s34
      %p356 = scmp.eq.s32.totalorder %s355, 0
      %s358 = sadd.s32 %s357, 1
      %s359 = scalar_select %p356, %s357, %s358
      %p362 = pneg %p356
      %p363 = scmp.eq.s32.totalorder %s27, 1
      %p364 = por %p362, %p363
      %p365 = scmp.ne.s32.totalorder %s357, %s360
      %p366 = scmp.eq.s32.totalorder %s27, 0
      %p367 = por %p365, %p366
      %p368 = scmp.ne.s32.totalorder %s357, %s360
      %p369 = scmp.eq.s32.totalorder %s32, 1
      %p370 = por %p368, %p369
      %p371 = scmp.ne.s32.totalorder %s360, %s361
      %p372 = scmp.eq.s32.totalorder %s32, 0
      %p373 = por %p371, %p372
      %p374 = scmp.ne.s32.totalorder %s360, %s361
      %p375 = scmp.eq.s32.totalorder %s33, 1
      %p376 = por %p374, %p375
      %p378 = scmp.ne.s32.totalorder %s361, %s377
      %p379 = scmp.eq.s32.totalorder %s33, 0
      %p380 = por %p378, %p379
      %p381 = scmp.le.s32.totalorder 1, %s27
      %p382 = scmp.lt.s32.totalorder %s27, 3
      %p383 = pnand %p381, %p382
      %p384 = pneg %p383
      // Predicated region
      $region9: #{_lambda_.1} parent=5 // pred_check
        _
      $region10: #{_lambda_.1} parent=5 // pred_check_branch
        %386 = sbr.rel (%p383) target = $region12
      $region11: #{_lambda_.1} parent=5 // pred_region
        %s387 = ssub.s32 %s27, 1
        // Predicated region
        $region13: #{_lambda_.1} parent=11 // pred_check
          %p388 = pneg %p74
        $region14: #{_lambda_.1} parent=11 // pred_check_branch
          %390 = sbr.rel (%p388) target = $region16
        $region15: #{_lambda_.1} parent=11 // pred_region
          _
        $region16: #{_lambda_.1} parent=11 // pred_fallthru
          _
        // Predicated region
        $region17: #{_lambda_.1} parent=11 // pred_check
          %p391 = pneg %p95
        $region18: #{_lambda_.1} parent=11 // pred_check_branch
          %393 = sbr.rel (%p391) target = $region20
        $region19: #{_lambda_.1} parent=11 // pred_region
          _
        $region20: #{_lambda_.1} parent=11 // pred_fallthru
          _
        // Predicated region
        $region21: #{_lambda_.1} parent=11 // pred_check
          %p394 = pneg %p116
        $region22: #{_lambda_.1} parent=11 // pred_check_branch
          %396 = sbr.rel (%p394) target = $region24
        $region23: #{_lambda_.1} parent=11 // pred_region
          %398 = vsyncadd [#allocation13], 0
          %s399 = sshll.u32 %s3, 4
          %s400 = int_to_ptr.hbm [resolvable:$true] %s399
          %s401 = sshll.u32 [#allocation12], 4
          %s402 = int_to_ptr.vmem [resolvable:$true] %s401
          %407 = dma.hbm_to_vmem [thread:$0]  %s400, 4608, %s402, [#allocation13], 64, 64, 4
        $region24: #{_lambda_.1} parent=11 // pred_fallthru
          _
        // Predicated region
        $region25: #{_lambda_.1} parent=11 // pred_check
          %p408 = pneg %p137
        $region26: #{_lambda_.1} parent=11 // pred_check_branch
          %410 = sbr.rel (%p408) target = $region28
        $region27: #{_lambda_.1} parent=11 // pred_region
          %412 = vsyncadd [#allocation16], 0
          %s413 = sshll.u32 %s4, 4
          %s414 = int_to_ptr.hbm [resolvable:$true] %s413
          %s415 = sshll.u32 [#allocation15], 4
          %s416 = int_to_ptr.vmem [resolvable:$true] %s415
          %421 = dma.hbm_to_vmem [thread:$0]  %s414, 18432, %s416, [#allocation16], 128, 128, 8
        $region28: #{_lambda_.1} parent=11 // pred_fallthru
          _
        // Predicated region
        $region29: #{_lambda_.1} parent=11 // pred_check
          %p422 = pneg %p158
        $region30: #{_lambda_.1} parent=11 // pred_check_branch
          %424 = sbr.rel (%p422) target = $region32
        $region31: #{_lambda_.1} parent=11 // pred_region
          _
        $region32: #{_lambda_.1} parent=11 // pred_fallthru
          _
        // Predicated region
        $region33: #{_lambda_.1} parent=11 // pred_check
          %p425 = pneg %p179
        $region34: #{_lambda_.1} parent=11 // pred_check_branch
          %427 = sbr.rel (%p425) target = $region36
        $region35: #{_lambda_.1} parent=11 // pred_region
          _
        $region36: #{_lambda_.1} parent=11 // pred_fallthru
          _
        // Predicated region
        $region37: #{_lambda_.1} parent=11 // pred_check
          %p428 = pneg %p200
        $region38: #{_lambda_.1} parent=11 // pred_check_branch
          %430 = sbr.rel (%p428) target = $region40
        $region39: #{_lambda_.1} parent=11 // pred_region
          %432 = vsyncadd [#allocation16], 0
          %s434 = sshll.u32 %s7, 4
          %s435 = int_to_ptr.hbm [resolvable:$true] %s434
          %s436 = sshll.u32 [#allocation17], 4
          %s437 = int_to_ptr.vmem [resolvable:$true] %s436
          %439 = dma.hbm_to_vmem [thread:$0]  %s435, 16, %s437, [#allocation16]
        $region40: #{_lambda_.1} parent=11 // pred_fallthru
          _
        // Predicated region
        $region41: #{_lambda_.1} parent=11 // pred_check
          %p440 = pneg %p221
        $region42: #{_lambda_.1} parent=11 // pred_check_branch
          %442 = sbr.rel (%p440) target = $region44
        $region43: #{_lambda_.1} parent=11 // pred_region
          _
        $region44: #{_lambda_.1} parent=11 // pred_fallthru
          _
        // Predicated region
        $region45: #{_lambda_.1} parent=11 // pred_check
          %p443 = pneg %p242
        $region46: #{_lambda_.1} parent=11 // pred_check_branch
          %445 = sbr.rel (%p443) target = $region48
        $region47: #{_lambda_.1} parent=11 // pred_region
          _
        $region48: #{_lambda_.1} parent=11 // pred_fallthru
          _
        // Predicated region
        $region49: #{_lambda_.1} parent=11 // pred_check
          %p446 = pneg %p263
        $region50: #{_lambda_.1} parent=11 // pred_check_branch
          %448 = sbr.rel (%p446) target = $region52
        $region51: #{_lambda_.1} parent=11 // pred_region
          _
        $region52: #{_lambda_.1} parent=11 // pred_fallthru
          _
        // Predicated region
        $region53: #{_lambda_.1} parent=11 // pred_check
          %p449 = pneg %p284
        $region54: #{_lambda_.1} parent=11 // pred_check_branch
          %451 = sbr.rel (%p449) target = $region56
        $region55: #{_lambda_.1} parent=11 // pred_region
          %453 = vsyncadd [#allocation19], 0
          %s454 = sshll.u32 %s11, 4
          %s455 = int_to_ptr.hbm [resolvable:$true] %s454
          %s456 = sshll.u32 [#allocation18], 4
          %s457 = int_to_ptr.vmem [resolvable:$true] %s456
          %462 = dma.hbm_to_vmem [thread:$0]  %s455, 2048, %s457, [#allocation19], 64, 64, 4
        $region56: #{_lambda_.1} parent=11 // pred_fallthru
          _
        // Predicated region
        $region57: #{_lambda_.1} parent=11 // pred_check
          %p463 = pneg %p305
        $region58: #{_lambda_.1} parent=11 // pred_check_branch
          %465 = sbr.rel (%p463) target = $region60
        $region59: #{_lambda_.1} parent=11 // pred_region
          _
        $region60: #{_lambda_.1} parent=11 // pred_fallthru
          _
        // Predicated region
        $region61: #{_lambda_.1} parent=11 // pred_check
          %p466 = pneg %p326
        $region62: #{_lambda_.1} parent=11 // pred_check_branch
          %468 = sbr.rel (%p466) target = $region64
        $region63: #{_lambda_.1} parent=11 // pred_region
          _
        $region64: #{_lambda_.1} parent=11 // pred_fallthru
          _
        // Predicated region
        $region65: #{_lambda_.1} parent=11 // pred_check
          %p469 = pneg %p347
        $region66: #{_lambda_.1} parent=11 // pred_check_branch
          %471 = sbr.rel (%p469) target = $region68
        $region67: #{_lambda_.1} parent=11 // pred_region
          %473 = vsyncadd [#allocation19], 0
          %s475 = sshll.u32 %s14, 4
          %s476 = int_to_ptr.hbm [resolvable:$true] %s475
          %s477 = sshll.u32 [#allocation20], 4
          %s478 = int_to_ptr.vmem [resolvable:$true] %s477
          %480 = dma.hbm_to_vmem [thread:$0]  %s476, 16, %s478, [#allocation19]
        $region68: #{_lambda_.1} parent=11 // pred_fallthru
          _
      $region12: #{_lambda_.1} parent=5 // pred_fallthru
        _
      %p481 = scmp.lt.s32.totalorder %s27, 2
      // Predicated region
      $region69: #{_lambda_.1} parent=5 // pred_check
        %p482 = pneg %p481
      $region70: #{_lambda_.1} parent=5 // pred_check_branch
        %484 = sbr.rel (%p482) target = $region72
      $region71: #{_lambda_.1} parent=5 // pred_region
        // Predicated region
        $region73: #{_lambda_.1} parent=71 // pred_check
          %p485 = pneg %p47
        $region74: #{_lambda_.1} parent=71 // pred_check_branch
          %487 = sbr.rel (%p485) target = $region76
        $region75: #{_lambda_.1} parent=71 // pred_region
          %s488 = smul.u32 41, %s27
          %p489 = scmp.lt.s32.totalorder %s488, 81
          %s490 = scalar_select %p489, %s488, 81
          %s491 = smul.addr %s490, 8
          %s492 = scalar_lea.vmem %s0, %s491
          %s493 = smul.u32 41, %s27
        $region76: #{_lambda_.1} parent=71 // pred_fallthru
          _
      $region72: #{_lambda_.1} parent=5 // pred_fallthru
        _
      %p494 = scmp.le.s32.totalorder 1, %s27
      %p495 = scmp.lt.s32.totalorder %s27, 3
      %p496 = pnand %p494, %p495
      %p497 = pneg %p496
      // Predicated region
      $region77: #{_lambda_.1} parent=5 // pred_check
        _
      $region78: #{_lambda_.1} parent=5 // pred_check_branch
        %499 = sbr.rel (%p496) target = $region80
      $region79: #{_lambda_.1} parent=5 // pred_region
        %s500 = ssub.s32 %s27, 1
        // Predicated region
        $region81: #{_lambda_.1} parent=79 // pred_check
          %p501 = pneg %p116
        $region82: #{_lambda_.1} parent=79 // pred_check_branch
          %503 = sbr.rel (%p501) target = $region84
        $region83: #{_lambda_.1} parent=79 // pred_region
          %505 = dma.done [#allocation13], 4608
        $region84: #{_lambda_.1} parent=79 // pred_fallthru
          _
        // Predicated region
        $region85: #{_lambda_.1} parent=79 // pred_check
          %p506 = pneg %p137
        $region86: #{_lambda_.1} parent=79 // pred_check_branch
          %508 = sbr.rel (%p506) target = $region88
        $region87: #{_lambda_.1} parent=79 // pred_region
          %510 = dma.done [#allocation16], 18432
        $region88: #{_lambda_.1} parent=79 // pred_fallthru
          _
        // Predicated region
        $region89: #{_lambda_.1} parent=79 // pred_check
          %p511 = pneg %p200
        $region90: #{_lambda_.1} parent=79 // pred_check_branch
          %513 = sbr.rel (%p511) target = $region92
        $region91: #{_lambda_.1} parent=79 // pred_region
          %515 = dma.done [#allocation16], 16
        $region92: #{_lambda_.1} parent=79 // pred_fallthru
          _
        // Predicated region
        $region93: #{_lambda_.1} parent=79 // pred_check
          %p516 = pneg %p284
        $region94: #{_lambda_.1} parent=79 // pred_check_branch
          %518 = sbr.rel (%p516) target = $region96
        $region95: #{_lambda_.1} parent=79 // pred_region
          %520 = dma.done [#allocation19], 2048
        $region96: #{_lambda_.1} parent=79 // pred_fallthru
          _
        // Predicated region
        $region97: #{_lambda_.1} parent=79 // pred_check
          %p521 = pneg %p347
        $region98: #{_lambda_.1} parent=79 // pred_check_branch
          %523 = sbr.rel (%p521) target = $region100
        $region99: #{_lambda_.1} parent=79 // pred_region
          %525 = dma.done [#allocation19], 16
        $region100: #{_lambda_.1} parent=79 // pred_fallthru
          _
        %s526 = smul.u32 41, %s32
        %p527 = scmp.lt.s32.totalorder %s526, 81
        %s528 = scalar_select %p527, %s526, 81
        %s529 = smul.addr %s528, 8
        %s530 = scalar_lea.vmem %s0, %s529
        %p531 = pneg %p53
        %p532 = pneg %p50
        %p533 = pneg %p74
        %p534 = pneg %p71
        %p535 = pneg %p95
        %p536 = pneg %p92
        %p537 = pneg %p116
        %p538 = pneg %p113
        %p539 = pneg %p137
        %p540 = pneg %p134
        %p541 = pneg %p158
        %p542 = pneg %p155
        %p543 = pneg %p179
        %p544 = pneg %p176
        %p545 = pneg %p200
        %p546 = pneg %p197
        %p547 = pneg %p221
        %p548 = pneg %p218
        %p549 = pneg %p242
        %p550 = pneg %p239
        %p551 = pneg %p263
        %p552 = pneg %p260
        %p553 = pneg %p284
        %p554 = pneg %p281
        %p555 = pneg %p305
        %p556 = pneg %p302
        %p557 = pneg %p326
        %p558 = pneg %p323
        %p559 = pneg %p347
        %p560 = pneg %p344
        %p561 = pneg %p373
        %p562 = pneg %p370
        %s563 = sand.u32 %s360, 1
        %s564 = scalar_lea.sflag [#allocation14], %s563
        %s565 = sand.u32 %s360, 1
        %s566 = scalar_lea.vmem [#allocation21], %s565
        %s567 = smul.u32 41, %s32
        %p568 = scmp.lt.s32.totalorder %s567, 81
        %s569 = scalar_select %p568, %s567, 81
        %s570 = smul.addr %s569, 8
        %s571 = scalar_lea.vmem %s0, %s570
        %s572 = smul.u32 41, %s32
        %v574 = vld [vmem:[%s1] sm:$0xff]
        %v575 = vld [vmem:[%s1 + $0x8] sm:$0x1]
        %v576 = vld [vmem:[%s5] sm:$0x1]
        %v577 = vld [vmem:[%s571] sm:$0xff]
        %v578 = vld [vmem:[%s571 + $0x8] sm:$0xff]
        %v579 = vld [vmem:[%s571 + $0x10] sm:$0xff]
        %v580 = vld [vmem:[%s571 + $0x18] sm:$0xff]
        %v581 = vld [vmem:[%s571 + $0x20] sm:$0xff]
        %v582 = vld [vmem:[%s571 + $0x28] sm:$0xff]
        %v583 = vld [vmem:[%s571 + $0x30] sm:$0xff]
        %v584 = vld [vmem:[%s571 + $0x38] sm:$0xff]
        %v585 = vld [vmem:[%s571 + $0x40] sm:$0xff]
        %v586 = vld [vmem:[%s571 + $0x48] sm:$0xff]
        %v587 = vld [vmem:[%s571 + $0x50] sm:$0xff]
        %v588 = vld [vmem:[%s571 + $0x58] sm:$0xff]
        %v589 = vld [vmem:[%s571 + $0x60] sm:$0xff]
        %v590 = vld [vmem:[%s571 + $0x68] sm:$0xff]
        %v591 = vld [vmem:[%s571 + $0x70] sm:$0xff]
        %v592 = vld [vmem:[%s571 + $0x78] sm:$0xff]
        %594 = vset.pattern.permute.xlu0 0
        %595 = vperm.xlu0 %594, %v577
        %v596 = vpop.permute.xlu0 %595
        %599 = vset.pattern.permute.xlu0 0
        %600 = vperm.xlu0 %599, %v578
        %v601 = vpop.permute.xlu0 %600
        %604 = vset.pattern.permute.xlu0 0
        %605 = vperm.xlu0 %604, %v579
        %v606 = vpop.permute.xlu0 %605
        %609 = vset.pattern.permute.xlu0 0
        %610 = vperm.xlu0 %609, %v580
        %v611 = vpop.permute.xlu0 %610
        %614 = vset.pattern.permute.xlu0 0
        %615 = vperm.xlu0 %614, %v581
        %v616 = vpop.permute.xlu0 %615
        %619 = vset.pattern.permute.xlu0 0
        %620 = vperm.xlu0 %619, %v582
        %v621 = vpop.permute.xlu0 %620
        %624 = vset.pattern.permute.xlu0 0
        %625 = vperm.xlu0 %624, %v583
        %v626 = vpop.permute.xlu0 %625
        %629 = vset.pattern.permute.xlu0 0
        %630 = vperm.xlu0 %629, %v584
        %v631 = vpop.permute.xlu0 %630
        %634 = vset.pattern.permute.xlu0 0
        %635 = vperm.xlu0 %634, %v585
        %v636 = vpop.permute.xlu0 %635
        %639 = vset.pattern.permute.xlu0 0
        %640 = vperm.xlu0 %639, %v586
        %v641 = vpop.permute.xlu0 %640
        %644 = vset.pattern.permute.xlu0 0
        %645 = vperm.xlu0 %644, %v587
        %v646 = vpop.permute.xlu0 %645
        %649 = vset.pattern.permute.xlu0 0
        %650 = vperm.xlu0 %649, %v588
        %v651 = vpop.permute.xlu0 %650
        %654 = vset.pattern.permute.xlu0 0
        %655 = vperm.xlu0 %654, %v589
        %v656 = vpop.permute.xlu0 %655
        %659 = vset.pattern.permute.xlu0 0
        %660 = vperm.xlu0 %659, %v590
        %v661 = vpop.permute.xlu0 %660
        %664 = vset.pattern.permute.xlu0 0
        %665 = vperm.xlu0 %664, %v591
        %v666 = vpop.permute.xlu0 %665
        %669 = vset.pattern.permute.xlu0 0
        %670 = vperm.xlu0 %669, %v592
        %v671 = vpop.permute.xlu0 %670
        %v673 = vperm.slane %v574, 0
        %v674 = vmul.f32 %v596, %v673
        %v675 = vmul.f32 %v601, %v673
        %v676 = vmul.f32 %v606, %v673
        %v677 = vmul.f32 %v611, %v673
        %v678 = vmul.f32 %v616, %v673
        %v679 = vmul.f32 %v621, %v673
        %v680 = vmul.f32 %v626, %v673
        %v681 = vmul.f32 %v631, %v673
        %v682 = vmul.f32 %v636, %v673
        %v683 = vmul.f32 %v641, %v673
        %v684 = vmul.f32 %v646, %v673
        %v685 = vmul.f32 %v651, %v673
        %v686 = vmul.f32 %v656, %v673
        %v687 = vmul.f32 %v661, %v673
        %v688 = vmul.f32 %v666, %v673
        %v689 = vmul.f32 %v671, %v673
        %v690 = vld [vmem:[%s571 + $0x1] sm:$0xff]
        %v691 = vld [vmem:[%s571 + $0x9] sm:$0xff]
        %v692 = vld [vmem:[%s571 + $0x11] sm:$0xff]
        %v693 = vld [vmem:[%s571 + $0x19] sm:$0xff]
        %v694 = vld [vmem:[%s571 + $0x21] sm:$0xff]
        %v695 = vld [vmem:[%s571 + $0x29] sm:$0xff]
        %v696 = vld [vmem:[%s571 + $0x31] sm:$0xff]
        %v697 = vld [vmem:[%s571 + $0x39] sm:$0xff]
        %v698 = vld [vmem:[%s571 + $0x41] sm:$0xff]
        %v699 = vld [vmem:[%s571 + $0x49] sm:$0xff]
        %v700 = vld [vmem:[%s571 + $0x51] sm:$0xff]
        %v701 = vld [vmem:[%s571 + $0x59] sm:$0xff]
        %v702 = vld [vmem:[%s571 + $0x61] sm:$0xff]
        %v703 = vld [vmem:[%s571 + $0x69] sm:$0xff]
        %v704 = vld [vmem:[%s571 + $0x71] sm:$0xff]
        %v705 = vld [vmem:[%s571 + $0x79] sm:$0xff]
        %707 = vset.pattern.permute.xlu0 0
        %708 = vperm.xlu0 %707, %v690
        %v709 = vpop.permute.xlu0 %708
        %712 = vset.pattern.permute.xlu0 0
        %713 = vperm.xlu0 %712, %v691
        %v714 = vpop.permute.xlu0 %713
        %717 = vset.pattern.permute.xlu0 0
        %718 = vperm.xlu0 %717, %v692
        %v719 = vpop.permute.xlu0 %718
        %722 = vset.pattern.permute.xlu0 0
        %723 = vperm.xlu0 %722, %v693
        %v724 = vpop.permute.xlu0 %723
        %727 = vset.pattern.permute.xlu0 0
        %728 = vperm.xlu0 %727, %v694
        %v729 = vpop.permute.xlu0 %728
        %732 = vset.pattern.permute.xlu0 0
        %733 = vperm.xlu0 %732, %v695
        %v734 = vpop.permute.xlu0 %733
        %737 = vset.pattern.permute.xlu0 0
        %738 = vperm.xlu0 %737, %v696
        %v739 = vpop.permute.xlu0 %738
        %742 = vset.pattern.permute.xlu0 0
        %743 = vperm.xlu0 %742, %v697
        %v744 = vpop.permute.xlu0 %743
        %747 = vset.pattern.permute.xlu0 0
        %748 = vperm.xlu0 %747, %v698
        %v749 = vpop.permute.xlu0 %748
        %752 = vset.pattern.permute.xlu0 0
        %753 = vperm.xlu0 %752, %v699
        %v754 = vpop.permute.xlu0 %753
        %757 = vset.pattern.permute.xlu0 0
        %758 = vperm.xlu0 %757, %v700
        %v759 = vpop.permute.xlu0 %758
        %762 = vset.pattern.permute.xlu0 0
        %763 = vperm.xlu0 %762, %v701
        %v764 = vpop.permute.xlu0 %763
        %767 = vset.pattern.permute.xlu0 0
        %768 = vperm.xlu0 %767, %v702
        %v769 = vpop.permute.xlu0 %768
        %772 = vset.pattern.permute.xlu0 0
        %773 = vperm.xlu0 %772, %v703
        %v774 = vpop.permute.xlu0 %773
        %777 = vset.pattern.permute.xlu0 0
        %778 = vperm.xlu0 %777, %v704
        %v779 = vpop.permute.xlu0 %778
        %782 = vset.pattern.permute.xlu0 0
        %783 = vperm.xlu0 %782, %v705
        %v784 = vpop.permute.xlu0 %783
        %v786 = vperm.slane %v574, 1
        %v787 = vmul.f32 %v709, %v786
        %v788 = vmul.f32 %v714, %v786
        %v789 = vmul.f32 %v719, %v786
        %v790 = vmul.f32 %v724, %v786
        %v791 = vmul.f32 %v729, %v786
        %v792 = vmul.f32 %v734, %v786
        %v793 = vmul.f32 %v739, %v786
        %v794 = vmul.f32 %v744, %v786
        %v795 = vmul.f32 %v749, %v786
        %v796 = vmul.f32 %v754, %v786
        %v797 = vmul.f32 %v759, %v786
        %v798 = vmul.f32 %v764, %v786
        %v799 = vmul.f32 %v769, %v786
        %v800 = vmul.f32 %v774, %v786
        %v801 = vmul.f32 %v779, %v786
        %v802 = vmul.f32 %v784, %v786
        %v803 = vadd.f32 %v674, %v787
        %v804 = vadd.f32 %v675, %v788
        %v805 = vadd.f32 %v676, %v789
        %v806 = vadd.f32 %v677, %v790
        %v807 = vadd.f32 %v678, %v791
        %v808 = vadd.f32 %v679, %v792
        %v809 = vadd.f32 %v680, %v793
        %v810 = vadd.f32 %v681, %v794
        %v811 = vadd.f32 %v682, %v795
        %v812 = vadd.f32 %v683, %v796
        %v813 = vadd.f32 %v684, %v797
        %v814 = vadd.f32 %v685, %v798
        %v815 = vadd.f32 %v686, %v799
        %v816 = vadd.f32 %v687, %v800
        %v817 = vadd.f32 %v688, %v801
        %v818 = vadd.f32 %v689, %v802
        %v819 = vld [vmem:[%s571 + $0x2] sm:$0xff]
        %v820 = vld [vmem:[%s571 + $0xa] sm:$0xff]
        %v821 = vld [vmem:[%s571 + $0x12] sm:$0xff]
        %v822 = vld [vmem:[%s571 + $0x1a] sm:$0xff]
        %v823 = vld [vmem:[%s571 + $0x22] sm:$0xff]
        %v824 = vld [vmem:[%s571 + $0x2a] sm:$0xff]
        %v825 = vld [vmem:[%s571 + $0x32] sm:$0xff]
        %v826 = vld [vmem:[%s571 + $0x3a] sm:$0xff]
        %v827 = vld [vmem:[%s571 + $0x42] sm:$0xff]
        %v828 = vld [vmem:[%s571 + $0x4a] sm:$0xff]
        %v829 = vld [vmem:[%s571 + $0x52] sm:$0xff]
        %v830 = vld [vmem:[%s571 + $0x5a] sm:$0xff]
        %v831 = vld [vmem:[%s571 + $0x62] sm:$0xff]
        %v832 = vld [vmem:[%s571 + $0x6a] sm:$0xff]
        %v833 = vld [vmem:[%s571 + $0x72] sm:$0xff]
        %v834 = vld [vmem:[%s571 + $0x7a] sm:$0xff]
        %836 = vset.pattern.permute.xlu0 0
        %837 = vperm.xlu0 %836, %v819
        %v838 = vpop.permute.xlu0 %837
        %841 = vset.pattern.permute.xlu0 0
        %842 = vperm.xlu0 %841, %v820
        %v843 = vpop.permute.xlu0 %842
        %846 = vset.pattern.permute.xlu0 0
        %847 = vperm.xlu0 %846, %v821
        %v848 = vpop.permute.xlu0 %847
        %851 = vset.pattern.permute.xlu0 0
        %852 = vperm.xlu0 %851, %v822
        %v853 = vpop.permute.xlu0 %852
        %856 = vset.pattern.permute.xlu0 0
        %857 = vperm.xlu0 %856, %v823
        %v858 = vpop.permute.xlu0 %857
        %861 = vset.pattern.permute.xlu0 0
        %862 = vperm.xlu0 %861, %v824
        %v863 = vpop.permute.xlu0 %862
        %866 = vset.pattern.permute.xlu0 0
        %867 = vperm.xlu0 %866, %v825
        %v868 = vpop.permute.xlu0 %867
        %871 = vset.pattern.permute.xlu0 0
        %872 = vperm.xlu0 %871, %v826
        %v873 = vpop.permute.xlu0 %872
        %876 = vset.pattern.permute.xlu0 0
        %877 = vperm.xlu0 %876, %v827
        %v878 = vpop.permute.xlu0 %877
        %881 = vset.pattern.permute.xlu0 0
        %882 = vperm.xlu0 %881, %v828
        %v883 = vpop.permute.xlu0 %882
        %886 = vset.pattern.permute.xlu0 0
        %887 = vperm.xlu0 %886, %v829
        %v888 = vpop.permute.xlu0 %887
        %891 = vset.pattern.permute.xlu0 0
        %892 = vperm.xlu0 %891, %v830
        %v893 = vpop.permute.xlu0 %892
        %896 = vset.pattern.permute.xlu0 0
        %897 = vperm.xlu0 %896, %v831
        %v898 = vpop.permute.xlu0 %897
        %901 = vset.pattern.permute.xlu0 0
        %902 = vperm.xlu0 %901, %v832
        %v903 = vpop.permute.xlu0 %902
        %906 = vset.pattern.permute.xlu0 0
        %907 = vperm.xlu0 %906, %v833
        %v908 = vpop.permute.xlu0 %907
        %911 = vset.pattern.permute.xlu0 0
        %912 = vperm.xlu0 %911, %v834
        %v913 = vpop.permute.xlu0 %912
        %v915 = vperm.slane %v574, 2
        %v916 = vmul.f32 %v838, %v915
        %v917 = vmul.f32 %v843, %v915
        %v918 = vmul.f32 %v848, %v915
        %v919 = vmul.f32 %v853, %v915
        %v920 = vmul.f32 %v858, %v915
        %v921 = vmul.f32 %v863, %v915
        %v922 = vmul.f32 %v868, %v915
        %v923 = vmul.f32 %v873, %v915
        %v924 = vmul.f32 %v878, %v915
        %v925 = vmul.f32 %v883, %v915
        %v926 = vmul.f32 %v888, %v915
        %v927 = vmul.f32 %v893, %v915
        %v928 = vmul.f32 %v898, %v915
        %v929 = vmul.f32 %v903, %v915
        %v930 = vmul.f32 %v908, %v915
        %v931 = vmul.f32 %v913, %v915
        %v932 = vadd.f32 %v803, %v916
        %v933 = vadd.f32 %v804, %v917
        %v934 = vadd.f32 %v805, %v918
        %v935 = vadd.f32 %v806, %v919
        %v936 = vadd.f32 %v807, %v920
        %v937 = vadd.f32 %v808, %v921
        %v938 = vadd.f32 %v809, %v922
        %v939 = vadd.f32 %v810, %v923
        %v940 = vadd.f32 %v811, %v924
        %v941 = vadd.f32 %v812, %v925
        %v942 = vadd.f32 %v813, %v926
        %v943 = vadd.f32 %v814, %v927
        %v944 = vadd.f32 %v815, %v928
        %v945 = vadd.f32 %v816, %v929
        %v946 = vadd.f32 %v817, %v930
        %v947 = vadd.f32 %v818, %v931
        %v948 = vld [vmem:[%s571 + $0x12] sm:$0xff]
        %v949 = vld [vmem:[%s571 + $0x1a] sm:$0xff]
        %v950 = vld [vmem:[%s571 + $0x22] sm:$0xff]
        %v951 = vld [vmem:[%s571 + $0x2a] sm:$0xff]
        %v952 = vld [vmem:[%s571 + $0x32] sm:$0xff]
        %v953 = vld [vmem:[%s571 + $0x3a] sm:$0xff]
        %v954 = vld [vmem:[%s571 + $0x42] sm:$0xff]
        %v955 = vld [vmem:[%s571 + $0x4a] sm:$0xff]
        %v956 = vld [vmem:[%s571 + $0x52] sm:$0xff]
        %v957 = vld [vmem:[%s571 + $0x5a] sm:$0xff]
        %v958 = vld [vmem:[%s571 + $0x62] sm:$0xff]
        %v959 = vld [vmem:[%s571 + $0x6a] sm:$0xff]
        %v960 = vld [vmem:[%s571 + $0x72] sm:$0xff]
        %v961 = vld [vmem:[%s571 + $0x7a] sm:$0xff]
        %v962 = vld [vmem:[%s571 + $0x82] sm:$0xff]
        %v963 = vld [vmem:[%s571 + $0x8a] sm:$0xff]
        %965 = vset.pattern.permute.xlu0 0
        %966 = vperm.xlu0 %965, %v948
        %v967 = vpop.permute.xlu0 %966
        %970 = vset.pattern.permute.xlu0 0
        %971 = vperm.xlu0 %970, %v949
        %v972 = vpop.permute.xlu0 %971
        %975 = vset.pattern.permute.xlu0 0
        %976 = vperm.xlu0 %975, %v950
        %v977 = vpop.permute.xlu0 %976
        %980 = vset.pattern.permute.xlu0 0
        %981 = vperm.xlu0 %980, %v951
        %v982 = vpop.permute.xlu0 %981
        %985 = vset.pattern.permute.xlu0 0
        %986 = vperm.xlu0 %985, %v952
        %v987 = vpop.permute.xlu0 %986
        %990 = vset.pattern.permute.xlu0 0
        %991 = vperm.xlu0 %990, %v953
        %v992 = vpop.permute.xlu0 %991
        %995 = vset.pattern.permute.xlu0 0
        %996 = vperm.xlu0 %995, %v954
        %v997 = vpop.permute.xlu0 %996
        %1000 = vset.pattern.permute.xlu0 0
        %1001 = vperm.xlu0 %1000, %v955
        %v1002 = vpop.permute.xlu0 %1001
        %1005 = vset.pattern.permute.xlu0 0
        %1006 = vperm.xlu0 %1005, %v956
        %v1007 = vpop.permute.xlu0 %1006
        %1010 = vset.pattern.permute.xlu0 0
        %1011 = vperm.xlu0 %1010, %v957
        %v1012 = vpop.permute.xlu0 %1011
        %1015 = vset.pattern.permute.xlu0 0
        %1016 = vperm.xlu0 %1015, %v958
        %v1017 = vpop.permute.xlu0 %1016
        %1020 = vset.pattern.permute.xlu0 0
        %1021 = vperm.xlu0 %1020, %v959
        %v1022 = vpop.permute.xlu0 %1021
        %1025 = vset.pattern.permute.xlu0 0
        %1026 = vperm.xlu0 %1025, %v960
        %v1027 = vpop.permute.xlu0 %1026
        %1030 = vset.pattern.permute.xlu0 0
        %1031 = vperm.xlu0 %1030, %v961
        %v1032 = vpop.permute.xlu0 %1031
        %1035 = vset.pattern.permute.xlu0 0
        %1036 = vperm.xlu0 %1035, %v962
        %v1037 = vpop.permute.xlu0 %1036
        %1040 = vset.pattern.permute.xlu0 0
        %1041 = vperm.xlu0 %1040, %v963
        %v1042 = vpop.permute.xlu0 %1041
        %v1044 = vperm.slane %v574, 3
        %v1045 = vmul.f32 %v967, %v1044
        %v1046 = vmul.f32 %v972, %v1044
        %v1047 = vmul.f32 %v977, %v1044
        %v1048 = vmul.f32 %v982, %v1044
        %v1049 = vmul.f32 %v987, %v1044
        %v1050 = vmul.f32 %v992, %v1044
        %v1051 = vmul.f32 %v997, %v1044
        %v1052 = vmul.f32 %v1002, %v1044
        %v1053 = vmul.f32 %v1007, %v1044
        %v1054 = vmul.f32 %v1012, %v1044
        %v1055 = vmul.f32 %v1017, %v1044
        %v1056 = vmul.f32 %v1022, %v1044
        %v1057 = vmul.f32 %v1027, %v1044
        %v1058 = vmul.f32 %v1032, %v1044
        %v1059 = vmul.f32 %v1037, %v1044
        %v1060 = vmul.f32 %v1042, %v1044
        %v1061 = vadd.f32 %v932, %v1045
        %v1062 = vadd.f32 %v933, %v1046
        %v1063 = vadd.f32 %v934, %v1047
        %v1064 = vadd.f32 %v935, %v1048
        %v1065 = vadd.f32 %v936, %v1049
        %v1066 = vadd.f32 %v937, %v1050
        %v1067 = vadd.f32 %v938, %v1051
        %v1068 = vadd.f32 %v939, %v1052
        %v1069 = vadd.f32 %v940, %v1053
        %v1070 = vadd.f32 %v941, %v1054
        %v1071 = vadd.f32 %v942, %v1055
        %v1072 = vadd.f32 %v943, %v1056
        %v1073 = vadd.f32 %v944, %v1057
        %v1074 = vadd.f32 %v945, %v1058
        %v1075 = vadd.f32 %v946, %v1059
        %v1076 = vadd.f32 %v947, %v1060
        %v1077 = vld [vmem:[%s571 + $0x13] sm:$0xff]
        %v1078 = vld [vmem:[%s571 + $0x1b] sm:$0xff]
        %v1079 = vld [vmem:[%s571 + $0x23] sm:$0xff]
        %v1080 = vld [vmem:[%s571 + $0x2b] sm:$0xff]
        %v1081 = vld [vmem:[%s571 + $0x33] sm:$0xff]
        %v1082 = vld [vmem:[%s571 + $0x3b] sm:$0xff]
        %v1083 = vld [vmem:[%s571 + $0x43] sm:$0xff]
        %v1084 = vld [vmem:[%s571 + $0x4b] sm:$0xff]
        %v1085 = vld [vmem:[%s571 + $0x53] sm:$0xff]
        %v1086 = vld [vmem:[%s571 + $0x5b] sm:$0xff]
        %v1087 = vld [vmem:[%s571 + $0x63] sm:$0xff]
        %v1088 = vld [vmem:[%s571 + $0x6b] sm:$0xff]
        %v1089 = vld [vmem:[%s571 + $0x73] sm:$0xff]
        %v1090 = vld [vmem:[%s571 + $0x7b] sm:$0xff]
        %v1091 = vld [vmem:[%s571 + $0x83] sm:$0xff]
        %v1092 = vld [vmem:[%s571 + $0x8b] sm:$0xff]
        %1094 = vset.pattern.permute.xlu0 0
        %1095 = vperm.xlu0 %1094, %v1077
        %v1096 = vpop.permute.xlu0 %1095
        %1099 = vset.pattern.permute.xlu0 0
        %1100 = vperm.xlu0 %1099, %v1078
        %v1101 = vpop.permute.xlu0 %1100
        %1104 = vset.pattern.permute.xlu0 0
        %1105 = vperm.xlu0 %1104, %v1079
        %v1106 = vpop.permute.xlu0 %1105
        %1109 = vset.pattern.permute.xlu0 0
        %1110 = vperm.xlu0 %1109, %v1080
        %v1111 = vpop.permute.xlu0 %1110
        %1114 = vset.pattern.permute.xlu0 0
        %1115 = vperm.xlu0 %1114, %v1081
        %v1116 = vpop.permute.xlu0 %1115
        %1119 = vset.pattern.permute.xlu0 0
        %1120 = vperm.xlu0 %1119, %v1082
        %v1121 = vpop.permute.xlu0 %1120
        %1124 = vset.pattern.permute.xlu0 0
        %1125 = vperm.xlu0 %1124, %v1083
        %v1126 = vpop.permute.xlu0 %1125
        %1129 = vset.pattern.permute.xlu0 0
        %1130 = vperm.xlu0 %1129, %v1084
        %v1131 = vpop.permute.xlu0 %1130
        %1134 = vset.pattern.permute.xlu0 0
        %1135 = vperm.xlu0 %1134, %v1085
        %v1136 = vpop.permute.xlu0 %1135
        %1139 = vset.pattern.permute.xlu0 0
        %1140 = vperm.xlu0 %1139, %v1086
        %v1141 = vpop.permute.xlu0 %1140
        %1144 = vset.pattern.permute.xlu0 0
        %1145 = vperm.xlu0 %1144, %v1087
        %v1146 = vpop.permute.xlu0 %1145
        %1149 = vset.pattern.permute.xlu0 0
        %1150 = vperm.xlu0 %1149, %v1088
        %v1151 = vpop.permute.xlu0 %1150
        %1154 = vset.pattern.permute.xlu0 0
        %1155 = vperm.xlu0 %1154, %v1089
        %v1156 = vpop.permute.xlu0 %1155
        %1159 = vset.pattern.permute.xlu0 0
        %1160 = vperm.xlu0 %1159, %v1090
        %v1161 = vpop.permute.xlu0 %1160
        %1164 = vset.pattern.permute.xlu0 0
        %1165 = vperm.xlu0 %1164, %v1091
        %v1166 = vpop.permute.xlu0 %1165
        %1169 = vset.pattern.permute.xlu0 0
        %1170 = vperm.xlu0 %1169, %v1092
        %v1171 = vpop.permute.xlu0 %1170
        %v1173 = vperm.slane %v574, 4
        %v1174 = vmul.f32 %v1096, %v1173
        %v1175 = vmul.f32 %v1101, %v1173
        %v1176 = vmul.f32 %v1106, %v1173
        %v1177 = vmul.f32 %v1111, %v1173
        %v1178 = vmul.f32 %v1116, %v1173
        %v1179 = vmul.f32 %v1121, %v1173
        %v1180 = vmul.f32 %v1126, %v1173
        %v1181 = vmul.f32 %v1131, %v1173
        %v1182 = vmul.f32 %v1136, %v1173
        %v1183 = vmul.f32 %v1141, %v1173
        %v1184 = vmul.f32 %v1146, %v1173
        %v1185 = vmul.f32 %v1151, %v1173
        %v1186 = vmul.f32 %v1156, %v1173
        %v1187 = vmul.f32 %v1161, %v1173
        %v1188 = vmul.f32 %v1166, %v1173
        %v1189 = vmul.f32 %v1171, %v1173
        %v1190 = vadd.f32 %v1061, %v1174
        %v1191 = vadd.f32 %v1062, %v1175
        %v1192 = vadd.f32 %v1063, %v1176
        %v1193 = vadd.f32 %v1064, %v1177
        %v1194 = vadd.f32 %v1065, %v1178
        %v1195 = vadd.f32 %v1066, %v1179
        %v1196 = vadd.f32 %v1067, %v1180
        %v1197 = vadd.f32 %v1068, %v1181
        %v1198 = vadd.f32 %v1069, %v1182
        %v1199 = vadd.f32 %v1070, %v1183
        %v1200 = vadd.f32 %v1071, %v1184
        %v1201 = vadd.f32 %v1072, %v1185
        %v1202 = vadd.f32 %v1073, %v1186
        %v1203 = vadd.f32 %v1074, %v1187
        %v1204 = vadd.f32 %v1075, %v1188
        %v1205 = vadd.f32 %v1076, %v1189
        %v1206 = vld [vmem:[%s571 + $0x14] sm:$0xff]
        %v1207 = vld [vmem:[%s571 + $0x1c] sm:$0xff]
        %v1208 = vld [vmem:[%s571 + $0x24] sm:$0xff]
        %v1209 = vld [vmem:[%s571 + $0x2c] sm:$0xff]
        %v1210 = vld [vmem:[%s571 + $0x34] sm:$0xff]
        %v1211 = vld [vmem:[%s571 + $0x3c] sm:$0xff]
        %v1212 = vld [vmem:[%s571 + $0x44] sm:$0xff]
        %v1213 = vld [vmem:[%s571 + $0x4c] sm:$0xff]
        %v1214 = vld [vmem:[%s571 + $0x54] sm:$0xff]
        %v1215 = vld [vmem:[%s571 + $0x5c] sm:$0xff]
        %v1216 = vld [vmem:[%s571 + $0x64] sm:$0xff]
        %v1217 = vld [vmem:[%s571 + $0x6c] sm:$0xff]
        %v1218 = vld [vmem:[%s571 + $0x74] sm:$0xff]
        %v1219 = vld [vmem:[%s571 + $0x7c] sm:$0xff]
        %v1220 = vld [vmem:[%s571 + $0x84] sm:$0xff]
        %v1221 = vld [vmem:[%s571 + $0x8c] sm:$0xff]
        %1223 = vset.pattern.permute.xlu0 0
        %1224 = vperm.xlu0 %1223, %v1206
        %v1225 = vpop.permute.xlu0 %1224
        %1228 = vset.pattern.permute.xlu0 0
        %1229 = vperm.xlu0 %1228, %v1207
        %v1230 = vpop.permute.xlu0 %1229
        %1233 = vset.pattern.permute.xlu0 0
        %1234 = vperm.xlu0 %1233, %v1208
        %v1235 = vpop.permute.xlu0 %1234
        %1238 = vset.pattern.permute.xlu0 0
        %1239 = vperm.xlu0 %1238, %v1209
        %v1240 = vpop.permute.xlu0 %1239
        %1243 = vset.pattern.permute.xlu0 0
        %1244 = vperm.xlu0 %1243, %v1210
        %v1245 = vpop.permute.xlu0 %1244
        %1248 = vset.pattern.permute.xlu0 0
        %1249 = vperm.xlu0 %1248, %v1211
        %v1250 = vpop.permute.xlu0 %1249
        %1253 = vset.pattern.permute.xlu0 0
        %1254 = vperm.xlu0 %1253, %v1212
        %v1255 = vpop.permute.xlu0 %1254
        %1258 = vset.pattern.permute.xlu0 0
        %1259 = vperm.xlu0 %1258, %v1213
        %v1260 = vpop.permute.xlu0 %1259
        %1263 = vset.pattern.permute.xlu0 0
        %1264 = vperm.xlu0 %1263, %v1214
        %v1265 = vpop.permute.xlu0 %1264
        %1268 = vset.pattern.permute.xlu0 0
        %1269 = vperm.xlu0 %1268, %v1215
        %v1270 = vpop.permute.xlu0 %1269
        %1273 = vset.pattern.permute.xlu0 0
        %1274 = vperm.xlu0 %1273, %v1216
        %v1275 = vpop.permute.xlu0 %1274
        %1278 = vset.pattern.permute.xlu0 0
        %1279 = vperm.xlu0 %1278, %v1217
        %v1280 = vpop.permute.xlu0 %1279
        %1283 = vset.pattern.permute.xlu0 0
        %1284 = vperm.xlu0 %1283, %v1218
        %v1285 = vpop.permute.xlu0 %1284
        %1288 = vset.pattern.permute.xlu0 0
        %1289 = vperm.xlu0 %1288, %v1219
        %v1290 = vpop.permute.xlu0 %1289
        %1293 = vset.pattern.permute.xlu0 0
        %1294 = vperm.xlu0 %1293, %v1220
        %v1295 = vpop.permute.xlu0 %1294
        %1298 = vset.pattern.permute.xlu0 0
        %1299 = vperm.xlu0 %1298, %v1221
        %v1300 = vpop.permute.xlu0 %1299
        %v1302 = vperm.slane %v574, 5
        %v1303 = vmul.f32 %v1225, %v1302
        %v1304 = vmul.f32 %v1230, %v1302
        %v1305 = vmul.f32 %v1235, %v1302
        %v1306 = vmul.f32 %v1240, %v1302
        %v1307 = vmul.f32 %v1245, %v1302
        %v1308 = vmul.f32 %v1250, %v1302
        %v1309 = vmul.f32 %v1255, %v1302
        %v1310 = vmul.f32 %v1260, %v1302
        %v1311 = vmul.f32 %v1265, %v1302
        %v1312 = vmul.f32 %v1270, %v1302
        %v1313 = vmul.f32 %v1275, %v1302
        %v1314 = vmul.f32 %v1280, %v1302
        %v1315 = vmul.f32 %v1285, %v1302
        %v1316 = vmul.f32 %v1290, %v1302
        %v1317 = vmul.f32 %v1295, %v1302
        %v1318 = vmul.f32 %v1300, %v1302
        %v1319 = vadd.f32 %v1190, %v1303
        %v1320 = vadd.f32 %v1191, %v1304
        %v1321 = vadd.f32 %v1192, %v1305
        %v1322 = vadd.f32 %v1193, %v1306
        %v1323 = vadd.f32 %v1194, %v1307
        %v1324 = vadd.f32 %v1195, %v1308
        %v1325 = vadd.f32 %v1196, %v1309
        %v1326 = vadd.f32 %v1197, %v1310
        %v1327 = vadd.f32 %v1198, %v1311
        %v1328 = vadd.f32 %v1199, %v1312
        %v1329 = vadd.f32 %v1200, %v1313
        %v1330 = vadd.f32 %v1201, %v1314
        %v1331 = vadd.f32 %v1202, %v1315
        %v1332 = vadd.f32 %v1203, %v1316
        %v1333 = vadd.f32 %v1204, %v1317
        %v1334 = vadd.f32 %v1205, %v1318
        %v1335 = vld [vmem:[%s571 + $0x24] sm:$0xff]
        %v1336 = vld [vmem:[%s571 + $0x2c] sm:$0xff]
        %v1337 = vld [vmem:[%s571 + $0x34] sm:$0xff]
        %v1338 = vld [vmem:[%s571 + $0x3c] sm:$0xff]
        %v1339 = vld [vmem:[%s571 + $0x44] sm:$0xff]
        %v1340 = vld [vmem:[%s571 + $0x4c] sm:$0xff]
        %v1341 = vld [vmem:[%s571 + $0x54] sm:$0xff]
        %v1342 = vld [vmem:[%s571 + $0x5c] sm:$0xff]
        %v1343 = vld [vmem:[%s571 + $0x64] sm:$0xff]
        %v1344 = vld [vmem:[%s571 + $0x6c] sm:$0xff]
        %v1345 = vld [vmem:[%s571 + $0x74] sm:$0xff]
        %v1346 = vld [vmem:[%s571 + $0x7c] sm:$0xff]
        %v1347 = vld [vmem:[%s571 + $0x84] sm:$0xff]
        %v1348 = vld [vmem:[%s571 + $0x8c] sm:$0xff]
        %v1349 = vld [vmem:[%s571 + $0x94] sm:$0xff]
        %v1350 = vld [vmem:[%s571 + $0x9c] sm:$0xff]
        %1352 = vset.pattern.permute.xlu0 0
        %1353 = vperm.xlu0 %1352, %v1335
        %v1354 = vpop.permute.xlu0 %1353
        %1357 = vset.pattern.permute.xlu0 0
        %1358 = vperm.xlu0 %1357, %v1336
        %v1359 = vpop.permute.xlu0 %1358
        %1362 = vset.pattern.permute.xlu0 0
        %1363 = vperm.xlu0 %1362, %v1337
        %v1364 = vpop.permute.xlu0 %1363
        %1367 = vset.pattern.permute.xlu0 0
        %1368 = vperm.xlu0 %1367, %v1338
        %v1369 = vpop.permute.xlu0 %1368
        %1372 = vset.pattern.permute.xlu0 0
        %1373 = vperm.xlu0 %1372, %v1339
        %v1374 = vpop.permute.xlu0 %1373
        %1377 = vset.pattern.permute.xlu0 0
        %1378 = vperm.xlu0 %1377, %v1340
        %v1379 = vpop.permute.xlu0 %1378
        %1382 = vset.pattern.permute.xlu0 0
        %1383 = vperm.xlu0 %1382, %v1341
        %v1384 = vpop.permute.xlu0 %1383
        %1387 = vset.pattern.permute.xlu0 0
        %1388 = vperm.xlu0 %1387, %v1342
        %v1389 = vpop.permute.xlu0 %1388
        %1392 = vset.pattern.permute.xlu0 0
        %1393 = vperm.xlu0 %1392, %v1343
        %v1394 = vpop.permute.xlu0 %1393
        %1397 = vset.pattern.permute.xlu0 0
        %1398 = vperm.xlu0 %1397, %v1344
        %v1399 = vpop.permute.xlu0 %1398
        %1402 = vset.pattern.permute.xlu0 0
        %1403 = vperm.xlu0 %1402, %v1345
        %v1404 = vpop.permute.xlu0 %1403
        %1407 = vset.pattern.permute.xlu0 0
        %1408 = vperm.xlu0 %1407, %v1346
        %v1409 = vpop.permute.xlu0 %1408
        %1412 = vset.pattern.permute.xlu0 0
        %1413 = vperm.xlu0 %1412, %v1347
        %v1414 = vpop.permute.xlu0 %1413
        %1417 = vset.pattern.permute.xlu0 0
        %1418 = vperm.xlu0 %1417, %v1348
        %v1419 = vpop.permute.xlu0 %1418
        %1422 = vset.pattern.permute.xlu0 0
        %1423 = vperm.xlu0 %1422, %v1349
        %v1424 = vpop.permute.xlu0 %1423
        %1427 = vset.pattern.permute.xlu0 0
        %1428 = vperm.xlu0 %1427, %v1350
        %v1429 = vpop.permute.xlu0 %1428
        %v1431 = vperm.slane %v574, 6
        %v1432 = vmul.f32 %v1354, %v1431
        %v1433 = vmul.f32 %v1359, %v1431
        %v1434 = vmul.f32 %v1364, %v1431
        %v1435 = vmul.f32 %v1369, %v1431
        %v1436 = vmul.f32 %v1374, %v1431
        %v1437 = vmul.f32 %v1379, %v1431
        %v1438 = vmul.f32 %v1384, %v1431
        %v1439 = vmul.f32 %v1389, %v1431
        %v1440 = vmul.f32 %v1394, %v1431
        %v1441 = vmul.f32 %v1399, %v1431
        %v1442 = vmul.f32 %v1404, %v1431
        %v1443 = vmul.f32 %v1409, %v1431
        %v1444 = vmul.f32 %v1414, %v1431
        %v1445 = vmul.f32 %v1419, %v1431
        %v1446 = vmul.f32 %v1424, %v1431
        %v1447 = vmul.f32 %v1429, %v1431
        %v1448 = vadd.f32 %v1319, %v1432
        %v1449 = vadd.f32 %v1320, %v1433
        %v1450 = vadd.f32 %v1321, %v1434
        %v1451 = vadd.f32 %v1322, %v1435
        %v1452 = vadd.f32 %v1323, %v1436
        %v1453 = vadd.f32 %v1324, %v1437
        %v1454 = vadd.f32 %v1325, %v1438
        %v1455 = vadd.f32 %v1326, %v1439
        %v1456 = vadd.f32 %v1327, %v1440
        %v1457 = vadd.f32 %v1328, %v1441
        %v1458 = vadd.f32 %v1329, %v1442
        %v1459 = vadd.f32 %v1330, %v1443
        %v1460 = vadd.f32 %v1331, %v1444
        %v1461 = vadd.f32 %v1332, %v1445
        %v1462 = vadd.f32 %v1333, %v1446
        %v1463 = vadd.f32 %v1334, %v1447
        %v1464 = vld [vmem:[%s571 + $0x25] sm:$0xff]
        %v1465 = vld [vmem:[%s571 + $0x2d] sm:$0xff]
        %v1466 = vld [vmem:[%s571 + $0x35] sm:$0xff]
        %v1467 = vld [vmem:[%s571 + $0x3d] sm:$0xff]
        %v1468 = vld [vmem:[%s571 + $0x45] sm:$0xff]
        %v1469 = vld [vmem:[%s571 + $0x4d] sm:$0xff]
        %v1470 = vld [vmem:[%s571 + $0x55] sm:$0xff]
        %v1471 = vld [vmem:[%s571 + $0x5d] sm:$0xff]
        %v1472 = vld [vmem:[%s571 + $0x65] sm:$0xff]
        %v1473 = vld [vmem:[%s571 + $0x6d] sm:$0xff]
        %v1474 = vld [vmem:[%s571 + $0x75] sm:$0xff]
        %v1475 = vld [vmem:[%s571 + $0x7d] sm:$0xff]
        %v1476 = vld [vmem:[%s571 + $0x85] sm:$0xff]
        %v1477 = vld [vmem:[%s571 + $0x8d] sm:$0xff]
        %v1478 = vld [vmem:[%s571 + $0x95] sm:$0xff]
        %v1479 = vld [vmem:[%s571 + $0x9d] sm:$0xff]
        %1481 = vset.pattern.permute.xlu0 0
        %1482 = vperm.xlu0 %1481, %v1464
        %v1483 = vpop.permute.xlu0 %1482
        %1486 = vset.pattern.permute.xlu0 0
        %1487 = vperm.xlu0 %1486, %v1465
        %v1488 = vpop.permute.xlu0 %1487
        %1491 = vset.pattern.permute.xlu0 0
        %1492 = vperm.xlu0 %1491, %v1466
        %v1493 = vpop.permute.xlu0 %1492
        %1496 = vset.pattern.permute.xlu0 0
        %1497 = vperm.xlu0 %1496, %v1467
        %v1498 = vpop.permute.xlu0 %1497
        %1501 = vset.pattern.permute.xlu0 0
        %1502 = vperm.xlu0 %1501, %v1468
        %v1503 = vpop.permute.xlu0 %1502
        %1506 = vset.pattern.permute.xlu0 0
        %1507 = vperm.xlu0 %1506, %v1469
        %v1508 = vpop.permute.xlu0 %1507
        %1511 = vset.pattern.permute.xlu0 0
        %1512 = vperm.xlu0 %1511, %v1470
        %v1513 = vpop.permute.xlu0 %1512
        %1516 = vset.pattern.permute.xlu0 0
        %1517 = vperm.xlu0 %1516, %v1471
        %v1518 = vpop.permute.xlu0 %1517
        %1521 = vset.pattern.permute.xlu0 0
        %1522 = vperm.xlu0 %1521, %v1472
        %v1523 = vpop.permute.xlu0 %1522
        %1526 = vset.pattern.permute.xlu0 0
        %1527 = vperm.xlu0 %1526, %v1473
        %v1528 = vpop.permute.xlu0 %1527
        %1531 = vset.pattern.permute.xlu0 0
        %1532 = vperm.xlu0 %1531, %v1474
        %v1533 = vpop.permute.xlu0 %1532
        %1536 = vset.pattern.permute.xlu0 0
        %1537 = vperm.xlu0 %1536, %v1475
        %v1538 = vpop.permute.xlu0 %1537
        %1541 = vset.pattern.permute.xlu0 0
        %1542 = vperm.xlu0 %1541, %v1476
        %v1543 = vpop.permute.xlu0 %1542
        %1546 = vset.pattern.permute.xlu0 0
        %1547 = vperm.xlu0 %1546, %v1477
        %v1548 = vpop.permute.xlu0 %1547
        %1551 = vset.pattern.permute.xlu0 0
        %1552 = vperm.xlu0 %1551, %v1478
        %v1553 = vpop.permute.xlu0 %1552
        %1556 = vset.pattern.permute.xlu0 0
        %1557 = vperm.xlu0 %1556, %v1479
        %v1558 = vpop.permute.xlu0 %1557
        %v1560 = vperm.slane %v574, 7
        %v1561 = vmul.f32 %v1483, %v1560
        %v1562 = vmul.f32 %v1488, %v1560
        %v1563 = vmul.f32 %v1493, %v1560
        %v1564 = vmul.f32 %v1498, %v1560
        %v1565 = vmul.f32 %v1503, %v1560
        %v1566 = vmul.f32 %v1508, %v1560
        %v1567 = vmul.f32 %v1513, %v1560
        %v1568 = vmul.f32 %v1518, %v1560
        %v1569 = vmul.f32 %v1523, %v1560
        %v1570 = vmul.f32 %v1528, %v1560
        %v1571 = vmul.f32 %v1533, %v1560
        %v1572 = vmul.f32 %v1538, %v1560
        %v1573 = vmul.f32 %v1543, %v1560
        %v1574 = vmul.f32 %v1548, %v1560
        %v1575 = vmul.f32 %v1553, %v1560
        %v1576 = vmul.f32 %v1558, %v1560
        %v1577 = vadd.f32 %v1448, %v1561
        %v1578 = vadd.f32 %v1449, %v1562
        %v1579 = vadd.f32 %v1450, %v1563
        %v1580 = vadd.f32 %v1451, %v1564
        %v1581 = vadd.f32 %v1452, %v1565
        %v1582 = vadd.f32 %v1453, %v1566
        %v1583 = vadd.f32 %v1454, %v1567
        %v1584 = vadd.f32 %v1455, %v1568
        %v1585 = vadd.f32 %v1456, %v1569
        %v1586 = vadd.f32 %v1457, %v1570
        %v1587 = vadd.f32 %v1458, %v1571
        %v1588 = vadd.f32 %v1459, %v1572
        %v1589 = vadd.f32 %v1460, %v1573
        %v1590 = vadd.f32 %v1461, %v1574
        %v1591 = vadd.f32 %v1462, %v1575
        %v1592 = vadd.f32 %v1463, %v1576
        %v1593 = vld [vmem:[%s571 + $0x26] sm:$0xff]
        %v1594 = vld [vmem:[%s571 + $0x2e] sm:$0xff]
        %v1595 = vld [vmem:[%s571 + $0x36] sm:$0xff]
        %v1596 = vld [vmem:[%s571 + $0x3e] sm:$0xff]
        %v1597 = vld [vmem:[%s571 + $0x46] sm:$0xff]
        %v1598 = vld [vmem:[%s571 + $0x4e] sm:$0xff]
        %v1599 = vld [vmem:[%s571 + $0x56] sm:$0xff]
        %v1600 = vld [vmem:[%s571 + $0x5e] sm:$0xff]
        %v1601 = vld [vmem:[%s571 + $0x66] sm:$0xff]
        %v1602 = vld [vmem:[%s571 + $0x6e] sm:$0xff]
        %v1603 = vld [vmem:[%s571 + $0x76] sm:$0xff]
        %v1604 = vld [vmem:[%s571 + $0x7e] sm:$0xff]
        %v1605 = vld [vmem:[%s571 + $0x86] sm:$0xff]
        %v1606 = vld [vmem:[%s571 + $0x8e] sm:$0xff]
        %v1607 = vld [vmem:[%s571 + $0x96] sm:$0xff]
        %v1608 = vld [vmem:[%s571 + $0x9e] sm:$0xff]
        %1610 = vset.pattern.permute.xlu0 0
        %1611 = vperm.xlu0 %1610, %v1593
        %v1612 = vpop.permute.xlu0 %1611
        %1615 = vset.pattern.permute.xlu0 0
        %1616 = vperm.xlu0 %1615, %v1594
        %v1617 = vpop.permute.xlu0 %1616
        %1620 = vset.pattern.permute.xlu0 0
        %1621 = vperm.xlu0 %1620, %v1595
        %v1622 = vpop.permute.xlu0 %1621
        %1625 = vset.pattern.permute.xlu0 0
        %1626 = vperm.xlu0 %1625, %v1596
        %v1627 = vpop.permute.xlu0 %1626
        %1630 = vset.pattern.permute.xlu0 0
        %1631 = vperm.xlu0 %1630, %v1597
        %v1632 = vpop.permute.xlu0 %1631
        %1635 = vset.pattern.permute.xlu0 0
        %1636 = vperm.xlu0 %1635, %v1598
        %v1637 = vpop.permute.xlu0 %1636
        %1640 = vset.pattern.permute.xlu0 0
        %1641 = vperm.xlu0 %1640, %v1599
        %v1642 = vpop.permute.xlu0 %1641
        %1645 = vset.pattern.permute.xlu0 0
        %1646 = vperm.xlu0 %1645, %v1600
        %v1647 = vpop.permute.xlu0 %1646
        %1650 = vset.pattern.permute.xlu0 0
        %1651 = vperm.xlu0 %1650, %v1601
        %v1652 = vpop.permute.xlu0 %1651
        %1655 = vset.pattern.permute.xlu0 0
        %1656 = vperm.xlu0 %1655, %v1602
        %v1657 = vpop.permute.xlu0 %1656
        %1660 = vset.pattern.permute.xlu0 0
        %1661 = vperm.xlu0 %1660, %v1603
        %v1662 = vpop.permute.xlu0 %1661
        %1665 = vset.pattern.permute.xlu0 0
        %1666 = vperm.xlu0 %1665, %v1604
        %v1667 = vpop.permute.xlu0 %1666
        %1670 = vset.pattern.permute.xlu0 0
        %1671 = vperm.xlu0 %1670, %v1605
        %v1672 = vpop.permute.xlu0 %1671
        %1675 = vset.pattern.permute.xlu0 0
        %1676 = vperm.xlu0 %1675, %v1606
        %v1677 = vpop.permute.xlu0 %1676
        %1680 = vset.pattern.permute.xlu0 0
        %1681 = vperm.xlu0 %1680, %v1607
        %v1682 = vpop.permute.xlu0 %1681
        %1685 = vset.pattern.permute.xlu0 0
        %1686 = vperm.xlu0 %1685, %v1608
        %v1687 = vpop.permute.xlu0 %1686
        %v1689 = vperm.slane %v575, 0
        %v1690 = vmul.f32 %v1612, %v1689
        %v1691 = vmul.f32 %v1617, %v1689
        %v1692 = vmul.f32 %v1622, %v1689
        %v1693 = vmul.f32 %v1627, %v1689
        %v1694 = vmul.f32 %v1632, %v1689
        %v1695 = vmul.f32 %v1637, %v1689
        %v1696 = vmul.f32 %v1642, %v1689
        %v1697 = vmul.f32 %v1647, %v1689
        %v1698 = vmul.f32 %v1652, %v1689
        %v1699 = vmul.f32 %v1657, %v1689
        %v1700 = vmul.f32 %v1662, %v1689
        %v1701 = vmul.f32 %v1667, %v1689
        %v1702 = vmul.f32 %v1672, %v1689
        %v1703 = vmul.f32 %v1677, %v1689
        %v1704 = vmul.f32 %v1682, %v1689
        %v1705 = vmul.f32 %v1687, %v1689
        %v1706 = vadd.f32 %v1577, %v1690
        %v1707 = vadd.f32 %v1578, %v1691
        %v1708 = vadd.f32 %v1579, %v1692
        %v1709 = vadd.f32 %v1580, %v1693
        %v1710 = vadd.f32 %v1581, %v1694
        %v1711 = vadd.f32 %v1582, %v1695
        %v1712 = vadd.f32 %v1583, %v1696
        %v1713 = vadd.f32 %v1584, %v1697
        %v1714 = vadd.f32 %v1585, %v1698
        %v1715 = vadd.f32 %v1586, %v1699
        %v1716 = vadd.f32 %v1587, %v1700
        %v1717 = vadd.f32 %v1588, %v1701
        %v1718 = vadd.f32 %v1589, %v1702
        %v1719 = vadd.f32 %v1590, %v1703
        %v1720 = vadd.f32 %v1591, %v1704
        %v1721 = vadd.f32 %v1592, %v1705
        %v1723 = vperm.slane %v576, 0
        %v1725 = vadd.f32 %v1706, %v1723
        %v1726 = vadd.f32 %v1707, %v1723
        %v1727 = vadd.f32 %v1708, %v1723
        %v1728 = vadd.f32 %v1709, %v1723
        %v1729 = vadd.f32 %v1710, %v1723
        %v1730 = vadd.f32 %v1711, %v1723
        %v1731 = vadd.f32 %v1712, %v1723
        %v1732 = vadd.f32 %v1713, %v1723
        %v1733 = vadd.f32 %v1714, %v1723
        %v1734 = vadd.f32 %v1715, %v1723
        %v1735 = vadd.f32 %v1716, %v1723
        %v1736 = vadd.f32 %v1717, %v1723
        %v1737 = vadd.f32 %v1718, %v1723
        %v1738 = vadd.f32 %v1719, %v1723
        %v1739 = vadd.f32 %v1720, %v1723
        %v1740 = vadd.f32 %v1721, %v1723
        %v1741 = vmax.f32 %v1725, 0.0
        %v1742 = vmax.f32 %v1726, 0.0
        %v1743 = vmax.f32 %v1727, 0.0
        %v1744 = vmax.f32 %v1728, 0.0
        %v1745 = vmax.f32 %v1729, 0.0
        %v1746 = vmax.f32 %v1730, 0.0
        %v1747 = vmax.f32 %v1731, 0.0
        %v1748 = vmax.f32 %v1732, 0.0
        %v1749 = vmax.f32 %v1733, 0.0
        %v1750 = vmax.f32 %v1734, 0.0
        %v1751 = vmax.f32 %v1735, 0.0
        %v1752 = vmax.f32 %v1736, 0.0
        %v1753 = vmax.f32 %v1737, 0.0
        %v1754 = vmax.f32 %v1738, 0.0
        %v1755 = vmax.f32 %v1739, 0.0
        %v1756 = vmax.f32 %v1740, 0.0
        %vm1757 = vcmask 261120
        %1758 = vst.msk [vmem:[#allocation2] sm:$0xff] %vm1757, %v1741
        %1759 = vst.msk [vmem:[#allocation2 + $0x8] sm:$0xff] %vm1757, %v1742
        %1760 = vst.msk [vmem:[#allocation2 + $0x10] sm:$0xff] %vm1757, %v1743
        %1761 = vst.msk [vmem:[#allocation2 + $0x18] sm:$0xff] %vm1757, %v1744
        %1762 = vst.msk [vmem:[#allocation2 + $0x20] sm:$0xff] %vm1757, %v1745
        %1763 = vst.msk [vmem:[#allocation2 + $0x28] sm:$0xff] %vm1757, %v1746
        %1764 = vst.msk [vmem:[#allocation2 + $0x30] sm:$0xff] %vm1757, %v1747
        %1765 = vst.msk [vmem:[#allocation2 + $0x38] sm:$0xff] %vm1757, %v1748
        %1766 = vst.msk [vmem:[#allocation2 + $0x40] sm:$0xff] %vm1757, %v1749
        %1767 = vst.msk [vmem:[#allocation2 + $0x48] sm:$0xff] %vm1757, %v1750
        %1768 = vst.msk [vmem:[#allocation2 + $0x50] sm:$0xff] %vm1757, %v1751
        %1769 = vst.msk [vmem:[#allocation2 + $0x58] sm:$0xff] %vm1757, %v1752
        %1770 = vst.msk [vmem:[#allocation2 + $0x60] sm:$0xff] %vm1757, %v1753
        %1771 = vst.msk [vmem:[#allocation2 + $0x68] sm:$0xff] %vm1757, %v1754
        %1772 = vst.msk [vmem:[#allocation2 + $0x70] sm:$0xff] %vm1757, %v1755
        %1773 = vst.msk [vmem:[#allocation2 + $0x78] sm:$0xff] %vm1757, %v1756
        %v1774 = vld [vmem:[%s571 + $0x80] sm:$0xff]
        %v1775 = vld [vmem:[%s571 + $0x88] sm:$0xff]
        %v1776 = vld [vmem:[%s571 + $0x90] sm:$0xff]
        %v1777 = vld [vmem:[%s571 + $0x98] sm:$0xff]
        %v1778 = vld [vmem:[%s571 + $0xa0] sm:$0xff]
        %v1779 = vld [vmem:[%s571 + $0xa8] sm:$0xff]
        %v1780 = vld [vmem:[%s571 + $0xb0] sm:$0xff]
        %v1781 = vld [vmem:[%s571 + $0xb8] sm:$0xff]
        %v1782 = vld [vmem:[%s571 + $0xc0] sm:$0xff]
        %v1783 = vld [vmem:[%s571 + $0xc8] sm:$0xff]
        %v1784 = vld [vmem:[%s571 + $0xd0] sm:$0xff]
        %v1785 = vld [vmem:[%s571 + $0xd8] sm:$0xff]
        %v1786 = vld [vmem:[%s571 + $0xe0] sm:$0xff]
        %v1787 = vld [vmem:[%s571 + $0xe8] sm:$0xff]
        %v1788 = vld [vmem:[%s571 + $0xf0] sm:$0xff]
        %v1789 = vld [vmem:[%s571 + $0xf8] sm:$0xff]
        %1791 = vset.pattern.permute.xlu0 0
        %1792 = vperm.xlu0 %1791, %v1774
        %v1793 = vpop.permute.xlu0 %1792
        %1796 = vset.pattern.permute.xlu0 0
        %1797 = vperm.xlu0 %1796, %v1775
        %v1798 = vpop.permute.xlu0 %1797
        %1801 = vset.pattern.permute.xlu0 0
        %1802 = vperm.xlu0 %1801, %v1776
        %v1803 = vpop.permute.xlu0 %1802
        %1806 = vset.pattern.permute.xlu0 0
        %1807 = vperm.xlu0 %1806, %v1777
        %v1808 = vpop.permute.xlu0 %1807
        %1811 = vset.pattern.permute.xlu0 0
        %1812 = vperm.xlu0 %1811, %v1778
        %v1813 = vpop.permute.xlu0 %1812
        %1816 = vset.pattern.permute.xlu0 0
        %1817 = vperm.xlu0 %1816, %v1779
        %v1818 = vpop.permute.xlu0 %1817
        %1821 = vset.pattern.permute.xlu0 0
        %1822 = vperm.xlu0 %1821, %v1780
        %v1823 = vpop.permute.xlu0 %1822
        %1826 = vset.pattern.permute.xlu0 0
        %1827 = vperm.xlu0 %1826, %v1781
        %v1828 = vpop.permute.xlu0 %1827
        %1831 = vset.pattern.permute.xlu0 0
        %1832 = vperm.xlu0 %1831, %v1782
        %v1833 = vpop.permute.xlu0 %1832
        %1836 = vset.pattern.permute.xlu0 0
        %1837 = vperm.xlu0 %1836, %v1783
        %v1838 = vpop.permute.xlu0 %1837
        %1841 = vset.pattern.permute.xlu0 0
        %1842 = vperm.xlu0 %1841, %v1784
        %v1843 = vpop.permute.xlu0 %1842
        %1846 = vset.pattern.permute.xlu0 0
        %1847 = vperm.xlu0 %1846, %v1785
        %v1848 = vpop.permute.xlu0 %1847
        %1851 = vset.pattern.permute.xlu0 0
        %1852 = vperm.xlu0 %1851, %v1786
        %v1853 = vpop.permute.xlu0 %1852
        %1856 = vset.pattern.permute.xlu0 0
        %1857 = vperm.xlu0 %1856, %v1787
        %v1858 = vpop.permute.xlu0 %1857
        %1861 = vset.pattern.permute.xlu0 0
        %1862 = vperm.xlu0 %1861, %v1788
        %v1863 = vpop.permute.xlu0 %1862
        %1866 = vset.pattern.permute.xlu0 0
        %1867 = vperm.xlu0 %1866, %v1789
        %v1868 = vpop.permute.xlu0 %1867
        %v1870 = vmul.f32 %v1793, %v673
        %v1871 = vmul.f32 %v1798, %v673
        %v1872 = vmul.f32 %v1803, %v673
        %v1873 = vmul.f32 %v1808, %v673
        %v1874 = vmul.f32 %v1813, %v673
        %v1875 = vmul.f32 %v1818, %v673
        %v1876 = vmul.f32 %v1823, %v673
        %v1877 = vmul.f32 %v1828, %v673
        %v1878 = vmul.f32 %v1833, %v673
        %v1879 = vmul.f32 %v1838, %v673
        %v1880 = vmul.f32 %v1843, %v673
        %v1881 = vmul.f32 %v1848, %v673
        %v1882 = vmul.f32 %v1853, %v673
        %v1883 = vmul.f32 %v1858, %v673
        %v1884 = vmul.f32 %v1863, %v673
        %v1885 = vmul.f32 %v1868, %v673
        %v1886 = vld [vmem:[%s571 + $0x81] sm:$0xff]
        %v1887 = vld [vmem:[%s571 + $0x89] sm:$0xff]
        %v1888 = vld [vmem:[%s571 + $0x91] sm:$0xff]
        %v1889 = vld [vmem:[%s571 + $0x99] sm:$0xff]
        %v1890 = vld [vmem:[%s571 + $0xa1] sm:$0xff]
        %v1891 = vld [vmem:[%s571 + $0xa9] sm:$0xff]
        %v1892 = vld [vmem:[%s571 + $0xb1] sm:$0xff]
        %v1893 = vld [vmem:[%s571 + $0xb9] sm:$0xff]
        %v1894 = vld [vmem:[%s571 + $0xc1] sm:$0xff]
        %v1895 = vld [vmem:[%s571 + $0xc9] sm:$0xff]
        %v1896 = vld [vmem:[%s571 + $0xd1] sm:$0xff]
        %v1897 = vld [vmem:[%s571 + $0xd9] sm:$0xff]
        %v1898 = vld [vmem:[%s571 + $0xe1] sm:$0xff]
        %v1899 = vld [vmem:[%s571 + $0xe9] sm:$0xff]
        %v1900 = vld [vmem:[%s571 + $0xf1] sm:$0xff]
        %v1901 = vld [vmem:[%s571 + $0xf9] sm:$0xff]
        %1903 = vset.pattern.permute.xlu0 0
        %1904 = vperm.xlu0 %1903, %v1886
        %v1905 = vpop.permute.xlu0 %1904
        %1908 = vset.pattern.permute.xlu0 0
        %1909 = vperm.xlu0 %1908, %v1887
        %v1910 = vpop.permute.xlu0 %1909
        %1913 = vset.pattern.permute.xlu0 0
        %1914 = vperm.xlu0 %1913, %v1888
        %v1915 = vpop.permute.xlu0 %1914
        %1918 = vset.pattern.permute.xlu0 0
        %1919 = vperm.xlu0 %1918, %v1889
        %v1920 = vpop.permute.xlu0 %1919
        %1923 = vset.pattern.permute.xlu0 0
        %1924 = vperm.xlu0 %1923, %v1890
        %v1925 = vpop.permute.xlu0 %1924
        %1928 = vset.pattern.permute.xlu0 0
        %1929 = vperm.xlu0 %1928, %v1891
        %v1930 = vpop.permute.xlu0 %1929
        %1933 = vset.pattern.permute.xlu0 0
        %1934 = vperm.xlu0 %1933, %v1892
        %v1935 = vpop.permute.xlu0 %1934
        %1938 = vset.pattern.permute.xlu0 0
        %1939 = vperm.xlu0 %1938, %v1893
        %v1940 = vpop.permute.xlu0 %1939
        %1943 = vset.pattern.permute.xlu0 0
        %1944 = vperm.xlu0 %1943, %v1894
        %v1945 = vpop.permute.xlu0 %1944
        %1948 = vset.pattern.permute.xlu0 0
        %1949 = vperm.xlu0 %1948, %v1895
        %v1950 = vpop.permute.xlu0 %1949
        %1953 = vset.pattern.permute.xlu0 0
        %1954 = vperm.xlu0 %1953, %v1896
        %v1955 = vpop.permute.xlu0 %1954
        %1958 = vset.pattern.permute.xlu0 0
        %1959 = vperm.xlu0 %1958, %v1897
        %v1960 = vpop.permute.xlu0 %1959
        %1963 = vset.pattern.permute.xlu0 0
        %1964 = vperm.xlu0 %1963, %v1898
        %v1965 = vpop.permute.xlu0 %1964
        %1968 = vset.pattern.permute.xlu0 0
        %1969 = vperm.xlu0 %1968, %v1899
        %v1970 = vpop.permute.xlu0 %1969
        %1973 = vset.pattern.permute.xlu0 0
        %1974 = vperm.xlu0 %1973, %v1900
        %v1975 = vpop.permute.xlu0 %1974
        %1978 = vset.pattern.permute.xlu0 0
        %1979 = vperm.xlu0 %1978, %v1901
        %v1980 = vpop.permute.xlu0 %1979
        %v1982 = vmul.f32 %v1905, %v786
        %v1983 = vmul.f32 %v1910, %v786
        %v1984 = vmul.f32 %v1915, %v786
        %v1985 = vmul.f32 %v1920, %v786
        %v1986 = vmul.f32 %v1925, %v786
        %v1987 = vmul.f32 %v1930, %v786
        %v1988 = vmul.f32 %v1935, %v786
        %v1989 = vmul.f32 %v1940, %v786
        %v1990 = vmul.f32 %v1945, %v786
        %v1991 = vmul.f32 %v1950, %v786
        %v1992 = vmul.f32 %v1955, %v786
        %v1993 = vmul.f32 %v1960, %v786
        %v1994 = vmul.f32 %v1965, %v786
        %v1995 = vmul.f32 %v1970, %v786
        %v1996 = vmul.f32 %v1975, %v786
        %v1997 = vmul.f32 %v1980, %v786
        %v1998 = vadd.f32 %v1870, %v1982
        %v1999 = vadd.f32 %v1871, %v1983
        %v2000 = vadd.f32 %v1872, %v1984
        %v2001 = vadd.f32 %v1873, %v1985
        %v2002 = vadd.f32 %v1874, %v1986
        %v2003 = vadd.f32 %v1875, %v1987
        %v2004 = vadd.f32 %v1876, %v1988
        %v2005 = vadd.f32 %v1877, %v1989
        %v2006 = vadd.f32 %v1878, %v1990
        %v2007 = vadd.f32 %v1879, %v1991
        %v2008 = vadd.f32 %v1880, %v1992
        %v2009 = vadd.f32 %v1881, %v1993
        %v2010 = vadd.f32 %v1882, %v1994
        %v2011 = vadd.f32 %v1883, %v1995
        %v2012 = vadd.f32 %v1884, %v1996
        %v2013 = vadd.f32 %v1885, %v1997
        %v2014 = vld [vmem:[%s571 + $0x82] sm:$0xff]
        %v2015 = vld [vmem:[%s571 + $0x8a] sm:$0xff]
        %v2016 = vld [vmem:[%s571 + $0x92] sm:$0xff]
        %v2017 = vld [vmem:[%s571 + $0x9a] sm:$0xff]
        %v2018 = vld [vmem:[%s571 + $0xa2] sm:$0xff]
        %v2019 = vld [vmem:[%s571 + $0xaa] sm:$0xff]
        %v2020 = vld [vmem:[%s571 + $0xb2] sm:$0xff]
        %v2021 = vld [vmem:[%s571 + $0xba] sm:$0xff]
        %v2022 = vld [vmem:[%s571 + $0xc2] sm:$0xff]
        %v2023 = vld [vmem:[%s571 + $0xca] sm:$0xff]
        %v2024 = vld [vmem:[%s571 + $0xd2] sm:$0xff]
        %v2025 = vld [vmem:[%s571 + $0xda] sm:$0xff]
        %v2026 = vld [vmem:[%s571 + $0xe2] sm:$0xff]
        %v2027 = vld [vmem:[%s571 + $0xea] sm:$0xff]
        %v2028 = vld [vmem:[%s571 + $0xf2] sm:$0xff]
        %v2029 = vld [vmem:[%s571 + $0xfa] sm:$0xff]
        %2031 = vset.pattern.permute.xlu0 0
        %2032 = vperm.xlu0 %2031, %v2014
        %v2033 = vpop.permute.xlu0 %2032
        %2036 = vset.pattern.permute.xlu0 0
        %2037 = vperm.xlu0 %2036, %v2015
        %v2038 = vpop.permute.xlu0 %2037
        %2041 = vset.pattern.permute.xlu0 0
        %2042 = vperm.xlu0 %2041, %v2016
        %v2043 = vpop.permute.xlu0 %2042
        %2046 = vset.pattern.permute.xlu0 0
        %2047 = vperm.xlu0 %2046, %v2017
        %v2048 = vpop.permute.xlu0 %2047
        %2051 = vset.pattern.permute.xlu0 0
        %2052 = vperm.xlu0 %2051, %v2018
        %v2053 = vpop.permute.xlu0 %2052
        %2056 = vset.pattern.permute.xlu0 0
        %2057 = vperm.xlu0 %2056, %v2019
        %v2058 = vpop.permute.xlu0 %2057
        %2061 = vset.pattern.permute.xlu0 0
        %2062 = vperm.xlu0 %2061, %v2020
        %v2063 = vpop.permute.xlu0 %2062
        %2066 = vset.pattern.permute.xlu0 0
        %2067 = vperm.xlu0 %2066, %v2021
        %v2068 = vpop.permute.xlu0 %2067
        %2071 = vset.pattern.permute.xlu0 0
        %2072 = vperm.xlu0 %2071, %v2022
        %v2073 = vpop.permute.xlu0 %2072
        %2076 = vset.pattern.permute.xlu0 0
        %2077 = vperm.xlu0 %2076, %v2023
        %v2078 = vpop.permute.xlu0 %2077
        %2081 = vset.pattern.permute.xlu0 0
        %2082 = vperm.xlu0 %2081, %v2024
        %v2083 = vpop.permute.xlu0 %2082
        %2086 = vset.pattern.permute.xlu0 0
        %2087 = vperm.xlu0 %2086, %v2025
        %v2088 = vpop.permute.xlu0 %2087
        %2091 = vset.pattern.permute.xlu0 0
        %2092 = vperm.xlu0 %2091, %v2026
        %v2093 = vpop.permute.xlu0 %2092
        %2096 = vset.pattern.permute.xlu0 0
        %2097 = vperm.xlu0 %2096, %v2027
        %v2098 = vpop.permute.xlu0 %2097
        %2101 = vset.pattern.permute.xlu0 0
        %2102 = vperm.xlu0 %2101, %v2028
        %v2103 = vpop.permute.xlu0 %2102
        %2106 = vset.pattern.permute.xlu0 0
        %2107 = vperm.xlu0 %2106, %v2029
        %v2108 = vpop.permute.xlu0 %2107
        %v2110 = vmul.f32 %v2033, %v915
        %v2111 = vmul.f32 %v2038, %v915
        %v2112 = vmul.f32 %v2043, %v915
        %v2113 = vmul.f32 %v2048, %v915
        %v2114 = vmul.f32 %v2053, %v915
        %v2115 = vmul.f32 %v2058, %v915
        %v2116 = vmul.f32 %v2063, %v915
        %v2117 = vmul.f32 %v2068, %v915
        %v2118 = vmul.f32 %v2073, %v915
        %v2119 = vmul.f32 %v2078, %v915
        %v2120 = vmul.f32 %v2083, %v915
        %v2121 = vmul.f32 %v2088, %v915
        %v2122 = vmul.f32 %v2093, %v915
        %v2123 = vmul.f32 %v2098, %v915
        %v2124 = vmul.f32 %v2103, %v915
        %v2125 = vmul.f32 %v2108, %v915
        %v2126 = vadd.f32 %v1998, %v2110
        %v2127 = vadd.f32 %v1999, %v2111
        %v2128 = vadd.f32 %v2000, %v2112
        %v2129 = vadd.f32 %v2001, %v2113
        %v2130 = vadd.f32 %v2002, %v2114
        %v2131 = vadd.f32 %v2003, %v2115
        %v2132 = vadd.f32 %v2004, %v2116
        %v2133 = vadd.f32 %v2005, %v2117
        %v2134 = vadd.f32 %v2006, %v2118
        %v2135 = vadd.f32 %v2007, %v2119
        %v2136 = vadd.f32 %v2008, %v2120
        %v2137 = vadd.f32 %v2009, %v2121
        %v2138 = vadd.f32 %v2010, %v2122
        %v2139 = vadd.f32 %v2011, %v2123
        %v2140 = vadd.f32 %v2012, %v2124
        %v2141 = vadd.f32 %v2013, %v2125
        %v2142 = vld [vmem:[%s571 + $0x92] sm:$0xff]
        %v2143 = vld [vmem:[%s571 + $0x9a] sm:$0xff]
        %v2144 = vld [vmem:[%s571 + $0xa2] sm:$0xff]
        %v2145 = vld [vmem:[%s571 + $0xaa] sm:$0xff]
        %v2146 = vld [vmem:[%s571 + $0xb2] sm:$0xff]
        %v2147 = vld [vmem:[%s571 + $0xba] sm:$0xff]
        %v2148 = vld [vmem:[%s571 + $0xc2] sm:$0xff]
        %v2149 = vld [vmem:[%s571 + $0xca] sm:$0xff]
        %v2150 = vld [vmem:[%s571 + $0xd2] sm:$0xff]
        %v2151 = vld [vmem:[%s571 + $0xda] sm:$0xff]
        %v2152 = vld [vmem:[%s571 + $0xe2] sm:$0xff]
        %v2153 = vld [vmem:[%s571 + $0xea] sm:$0xff]
        %v2154 = vld [vmem:[%s571 + $0xf2] sm:$0xff]
        %v2155 = vld [vmem:[%s571 + $0xfa] sm:$0xff]
        %v2156 = vld [vmem:[%s571 + $0x102] sm:$0xff]
        %v2157 = vld [vmem:[%s571 + $0x10a] sm:$0xff]
        %2159 = vset.pattern.permute.xlu0 0
        %2160 = vperm.xlu0 %2159, %v2142
        %v2161 = vpop.permute.xlu0 %2160
        %2164 = vset.pattern.permute.xlu0 0
        %2165 = vperm.xlu0 %2164, %v2143
        %v2166 = vpop.permute.xlu0 %2165
        %2169 = vset.pattern.permute.xlu0 0
        %2170 = vperm.xlu0 %2169, %v2144
        %v2171 = vpop.permute.xlu0 %2170
        %2174 = vset.pattern.permute.xlu0 0
        %2175 = vperm.xlu0 %2174, %v2145
        %v2176 = vpop.permute.xlu0 %2175
        %2179 = vset.pattern.permute.xlu0 0
        %2180 = vperm.xlu0 %2179, %v2146
        %v2181 = vpop.permute.xlu0 %2180
        %2184 = vset.pattern.permute.xlu0 0
        %2185 = vperm.xlu0 %2184, %v2147
        %v2186 = vpop.permute.xlu0 %2185
        %2189 = vset.pattern.permute.xlu0 0
        %2190 = vperm.xlu0 %2189, %v2148
        %v2191 = vpop.permute.xlu0 %2190
        %2194 = vset.pattern.permute.xlu0 0
        %2195 = vperm.xlu0 %2194, %v2149
        %v2196 = vpop.permute.xlu0 %2195
        %2199 = vset.pattern.permute.xlu0 0
        %2200 = vperm.xlu0 %2199, %v2150
        %v2201 = vpop.permute.xlu0 %2200
        %2204 = vset.pattern.permute.xlu0 0
        %2205 = vperm.xlu0 %2204, %v2151
        %v2206 = vpop.permute.xlu0 %2205
        %2209 = vset.pattern.permute.xlu0 0
        %2210 = vperm.xlu0 %2209, %v2152
        %v2211 = vpop.permute.xlu0 %2210
        %2214 = vset.pattern.permute.xlu0 0
        %2215 = vperm.xlu0 %2214, %v2153
        %v2216 = vpop.permute.xlu0 %2215
        %2219 = vset.pattern.permute.xlu0 0
        %2220 = vperm.xlu0 %2219, %v2154
        %v2221 = vpop.permute.xlu0 %2220
        %2224 = vset.pattern.permute.xlu0 0
        %2225 = vperm.xlu0 %2224, %v2155
        %v2226 = vpop.permute.xlu0 %2225
        %2229 = vset.pattern.permute.xlu0 0
        %2230 = vperm.xlu0 %2229, %v2156
        %v2231 = vpop.permute.xlu0 %2230
        %2234 = vset.pattern.permute.xlu0 0
        %2235 = vperm.xlu0 %2234, %v2157
        %v2236 = vpop.permute.xlu0 %2235
        %v2238 = vmul.f32 %v2161, %v1044
        %v2239 = vmul.f32 %v2166, %v1044
        %v2240 = vmul.f32 %v2171, %v1044
        %v2241 = vmul.f32 %v2176, %v1044
        %v2242 = vmul.f32 %v2181, %v1044
        %v2243 = vmul.f32 %v2186, %v1044
        %v2244 = vmul.f32 %v2191, %v1044
        %v2245 = vmul.f32 %v2196, %v1044
        %v2246 = vmul.f32 %v2201, %v1044
        %v2247 = vmul.f32 %v2206, %v1044
        %v2248 = vmul.f32 %v2211, %v1044
        %v2249 = vmul.f32 %v2216, %v1044
        %v2250 = vmul.f32 %v2221, %v1044
        %v2251 = vmul.f32 %v2226, %v1044
        %v2252 = vmul.f32 %v2231, %v1044
        %v2253 = vmul.f32 %v2236, %v1044
        %v2254 = vadd.f32 %v2126, %v2238
        %v2255 = vadd.f32 %v2127, %v2239
        %v2256 = vadd.f32 %v2128, %v2240
        %v2257 = vadd.f32 %v2129, %v2241
        %v2258 = vadd.f32 %v2130, %v2242
        %v2259 = vadd.f32 %v2131, %v2243
        %v2260 = vadd.f32 %v2132, %v2244
        %v2261 = vadd.f32 %v2133, %v2245
        %v2262 = vadd.f32 %v2134, %v2246
        %v2263 = vadd.f32 %v2135, %v2247
        %v2264 = vadd.f32 %v2136, %v2248
        %v2265 = vadd.f32 %v2137, %v2249
        %v2266 = vadd.f32 %v2138, %v2250
        %v2267 = vadd.f32 %v2139, %v2251
        %v2268 = vadd.f32 %v2140, %v2252
        %v2269 = vadd.f32 %v2141, %v2253
        %v2270 = vld [vmem:[%s571 + $0x93] sm:$0xff]
        %v2271 = vld [vmem:[%s571 + $0x9b] sm:$0xff]
        %v2272 = vld [vmem:[%s571 + $0xa3] sm:$0xff]
        %v2273 = vld [vmem:[%s571 + $0xab] sm:$0xff]
        %v2274 = vld [vmem:[%s571 + $0xb3] sm:$0xff]
        %v2275 = vld [vmem:[%s571 + $0xbb] sm:$0xff]
        %v2276 = vld [vmem:[%s571 + $0xc3] sm:$0xff]
        %v2277 = vld [vmem:[%s571 + $0xcb] sm:$0xff]
        %v2278 = vld [vmem:[%s571 + $0xd3] sm:$0xff]
        %v2279 = vld [vmem:[%s571 + $0xdb] sm:$0xff]
        %v2280 = vld [vmem:[%s571 + $0xe3] sm:$0xff]
        %v2281 = vld [vmem:[%s571 + $0xeb] sm:$0xff]
        %v2282 = vld [vmem:[%s571 + $0xf3] sm:$0xff]
        %v2283 = vld [vmem:[%s571 + $0xfb] sm:$0xff]
        %v2284 = vld [vmem:[%s571 + $0x103] sm:$0xff]
        %v2285 = vld [vmem:[%s571 + $0x10b] sm:$0xff]
        %2287 = vset.pattern.permute.xlu0 0
        %2288 = vperm.xlu0 %2287, %v2270
        %v2289 = vpop.permute.xlu0 %2288
        %2292 = vset.pattern.permute.xlu0 0
        %2293 = vperm.xlu0 %2292, %v2271
        %v2294 = vpop.permute.xlu0 %2293
        %2297 = vset.pattern.permute.xlu0 0
        %2298 = vperm.xlu0 %2297, %v2272
        %v2299 = vpop.permute.xlu0 %2298
        %2302 = vset.pattern.permute.xlu0 0
        %2303 = vperm.xlu0 %2302, %v2273
        %v2304 = vpop.permute.xlu0 %2303
        %2307 = vset.pattern.permute.xlu0 0
        %2308 = vperm.xlu0 %2307, %v2274
        %v2309 = vpop.permute.xlu0 %2308
        %2312 = vset.pattern.permute.xlu0 0
        %2313 = vperm.xlu0 %2312, %v2275
        %v2314 = vpop.permute.xlu0 %2313
        %2317 = vset.pattern.permute.xlu0 0
        %2318 = vperm.xlu0 %2317, %v2276
        %v2319 = vpop.permute.xlu0 %2318
        %2322 = vset.pattern.permute.xlu0 0
        %2323 = vperm.xlu0 %2322, %v2277
        %v2324 = vpop.permute.xlu0 %2323
        %2327 = vset.pattern.permute.xlu0 0
        %2328 = vperm.xlu0 %2327, %v2278
        %v2329 = vpop.permute.xlu0 %2328
        %2332 = vset.pattern.permute.xlu0 0
        %2333 = vperm.xlu0 %2332, %v2279
        %v2334 = vpop.permute.xlu0 %2333
        %2337 = vset.pattern.permute.xlu0 0
        %2338 = vperm.xlu0 %2337, %v2280
        %v2339 = vpop.permute.xlu0 %2338
        %2342 = vset.pattern.permute.xlu0 0
        %2343 = vperm.xlu0 %2342, %v2281
        %v2344 = vpop.permute.xlu0 %2343
        %2347 = vset.pattern.permute.xlu0 0
        %2348 = vperm.xlu0 %2347, %v2282
        %v2349 = vpop.permute.xlu0 %2348
        %2352 = vset.pattern.permute.xlu0 0
        %2353 = vperm.xlu0 %2352, %v2283
        %v2354 = vpop.permute.xlu0 %2353
        %2357 = vset.pattern.permute.xlu0 0
        %2358 = vperm.xlu0 %2357, %v2284
        %v2359 = vpop.permute.xlu0 %2358
        %2362 = vset.pattern.permute.xlu0 0
        %2363 = vperm.xlu0 %2362, %v2285
        %v2364 = vpop.permute.xlu0 %2363
        %v2366 = vmul.f32 %v2289, %v1173
        %v2367 = vmul.f32 %v2294, %v1173
        %v2368 = vmul.f32 %v2299, %v1173
        %v2369 = vmul.f32 %v2304, %v1173
        %v2370 = vmul.f32 %v2309, %v1173
        %v2371 = vmul.f32 %v2314, %v1173
        %v2372 = vmul.f32 %v2319, %v1173
        %v2373 = vmul.f32 %v2324, %v1173
        %v2374 = vmul.f32 %v2329, %v1173
        %v2375 = vmul.f32 %v2334, %v1173
        %v2376 = vmul.f32 %v2339, %v1173
        %v2377 = vmul.f32 %v2344, %v1173
        %v2378 = vmul.f32 %v2349, %v1173
        %v2379 = vmul.f32 %v2354, %v1173
        %v2380 = vmul.f32 %v2359, %v1173
        %v2381 = vmul.f32 %v2364, %v1173
        %v2382 = vadd.f32 %v2254, %v2366
        %v2383 = vadd.f32 %v2255, %v2367
        %v2384 = vadd.f32 %v2256, %v2368
        %v2385 = vadd.f32 %v2257, %v2369
        %v2386 = vadd.f32 %v2258, %v2370
        %v2387 = vadd.f32 %v2259, %v2371
        %v2388 = vadd.f32 %v2260, %v2372
        %v2389 = vadd.f32 %v2261, %v2373
        %v2390 = vadd.f32 %v2262, %v2374
        %v2391 = vadd.f32 %v2263, %v2375
        %v2392 = vadd.f32 %v2264, %v2376
        %v2393 = vadd.f32 %v2265, %v2377
        %v2394 = vadd.f32 %v2266, %v2378
        %v2395 = vadd.f32 %v2267, %v2379
        %v2396 = vadd.f32 %v2268, %v2380
        %v2397 = vadd.f32 %v2269, %v2381
        %v2398 = vld [vmem:[%s571 + $0x94] sm:$0xff]
        %v2399 = vld [vmem:[%s571 + $0x9c] sm:$0xff]
        %v2400 = vld [vmem:[%s571 + $0xa4] sm:$0xff]
        %v2401 = vld [vmem:[%s571 + $0xac] sm:$0xff]
        %v2402 = vld [vmem:[%s571 + $0xb4] sm:$0xff]
        %v2403 = vld [vmem:[%s571 + $0xbc] sm:$0xff]
        %v2404 = vld [vmem:[%s571 + $0xc4] sm:$0xff]
        %v2405 = vld [vmem:[%s571 + $0xcc] sm:$0xff]
        %v2406 = vld [vmem:[%s571 + $0xd4] sm:$0xff]
        %v2407 = vld [vmem:[%s571 + $0xdc] sm:$0xff]
        %v2408 = vld [vmem:[%s571 + $0xe4] sm:$0xff]
        %v2409 = vld [vmem:[%s571 + $0xec] sm:$0xff]
        %v2410 = vld [vmem:[%s571 + $0xf4] sm:$0xff]
        %v2411 = vld [vmem:[%s571 + $0xfc] sm:$0xff]
        %v2412 = vld [vmem:[%s571 + $0x104] sm:$0xff]
        %v2413 = vld [vmem:[%s571 + $0x10c] sm:$0xff]
        %2415 = vset.pattern.permute.xlu0 0
        %2416 = vperm.xlu0 %2415, %v2398
        %v2417 = vpop.permute.xlu0 %2416
        %2420 = vset.pattern.permute.xlu0 0
        %2421 = vperm.xlu0 %2420, %v2399
        %v2422 = vpop.permute.xlu0 %2421
        %2425 = vset.pattern.permute.xlu0 0
        %2426 = vperm.xlu0 %2425, %v2400
        %v2427 = vpop.permute.xlu0 %2426
        %2430 = vset.pattern.permute.xlu0 0
        %2431 = vperm.xlu0 %2430, %v2401
        %v2432 = vpop.permute.xlu0 %2431
        %2435 = vset.pattern.permute.xlu0 0
        %2436 = vperm.xlu0 %2435, %v2402
        %v2437 = vpop.permute.xlu0 %2436
        %2440 = vset.pattern.permute.xlu0 0
        %2441 = vperm.xlu0 %2440, %v2403
        %v2442 = vpop.permute.xlu0 %2441
        %2445 = vset.pattern.permute.xlu0 0
        %2446 = vperm.xlu0 %2445, %v2404
        %v2447 = vpop.permute.xlu0 %2446
        %2450 = vset.pattern.permute.xlu0 0
        %2451 = vperm.xlu0 %2450, %v2405
        %v2452 = vpop.permute.xlu0 %2451
        %2455 = vset.pattern.permute.xlu0 0
        %2456 = vperm.xlu0 %2455, %v2406
        %v2457 = vpop.permute.xlu0 %2456
        %2460 = vset.pattern.permute.xlu0 0
        %2461 = vperm.xlu0 %2460, %v2407
        %v2462 = vpop.permute.xlu0 %2461
        %2465 = vset.pattern.permute.xlu0 0
        %2466 = vperm.xlu0 %2465, %v2408
        %v2467 = vpop.permute.xlu0 %2466
        %2470 = vset.pattern.permute.xlu0 0
        %2471 = vperm.xlu0 %2470, %v2409
        %v2472 = vpop.permute.xlu0 %2471
        %2475 = vset.pattern.permute.xlu0 0
        %2476 = vperm.xlu0 %2475, %v2410
        %v2477 = vpop.permute.xlu0 %2476
        %2480 = vset.pattern.permute.xlu0 0
        %2481 = vperm.xlu0 %2480, %v2411
        %v2482 = vpop.permute.xlu0 %2481
        %2485 = vset.pattern.permute.xlu0 0
        %2486 = vperm.xlu0 %2485, %v2412
        %v2487 = vpop.permute.xlu0 %2486
        %2490 = vset.pattern.permute.xlu0 0
        %2491 = vperm.xlu0 %2490, %v2413
        %v2492 = vpop.permute.xlu0 %2491
        %v2494 = vmul.f32 %v2417, %v1302
        %v2495 = vmul.f32 %v2422, %v1302
        %v2496 = vmul.f32 %v2427, %v1302
        %v2497 = vmul.f32 %v2432, %v1302
        %v2498 = vmul.f32 %v2437, %v1302
        %v2499 = vmul.f32 %v2442, %v1302
        %v2500 = vmul.f32 %v2447, %v1302
        %v2501 = vmul.f32 %v2452, %v1302
        %v2502 = vmul.f32 %v2457, %v1302
        %v2503 = vmul.f32 %v2462, %v1302
        %v2504 = vmul.f32 %v2467, %v1302
        %v2505 = vmul.f32 %v2472, %v1302
        %v2506 = vmul.f32 %v2477, %v1302
        %v2507 = vmul.f32 %v2482, %v1302
        %v2508 = vmul.f32 %v2487, %v1302
        %v2509 = vmul.f32 %v2492, %v1302
        %v2510 = vadd.f32 %v2382, %v2494
        %v2511 = vadd.f32 %v2383, %v2495
        %v2512 = vadd.f32 %v2384, %v2496
        %v2513 = vadd.f32 %v2385, %v2497
        %v2514 = vadd.f32 %v2386, %v2498
        %v2515 = vadd.f32 %v2387, %v2499
        %v2516 = vadd.f32 %v2388, %v2500
        %v2517 = vadd.f32 %v2389, %v2501
        %v2518 = vadd.f32 %v2390, %v2502
        %v2519 = vadd.f32 %v2391, %v2503
        %v2520 = vadd.f32 %v2392, %v2504
        %v2521 = vadd.f32 %v2393, %v2505
        %v2522 = vadd.f32 %v2394, %v2506
        %v2523 = vadd.f32 %v2395, %v2507
        %v2524 = vadd.f32 %v2396, %v2508
        %v2525 = vadd.f32 %v2397, %v2509
        %v2526 = vld [vmem:[%s571 + $0xa4] sm:$0xff]
        %v2527 = vld [vmem:[%s571 + $0xac] sm:$0xff]
        %v2528 = vld [vmem:[%s571 + $0xb4] sm:$0xff]
        %v2529 = vld [vmem:[%s571 + $0xbc] sm:$0xff]
        %v2530 = vld [vmem:[%s571 + $0xc4] sm:$0xff]
        %v2531 = vld [vmem:[%s571 + $0xcc] sm:$0xff]
        %v2532 = vld [vmem:[%s571 + $0xd4] sm:$0xff]
        %v2533 = vld [vmem:[%s571 + $0xdc] sm:$0xff]
        %v2534 = vld [vmem:[%s571 + $0xe4] sm:$0xff]
        %v2535 = vld [vmem:[%s571 + $0xec] sm:$0xff]
        %v2536 = vld [vmem:[%s571 + $0xf4] sm:$0xff]
        %v2537 = vld [vmem:[%s571 + $0xfc] sm:$0xff]
        %v2538 = vld [vmem:[%s571 + $0x104] sm:$0xff]
        %v2539 = vld [vmem:[%s571 + $0x10c] sm:$0xff]
        %v2540 = vld [vmem:[%s571 + $0x114] sm:$0xff]
        %v2541 = vld [vmem:[%s571 + $0x11c] sm:$0xff]
        %2543 = vset.pattern.permute.xlu0 0
        %2544 = vperm.xlu0 %2543, %v2526
        %v2545 = vpop.permute.xlu0 %2544
        %2548 = vset.pattern.permute.xlu0 0
        %2549 = vperm.xlu0 %2548, %v2527
        %v2550 = vpop.permute.xlu0 %2549
        %2553 = vset.pattern.permute.xlu0 0
        %2554 = vperm.xlu0 %2553, %v2528
        %v2555 = vpop.permute.xlu0 %2554
        %2558 = vset.pattern.permute.xlu0 0
        %2559 = vperm.xlu0 %2558, %v2529
        %v2560 = vpop.permute.xlu0 %2559
        %2563 = vset.pattern.permute.xlu0 0
        %2564 = vperm.xlu0 %2563, %v2530
        %v2565 = vpop.permute.xlu0 %2564
        %2568 = vset.pattern.permute.xlu0 0
        %2569 = vperm.xlu0 %2568, %v2531
        %v2570 = vpop.permute.xlu0 %2569
        %2573 = vset.pattern.permute.xlu0 0
        %2574 = vperm.xlu0 %2573, %v2532
        %v2575 = vpop.permute.xlu0 %2574
        %2578 = vset.pattern.permute.xlu0 0
        %2579 = vperm.xlu0 %2578, %v2533
        %v2580 = vpop.permute.xlu0 %2579
        %2583 = vset.pattern.permute.xlu0 0
        %2584 = vperm.xlu0 %2583, %v2534
        %v2585 = vpop.permute.xlu0 %2584
        %2588 = vset.pattern.permute.xlu0 0
        %2589 = vperm.xlu0 %2588, %v2535
        %v2590 = vpop.permute.xlu0 %2589
        %2593 = vset.pattern.permute.xlu0 0
        %2594 = vperm.xlu0 %2593, %v2536
        %v2595 = vpop.permute.xlu0 %2594
        %2598 = vset.pattern.permute.xlu0 0
        %2599 = vperm.xlu0 %2598, %v2537
        %v2600 = vpop.permute.xlu0 %2599
        %2603 = vset.pattern.permute.xlu0 0
        %2604 = vperm.xlu0 %2603, %v2538
        %v2605 = vpop.permute.xlu0 %2604
        %2608 = vset.pattern.permute.xlu0 0
        %2609 = vperm.xlu0 %2608, %v2539
        %v2610 = vpop.permute.xlu0 %2609
        %2613 = vset.pattern.permute.xlu0 0
        %2614 = vperm.xlu0 %2613, %v2540
        %v2615 = vpop.permute.xlu0 %2614
        %2618 = vset.pattern.permute.xlu0 0
        %2619 = vperm.xlu0 %2618, %v2541
        %v2620 = vpop.permute.xlu0 %2619
        %v2622 = vmul.f32 %v2545, %v1431
        %v2623 = vmul.f32 %v2550, %v1431
        %v2624 = vmul.f32 %v2555, %v1431
        %v2625 = vmul.f32 %v2560, %v1431
        %v2626 = vmul.f32 %v2565, %v1431
        %v2627 = vmul.f32 %v2570, %v1431
        %v2628 = vmul.f32 %v2575, %v1431
        %v2629 = vmul.f32 %v2580, %v1431
        %v2630 = vmul.f32 %v2585, %v1431
        %v2631 = vmul.f32 %v2590, %v1431
        %v2632 = vmul.f32 %v2595, %v1431
        %v2633 = vmul.f32 %v2600, %v1431
        %v2634 = vmul.f32 %v2605, %v1431
        %v2635 = vmul.f32 %v2610, %v1431
        %v2636 = vmul.f32 %v2615, %v1431
        %v2637 = vmul.f32 %v2620, %v1431
        %v2638 = vadd.f32 %v2510, %v2622
        %v2639 = vadd.f32 %v2511, %v2623
        %v2640 = vadd.f32 %v2512, %v2624
        %v2641 = vadd.f32 %v2513, %v2625
        %v2642 = vadd.f32 %v2514, %v2626
        %v2643 = vadd.f32 %v2515, %v2627
        %v2644 = vadd.f32 %v2516, %v2628
        %v2645 = vadd.f32 %v2517, %v2629
        %v2646 = vadd.f32 %v2518, %v2630
        %v2647 = vadd.f32 %v2519, %v2631
        %v2648 = vadd.f32 %v2520, %v2632
        %v2649 = vadd.f32 %v2521, %v2633
        %v2650 = vadd.f32 %v2522, %v2634
        %v2651 = vadd.f32 %v2523, %v2635
        %v2652 = vadd.f32 %v2524, %v2636
        %v2653 = vadd.f32 %v2525, %v2637
        %v2654 = vld [vmem:[%s571 + $0xa5] sm:$0xff]
        %v2655 = vld [vmem:[%s571 + $0xad] sm:$0xff]
        %v2656 = vld [vmem:[%s571 + $0xb5] sm:$0xff]
        %v2657 = vld [vmem:[%s571 + $0xbd] sm:$0xff]
        %v2658 = vld [vmem:[%s571 + $0xc5] sm:$0xff]
        %v2659 = vld [vmem:[%s571 + $0xcd] sm:$0xff]
        %v2660 = vld [vmem:[%s571 + $0xd5] sm:$0xff]
        %v2661 = vld [vmem:[%s571 + $0xdd] sm:$0xff]
        %v2662 = vld [vmem:[%s571 + $0xe5] sm:$0xff]
        %v2663 = vld [vmem:[%s571 + $0xed] sm:$0xff]
        %v2664 = vld [vmem:[%s571 + $0xf5] sm:$0xff]
        %v2665 = vld [vmem:[%s571 + $0xfd] sm:$0xff]
        %v2666 = vld [vmem:[%s571 + $0x105] sm:$0xff]
        %v2667 = vld [vmem:[%s571 + $0x10d] sm:$0xff]
        %v2668 = vld [vmem:[%s571 + $0x115] sm:$0xff]
        %v2669 = vld [vmem:[%s571 + $0x11d] sm:$0xff]
        %2671 = vset.pattern.permute.xlu0 0
        %2672 = vperm.xlu0 %2671, %v2654
        %v2673 = vpop.permute.xlu0 %2672
        %2676 = vset.pattern.permute.xlu0 0
        %2677 = vperm.xlu0 %2676, %v2655
        %v2678 = vpop.permute.xlu0 %2677
        %2681 = vset.pattern.permute.xlu0 0
        %2682 = vperm.xlu0 %2681, %v2656
        %v2683 = vpop.permute.xlu0 %2682
        %2686 = vset.pattern.permute.xlu0 0
        %2687 = vperm.xlu0 %2686, %v2657
        %v2688 = vpop.permute.xlu0 %2687
        %2691 = vset.pattern.permute.xlu0 0
        %2692 = vperm.xlu0 %2691, %v2658
        %v2693 = vpop.permute.xlu0 %2692
        %2696 = vset.pattern.permute.xlu0 0
        %2697 = vperm.xlu0 %2696, %v2659
        %v2698 = vpop.permute.xlu0 %2697
        %2701 = vset.pattern.permute.xlu0 0
        %2702 = vperm.xlu0 %2701, %v2660
        %v2703 = vpop.permute.xlu0 %2702
        %2706 = vset.pattern.permute.xlu0 0
        %2707 = vperm.xlu0 %2706, %v2661
        %v2708 = vpop.permute.xlu0 %2707
        %2711 = vset.pattern.permute.xlu0 0
        %2712 = vperm.xlu0 %2711, %v2662
        %v2713 = vpop.permute.xlu0 %2712
        %2716 = vset.pattern.permute.xlu0 0
        %2717 = vperm.xlu0 %2716, %v2663
        %v2718 = vpop.permute.xlu0 %2717
        %2721 = vset.pattern.permute.xlu0 0
        %2722 = vperm.xlu0 %2721, %v2664
        %v2723 = vpop.permute.xlu0 %2722
        %2726 = vset.pattern.permute.xlu0 0
        %2727 = vperm.xlu0 %2726, %v2665
        %v2728 = vpop.permute.xlu0 %2727
        %2731 = vset.pattern.permute.xlu0 0
        %2732 = vperm.xlu0 %2731, %v2666
        %v2733 = vpop.permute.xlu0 %2732
        %2736 = vset.pattern.permute.xlu0 0
        %2737 = vperm.xlu0 %2736, %v2667
        %v2738 = vpop.permute.xlu0 %2737
        %2741 = vset.pattern.permute.xlu0 0
        %2742 = vperm.xlu0 %2741, %v2668
        %v2743 = vpop.permute.xlu0 %2742
        %2746 = vset.pattern.permute.xlu0 0
        %2747 = vperm.xlu0 %2746, %v2669
        %v2748 = vpop.permute.xlu0 %2747
        %v2750 = vmul.f32 %v2673, %v1560
        %v2751 = vmul.f32 %v2678, %v1560
        %v2752 = vmul.f32 %v2683, %v1560
        %v2753 = vmul.f32 %v2688, %v1560
        %v2754 = vmul.f32 %v2693, %v1560
        %v2755 = vmul.f32 %v2698, %v1560
        %v2756 = vmul.f32 %v2703, %v1560
        %v2757 = vmul.f32 %v2708, %v1560
        %v2758 = vmul.f32 %v2713, %v1560
        %v2759 = vmul.f32 %v2718, %v1560
        %v2760 = vmul.f32 %v2723, %v1560
        %v2761 = vmul.f32 %v2728, %v1560
        %v2762 = vmul.f32 %v2733, %v1560
        %v2763 = vmul.f32 %v2738, %v1560
        %v2764 = vmul.f32 %v2743, %v1560
        %v2765 = vmul.f32 %v2748, %v1560
        %v2766 = vadd.f32 %v2638, %v2750
        %v2767 = vadd.f32 %v2639, %v2751
        %v2768 = vadd.f32 %v2640, %v2752
        %v2769 = vadd.f32 %v2641, %v2753
        %v2770 = vadd.f32 %v2642, %v2754
        %v2771 = vadd.f32 %v2643, %v2755
        %v2772 = vadd.f32 %v2644, %v2756
        %v2773 = vadd.f32 %v2645, %v2757
        %v2774 = vadd.f32 %v2646, %v2758
        %v2775 = vadd.f32 %v2647, %v2759
        %v2776 = vadd.f32 %v2648, %v2760
        %v2777 = vadd.f32 %v2649, %v2761
        %v2778 = vadd.f32 %v2650, %v2762
        %v2779 = vadd.f32 %v2651, %v2763
        %v2780 = vadd.f32 %v2652, %v2764
        %v2781 = vadd.f32 %v2653, %v2765
        %v2782 = vld [vmem:[%s571 + $0xa6] sm:$0xff]
        %v2783 = vld [vmem:[%s571 + $0xae] sm:$0xff]
        %v2784 = vld [vmem:[%s571 + $0xb6] sm:$0xff]
        %v2785 = vld [vmem:[%s571 + $0xbe] sm:$0xff]
        %v2786 = vld [vmem:[%s571 + $0xc6] sm:$0xff]
        %v2787 = vld [vmem:[%s571 + $0xce] sm:$0xff]
        %v2788 = vld [vmem:[%s571 + $0xd6] sm:$0xff]
        %v2789 = vld [vmem:[%s571 + $0xde] sm:$0xff]
        %v2790 = vld [vmem:[%s571 + $0xe6] sm:$0xff]
        %v2791 = vld [vmem:[%s571 + $0xee] sm:$0xff]
        %v2792 = vld [vmem:[%s571 + $0xf6] sm:$0xff]
        %v2793 = vld [vmem:[%s571 + $0xfe] sm:$0xff]
        %v2794 = vld [vmem:[%s571 + $0x106] sm:$0xff]
        %v2795 = vld [vmem:[%s571 + $0x10e] sm:$0xff]
        %v2796 = vld [vmem:[%s571 + $0x116] sm:$0xff]
        %v2797 = vld [vmem:[%s571 + $0x11e] sm:$0xff]
        %2799 = vset.pattern.permute.xlu0 0
        %2800 = vperm.xlu0 %2799, %v2782
        %v2801 = vpop.permute.xlu0 %2800
        %2804 = vset.pattern.permute.xlu0 0
        %2805 = vperm.xlu0 %2804, %v2783
        %v2806 = vpop.permute.xlu0 %2805
        %2809 = vset.pattern.permute.xlu0 0
        %2810 = vperm.xlu0 %2809, %v2784
        %v2811 = vpop.permute.xlu0 %2810
        %2814 = vset.pattern.permute.xlu0 0
        %2815 = vperm.xlu0 %2814, %v2785
        %v2816 = vpop.permute.xlu0 %2815
        %2819 = vset.pattern.permute.xlu0 0
        %2820 = vperm.xlu0 %2819, %v2786
        %v2821 = vpop.permute.xlu0 %2820
        %2824 = vset.pattern.permute.xlu0 0
        %2825 = vperm.xlu0 %2824, %v2787
        %v2826 = vpop.permute.xlu0 %2825
        %2829 = vset.pattern.permute.xlu0 0
        %2830 = vperm.xlu0 %2829, %v2788
        %v2831 = vpop.permute.xlu0 %2830
        %2834 = vset.pattern.permute.xlu0 0
        %2835 = vperm.xlu0 %2834, %v2789
        %v2836 = vpop.permute.xlu0 %2835
        %2839 = vset.pattern.permute.xlu0 0
        %2840 = vperm.xlu0 %2839, %v2790
        %v2841 = vpop.permute.xlu0 %2840
        %2844 = vset.pattern.permute.xlu0 0
        %2845 = vperm.xlu0 %2844, %v2791
        %v2846 = vpop.permute.xlu0 %2845
        %2849 = vset.pattern.permute.xlu0 0
        %2850 = vperm.xlu0 %2849, %v2792
        %v2851 = vpop.permute.xlu0 %2850
        %2854 = vset.pattern.permute.xlu0 0
        %2855 = vperm.xlu0 %2854, %v2793
        %v2856 = vpop.permute.xlu0 %2855
        %2859 = vset.pattern.permute.xlu0 0
        %2860 = vperm.xlu0 %2859, %v2794
        %v2861 = vpop.permute.xlu0 %2860
        %2864 = vset.pattern.permute.xlu0 0
        %2865 = vperm.xlu0 %2864, %v2795
        %v2866 = vpop.permute.xlu0 %2865
        %2869 = vset.pattern.permute.xlu0 0
        %2870 = vperm.xlu0 %2869, %v2796
        %v2871 = vpop.permute.xlu0 %2870
        %2874 = vset.pattern.permute.xlu0 0
        %2875 = vperm.xlu0 %2874, %v2797
        %v2876 = vpop.permute.xlu0 %2875
        %v2878 = vmul.f32 %v2801, %v1689
        %v2879 = vmul.f32 %v2806, %v1689
        %v2880 = vmul.f32 %v2811, %v1689
        %v2881 = vmul.f32 %v2816, %v1689
        %v2882 = vmul.f32 %v2821, %v1689
        %v2883 = vmul.f32 %v2826, %v1689
        %v2884 = vmul.f32 %v2831, %v1689
        %v2885 = vmul.f32 %v2836, %v1689
        %v2886 = vmul.f32 %v2841, %v1689
        %v2887 = vmul.f32 %v2846, %v1689
        %v2888 = vmul.f32 %v2851, %v1689
        %v2889 = vmul.f32 %v2856, %v1689
        %v2890 = vmul.f32 %v2861, %v1689
        %v2891 = vmul.f32 %v2866, %v1689
        %v2892 = vmul.f32 %v2871, %v1689
        %v2893 = vmul.f32 %v2876, %v1689
        %v2894 = vadd.f32 %v2766, %v2878
        %v2895 = vadd.f32 %v2767, %v2879
        %v2896 = vadd.f32 %v2768, %v2880
        %v2897 = vadd.f32 %v2769, %v2881
        %v2898 = vadd.f32 %v2770, %v2882
        %v2899 = vadd.f32 %v2771, %v2883
        %v2900 = vadd.f32 %v2772, %v2884
        %v2901 = vadd.f32 %v2773, %v2885
        %v2902 = vadd.f32 %v2774, %v2886
        %v2903 = vadd.f32 %v2775, %v2887
        %v2904 = vadd.f32 %v2776, %v2888
        %v2905 = vadd.f32 %v2777, %v2889
        %v2906 = vadd.f32 %v2778, %v2890
        %v2907 = vadd.f32 %v2779, %v2891
        %v2908 = vadd.f32 %v2780, %v2892
        %v2909 = vadd.f32 %v2781, %v2893
        %v2910 = vadd.f32 %v2894, %v1723
        %v2911 = vadd.f32 %v2895, %v1723
        %v2912 = vadd.f32 %v2896, %v1723
        %v2913 = vadd.f32 %v2897, %v1723
        %v2914 = vadd.f32 %v2898, %v1723
        %v2915 = vadd.f32 %v2899, %v1723
        %v2916 = vadd.f32 %v2900, %v1723
        %v2917 = vadd.f32 %v2901, %v1723
        %v2918 = vadd.f32 %v2902, %v1723
        %v2919 = vadd.f32 %v2903, %v1723
        %v2920 = vadd.f32 %v2904, %v1723
        %v2921 = vadd.f32 %v2905, %v1723
        %v2922 = vadd.f32 %v2906, %v1723
        %v2923 = vadd.f32 %v2907, %v1723
        %v2924 = vadd.f32 %v2908, %v1723
        %v2925 = vadd.f32 %v2909, %v1723
        %v2926 = vmax.f32 %v2910, 0.0
        %v2927 = vmax.f32 %v2911, 0.0
        %v2928 = vmax.f32 %v2912, 0.0
        %v2929 = vmax.f32 %v2913, 0.0
        %v2930 = vmax.f32 %v2914, 0.0
        %v2931 = vmax.f32 %v2915, 0.0
        %v2932 = vmax.f32 %v2916, 0.0
        %v2933 = vmax.f32 %v2917, 0.0
        %v2934 = vmax.f32 %v2918, 0.0
        %v2935 = vmax.f32 %v2919, 0.0
        %v2936 = vmax.f32 %v2920, 0.0
        %v2937 = vmax.f32 %v2921, 0.0
        %v2938 = vmax.f32 %v2922, 0.0
        %v2939 = vmax.f32 %v2923, 0.0
        %v2940 = vmax.f32 %v2924, 0.0
        %v2941 = vmax.f32 %v2925, 0.0
        %2942 = vst.msk [vmem:[#allocation2 + $0x80] sm:$0xff] %vm1757, %v2926
        %2943 = vst.msk [vmem:[#allocation2 + $0x88] sm:$0xff] %vm1757, %v2927
        %2944 = vst.msk [vmem:[#allocation2 + $0x90] sm:$0xff] %vm1757, %v2928
        %2945 = vst.msk [vmem:[#allocation2 + $0x98] sm:$0xff] %vm1757, %v2929
        %2946 = vst.msk [vmem:[#allocation2 + $0xa0] sm:$0xff] %vm1757, %v2930
        %2947 = vst.msk [vmem:[#allocation2 + $0xa8] sm:$0xff] %vm1757, %v2931
        %2948 = vst.msk [vmem:[#allocation2 + $0xb0] sm:$0xff] %vm1757, %v2932
        %2949 = vst.msk [vmem:[#allocation2 + $0xb8] sm:$0xff] %vm1757, %v2933
        %2950 = vst.msk [vmem:[#allocation2 + $0xc0] sm:$0xff] %vm1757, %v2934
        %2951 = vst.msk [vmem:[#allocation2 + $0xc8] sm:$0xff] %vm1757, %v2935
        %2952 = vst.msk [vmem:[#allocation2 + $0xd0] sm:$0xff] %vm1757, %v2936
        %2953 = vst.msk [vmem:[#allocation2 + $0xd8] sm:$0xff] %vm1757, %v2937
        %2954 = vst.msk [vmem:[#allocation2 + $0xe0] sm:$0xff] %vm1757, %v2938
        %2955 = vst.msk [vmem:[#allocation2 + $0xe8] sm:$0xff] %vm1757, %v2939
        %2956 = vst.msk [vmem:[#allocation2 + $0xf0] sm:$0xff] %vm1757, %v2940
        %2957 = vst.msk [vmem:[#allocation2 + $0xf8] sm:$0xff] %vm1757, %v2941
        %v2958 = vld [vmem:[%s571 + $0x100] sm:$0xff]
        %v2959 = vld [vmem:[%s571 + $0x108] sm:$0xff]
        %v2960 = vld [vmem:[%s571 + $0x110] sm:$0xff]
        %v2961 = vld [vmem:[%s571 + $0x118] sm:$0x3f]
        %2963 = vset.pattern.permute.xlu0 0
        %2964 = vperm.xlu0 %2963, %v2958
        %v2965 = vpop.permute.xlu0 %2964
        %2968 = vset.pattern.permute.xlu0 0
        %2969 = vperm.xlu0 %2968, %v2959
        %v2970 = vpop.permute.xlu0 %2969
        %2973 = vset.pattern.permute.xlu0 0
        %2974 = vperm.xlu0 %2973, %v2960
        %v2975 = vpop.permute.xlu0 %2974
        %2978 = vset.pattern.permute.xlu0 0
        %2979 = vperm.xlu0 %2978, %v2961
        %v2980 = vpop.permute.xlu0 %2979
        %v2982 = vmul.f32 %v2965, %v673
        %v2983 = vmul.f32 %v2970, %v673
        %v2984 = vmul.f32 %v2975, %v673
        %v2985 = vmul.f32 %v2980, %v673
        %v2986 = vld [vmem:[%s571 + $0x101] sm:$0xff]
        %v2987 = vld [vmem:[%s571 + $0x109] sm:$0xff]
        %v2988 = vld [vmem:[%s571 + $0x111] sm:$0xff]
        %v2989 = vld [vmem:[%s571 + $0x119] sm:$0x3f]
        %2991 = vset.pattern.permute.xlu0 0
        %2992 = vperm.xlu0 %2991, %v2986
        %v2993 = vpop.permute.xlu0 %2992
        %2996 = vset.pattern.permute.xlu0 0
        %2997 = vperm.xlu0 %2996, %v2987
        %v2998 = vpop.permute.xlu0 %2997
        %3001 = vset.pattern.permute.xlu0 0
        %3002 = vperm.xlu0 %3001, %v2988
        %v3003 = vpop.permute.xlu0 %3002
        %3006 = vset.pattern.permute.xlu0 0
        %3007 = vperm.xlu0 %3006, %v2989
        %v3008 = vpop.permute.xlu0 %3007
        %v3010 = vmul.f32 %v2993, %v786
        %v3011 = vmul.f32 %v2998, %v786
        %v3012 = vmul.f32 %v3003, %v786
        %v3013 = vmul.f32 %v3008, %v786
        %v3014 = vadd.f32 %v2982, %v3010
        %v3015 = vadd.f32 %v2983, %v3011
        %v3016 = vadd.f32 %v2984, %v3012
        %v3017 = vadd.f32 %v2985, %v3013
        %v3018 = vld [vmem:[%s571 + $0x102] sm:$0xff]
        %v3019 = vld [vmem:[%s571 + $0x10a] sm:$0xff]
        %v3020 = vld [vmem:[%s571 + $0x112] sm:$0xff]
        %v3021 = vld [vmem:[%s571 + $0x11a] sm:$0x3f]
        %3023 = vset.pattern.permute.xlu0 0
        %3024 = vperm.xlu0 %3023, %v3018
        %v3025 = vpop.permute.xlu0 %3024
        %3028 = vset.pattern.permute.xlu0 0
        %3029 = vperm.xlu0 %3028, %v3019
        %v3030 = vpop.permute.xlu0 %3029
        %3033 = vset.pattern.permute.xlu0 0
        %3034 = vperm.xlu0 %3033, %v3020
        %v3035 = vpop.permute.xlu0 %3034
        %3038 = vset.pattern.permute.xlu0 0
        %3039 = vperm.xlu0 %3038, %v3021
        %v3040 = vpop.permute.xlu0 %3039
        %v3042 = vmul.f32 %v3025, %v915
        %v3043 = vmul.f32 %v3030, %v915
        %v3044 = vmul.f32 %v3035, %v915
        %v3045 = vmul.f32 %v3040, %v915
        %v3046 = vadd.f32 %v3014, %v3042
        %v3047 = vadd.f32 %v3015, %v3043
        %v3048 = vadd.f32 %v3016, %v3044
        %v3049 = vadd.f32 %v3017, %v3045
        %v3050 = vld [vmem:[%s571 + $0x112] sm:$0xff]
        %v3051 = vld [vmem:[%s571 + $0x11a] sm:$0xff]
        %v3052 = vld [vmem:[%s571 + $0x122] sm:$0xff]
        %v3053 = vld [vmem:[%s571 + $0x12a] sm:$0x3f]
        %3055 = vset.pattern.permute.xlu0 0
        %3056 = vperm.xlu0 %3055, %v3050
        %v3057 = vpop.permute.xlu0 %3056
        %3060 = vset.pattern.permute.xlu0 0
        %3061 = vperm.xlu0 %3060, %v3051
        %v3062 = vpop.permute.xlu0 %3061
        %3065 = vset.pattern.permute.xlu0 0
        %3066 = vperm.xlu0 %3065, %v3052
        %v3067 = vpop.permute.xlu0 %3066
        %3070 = vset.pattern.permute.xlu0 0
        %3071 = vperm.xlu0 %3070, %v3053
        %v3072 = vpop.permute.xlu0 %3071
        %v3074 = vmul.f32 %v3057, %v1044
        %v3075 = vmul.f32 %v3062, %v1044
        %v3076 = vmul.f32 %v3067, %v1044
        %v3077 = vmul.f32 %v3072, %v1044
        %v3078 = vadd.f32 %v3046, %v3074
        %v3079 = vadd.f32 %v3047, %v3075
        %v3080 = vadd.f32 %v3048, %v3076
        %v3081 = vadd.f32 %v3049, %v3077
        %v3082 = vld [vmem:[%s571 + $0x113] sm:$0xff]
        %v3083 = vld [vmem:[%s571 + $0x11b] sm:$0xff]
        %v3084 = vld [vmem:[%s571 + $0x123] sm:$0xff]
        %v3085 = vld [vmem:[%s571 + $0x12b] sm:$0x3f]
        %3087 = vset.pattern.permute.xlu0 0
        %3088 = vperm.xlu0 %3087, %v3082
        %v3089 = vpop.permute.xlu0 %3088
        %3092 = vset.pattern.permute.xlu0 0
        %3093 = vperm.xlu0 %3092, %v3083
        %v3094 = vpop.permute.xlu0 %3093
        %3097 = vset.pattern.permute.xlu0 0
        %3098 = vperm.xlu0 %3097, %v3084
        %v3099 = vpop.permute.xlu0 %3098
        %3102 = vset.pattern.permute.xlu0 0
        %3103 = vperm.xlu0 %3102, %v3085
        %v3104 = vpop.permute.xlu0 %3103
        %v3106 = vmul.f32 %v3089, %v1173
        %v3107 = vmul.f32 %v3094, %v1173
        %v3108 = vmul.f32 %v3099, %v1173
        %v3109 = vmul.f32 %v3104, %v1173
        %v3110 = vadd.f32 %v3078, %v3106
        %v3111 = vadd.f32 %v3079, %v3107
        %v3112 = vadd.f32 %v3080, %v3108
        %v3113 = vadd.f32 %v3081, %v3109
        %v3114 = vld [vmem:[%s571 + $0x114] sm:$0xff]
        %v3115 = vld [vmem:[%s571 + $0x11c] sm:$0xff]
        %v3116 = vld [vmem:[%s571 + $0x124] sm:$0xff]
        %v3117 = vld [vmem:[%s571 + $0x12c] sm:$0x3f]
        %3119 = vset.pattern.permute.xlu0 0
        %3120 = vperm.xlu0 %3119, %v3114
        %v3121 = vpop.permute.xlu0 %3120
        %3124 = vset.pattern.permute.xlu0 0
        %3125 = vperm.xlu0 %3124, %v3115
        %v3126 = vpop.permute.xlu0 %3125
        %3129 = vset.pattern.permute.xlu0 0
        %3130 = vperm.xlu0 %3129, %v3116
        %v3131 = vpop.permute.xlu0 %3130
        %3134 = vset.pattern.permute.xlu0 0
        %3135 = vperm.xlu0 %3134, %v3117
        %v3136 = vpop.permute.xlu0 %3135
        %v3138 = vmul.f32 %v3121, %v1302
        %v3139 = vmul.f32 %v3126, %v1302
        %v3140 = vmul.f32 %v3131, %v1302
        %v3141 = vmul.f32 %v3136, %v1302
        %v3142 = vadd.f32 %v3110, %v3138
        %v3143 = vadd.f32 %v3111, %v3139
        %v3144 = vadd.f32 %v3112, %v3140
        %v3145 = vadd.f32 %v3113, %v3141
        %v3146 = vld [vmem:[%s571 + $0x124] sm:$0xff]
        %v3147 = vld [vmem:[%s571 + $0x12c] sm:$0xff]
        %v3148 = vld [vmem:[%s571 + $0x134] sm:$0xff]
        %v3149 = vld [vmem:[%s571 + $0x13c] sm:$0x3f]
        %3151 = vset.pattern.permute.xlu0 0
        %3152 = vperm.xlu0 %3151, %v3146
        %v3153 = vpop.permute.xlu0 %3152
        %3156 = vset.pattern.permute.xlu0 0
        %3157 = vperm.xlu0 %3156, %v3147
        %v3158 = vpop.permute.xlu0 %3157
        %3161 = vset.pattern.permute.xlu0 0
        %3162 = vperm.xlu0 %3161, %v3148
        %v3163 = vpop.permute.xlu0 %3162
        %3166 = vset.pattern.permute.xlu0 0
        %3167 = vperm.xlu0 %3166, %v3149
        %v3168 = vpop.permute.xlu0 %3167
        %v3170 = vmul.f32 %v3153, %v1431
        %v3171 = vmul.f32 %v3158, %v1431
        %v3172 = vmul.f32 %v3163, %v1431
        %v3173 = vmul.f32 %v3168, %v1431
        %v3174 = vadd.f32 %v3142, %v3170
        %v3175 = vadd.f32 %v3143, %v3171
        %v3176 = vadd.f32 %v3144, %v3172
        %v3177 = vadd.f32 %v3145, %v3173
        %v3178 = vld [vmem:[%s571 + $0x125] sm:$0xff]
        %v3179 = vld [vmem:[%s571 + $0x12d] sm:$0xff]
        %v3180 = vld [vmem:[%s571 + $0x135] sm:$0xff]
        %v3181 = vld [vmem:[%s571 + $0x13d] sm:$0x3f]
        %3183 = vset.pattern.permute.xlu0 0
        %3184 = vperm.xlu0 %3183, %v3178
        %v3185 = vpop.permute.xlu0 %3184
        %3188 = vset.pattern.permute.xlu0 0
        %3189 = vperm.xlu0 %3188, %v3179
        %v3190 = vpop.permute.xlu0 %3189
        %3193 = vset.pattern.permute.xlu0 0
        %3194 = vperm.xlu0 %3193, %v3180
        %v3195 = vpop.permute.xlu0 %3194
        %3198 = vset.pattern.permute.xlu0 0
        %3199 = vperm.xlu0 %3198, %v3181
        %v3200 = vpop.permute.xlu0 %3199
        %v3202 = vmul.f32 %v3185, %v1560
        %v3203 = vmul.f32 %v3190, %v1560
        %v3204 = vmul.f32 %v3195, %v1560
        %v3205 = vmul.f32 %v3200, %v1560
        %v3206 = vadd.f32 %v3174, %v3202
        %v3207 = vadd.f32 %v3175, %v3203
        %v3208 = vadd.f32 %v3176, %v3204
        %v3209 = vadd.f32 %v3177, %v3205
        %v3210 = vld [vmem:[%s571 + $0x126] sm:$0xff]
        %v3211 = vld [vmem:[%s571 + $0x12e] sm:$0xff]
        %v3212 = vld [vmem:[%s571 + $0x136] sm:$0xff]
        %v3213 = vld [vmem:[%s571 + $0x13e] sm:$0x3f]
        %3215 = vset.pattern.permute.xlu0 0
        %3216 = vperm.xlu0 %3215, %v3210
        %v3217 = vpop.permute.xlu0 %3216
        %3220 = vset.pattern.permute.xlu0 0
        %3221 = vperm.xlu0 %3220, %v3211
        %v3222 = vpop.permute.xlu0 %3221
        %3225 = vset.pattern.permute.xlu0 0
        %3226 = vperm.xlu0 %3225, %v3212
        %v3227 = vpop.permute.xlu0 %3226
        %3230 = vset.pattern.permute.xlu0 0
        %3231 = vperm.xlu0 %3230, %v3213
        %v3232 = vpop.permute.xlu0 %3231
        %v3234 = vmul.f32 %v3217, %v1689
        %v3235 = vmul.f32 %v3222, %v1689
        %v3236 = vmul.f32 %v3227, %v1689
        %v3237 = vmul.f32 %v3232, %v1689
        %v3238 = vadd.f32 %v3206, %v3234
        %v3239 = vadd.f32 %v3207, %v3235
        %v3240 = vadd.f32 %v3208, %v3236
        %v3241 = vadd.f32 %v3209, %v3237
        %v3242 = vadd.f32 %v3238, %v1723
        %v3243 = vadd.f32 %v3239, %v1723
        %v3244 = vadd.f32 %v3240, %v1723
        %v3245 = vadd.f32 %v3241, %v1723
        %v3246 = vmax.f32 %v3242, 0.0
        %v3247 = vmax.f32 %v3243, 0.0
        %v3248 = vmax.f32 %v3244, 0.0
        %v3249 = vmax.f32 %v3245, 0.0
        %3250 = vst.msk [vmem:[#allocation2 + $0x100] sm:$0xff] %vm1757, %v3246
        %3251 = vst.msk [vmem:[#allocation2 + $0x108] sm:$0xff] %vm1757, %v3247
        %3252 = vst.msk [vmem:[#allocation2 + $0x110] sm:$0xff] %vm1757, %v3248
        %vm3253 = vcmask 259072
        %3254 = vst.msk [vmem:[#allocation2 + $0x118] sm:$0x3f] %vm3253, %v3249
        %3255 = vst.msk [vmem:[#allocation6] sm:$0xff] %vm1757, 0.0
        %3256 = vst.msk [vmem:[#allocation6 + $0x8] sm:$0xff] %vm1757, 0.0
        %3257 = vst.msk [vmem:[#allocation6 + $0x10] sm:$0xff] %vm1757, 0.0
        %3258 = vst.msk [vmem:[#allocation6 + $0x18] sm:$0xff] %vm1757, 0.0
        %3259 = vst.msk [vmem:[#allocation6 + $0x20] sm:$0xff] %vm1757, 0.0
        %3260 = vst.msk [vmem:[#allocation6 + $0x28] sm:$0xff] %vm1757, 0.0
        %3261 = vst.msk [vmem:[#allocation6 + $0x30] sm:$0xff] %vm1757, 0.0
        %3262 = vst.msk [vmem:[#allocation6 + $0x38] sm:$0xff] %vm1757, 0.0
        %3263 = vst.msk [vmem:[#allocation6 + $0x40] sm:$0xff] %vm1757, 0.0
        %3264 = vst.msk [vmem:[#allocation6 + $0x48] sm:$0xff] %vm1757, 0.0
        %3265 = vst.msk [vmem:[#allocation6 + $0x50] sm:$0xff] %vm1757, 0.0
        %3266 = vst.msk [vmem:[#allocation6 + $0x58] sm:$0xff] %vm1757, 0.0
        %vm3267 = vcmask 257024
        %3268 = vst.msk [vmem:[#allocation6 + $0x60] sm:$0xf] %vm3267, 0.0
        %v3269 = vld [vmem:[#allocation2] ss:$2 sm:$0xff]
        %s3270 = scalar_lea.vmem [#allocation2], 1
        %v3271 = vld [vmem:[%s3270] ss:$2 sm:$0xff]
        %s3272 = scalar_lea.vmem [#allocation2], 18
        %v3273 = vld [vmem:[%s3272] ss:$2 sm:$0xff]
        %s3274 = scalar_lea.vmem [#allocation2], 19
        %v3275 = vld [vmem:[%s3274] ss:$2 sm:$0xff]
        %v3276 = vmax.f32 %v3269, %v3271
        %v3277 = vmax.f32 %v3273, %v3275
        %v3278 = vmax.f32 %v3276, %v3277
        %3279 = vst.msk [vmem:[#allocation6 + $0xb] sm:$0xff] %vm1757, %v3278
        %s3280 = scalar_lea.vmem [#allocation2], 36
        %v3281 = vld [vmem:[%s3280] ss:$2 sm:$0xff]
        %s3282 = scalar_lea.vmem [#allocation2], 37
        %v3283 = vld [vmem:[%s3282] ss:$2 sm:$0xff]
        %s3284 = scalar_lea.vmem [#allocation2], 54
        %v3285 = vld [vmem:[%s3284] ss:$2 sm:$0xff]
        %s3286 = scalar_lea.vmem [#allocation2], 55
        %v3287 = vld [vmem:[%s3286] ss:$2 sm:$0xff]
        %v3288 = vmax.f32 %v3281, %v3283
        %v3289 = vmax.f32 %v3285, %v3287
        %v3290 = vmax.f32 %v3288, %v3289
        %3291 = vst.msk [vmem:[#allocation6 + $0x15] sm:$0xff] %vm1757, %v3290
        %s3292 = scalar_lea.vmem [#allocation2], 72
        %v3293 = vld [vmem:[%s3292] ss:$2 sm:$0xff]
        %s3294 = scalar_lea.vmem [#allocation2], 73
        %v3295 = vld [vmem:[%s3294] ss:$2 sm:$0xff]
        %s3296 = scalar_lea.vmem [#allocation2], 90
        %v3297 = vld [vmem:[%s3296] ss:$2 sm:$0xff]
        %s3298 = scalar_lea.vmem [#allocation2], 91
        %v3299 = vld [vmem:[%s3298] ss:$2 sm:$0xff]
        %v3300 = vmax.f32 %v3293, %v3295
        %v3301 = vmax.f32 %v3297, %v3299
        %v3302 = vmax.f32 %v3300, %v3301
        %3303 = vst.msk [vmem:[#allocation6 + $0x1f] sm:$0xff] %vm1757, %v3302
        %s3304 = scalar_lea.vmem [#allocation2], 108
        %v3305 = vld [vmem:[%s3304] ss:$2 sm:$0xff]
        %s3306 = scalar_lea.vmem [#allocation2], 109
        %v3307 = vld [vmem:[%s3306] ss:$2 sm:$0xff]
        %s3308 = scalar_lea.vmem [#allocation2], 126
        %v3309 = vld [vmem:[%s3308] ss:$2 sm:$0xff]
        %s3310 = scalar_lea.vmem [#allocation2], 127
        %v3311 = vld [vmem:[%s3310] ss:$2 sm:$0xff]
        %v3312 = vmax.f32 %v3305, %v3307
        %v3313 = vmax.f32 %v3309, %v3311
        %v3314 = vmax.f32 %v3312, %v3313
        %3315 = vst.msk [vmem:[#allocation6 + $0x29] sm:$0xff] %vm1757, %v3314
        %s3316 = scalar_lea.vmem [#allocation2], 144
        %v3317 = vld [vmem:[%s3316] ss:$2 sm:$0xff]
        %s3318 = scalar_lea.vmem [#allocation2], 145
        %v3319 = vld [vmem:[%s3318] ss:$2 sm:$0xff]
        %s3320 = scalar_lea.vmem [#allocation2], 162
        %v3321 = vld [vmem:[%s3320] ss:$2 sm:$0xff]
        %s3322 = scalar_lea.vmem [#allocation2], 163
        %v3323 = vld [vmem:[%s3322] ss:$2 sm:$0xff]
        %v3324 = vmax.f32 %v3317, %v3319
        %v3325 = vmax.f32 %v3321, %v3323
        %v3326 = vmax.f32 %v3324, %v3325
        %3327 = vst.msk [vmem:[#allocation6 + $0x33] sm:$0xff] %vm1757, %v3326
        %s3328 = scalar_lea.vmem [#allocation2], 180
        %v3329 = vld [vmem:[%s3328] ss:$2 sm:$0xff]
        %s3330 = scalar_lea.vmem [#allocation2], 181
        %v3331 = vld [vmem:[%s3330] ss:$2 sm:$0xff]
        %s3332 = scalar_lea.vmem [#allocation2], 198
        %v3333 = vld [vmem:[%s3332] ss:$2 sm:$0xff]
        %s3334 = scalar_lea.vmem [#allocation2], 199
        %v3335 = vld [vmem:[%s3334] ss:$2 sm:$0xff]
        %v3336 = vmax.f32 %v3329, %v3331
        %v3337 = vmax.f32 %v3333, %v3335
        %v3338 = vmax.f32 %v3336, %v3337
        %3339 = vst.msk [vmem:[#allocation6 + $0x3d] sm:$0xff] %vm1757, %v3338
        %s3340 = scalar_lea.vmem [#allocation2], 216
        %v3341 = vld [vmem:[%s3340] ss:$2 sm:$0xff]
        %s3342 = scalar_lea.vmem [#allocation2], 217
        %v3343 = vld [vmem:[%s3342] ss:$2 sm:$0xff]
        %s3344 = scalar_lea.vmem [#allocation2], 234
        %v3345 = vld [vmem:[%s3344] ss:$2 sm:$0xff]
        %s3346 = scalar_lea.vmem [#allocation2], 235
        %v3347 = vld [vmem:[%s3346] ss:$2 sm:$0xff]
        %v3348 = vmax.f32 %v3341, %v3343
        %v3349 = vmax.f32 %v3345, %v3347
        %v3350 = vmax.f32 %v3348, %v3349
        %3351 = vst.msk [vmem:[#allocation6 + $0x47] sm:$0xff] %vm1757, %v3350
        %s3352 = scalar_lea.vmem [#allocation2], 252
        %v3353 = vld [vmem:[%s3352] ss:$2 sm:$0xff]
        %s3354 = scalar_lea.vmem [#allocation2], 253
        %v3355 = vld [vmem:[%s3354] ss:$2 sm:$0xff]
        %s3356 = scalar_lea.vmem [#allocation2], 270
        %v3357 = vld [vmem:[%s3356] ss:$2 sm:$0xff]
        %s3358 = scalar_lea.vmem [#allocation2], 271
        %v3359 = vld [vmem:[%s3358] ss:$2 sm:$0xff]
        %v3360 = vmax.f32 %v3353, %v3355
        %v3361 = vmax.f32 %v3357, %v3359
        %v3362 = vmax.f32 %v3360, %v3361
        %3363 = vst.msk [vmem:[#allocation6 + $0x51] sm:$0xff] %vm1757, %v3362
        %v3364 = vld [vmem:[#allocation6] sm:$0xff]
        %v3365 = vld [vmem:[#allocation6 + $0x8] sm:$0xff]
        %v3366 = vld [vmem:[#allocation6 + $0x10] sm:$0xff]
        %v3367 = vld [vmem:[#allocation6 + $0x18] sm:$0xff]
        %v3368 = vld [vmem:[#allocation6 + $0x20] sm:$0xff]
        %v3369 = vld [vmem:[#allocation6 + $0x28] sm:$0xff]
        %v3370 = vld [vmem:[#allocation6 + $0x30] sm:$0xff]
        %v3371 = vld [vmem:[#allocation6 + $0x38] sm:$0xff]
        %v3372 = vld [vmem:[#allocation6 + $0x40] sm:$0xff]
        %v3373 = vld [vmem:[#allocation6 + $0x48] sm:$0xff]
        %v3374 = vld [vmem:[#allocation6 + $0x50] sm:$0xff]
        %v3375 = vld [vmem:[#allocation6 + $0x58] sm:$0xff]
        %v3376 = vld [vmem:[#allocation6 + $0x60] sm:$0xf]
        %v3377 = vpack.c.bf16 %v3364, %v3364
        %v3378 = vpack.c.bf16 %v3365, %v3365
        %v3379 = vpack.c.bf16 %v3366, %v3366
        %v3380 = vpack.c.bf16 %v3367, %v3367
        %v3381 = vpack.c.bf16 %v3368, %v3368
        %v3382 = vpack.c.bf16 %v3369, %v3369
        %v3383 = vpack.c.bf16 %v3370, %v3370
        %v3384 = vpack.c.bf16 %v3371, %v3371
        %v3385 = vpack.c.bf16 %v3372, %v3372
        %v3386 = vpack.c.bf16 %v3373, %v3373
        %v3387 = vpack.c.bf16 %v3374, %v3374
        %v3388 = vpack.c.bf16 %v3375, %v3375
        %v3389 = vpack.c.bf16 %v3376, %v3376
        %3390 = vst.msk [vmem:[#allocation9] sm:$0xf] %vm3267, %v3377
        %3391 = vst.msk [vmem:[#allocation9 + $0x4] sm:$0xf] %vm3267, %v3378
        %3392 = vst.msk [vmem:[#allocation9 + $0x8] sm:$0xf] %vm3267, %v3379
        %3393 = vst.msk [vmem:[#allocation9 + $0xc] sm:$0xf] %vm3267, %v3380
        %3394 = vst.msk [vmem:[#allocation9 + $0x10] sm:$0xf] %vm3267, %v3381
        %3395 = vst.msk [vmem:[#allocation9 + $0x14] sm:$0xf] %vm3267, %v3382
        %3396 = vst.msk [vmem:[#allocation9 + $0x18] sm:$0xf] %vm3267, %v3383
        %3397 = vst.msk [vmem:[#allocation9 + $0x1c] sm:$0xf] %vm3267, %v3384
        %3398 = vst.msk [vmem:[#allocation9 + $0x20] sm:$0xf] %vm3267, %v3385
        %3399 = vst.msk [vmem:[#allocation9 + $0x24] sm:$0xf] %vm3267, %v3386
        %3400 = vst.msk [vmem:[#allocation9 + $0x28] sm:$0xf] %vm3267, %v3387
        %3401 = vst.msk [vmem:[#allocation9 + $0x2c] sm:$0xf] %vm3267, %v3388
        %vm3402 = vcmask 254976
        %3403 = vst.msk [vmem:[#allocation9 + $0x30] sm:$0x3] %vm3402, %v3389
        %v3404 = vld [vmem:[%s6] sm:$0x1]
        %v3405 = vld [vmem:[#allocation9] sm:$0xf]
        %v3406 = vld [vmem:[#allocation9 + $0x4] sm:$0xf]
        %v3407 = vld [vmem:[#allocation9 + $0x8] sm:$0xf]
        %v3408 = vld [vmem:[#allocation9 + $0xc] sm:$0xf]
        %v3409 = vld [vmem:[#allocation9 + $0x10] sm:$0xf]
        %v3410 = vld [vmem:[#allocation9 + $0x14] sm:$0xf]
        %v3411 = vld [vmem:[#allocation9 + $0x18] sm:$0xf]
        %v3412 = vld [vmem:[#allocation9 + $0x1c] sm:$0xf]
        %v3413 = vld [vmem:[#allocation9 + $0x20] sm:$0xf]
        %v3414 = vld [vmem:[#allocation9 + $0x24] sm:$0x7]
        %v3415 = vld [vmem:[%s2] sm:$0xf]
        %v3416 = vld [vmem:[%s2 + $0x4] sm:$0xf]
        %v3417 = vld [vmem:[%s2 + $0x8] sm:$0xf]
        %v3418 = vld [vmem:[%s2 + $0xc] sm:$0xf]
        %v3419 = vld [vmem:[#allocation9 + $0x24] sm:$0xf]
        %v3420 = vld [vmem:[%s2 + $0x10] sm:$0xf]
        %v3421 = vld [vmem:[%s2 + $0x14] sm:$0xf]
        %v3422 = vld [vmem:[%s2 + $0x18] sm:$0xf]
        %v3423 = vld [vmem:[%s2 + $0x1c] sm:$0xf]
        %v3434 = vunpack.c.l.b16 %v3405
        %v3435 = vunpack.c.l.b16 %v3406
        %v3436 = vunpack.c.l.b16 %v3407
        %v3437 = vunpack.c.l.b16 %v3408
        %v3438 = vunpack.c.l.b16 %v3409
        %v3439 = vunpack.c.l.b16 %v3410
        %v3440 = vunpack.c.l.b16 %v3411
        %v3441 = vunpack.c.l.b16 %v3412
        %v3442 = vunpack.c.l.b16 %v3413
        %v3443 = vunpack.c.l.b16 %v3419
        %v3444 = vpack.c.b16 %v3435, %v3434
        %v3445 = vpack.c.b16 %v3437, %v3436
        %v3446 = vpack.c.b16 %v3439, %v3438
        %v3447 = vpack.c.b16 %v3441, %v3440
        %v3448 = vpack.c.b16 %v3443, %v3442
        %vm3449 = vsmask.f32 7424
        %v3451 = vshrl.u32 %v3444, 16
        %v3453 = vshll.u32 %v3444, 16
        %v3455 = vrot.slane %v3453, 1
        %v3456 = vor.u32 %v3451, %v3455
        %v3458 = vshll.u32 %v3445, 16
        %v3460 = vrot.slane %v3458, 1
        %v3461 = vsel %vm3449, %v3456, %v3460
        %v3462 = vshrl.u32 %v3445, 16
        %v3464 = vor.u32 %v3462, %v3460
        %v3466 = vshll.u32 %v3446, 16
        %v3468 = vrot.slane %v3466, 1
        %v3469 = vsel %vm3449, %v3464, %v3468
        %v3470 = vshrl.u32 %v3446, 16
        %v3472 = vor.u32 %v3470, %v3468
        %v3474 = vshll.u32 %v3447, 16
        %v3476 = vrot.slane %v3474, 1
        %v3477 = vsel %vm3449, %v3472, %v3476
        %v3478 = vshrl.u32 %v3447, 16
        %v3480 = vor.u32 %v3478, %v3476
        %v3482 = vshll.u32 %v3448, 16
        %v3484 = vrot.slane %v3482, 1
        %v3485 = vsel %vm3449, %v3480, %v3484
        %v3486 = vshrl.u32 %v3448, 16
        %v3488 = vor.u32 %v3486, %v3484
        %v3493 = vunpack.c.l.b16 %v3420
        %v3494 = vunpack.c.l.b16 %v3421
        %v3495 = vunpack.c.l.b16 %v3422
        %v3496 = vunpack.c.l.b16 %v3423
        %v3497 = vpack.c.b16 %v3494, %v3493
        %v3498 = vpack.c.b16 %v3496, %v3495
        %v3502 = vsel %vm1757, %v3461, 0
        %v3505 = vsel %vm1757, %v3469, 0
        %v3508 = vsel %vm1757, %v3477, 0
        %v3511 = vsel %vm1757, %v3485, 0
        %v3514 = vsel %vm1757, %v3488, 0
        %3516 = vmatpush.bf16.msra.mxu0 0
        %3517 = vmatpush.bf16.msra.mxu0 0
        %3518 = vmatpush.bf16.msra.mxu0 0
        %3519 = vmatpush.bf16.msra.mxu0 0
        %3520 = vmatpush.bf16.msra.mxu0 0
        %3521 = vmatpush.bf16.msra.mxu0 0
        %3522 = vmatpush.bf16.msra.mxu0 %v3498
        %3523 = vmatpush.bf16.msra.mxu0 %v3497
        %3524 = vmatmul.bf16.gmra.mxu0 %v3502
        %v3525 = vpop.f32.mrf.mxu0
        %v3526 = vadd.f32 0.0, %v3525
        %v3527 = vpop.f32.mrf.mxu0
        %v3528 = vadd.f32 0.0, %v3527
        %3529 = vmatmul.bf16.gmra.mxu0 %v3505
        %v3530 = vpop.f32.mrf.mxu0
        %v3531 = vadd.f32 0.0, %v3530
        %v3532 = vpop.f32.mrf.mxu0
        %v3533 = vadd.f32 0.0, %v3532
        %3534 = vmatmul.bf16.gmra.mxu0 %v3508
        %v3535 = vpop.f32.mrf.mxu0
        %v3536 = vadd.f32 0.0, %v3535
        %v3537 = vpop.f32.mrf.mxu0
        %v3538 = vadd.f32 0.0, %v3537
        %3539 = vmatmul.bf16.gmra.mxu0 %v3511
        %v3540 = vpop.f32.mrf.mxu0
        %v3541 = vadd.f32 0.0, %v3540
        %v3542 = vpop.f32.mrf.mxu0
        %v3543 = vadd.f32 0.0, %v3542
        %3544 = vmatmul.bf16.gmra.mxu0 %v3514
        %v3545 = vpop.f32.mrf.mxu0
        %v3546 = vadd.f32 0.0, %v3545
        %v3547 = vpop.f32.mrf.mxu0
        %v3548 = vadd.f32 0.0, %v3547
        %3549 = vdwg.mxu0
        %v3551 = vunpack.c.l.b16 %v3414
        %v3552 = vpack.c.b16 %v3551, %v3442
        %v3557 = vunpack.c.l.b16 %v3415
        %v3558 = vunpack.c.l.b16 %v3416
        %v3559 = vunpack.c.l.b16 %v3417
        %v3560 = vunpack.c.l.b16 %v3418
        %v3561 = vpack.c.b16 %v3558, %v3557
        %v3562 = vpack.c.b16 %v3560, %v3559
        %v3565 = vsel %vm1757, %v3444, 0
        %v3567 = vsel %vm1757, %v3445, 0
        %v3569 = vsel %vm1757, %v3446, 0
        %v3571 = vsel %vm1757, %v3447, 0
        %v3574 = vsel %vm1757, %v3552, 0
        %3576 = vmatpush.bf16.msra.mxu0 0
        %3577 = vmatpush.bf16.msra.mxu0 0
        %3578 = vmatpush.bf16.msra.mxu0 0
        %3579 = vmatpush.bf16.msra.mxu0 0
        %3580 = vmatpush.bf16.msra.mxu0 0
        %3581 = vmatpush.bf16.msra.mxu0 0
        %3582 = vmatpush.bf16.msra.mxu0 %v3562
        %3583 = vmatpush.bf16.msra.mxu0 %v3561
        %3584 = vmatmul.bf16.gmra.mxu0 %v3565
        %v3585 = vpop.f32.mrf.mxu0
        %v3586 = vadd.f32 %v3526, %v3585
        %v3587 = vpop.f32.mrf.mxu0
        %v3588 = vadd.f32 %v3528, %v3587
        %3589 = vmatmul.bf16.gmra.mxu0 %v3567
        %v3590 = vpop.f32.mrf.mxu0
        %v3591 = vadd.f32 %v3531, %v3590
        %v3592 = vpop.f32.mrf.mxu0
        %v3593 = vadd.f32 %v3533, %v3592
        %3594 = vmatmul.bf16.gmra.mxu0 %v3569
        %v3595 = vpop.f32.mrf.mxu0
        %v3596 = vadd.f32 %v3536, %v3595
        %v3597 = vpop.f32.mrf.mxu0
        %v3598 = vadd.f32 %v3538, %v3597
        %3599 = vmatmul.bf16.gmra.mxu0 %v3571
        %v3600 = vpop.f32.mrf.mxu0
        %v3601 = vadd.f32 %v3541, %v3600
        %v3602 = vpop.f32.mrf.mxu0
        %v3603 = vadd.f32 %v3543, %v3602
        %3604 = vmatmul.bf16.gmra.mxu0 %v3574
        %v3605 = vpop.f32.mrf.mxu0
        %v3606 = vadd.f32 %v3546, %v3605
        %v3607 = vpop.f32.mrf.mxu0
        %v3608 = vadd.f32 %v3548, %v3607
        %3609 = vdwg.mxu0
        %v3610 = vld [vmem:[#allocation9] sm:$0xe]
        %v3611 = vld [vmem:[%s2 + $0x20] sm:$0xf]
        %v3612 = vld [vmem:[%s2 + $0x24] sm:$0xf]
        %v3613 = vld [vmem:[%s2 + $0x28] sm:$0xf]
        %v3614 = vld [vmem:[%s2 + $0x2c] sm:$0xf]
        %v3616 = vunpack.c.l.b16 %v3610
        %v3617 = vpack.c.b16 %v3435, %v3616
        %vm3618 = vcmask 1046528
        %v3619 = vrot.slane %v3617, 1
        %v3620 = vrot.slane %v3445, 1
        %v3621 = vsel %vm3618, %v3619, %v3620
        %v3622 = vrot.slane %v3446, 1
        %v3623 = vsel %vm3618, %v3620, %v3622
        %v3624 = vrot.slane %v3447, 1
        %v3625 = vsel %vm3618, %v3622, %v3624
        %v3626 = vrot.slane %v3448, 1
        %v3627 = vsel %vm3618, %v3624, %v3626
        %v3632 = vunpack.c.l.b16 %v3611
        %v3633 = vunpack.c.l.b16 %v3612
        %v3634 = vunpack.c.l.b16 %v3613
        %v3635 = vunpack.c.l.b16 %v3614
        %v3636 = vpack.c.b16 %v3633, %v3632
        %v3637 = vpack.c.b16 %v3635, %v3634
        %v3641 = vsel %vm1757, %v3621, 0
        %v3644 = vsel %vm1757, %v3623, 0
        %v3647 = vsel %vm1757, %v3625, 0
        %v3650 = vsel %vm1757, %v3627, 0
        %v3653 = vsel %vm1757, %v3626, 0
        %3655 = vmatpush.bf16.msra.mxu0 0
        %3656 = vmatpush.bf16.msra.mxu0 0
        %3657 = vmatpush.bf16.msra.mxu0 0
        %3658 = vmatpush.bf16.msra.mxu0 0
        %3659 = vmatpush.bf16.msra.mxu0 0
        %3660 = vmatpush.bf16.msra.mxu0 0
        %3661 = vmatpush.bf16.msra.mxu0 %v3637
        %3662 = vmatpush.bf16.msra.mxu0 %v3636
        %3663 = vmatmul.bf16.gmra.mxu0 %v3641
        %v3664 = vpop.f32.mrf.mxu0
        %v3665 = vadd.f32 0.0, %v3664
        %v3666 = vpop.f32.mrf.mxu0
        %v3667 = vadd.f32 0.0, %v3666
        %3668 = vmatmul.bf16.gmra.mxu0 %v3644
        %v3669 = vpop.f32.mrf.mxu0
        %v3670 = vadd.f32 0.0, %v3669
        %v3671 = vpop.f32.mrf.mxu0
        %v3672 = vadd.f32 0.0, %v3671
        %3673 = vmatmul.bf16.gmra.mxu0 %v3647
        %v3674 = vpop.f32.mrf.mxu0
        %v3675 = vadd.f32 0.0, %v3674
        %v3676 = vpop.f32.mrf.mxu0
        %v3677 = vadd.f32 0.0, %v3676
        %3678 = vmatmul.bf16.gmra.mxu0 %v3650
        %v3679 = vpop.f32.mrf.mxu0
        %v3680 = vadd.f32 0.0, %v3679
        %v3681 = vpop.f32.mrf.mxu0
        %v3682 = vadd.f32 0.0, %v3681
        %3683 = vmatmul.bf16.gmra.mxu0 %v3653
        %v3684 = vpop.f32.mrf.mxu0
        %v3685 = vadd.f32 0.0, %v3684
        %v3686 = vpop.f32.mrf.mxu0
        %v3687 = vadd.f32 0.0, %v3686
        %3688 = vdwg.mxu0
        %v3689 = vadd.f32 %v3586, %v3665
        %v3690 = vadd.f32 %v3588, %v3667
        %v3691 = vadd.f32 %v3591, %v3670
        %v3692 = vadd.f32 %v3593, %v3672
        %v3693 = vadd.f32 %v3596, %v3675
        %v3694 = vadd.f32 %v3598, %v3677
        %v3695 = vadd.f32 %v3601, %v3680
        %v3696 = vadd.f32 %v3603, %v3682
        %v3697 = vadd.f32 %v3606, %v3685
        %v3698 = vadd.f32 %v3608, %v3687
        %v3699 = vld [vmem:[#allocation9 + $0x4] sm:$0xe]
        %v3700 = vld [vmem:[#allocation9 + $0x8] sm:$0xf]
        %v3701 = vld [vmem:[#allocation9 + $0xc] sm:$0xf]
        %v3702 = vld [vmem:[#allocation9 + $0x10] sm:$0xf]
        %v3703 = vld [vmem:[#allocation9 + $0x14] sm:$0xf]
        %v3704 = vld [vmem:[#allocation9 + $0x18] sm:$0xf]
        %v3705 = vld [vmem:[#allocation9 + $0x1c] sm:$0xf]
        %v3706 = vld [vmem:[#allocation9 + $0x20] sm:$0xf]
        %v3707 = vld [vmem:[#allocation9 + $0x24] sm:$0xf]
        %v3708 = vld [vmem:[#allocation9 + $0x28] sm:$0xf]
        %v3709 = vld [vmem:[%s2 + $0x30] sm:$0xf]
        %v3710 = vld [vmem:[%s2 + $0x34] sm:$0xf]
        %v3711 = vld [vmem:[%s2 + $0x38] sm:$0xf]
        %v3712 = vld [vmem:[%s2 + $0x3c] sm:$0xf]
        %v3723 = vunpack.c.l.b16 %v3699
        %v3724 = vunpack.c.l.b16 %v3700
        %v3725 = vunpack.c.l.b16 %v3701
        %v3726 = vunpack.c.l.b16 %v3702
        %v3727 = vunpack.c.l.b16 %v3703
        %v3728 = vunpack.c.l.b16 %v3704
        %v3729 = vunpack.c.l.b16 %v3705
        %v3730 = vunpack.c.l.b16 %v3706
        %v3731 = vunpack.c.l.b16 %v3707
        %v3732 = vunpack.c.l.b16 %v3708
        %v3733 = vpack.c.b16 %v3724, %v3723
        %v3734 = vpack.c.b16 %v3726, %v3725
        %v3735 = vpack.c.b16 %v3728, %v3727
        %v3736 = vpack.c.b16 %v3730, %v3729
        %v3737 = vpack.c.b16 %v3732, %v3731
        %v3738 = vrot.slane %v3733, 1
        %v3739 = vrot.slane %v3734, 1
        %v3740 = vsel %vm3618, %v3738, %v3739
        %v3741 = vrot.slane %v3735, 1
        %v3742 = vsel %vm3618, %v3739, %v3741
        %v3743 = vrot.slane %v3736, 1
        %v3744 = vsel %vm3618, %v3741, %v3743
        %v3745 = vrot.slane %v3737, 1
        %v3746 = vsel %vm3618, %v3743, %v3745
        %v3751 = vunpack.c.l.b16 %v3709
        %v3752 = vunpack.c.l.b16 %v3710
        %v3753 = vunpack.c.l.b16 %v3711
        %v3754 = vunpack.c.l.b16 %v3712
        %v3755 = vpack.c.b16 %v3752, %v3751
        %v3756 = vpack.c.b16 %v3754, %v3753
        %v3760 = vsel %vm1757, %v3740, 0
        %v3763 = vsel %vm1757, %v3742, 0
        %v3766 = vsel %vm1757, %v3744, 0
        %v3769 = vsel %vm1757, %v3746, 0
        %v3772 = vsel %vm1757, %v3745, 0
        %3774 = vmatpush.bf16.msra.mxu0 0
        %3775 = vmatpush.bf16.msra.mxu0 0
        %3776 = vmatpush.bf16.msra.mxu0 0
        %3777 = vmatpush.bf16.msra.mxu0 0
        %3778 = vmatpush.bf16.msra.mxu0 0
        %3779 = vmatpush.bf16.msra.mxu0 0
        %3780 = vmatpush.bf16.msra.mxu0 %v3756
        %3781 = vmatpush.bf16.msra.mxu0 %v3755
        %3782 = vmatmul.bf16.gmra.mxu0 %v3760
        %v3783 = vpop.f32.mrf.mxu0
        %v3784 = vadd.f32 0.0, %v3783
        %v3785 = vpop.f32.mrf.mxu0
        %v3786 = vadd.f32 0.0, %v3785
        %3787 = vmatmul.bf16.gmra.mxu0 %v3763
        %v3788 = vpop.f32.mrf.mxu0
        %v3789 = vadd.f32 0.0, %v3788
        %v3790 = vpop.f32.mrf.mxu0
        %v3791 = vadd.f32 0.0, %v3790
        %3792 = vmatmul.bf16.gmra.mxu0 %v3766
        %v3793 = vpop.f32.mrf.mxu0
        %v3794 = vadd.f32 0.0, %v3793
        %v3795 = vpop.f32.mrf.mxu0
        %v3796 = vadd.f32 0.0, %v3795
        %3797 = vmatmul.bf16.gmra.mxu0 %v3769
        %v3798 = vpop.f32.mrf.mxu0
        %v3799 = vadd.f32 0.0, %v3798
        %v3800 = vpop.f32.mrf.mxu0
        %v3801 = vadd.f32 0.0, %v3800
        %3802 = vmatmul.bf16.gmra.mxu0 %v3772
        %v3803 = vpop.f32.mrf.mxu0
        %v3804 = vadd.f32 0.0, %v3803
        %v3805 = vpop.f32.mrf.mxu0
        %v3806 = vadd.f32 0.0, %v3805
        %3807 = vdwg.mxu0
        %v3808 = vadd.f32 %v3689, %v3784
        %v3809 = vadd.f32 %v3690, %v3786
        %v3810 = vadd.f32 %v3691, %v3789
        %v3811 = vadd.f32 %v3692, %v3791
        %v3812 = vadd.f32 %v3693, %v3794
        %v3813 = vadd.f32 %v3694, %v3796
        %v3814 = vadd.f32 %v3695, %v3799
        %v3815 = vadd.f32 %v3696, %v3801
        %v3816 = vadd.f32 %v3697, %v3804
        %v3817 = vadd.f32 %v3698, %v3806
        %v3818 = vld [vmem:[#allocation9 + $0x4] sm:$0xe]
        %v3819 = vld [vmem:[#allocation9 + $0x8] sm:$0xf]
        %v3820 = vld [vmem:[#allocation9 + $0xc] sm:$0xf]
        %v3821 = vld [vmem:[#allocation9 + $0x10] sm:$0xf]
        %v3822 = vld [vmem:[#allocation9 + $0x14] sm:$0xf]
        %v3823 = vld [vmem:[#allocation9 + $0x18] sm:$0xf]
        %v3824 = vld [vmem:[#allocation9 + $0x1c] sm:$0xf]
        %v3825 = vld [vmem:[#allocation9 + $0x20] sm:$0xf]
        %v3826 = vld [vmem:[#allocation9 + $0x24] sm:$0xf]
        %v3827 = vld [vmem:[#allocation9 + $0x28] sm:$0xf]
        %v3828 = vld [vmem:[#allocation9 + $0x2c] sm:$0x1]
        %v3829 = vld [vmem:[%s2 + $0x40] sm:$0xf]
        %v3830 = vld [vmem:[%s2 + $0x44] sm:$0xf]
        %v3831 = vld [vmem:[%s2 + $0x48] sm:$0xf]
        %v3832 = vld [vmem:[%s2 + $0x4c] sm:$0xf]
        %v3844 = vunpack.c.l.b16 %v3818
        %v3845 = vunpack.c.l.b16 %v3819
        %v3846 = vunpack.c.l.b16 %v3820
        %v3847 = vunpack.c.l.b16 %v3821
        %v3848 = vunpack.c.l.b16 %v3822
        %v3849 = vunpack.c.l.b16 %v3823
        %v3850 = vunpack.c.l.b16 %v3824
        %v3851 = vunpack.c.l.b16 %v3825
        %v3852 = vunpack.c.l.b16 %v3826
        %v3853 = vunpack.c.l.b16 %v3827
        %v3854 = vunpack.c.l.b16 %v3828
        %v3855 = vpack.c.b16 %v3845, %v3844
        %v3856 = vpack.c.b16 %v3847, %v3846
        %v3857 = vpack.c.b16 %v3849, %v3848
        %v3858 = vpack.c.b16 %v3851, %v3850
        %v3859 = vpack.c.b16 %v3853, %v3852
        %v3860 = vpack.c.b16 %v3854, %v3854
        %vm3861 = vsmask.f32 6400
        %v3863 = vshrl.u32 %v3855, 16
        %v3865 = vrot.slane %v3863, 1
        %v3866 = vshll.u32 %v3855, 16
        %v3868 = vrot.slane %v3866, 2
        %v3869 = vor.u32 %v3865, %v3868
        %v3871 = vshrl.u32 %v3856, 16
        %v3873 = vrot.slane %v3871, 1
        %v3874 = vshll.u32 %v3856, 16
        %v3876 = vrot.slane %v3874, 2
        %v3877 = vor.u32 %v3873, %v3876
        %v3878 = vsel %vm3861, %v3869, %v3877
        %v3880 = vshrl.u32 %v3857, 16
        %v3882 = vrot.slane %v3880, 1
        %v3883 = vshll.u32 %v3857, 16
        %v3885 = vrot.slane %v3883, 2
        %v3886 = vor.u32 %v3882, %v3885
        %v3887 = vsel %vm3861, %v3877, %v3886
        %v3889 = vshrl.u32 %v3858, 16
        %v3891 = vrot.slane %v3889, 1
        %v3892 = vshll.u32 %v3858, 16
        %v3894 = vrot.slane %v3892, 2
        %v3895 = vor.u32 %v3891, %v3894
        %v3896 = vsel %vm3861, %v3886, %v3895
        %v3898 = vshrl.u32 %v3859, 16
        %v3900 = vrot.slane %v3898, 1
        %v3901 = vshll.u32 %v3859, 16
        %v3903 = vrot.slane %v3901, 2
        %v3904 = vor.u32 %v3900, %v3903
        %v3905 = vsel %vm3861, %v3895, %v3904
        %v3907 = vshll.u32 %v3860, 16
        %v3909 = vrot.slane %v3907, 2
        %v3910 = vsel %vm3861, %v3904, %v3909
        %v3915 = vunpack.c.l.b16 %v3829
        %v3916 = vunpack.c.l.b16 %v3830
        %v3917 = vunpack.c.l.b16 %v3831
        %v3918 = vunpack.c.l.b16 %v3832
        %v3919 = vpack.c.b16 %v3916, %v3915
        %v3920 = vpack.c.b16 %v3918, %v3917
        %v3924 = vsel %vm1757, %v3878, 0
        %v3927 = vsel %vm1757, %v3887, 0
        %v3930 = vsel %vm1757, %v3896, 0
        %v3933 = vsel %vm1757, %v3905, 0
        %v3936 = vsel %vm1757, %v3910, 0
        %3938 = vmatpush.bf16.msra.mxu0 0
        %3939 = vmatpush.bf16.msra.mxu0 0
        %3940 = vmatpush.bf16.msra.mxu0 0
        %3941 = vmatpush.bf16.msra.mxu0 0
        %3942 = vmatpush.bf16.msra.mxu0 0
        %3943 = vmatpush.bf16.msra.mxu0 0
        %3944 = vmatpush.bf16.msra.mxu0 %v3920
        %3945 = vmatpush.bf16.msra.mxu0 %v3919
        %3946 = vmatmul.bf16.gmra.mxu0 %v3924
        %v3947 = vpop.f32.mrf.mxu0
        %v3948 = vadd.f32 0.0, %v3947
        %v3949 = vpop.f32.mrf.mxu0
        %v3950 = vadd.f32 0.0, %v3949
        %3951 = vmatmul.bf16.gmra.mxu0 %v3927
        %v3952 = vpop.f32.mrf.mxu0
        %v3953 = vadd.f32 0.0, %v3952
        %v3954 = vpop.f32.mrf.mxu0
        %v3955 = vadd.f32 0.0, %v3954
        %3956 = vmatmul.bf16.gmra.mxu0 %v3930
        %v3957 = vpop.f32.mrf.mxu0
        %v3958 = vadd.f32 0.0, %v3957
        %v3959 = vpop.f32.mrf.mxu0
        %v3960 = vadd.f32 0.0, %v3959
        %3961 = vmatmul.bf16.gmra.mxu0 %v3933
        %v3962 = vpop.f32.mrf.mxu0
        %v3963 = vadd.f32 0.0, %v3962
        %v3964 = vpop.f32.mrf.mxu0
        %v3965 = vadd.f32 0.0, %v3964
        %3966 = vmatmul.bf16.gmra.mxu0 %v3936
        %v3967 = vpop.f32.mrf.mxu0
        %v3968 = vadd.f32 0.0, %v3967
        %v3969 = vpop.f32.mrf.mxu0
        %v3970 = vadd.f32 0.0, %v3969
        %3971 = vdwg.mxu0
        %v3972 = vadd.f32 %v3808, %v3948
        %v3973 = vadd.f32 %v3809, %v3950
        %v3974 = vadd.f32 %v3810, %v3953
        %v3975 = vadd.f32 %v3811, %v3955
        %v3976 = vadd.f32 %v3812, %v3958
        %v3977 = vadd.f32 %v3813, %v3960
        %v3978 = vadd.f32 %v3814, %v3963
        %v3979 = vadd.f32 %v3815, %v3965
        %v3980 = vadd.f32 %v3816, %v3968
        %v3981 = vadd.f32 %v3817, %v3970
        %v3982 = vld [vmem:[#allocation9 + $0x4] sm:$0xc]
        %v3983 = vld [vmem:[%s2 + $0x50] sm:$0xf]
        %v3984 = vld [vmem:[%s2 + $0x54] sm:$0xf]
        %v3985 = vld [vmem:[%s2 + $0x58] sm:$0xf]
        %v3986 = vld [vmem:[%s2 + $0x5c] sm:$0xf]
        %v3988 = vunpack.c.l.b16 %v3982
        %v3989 = vpack.c.b16 %v3845, %v3988
        %vm3990 = vcmask 1045504
        %v3991 = vrot.slane %v3989, 2
        %v3992 = vrot.slane %v3856, 2
        %v3993 = vsel %vm3990, %v3991, %v3992
        %v3994 = vrot.slane %v3857, 2
        %v3995 = vsel %vm3990, %v3992, %v3994
        %v3996 = vrot.slane %v3858, 2
        %v3997 = vsel %vm3990, %v3994, %v3996
        %v3998 = vrot.slane %v3859, 2
        %v3999 = vsel %vm3990, %v3996, %v3998
        %v4000 = vrot.slane %v3860, 2
        %v4001 = vsel %vm3990, %v3998, %v4000
        %v4006 = vunpack.c.l.b16 %v3983
        %v4007 = vunpack.c.l.b16 %v3984
        %v4008 = vunpack.c.l.b16 %v3985
        %v4009 = vunpack.c.l.b16 %v3986
        %v4010 = vpack.c.b16 %v4007, %v4006
        %v4011 = vpack.c.b16 %v4009, %v4008
        %v4015 = vsel %vm1757, %v3993, 0
        %v4018 = vsel %vm1757, %v3995, 0
        %v4021 = vsel %vm1757, %v3997, 0
        %v4024 = vsel %vm1757, %v3999, 0
        %v4027 = vsel %vm1757, %v4001, 0
        %4029 = vmatpush.bf16.msra.mxu0 0
        %4030 = vmatpush.bf16.msra.mxu0 0
        %4031 = vmatpush.bf16.msra.mxu0 0
        %4032 = vmatpush.bf16.msra.mxu0 0
        %4033 = vmatpush.bf16.msra.mxu0 0
        %4034 = vmatpush.bf16.msra.mxu0 0
        %4035 = vmatpush.bf16.msra.mxu0 %v4011
        %4036 = vmatpush.bf16.msra.mxu0 %v4010
        %4037 = vmatmul.bf16.gmra.mxu0 %v4015
        %v4038 = vpop.f32.mrf.mxu0
        %v4039 = vadd.f32 0.0, %v4038
        %v4040 = vpop.f32.mrf.mxu0
        %v4041 = vadd.f32 0.0, %v4040
        %4042 = vmatmul.bf16.gmra.mxu0 %v4018
        %v4043 = vpop.f32.mrf.mxu0
        %v4044 = vadd.f32 0.0, %v4043
        %v4045 = vpop.f32.mrf.mxu0
        %v4046 = vadd.f32 0.0, %v4045
        %4047 = vmatmul.bf16.gmra.mxu0 %v4021
        %v4048 = vpop.f32.mrf.mxu0
        %v4049 = vadd.f32 0.0, %v4048
        %v4050 = vpop.f32.mrf.mxu0
        %v4051 = vadd.f32 0.0, %v4050
        %4052 = vmatmul.bf16.gmra.mxu0 %v4024
        %v4053 = vpop.f32.mrf.mxu0
        %v4054 = vadd.f32 0.0, %v4053
        %v4055 = vpop.f32.mrf.mxu0
        %v4056 = vadd.f32 0.0, %v4055
        %4057 = vmatmul.bf16.gmra.mxu0 %v4027
        %v4058 = vpop.f32.mrf.mxu0
        %v4059 = vadd.f32 0.0, %v4058
        %v4060 = vpop.f32.mrf.mxu0
        %v4061 = vadd.f32 0.0, %v4060
        %4062 = vdwg.mxu0
        %v4063 = vadd.f32 %v3972, %v4039
        %v4064 = vadd.f32 %v3973, %v4041
        %v4065 = vadd.f32 %v3974, %v4044
        %v4066 = vadd.f32 %v3975, %v4046
        %v4067 = vadd.f32 %v3976, %v4049
        %v4068 = vadd.f32 %v3977, %v4051
        %v4069 = vadd.f32 %v3978, %v4054
        %v4070 = vadd.f32 %v3979, %v4056
        %v4071 = vadd.f32 %v3980, %v4059
        %v4072 = vadd.f32 %v3981, %v4061
        %v4073 = vld [vmem:[#allocation9 + $0x8] sm:$0xc]
        %v4074 = vld [vmem:[#allocation9 + $0xc] sm:$0xf]
        %v4075 = vld [vmem:[#allocation9 + $0x10] sm:$0xf]
        %v4076 = vld [vmem:[#allocation9 + $0x14] sm:$0xf]
        %v4077 = vld [vmem:[#allocation9 + $0x18] sm:$0xf]
        %v4078 = vld [vmem:[#allocation9 + $0x1c] sm:$0xf]
        %v4079 = vld [vmem:[#allocation9 + $0x20] sm:$0xf]
        %v4080 = vld [vmem:[#allocation9 + $0x24] sm:$0xf]
        %v4081 = vld [vmem:[#allocation9 + $0x28] sm:$0xf]
        %v4082 = vld [vmem:[#allocation9 + $0x2c] sm:$0xf]
        %v4083 = vld [vmem:[#allocation9 + $0x30] sm:$0x1]
        %v4084 = vld [vmem:[%s2 + $0x60] sm:$0xf]
        %v4085 = vld [vmem:[%s2 + $0x64] sm:$0xf]
        %v4086 = vld [vmem:[%s2 + $0x68] sm:$0xf]
        %v4087 = vld [vmem:[%s2 + $0x6c] sm:$0xf]
        %v4099 = vunpack.c.l.b16 %v4073
        %v4100 = vunpack.c.l.b16 %v4074
        %v4101 = vunpack.c.l.b16 %v4075
        %v4102 = vunpack.c.l.b16 %v4076
        %v4103 = vunpack.c.l.b16 %v4077
        %v4104 = vunpack.c.l.b16 %v4078
        %v4105 = vunpack.c.l.b16 %v4079
        %v4106 = vunpack.c.l.b16 %v4080
        %v4107 = vunpack.c.l.b16 %v4081
        %v4108 = vunpack.c.l.b16 %v4082
        %v4109 = vunpack.c.l.b16 %v4083
        %v4110 = vpack.c.b16 %v4100, %v4099
        %v4111 = vpack.c.b16 %v4102, %v4101
        %v4112 = vpack.c.b16 %v4104, %v4103
        %v4113 = vpack.c.b16 %v4106, %v4105
        %v4114 = vpack.c.b16 %v4108, %v4107
        %v4115 = vpack.c.b16 %v4109, %v4109
        %v4116 = vrot.slane %v4110, 2
        %v4117 = vrot.slane %v4111, 2
        %v4118 = vsel %vm3990, %v4116, %v4117
        %v4119 = vrot.slane %v4112, 2
        %v4120 = vsel %vm3990, %v4117, %v4119
        %v4121 = vrot.slane %v4113, 2
        %v4122 = vsel %vm3990, %v4119, %v4121
        %v4123 = vrot.slane %v4114, 2
        %v4124 = vsel %vm3990, %v4121, %v4123
        %v4125 = vrot.slane %v4115, 2
        %v4126 = vsel %vm3990, %v4123, %v4125
        %v4131 = vunpack.c.l.b16 %v4084
        %v4132 = vunpack.c.l.b16 %v4085
        %v4133 = vunpack.c.l.b16 %v4086
        %v4134 = vunpack.c.l.b16 %v4087
        %v4135 = vpack.c.b16 %v4132, %v4131
        %v4136 = vpack.c.b16 %v4134, %v4133
        %v4140 = vsel %vm1757, %v4118, 0
        %v4143 = vsel %vm1757, %v4120, 0
        %v4146 = vsel %vm1757, %v4122, 0
        %v4149 = vsel %vm1757, %v4124, 0
        %v4152 = vsel %vm1757, %v4126, 0
        %4154 = vmatpush.bf16.msra.mxu0 0
        %4155 = vmatpush.bf16.msra.mxu0 0
        %4156 = vmatpush.bf16.msra.mxu0 0
        %4157 = vmatpush.bf16.msra.mxu0 0
        %4158 = vmatpush.bf16.msra.mxu0 0
        %4159 = vmatpush.bf16.msra.mxu0 0
        %4160 = vmatpush.bf16.msra.mxu0 %v4136
        %4161 = vmatpush.bf16.msra.mxu0 %v4135
        %4162 = vmatmul.bf16.gmra.mxu0 %v4140
        %v4163 = vpop.f32.mrf.mxu0
        %v4164 = vadd.f32 0.0, %v4163
        %v4165 = vpop.f32.mrf.mxu0
        %v4166 = vadd.f32 0.0, %v4165
        %4167 = vmatmul.bf16.gmra.mxu0 %v4143
        %v4168 = vpop.f32.mrf.mxu0
        %v4169 = vadd.f32 0.0, %v4168
        %v4170 = vpop.f32.mrf.mxu0
        %v4171 = vadd.f32 0.0, %v4170
        %4172 = vmatmul.bf16.gmra.mxu0 %v4146
        %v4173 = vpop.f32.mrf.mxu0
        %v4174 = vadd.f32 0.0, %v4173
        %v4175 = vpop.f32.mrf.mxu0
        %v4176 = vadd.f32 0.0, %v4175
        %4177 = vmatmul.bf16.gmra.mxu0 %v4149
        %v4178 = vpop.f32.mrf.mxu0
        %v4179 = vadd.f32 0.0, %v4178
        %v4180 = vpop.f32.mrf.mxu0
        %v4181 = vadd.f32 0.0, %v4180
        %4182 = vmatmul.bf16.gmra.mxu0 %v4152
        %v4183 = vpop.f32.mrf.mxu0
        %v4184 = vadd.f32 0.0, %v4183
        %v4185 = vpop.f32.mrf.mxu0
        %v4186 = vadd.f32 0.0, %v4185
        %4187 = vdwg.mxu0
        %v4188 = vadd.f32 %v4063, %v4164
        %v4189 = vadd.f32 %v4064, %v4166
        %v4190 = vadd.f32 %v4065, %v4169
        %v4191 = vadd.f32 %v4066, %v4171
        %v4192 = vadd.f32 %v4067, %v4174
        %v4193 = vadd.f32 %v4068, %v4176
        %v4194 = vadd.f32 %v4069, %v4179
        %v4195 = vadd.f32 %v4070, %v4181
        %v4196 = vadd.f32 %v4071, %v4184
        %v4197 = vadd.f32 %v4072, %v4186
        %v4198 = vld [vmem:[#allocation9 + $0x30] sm:$0x3]
        %v4199 = vld [vmem:[%s2 + $0x70] sm:$0xf]
        %v4200 = vld [vmem:[%s2 + $0x74] sm:$0xf]
        %v4201 = vld [vmem:[%s2 + $0x78] sm:$0xf]
        %v4202 = vld [vmem:[%s2 + $0x7c] sm:$0xf]
        %v4204 = vunpack.c.l.b16 %v4198
        %v4205 = vpack.c.b16 %v4204, %v4204
        %vm4206 = vsmask.f32 5376
        %v4208 = vshrl.u32 %v4110, 16
        %v4210 = vrot.slane %v4208, 2
        %v4211 = vshll.u32 %v4110, 16
        %v4213 = vrot.slane %v4211, 3
        %v4214 = vor.u32 %v4210, %v4213
        %v4216 = vshrl.u32 %v4111, 16
        %v4218 = vrot.slane %v4216, 2
        %v4219 = vshll.u32 %v4111, 16
        %v4221 = vrot.slane %v4219, 3
        %v4222 = vor.u32 %v4218, %v4221
        %v4223 = vsel %vm4206, %v4214, %v4222
        %v4225 = vshrl.u32 %v4112, 16
        %v4227 = vrot.slane %v4225, 2
        %v4228 = vshll.u32 %v4112, 16
        %v4230 = vrot.slane %v4228, 3
        %v4231 = vor.u32 %v4227, %v4230
        %v4232 = vsel %vm4206, %v4222, %v4231
        %v4234 = vshrl.u32 %v4113, 16
        %v4236 = vrot.slane %v4234, 2
        %v4237 = vshll.u32 %v4113, 16
        %v4239 = vrot.slane %v4237, 3
        %v4240 = vor.u32 %v4236, %v4239
        %v4241 = vsel %vm4206, %v4231, %v4240
        %v4243 = vshrl.u32 %v4114, 16
        %v4245 = vrot.slane %v4243, 2
        %v4246 = vshll.u32 %v4114, 16
        %v4248 = vrot.slane %v4246, 3
        %v4249 = vor.u32 %v4245, %v4248
        %v4250 = vsel %vm4206, %v4240, %v4249
        %v4252 = vshrl.u32 %v4205, 16
        %v4254 = vrot.slane %v4252, 2
        %v4255 = vshll.u32 %v4205, 16
        %v4257 = vrot.slane %v4255, 3
        %v4258 = vor.u32 %v4254, %v4257
        %v4259 = vsel %vm4206, %v4249, %v4258
        %v4264 = vunpack.c.l.b16 %v4199
        %v4265 = vunpack.c.l.b16 %v4200
        %v4266 = vunpack.c.l.b16 %v4201
        %v4267 = vunpack.c.l.b16 %v4202
        %v4268 = vpack.c.b16 %v4265, %v4264
        %v4269 = vpack.c.b16 %v4267, %v4266
        %v4273 = vsel %vm1757, %v4223, 0
        %v4276 = vsel %vm1757, %v4232, 0
        %v4279 = vsel %vm1757, %v4241, 0
        %v4282 = vsel %vm1757, %v4250, 0
        %v4285 = vsel %vm1757, %v4259, 0
        %4287 = vmatpush.bf16.msra.mxu0 0
        %4288 = vmatpush.bf16.msra.mxu0 0
        %4289 = vmatpush.bf16.msra.mxu0 0
        %4290 = vmatpush.bf16.msra.mxu0 0
        %4291 = vmatpush.bf16.msra.mxu0 0
        %4292 = vmatpush.bf16.msra.mxu0 0
        %4293 = vmatpush.bf16.msra.mxu0 %v4269
        %4294 = vmatpush.bf16.msra.mxu0 %v4268
        %4295 = vmatmul.bf16.gmra.mxu0 %v4273
        %v4296 = vpop.f32.mrf.mxu0
        %v4297 = vadd.f32 0.0, %v4296
        %v4298 = vpop.f32.mrf.mxu0
        %v4299 = vadd.f32 0.0, %v4298
        %4300 = vmatmul.bf16.gmra.mxu0 %v4276
        %v4301 = vpop.f32.mrf.mxu0
        %v4302 = vadd.f32 0.0, %v4301
        %v4303 = vpop.f32.mrf.mxu0
        %v4304 = vadd.f32 0.0, %v4303
        %4305 = vmatmul.bf16.gmra.mxu0 %v4279
        %v4306 = vpop.f32.mrf.mxu0
        %v4307 = vadd.f32 0.0, %v4306
        %v4308 = vpop.f32.mrf.mxu0
        %v4309 = vadd.f32 0.0, %v4308
        %4310 = vmatmul.bf16.gmra.mxu0 %v4282
        %v4311 = vpop.f32.mrf.mxu0
        %v4312 = vadd.f32 0.0, %v4311
        %v4313 = vpop.f32.mrf.mxu0
        %v4314 = vadd.f32 0.0, %v4313
        %4315 = vmatmul.bf16.gmra.mxu0 %v4285
        %v4316 = vpop.f32.mrf.mxu0
        %v4317 = vadd.f32 0.0, %v4316
        %v4318 = vpop.f32.mrf.mxu0
        %v4319 = vadd.f32 0.0, %v4318
        %4320 = vdwg.mxu0
        %v4321 = vadd.f32 %v4188, %v4297
        %v4322 = vadd.f32 %v4189, %v4299
        %v4323 = vadd.f32 %v4190, %v4302
        %v4324 = vadd.f32 %v4191, %v4304
        %v4325 = vadd.f32 %v4192, %v4307
        %v4326 = vadd.f32 %v4193, %v4309
        %v4327 = vadd.f32 %v4194, %v4312
        %v4328 = vadd.f32 %v4195, %v4314
        %v4329 = vadd.f32 %v4196, %v4317
        %v4330 = vadd.f32 %v4197, %v4319
        %v4331 = vld [vmem:[#allocation9 + $0x8] sm:$0x8]
        %v4332 = vld [vmem:[%s2 + $0x80] sm:$0xf]
        %v4333 = vld [vmem:[%s2 + $0x84] sm:$0xf]
        %v4334 = vld [vmem:[%s2 + $0x88] sm:$0xf]
        %v4335 = vld [vmem:[%s2 + $0x8c] sm:$0xf]
        %v4337 = vunpack.c.l.b16 %v4331
        %v4338 = vpack.c.b16 %v4100, %v4337
        %vm4339 = vcmask 1044480
        %v4340 = vrot.slane %v4338, 3
        %v4341 = vrot.slane %v4111, 3
        %v4342 = vsel %vm4339, %v4340, %v4341
        %v4343 = vrot.slane %v4112, 3
        %v4344 = vsel %vm4339, %v4341, %v4343
        %v4345 = vrot.slane %v4113, 3
        %v4346 = vsel %vm4339, %v4343, %v4345
        %v4347 = vrot.slane %v4114, 3
        %v4348 = vsel %vm4339, %v4345, %v4347
        %v4349 = vrot.slane %v4205, 3
        %v4350 = vsel %vm4339, %v4347, %v4349
        %v4355 = vunpack.c.l.b16 %v4332
        %v4356 = vunpack.c.l.b16 %v4333
        %v4357 = vunpack.c.l.b16 %v4334
        %v4358 = vunpack.c.l.b16 %v4335
        %v4359 = vpack.c.b16 %v4356, %v4355
        %v4360 = vpack.c.b16 %v4358, %v4357
        %v4364 = vsel %vm1757, %v4342, 0
        %v4367 = vsel %vm1757, %v4344, 0
        %v4370 = vsel %vm1757, %v4346, 0
        %v4373 = vsel %vm1757, %v4348, 0
        %v4376 = vsel %vm1757, %v4350, 0
        %4378 = vmatpush.bf16.msra.mxu0 0
        %4379 = vmatpush.bf16.msra.mxu0 0
        %4380 = vmatpush.bf16.msra.mxu0 0
        %4381 = vmatpush.bf16.msra.mxu0 0
        %4382 = vmatpush.bf16.msra.mxu0 0
        %4383 = vmatpush.bf16.msra.mxu0 0
        %4384 = vmatpush.bf16.msra.mxu0 %v4360
        %4385 = vmatpush.bf16.msra.mxu0 %v4359
        %4386 = vmatmul.bf16.gmra.mxu0 %v4364
        %v4387 = vpop.f32.mrf.mxu0
        %v4388 = vadd.f32 0.0, %v4387
        %v4389 = vpop.f32.mrf.mxu0
        %v4390 = vadd.f32 0.0, %v4389
        %4391 = vmatmul.bf16.gmra.mxu0 %v4367
        %v4392 = vpop.f32.mrf.mxu0
        %v4393 = vadd.f32 0.0, %v4392
        %v4394 = vpop.f32.mrf.mxu0
        %v4395 = vadd.f32 0.0, %v4394
        %4396 = vmatmul.bf16.gmra.mxu0 %v4370
        %v4397 = vpop.f32.mrf.mxu0
        %v4398 = vadd.f32 0.0, %v4397
        %v4399 = vpop.f32.mrf.mxu0
        %v4400 = vadd.f32 0.0, %v4399
        %4401 = vmatmul.bf16.gmra.mxu0 %v4373
        %v4402 = vpop.f32.mrf.mxu0
        %v4403 = vadd.f32 0.0, %v4402
        %v4404 = vpop.f32.mrf.mxu0
        %v4405 = vadd.f32 0.0, %v4404
        %4406 = vmatmul.bf16.gmra.mxu0 %v4376
        %v4407 = vpop.f32.mrf.mxu0
        %v4408 = vadd.f32 0.0, %v4407
        %v4409 = vpop.f32.mrf.mxu0
        %v4410 = vadd.f32 0.0, %v4409
        %4411 = vdwg.mxu0
        %v4412 = vadd.f32 %v4321, %v4388
        %v4413 = vadd.f32 %v4322, %v4390
        %v4414 = vadd.f32 %v4323, %v4393
        %v4415 = vadd.f32 %v4324, %v4395
        %v4416 = vadd.f32 %v4325, %v4398
        %v4417 = vadd.f32 %v4326, %v4400
        %v4418 = vadd.f32 %v4327, %v4403
        %v4419 = vadd.f32 %v4328, %v4405
        %v4420 = vadd.f32 %v4329, %v4408
        %v4421 = vadd.f32 %v4330, %v4410
        %v4423 = vperm.slane %v3404, 0
        %v4425 = vadd.f32 %v4412, %v4423
        %v4426 = vadd.f32 %v4413, %v4423
        %v4427 = vadd.f32 %v4414, %v4423
        %v4428 = vadd.f32 %v4415, %v4423
        %v4429 = vadd.f32 %v4416, %v4423
        %v4430 = vadd.f32 %v4417, %v4423
        %v4431 = vadd.f32 %v4418, %v4423
        %v4432 = vadd.f32 %v4419, %v4423
        %v4433 = vadd.f32 %v4420, %v4423
        %v4434 = vadd.f32 %v4421, %v4423
        %v4435 = vmax.f32 %v4425, 0.0
        %v4436 = vmax.f32 %v4426, 0.0
        %v4437 = vmax.f32 %v4427, 0.0
        %v4438 = vmax.f32 %v4428, 0.0
        %v4439 = vmax.f32 %v4429, 0.0
        %v4440 = vmax.f32 %v4430, 0.0
        %v4441 = vmax.f32 %v4431, 0.0
        %v4442 = vmax.f32 %v4432, 0.0
        %v4443 = vmax.f32 %v4433, 0.0
        %v4444 = vmax.f32 %v4434, 0.0
        %vm4445 = vcmask 523264
        %4446 = vst.msk [vmem:[#allocation3] sm:$0xff] %vm4445, %v4435
        %4447 = vst.msk [vmem:[#allocation3 + $0x8] sm:$0xff] %vm4445, %v4436
        %4448 = vst.msk [vmem:[#allocation3 + $0x10] sm:$0xff] %vm4445, %v4437
        %4449 = vst.msk [vmem:[#allocation3 + $0x18] sm:$0xff] %vm4445, %v4438
        %4450 = vst.msk [vmem:[#allocation3 + $0x20] sm:$0xff] %vm4445, %v4439
        %4451 = vst.msk [vmem:[#allocation3 + $0x28] sm:$0xff] %vm4445, %v4440
        %4452 = vst.msk [vmem:[#allocation3 + $0x30] sm:$0xff] %vm4445, %v4441
        %4453 = vst.msk [vmem:[#allocation3 + $0x38] sm:$0xff] %vm4445, %v4442
        %4454 = vst.msk [vmem:[#allocation3 + $0x40] sm:$0xff] %vm4445, %v4443
        %vm4455 = vcmask 521216
        %4456 = vst.msk [vmem:[#allocation3 + $0x48] sm:$0x3f] %vm4455, %v4444
        %4457 = vst.msk [vmem:[#allocation7] sm:$0xff] %vm4445, 0.0
        %4458 = vst.msk [vmem:[#allocation7 + $0x8] sm:$0xff] %vm4445, 0.0
        %4459 = vst.msk [vmem:[#allocation7 + $0x10] sm:$0xff] %vm4445, 0.0
        %4460 = vst.msk [vmem:[#allocation7 + $0x18] sm:$0xff] %vm4445, 0.0
        %vm4461 = vcmask 519168
        %4462 = vst.msk [vmem:[#allocation7 + $0x20] sm:$0xf] %vm4461, 0.0
        %v4463 = vld [vmem:[#allocation3] ss:$2 sm:$0xf]
        %s4464 = scalar_lea.vmem [#allocation3], 1
        %v4465 = vld [vmem:[%s4464] ss:$2 sm:$0xf]
        %s4466 = scalar_lea.vmem [#allocation3], 10
        %v4467 = vld [vmem:[%s4466] ss:$2 sm:$0xf]
        %s4468 = scalar_lea.vmem [#allocation3], 11
        %v4469 = vld [vmem:[%s4468] ss:$2 sm:$0xf]
        %v4470 = vmax.f32 %v4463, %v4465
        %v4471 = vmax.f32 %v4467, %v4469
        %v4472 = vmax.f32 %v4470, %v4471
        %4473 = vst.msk [vmem:[#allocation7 + $0x7] sm:$0xf] %vm4461, %v4472
        %s4474 = scalar_lea.vmem [#allocation3], 20
        %v4475 = vld [vmem:[%s4474] ss:$2 sm:$0xf]
        %s4476 = scalar_lea.vmem [#allocation3], 21
        %v4477 = vld [vmem:[%s4476] ss:$2 sm:$0xf]
        %s4478 = scalar_lea.vmem [#allocation3], 30
        %v4479 = vld [vmem:[%s4478] ss:$2 sm:$0xf]
        %s4480 = scalar_lea.vmem [#allocation3], 31
        %v4481 = vld [vmem:[%s4480] ss:$2 sm:$0xf]
        %v4482 = vmax.f32 %v4475, %v4477
        %v4483 = vmax.f32 %v4479, %v4481
        %v4484 = vmax.f32 %v4482, %v4483
        %4485 = vst.msk [vmem:[#allocation7 + $0xd] sm:$0xf] %vm4461, %v4484
        %s4486 = scalar_lea.vmem [#allocation3], 40
        %v4487 = vld [vmem:[%s4486] ss:$2 sm:$0xf]
        %s4488 = scalar_lea.vmem [#allocation3], 41
        %v4489 = vld [vmem:[%s4488] ss:$2 sm:$0xf]
        %s4490 = scalar_lea.vmem [#allocation3], 50
        %v4491 = vld [vmem:[%s4490] ss:$2 sm:$0xf]
        %s4492 = scalar_lea.vmem [#allocation3], 51
        %v4493 = vld [vmem:[%s4492] ss:$2 sm:$0xf]
        %v4494 = vmax.f32 %v4487, %v4489
        %v4495 = vmax.f32 %v4491, %v4493
        %v4496 = vmax.f32 %v4494, %v4495
        %4497 = vst.msk [vmem:[#allocation7 + $0x13] sm:$0xf] %vm4461, %v4496
        %s4498 = scalar_lea.vmem [#allocation3], 60
        %v4499 = vld [vmem:[%s4498] ss:$2 sm:$0xf]
        %s4500 = scalar_lea.vmem [#allocation3], 61
        %v4501 = vld [vmem:[%s4500] ss:$2 sm:$0xf]
        %s4502 = scalar_lea.vmem [#allocation3], 70
        %v4503 = vld [vmem:[%s4502] ss:$2 sm:$0xf]
        %s4504 = scalar_lea.vmem [#allocation3], 71
        %v4505 = vld [vmem:[%s4504] ss:$2 sm:$0xf]
        %v4506 = vmax.f32 %v4499, %v4501
        %v4507 = vmax.f32 %v4503, %v4505
        %v4508 = vmax.f32 %v4506, %v4507
        %4509 = vst.msk [vmem:[#allocation7 + $0x19] sm:$0xf] %vm4461, %v4508
        %v4510 = vld [vmem:[#allocation7] sm:$0xff]
        %v4511 = vld [vmem:[#allocation7 + $0x8] sm:$0xff]
        %v4512 = vld [vmem:[#allocation7 + $0x10] sm:$0xff]
        %v4513 = vld [vmem:[#allocation7 + $0x18] sm:$0xff]
        %v4514 = vld [vmem:[#allocation7 + $0x20] sm:$0xf]
        %v4515 = vpack.c.bf16 %v4510, %v4510
        %v4516 = vpack.c.bf16 %v4511, %v4511
        %v4517 = vpack.c.bf16 %v4512, %v4512
        %v4518 = vpack.c.bf16 %v4513, %v4513
        %v4519 = vpack.c.bf16 %v4514, %v4514
        %4520 = vst.msk [vmem:[#allocation10] sm:$0xf] %vm4461, %v4515
        %4521 = vst.msk [vmem:[#allocation10 + $0x4] sm:$0xf] %vm4461, %v4516
        %4522 = vst.msk [vmem:[#allocation10 + $0x8] sm:$0xf] %vm4461, %v4517
        %4523 = vst.msk [vmem:[#allocation10 + $0xc] sm:$0xf] %vm4461, %v4518
        %vm4524 = vcmask 517120
        %4525 = vst.msk [vmem:[#allocation10 + $0x10] sm:$0x3] %vm4524, %v4519
        %v4526 = vld [vmem:[#allocation17] sm:$0x1]
        %v4527 = vld [vmem:[#allocation10] sm:$0xf]
        %v4528 = vld [vmem:[#allocation10 + $0x4] sm:$0xf]
        %v4529 = vld [vmem:[#allocation10 + $0x8] sm:$0x7]
        %v4530 = vld [vmem:[#allocation12] sm:$0xf]
        %v4531 = vld [vmem:[#allocation12 + $0x4] sm:$0xf]
        %v4532 = vld [vmem:[#allocation12 + $0x8] sm:$0xf]
        %v4533 = vld [vmem:[#allocation12 + $0xc] sm:$0xf]
        %v4534 = vld [vmem:[#allocation12 + $0x10] sm:$0xf]
        %v4535 = vld [vmem:[#allocation12 + $0x14] sm:$0xf]
        %v4536 = vld [vmem:[#allocation12 + $0x18] sm:$0xf]
        %v4537 = vld [vmem:[#allocation12 + $0x1c] sm:$0xf]
        %v4538 = vld [vmem:[#allocation10 + $0x8] sm:$0xf]
        %v4539 = vld [vmem:[#allocation12 + $0x20] sm:$0xf]
        %v4540 = vld [vmem:[#allocation12 + $0x24] sm:$0xf]
        %v4541 = vld [vmem:[#allocation12 + $0x28] sm:$0xf]
        %v4542 = vld [vmem:[#allocation12 + $0x2c] sm:$0xf]
        %v4543 = vld [vmem:[#allocation12 + $0x30] sm:$0xf]
        %v4544 = vld [vmem:[#allocation12 + $0x34] sm:$0xf]
        %v4545 = vld [vmem:[#allocation12 + $0x38] sm:$0xf]
        %v4546 = vld [vmem:[#allocation12 + $0x3c] sm:$0xf]
        %v4550 = vunpack.c.l.b16 %v4527
        %v4551 = vunpack.c.l.b16 %v4528
        %v4552 = vunpack.c.l.b16 %v4538
        %v4553 = vpack.c.b16 %v4551, %v4550
        %v4554 = vpack.c.b16 %v4552, %v4552
        %v4556 = vshrl.u32 %v4553, 16
        %v4558 = vshll.u32 %v4553, 16
        %v4560 = vrot.slane %v4558, 1
        %v4561 = vor.u32 %v4556, %v4560
        %v4563 = vshll.u32 %v4554, 16
        %v4565 = vrot.slane %v4563, 1
        %v4566 = vsel %vm3449, %v4561, %v4565
        %v4567 = vshrl.u32 %v4554, 16
        %v4569 = vor.u32 %v4567, %v4565
        %v4578 = vunpack.c.l.b16 %v4539
        %v4579 = vunpack.c.l.b16 %v4540
        %v4580 = vunpack.c.l.b16 %v4541
        %v4581 = vunpack.c.l.b16 %v4542
        %v4582 = vunpack.c.l.b16 %v4543
        %v4583 = vunpack.c.l.b16 %v4544
        %v4584 = vunpack.c.l.b16 %v4545
        %v4585 = vunpack.c.l.b16 %v4546
        %v4586 = vpack.c.b16 %v4579, %v4578
        %v4587 = vpack.c.b16 %v4581, %v4580
        %v4588 = vpack.c.b16 %v4583, %v4582
        %v4589 = vpack.c.b16 %v4585, %v4584
        %v4595 = vsel %vm4445, %v4566, 0
        %v4598 = vsel %vm4445, %v4569, 0
        %4600 = vmatpush.bf16.msra.mxu0 0
        %4601 = vmatpush.bf16.msra.mxu0 0
        %4602 = vmatpush.bf16.msra.mxu0 0
        %4603 = vmatpush.bf16.msra.mxu0 0
        %4604 = vmatpush.bf16.msra.mxu0 %v4589
        %4605 = vmatpush.bf16.msra.mxu0 %v4588
        %4606 = vmatpush.bf16.msra.mxu0 %v4587
        %4607 = vmatpush.bf16.msra.mxu0 %v4586
        %4608 = vmatmul.bf16.gmra.mxu0 %v4595
        %v4609 = vpop.f32.mrf.mxu0
        %v4610 = vadd.f32 0.0, %v4609
        %v4611 = vpop.f32.mrf.mxu0
        %v4612 = vadd.f32 0.0, %v4611
        %4613 = vmatmul.bf16.gmra.mxu0 %v4598
        %v4614 = vpop.f32.mrf.mxu0
        %v4615 = vadd.f32 0.0, %v4614
        %v4616 = vpop.f32.mrf.mxu0
        %4617 = vdwg.mxu0
        %v4619 = vunpack.c.l.b16 %v4529
        %v4620 = vpack.c.b16 %v4619, %v4619
        %v4629 = vunpack.c.l.b16 %v4530
        %v4630 = vunpack.c.l.b16 %v4531
        %v4631 = vunpack.c.l.b16 %v4532
        %v4632 = vunpack.c.l.b16 %v4533
        %v4633 = vunpack.c.l.b16 %v4534
        %v4634 = vunpack.c.l.b16 %v4535
        %v4635 = vunpack.c.l.b16 %v4536
        %v4636 = vunpack.c.l.b16 %v4537
        %v4637 = vpack.c.b16 %v4630, %v4629
        %v4638 = vpack.c.b16 %v4632, %v4631
        %v4639 = vpack.c.b16 %v4634, %v4633
        %v4640 = vpack.c.b16 %v4636, %v4635
        %v4645 = vsel %vm4445, %v4553, 0
        %v4648 = vsel %vm4445, %v4620, 0
        %4650 = vmatpush.bf16.msra.mxu0 0
        %4651 = vmatpush.bf16.msra.mxu0 0
        %4652 = vmatpush.bf16.msra.mxu0 0
        %4653 = vmatpush.bf16.msra.mxu0 0
        %4654 = vmatpush.bf16.msra.mxu0 %v4640
        %4655 = vmatpush.bf16.msra.mxu0 %v4639
        %4656 = vmatpush.bf16.msra.mxu0 %v4638
        %4657 = vmatpush.bf16.msra.mxu0 %v4637
        %4658 = vmatmul.bf16.gmra.mxu0 %v4645
        %v4659 = vpop.f32.mrf.mxu0
        %v4660 = vadd.f32 %v4610, %v4659
        %v4661 = vpop.f32.mrf.mxu0
        %v4662 = vadd.f32 %v4612, %v4661
        %4663 = vmatmul.bf16.gmra.mxu0 %v4648
        %v4664 = vpop.f32.mrf.mxu0
        %v4665 = vadd.f32 %v4615, %v4664
        %v4666 = vpop.f32.mrf.mxu0
        %4667 = vdwg.mxu0
        %v4668 = vld [vmem:[#allocation10] sm:$0xe]
        %v4669 = vld [vmem:[#allocation12 + $0x40] sm:$0xf]
        %v4670 = vld [vmem:[#allocation12 + $0x44] sm:$0xf]
        %v4671 = vld [vmem:[#allocation12 + $0x48] sm:$0xf]
        %v4672 = vld [vmem:[#allocation12 + $0x4c] sm:$0xf]
        %v4673 = vld [vmem:[#allocation12 + $0x50] sm:$0xf]
        %v4674 = vld [vmem:[#allocation12 + $0x54] sm:$0xf]
        %v4675 = vld [vmem:[#allocation12 + $0x58] sm:$0xf]
        %v4676 = vld [vmem:[#allocation12 + $0x5c] sm:$0xf]
        %v4678 = vunpack.c.l.b16 %v4668
        %v4679 = vpack.c.b16 %v4551, %v4678
        %v4680 = vrot.slane %v4679, 1
        %v4681 = vrot.slane %v4554, 1
        %v4682 = vsel %vm3618, %v4680, %v4681
        %v4691 = vunpack.c.l.b16 %v4669
        %v4692 = vunpack.c.l.b16 %v4670
        %v4693 = vunpack.c.l.b16 %v4671
        %v4694 = vunpack.c.l.b16 %v4672
        %v4695 = vunpack.c.l.b16 %v4673
        %v4696 = vunpack.c.l.b16 %v4674
        %v4697 = vunpack.c.l.b16 %v4675
        %v4698 = vunpack.c.l.b16 %v4676
        %v4699 = vpack.c.b16 %v4692, %v4691
        %v4700 = vpack.c.b16 %v4694, %v4693
        %v4701 = vpack.c.b16 %v4696, %v4695
        %v4702 = vpack.c.b16 %v4698, %v4697
        %v4708 = vsel %vm4445, %v4682, 0
        %v4711 = vsel %vm4445, %v4681, 0
        %4713 = vmatpush.bf16.msra.mxu0 0
        %4714 = vmatpush.bf16.msra.mxu0 0
        %4715 = vmatpush.bf16.msra.mxu0 0
        %4716 = vmatpush.bf16.msra.mxu0 0
        %4717 = vmatpush.bf16.msra.mxu0 %v4702
        %4718 = vmatpush.bf16.msra.mxu0 %v4701
        %4719 = vmatpush.bf16.msra.mxu0 %v4700
        %4720 = vmatpush.bf16.msra.mxu0 %v4699
        %4721 = vmatmul.bf16.gmra.mxu0 %v4708
        %v4722 = vpop.f32.mrf.mxu0
        %v4723 = vadd.f32 0.0, %v4722
        %v4724 = vpop.f32.mrf.mxu0
        %v4725 = vadd.f32 0.0, %v4724
        %4726 = vmatmul.bf16.gmra.mxu0 %v4711
        %v4727 = vpop.f32.mrf.mxu0
        %v4728 = vadd.f32 0.0, %v4727
        %v4729 = vpop.f32.mrf.mxu0
        %4730 = vdwg.mxu0
        %v4731 = vadd.f32 %v4660, %v4723
        %v4732 = vadd.f32 %v4662, %v4725
        %v4733 = vadd.f32 %v4665, %v4728
        %v4734 = vld [vmem:[#allocation10] sm:$0x8]
        %v4735 = vld [vmem:[#allocation10 + $0x4] sm:$0xf]
        %v4736 = vld [vmem:[#allocation10 + $0x8] sm:$0xf]
        %v4737 = vld [vmem:[#allocation10 + $0xc] sm:$0x3]
        %v4738 = vld [vmem:[#allocation12 + $0x60] sm:$0xf]
        %v4739 = vld [vmem:[#allocation12 + $0x64] sm:$0xf]
        %v4740 = vld [vmem:[#allocation12 + $0x68] sm:$0xf]
        %v4741 = vld [vmem:[#allocation12 + $0x6c] sm:$0xf]
        %v4742 = vld [vmem:[#allocation12 + $0x70] sm:$0xf]
        %v4743 = vld [vmem:[#allocation12 + $0x74] sm:$0xf]
        %v4744 = vld [vmem:[#allocation12 + $0x78] sm:$0xf]
        %v4745 = vld [vmem:[#allocation12 + $0x7c] sm:$0xf]
        %v4750 = vunpack.c.l.b16 %v4734
        %v4751 = vunpack.c.l.b16 %v4735
        %v4752 = vunpack.c.l.b16 %v4736
        %v4753 = vunpack.c.l.b16 %v4737
        %v4754 = vpack.c.b16 %v4751, %v4750
        %v4755 = vpack.c.b16 %v4753, %v4752
        %v4756 = vrot.slane %v4754, 3
        %v4757 = vrot.slane %v4755, 3
        %v4758 = vsel %vm4339, %v4756, %v4757
        %v4767 = vunpack.c.l.b16 %v4738
        %v4768 = vunpack.c.l.b16 %v4739
        %v4769 = vunpack.c.l.b16 %v4740
        %v4770 = vunpack.c.l.b16 %v4741
        %v4771 = vunpack.c.l.b16 %v4742
        %v4772 = vunpack.c.l.b16 %v4743
        %v4773 = vunpack.c.l.b16 %v4744
        %v4774 = vunpack.c.l.b16 %v4745
        %v4775 = vpack.c.b16 %v4768, %v4767
        %v4776 = vpack.c.b16 %v4770, %v4769
        %v4777 = vpack.c.b16 %v4772, %v4771
        %v4778 = vpack.c.b16 %v4774, %v4773
        %v4784 = vsel %vm4445, %v4758, 0
        %v4787 = vsel %vm4445, %v4757, 0
        %4789 = vmatpush.bf16.msra.mxu0 0
        %4790 = vmatpush.bf16.msra.mxu0 0
        %4791 = vmatpush.bf16.msra.mxu0 0
        %4792 = vmatpush.bf16.msra.mxu0 0
        %4793 = vmatpush.bf16.msra.mxu0 %v4778
        %4794 = vmatpush.bf16.msra.mxu0 %v4777
        %4795 = vmatpush.bf16.msra.mxu0 %v4776
        %4796 = vmatpush.bf16.msra.mxu0 %v4775
        %4797 = vmatmul.bf16.gmra.mxu0 %v4784
        %v4798 = vpop.f32.mrf.mxu0
        %v4799 = vadd.f32 0.0, %v4798
        %v4800 = vpop.f32.mrf.mxu0
        %v4801 = vadd.f32 0.0, %v4800
        %4802 = vmatmul.bf16.gmra.mxu0 %v4787
        %v4803 = vpop.f32.mrf.mxu0
        %v4804 = vadd.f32 0.0, %v4803
        %v4805 = vpop.f32.mrf.mxu0
        %4806 = vdwg.mxu0
        %v4807 = vadd.f32 %v4731, %v4799
        %v4808 = vadd.f32 %v4732, %v4801
        %v4809 = vadd.f32 %v4733, %v4804
        %v4810 = vld [vmem:[#allocation10 + $0xc] sm:$0x7]
        %v4811 = vld [vmem:[#allocation12 + $0x80] sm:$0xf]
        %v4812 = vld [vmem:[#allocation12 + $0x84] sm:$0xf]
        %v4813 = vld [vmem:[#allocation12 + $0x88] sm:$0xf]
        %v4814 = vld [vmem:[#allocation12 + $0x8c] sm:$0xf]
        %v4815 = vld [vmem:[#allocation12 + $0x90] sm:$0xf]
        %v4816 = vld [vmem:[#allocation12 + $0x94] sm:$0xf]
        %v4817 = vld [vmem:[#allocation12 + $0x98] sm:$0xf]
        %v4818 = vld [vmem:[#allocation12 + $0x9c] sm:$0xf]
        %v4820 = vunpack.c.l.b16 %v4810
        %v4821 = vpack.c.b16 %v4820, %v4752
        %vm4822 = vsmask.f32 4352
        %v4824 = vshrl.u32 %v4754, 16
        %v4826 = vrot.slane %v4824, 3
        %v4827 = vshll.u32 %v4754, 16
        %v4829 = vrot.slane %v4827, 4
        %v4830 = vor.u32 %v4826, %v4829
        %v4832 = vshrl.u32 %v4821, 16
        %v4834 = vrot.slane %v4832, 3
        %v4835 = vshll.u32 %v4821, 16
        %v4837 = vrot.slane %v4835, 4
        %v4838 = vor.u32 %v4834, %v4837
        %v4839 = vsel %vm4822, %v4830, %v4838
        %v4848 = vunpack.c.l.b16 %v4811
        %v4849 = vunpack.c.l.b16 %v4812
        %v4850 = vunpack.c.l.b16 %v4813
        %v4851 = vunpack.c.l.b16 %v4814
        %v4852 = vunpack.c.l.b16 %v4815
        %v4853 = vunpack.c.l.b16 %v4816
        %v4854 = vunpack.c.l.b16 %v4817
        %v4855 = vunpack.c.l.b16 %v4818
        %v4856 = vpack.c.b16 %v4849, %v4848
        %v4857 = vpack.c.b16 %v4851, %v4850
        %v4858 = vpack.c.b16 %v4853, %v4852
        %v4859 = vpack.c.b16 %v4855, %v4854
        %v4865 = vsel %vm4445, %v4839, 0
        %v4868 = vsel %vm4445, %v4838, 0
        %4870 = vmatpush.bf16.msra.mxu0 0
        %4871 = vmatpush.bf16.msra.mxu0 0
        %4872 = vmatpush.bf16.msra.mxu0 0
        %4873 = vmatpush.bf16.msra.mxu0 0
        %4874 = vmatpush.bf16.msra.mxu0 %v4859
        %4875 = vmatpush.bf16.msra.mxu0 %v4858
        %4876 = vmatpush.bf16.msra.mxu0 %v4857
        %4877 = vmatpush.bf16.msra.mxu0 %v4856
        %4878 = vmatmul.bf16.gmra.mxu0 %v4865
        %v4879 = vpop.f32.mrf.mxu0
        %v4880 = vadd.f32 0.0, %v4879
        %v4881 = vpop.f32.mrf.mxu0
        %v4882 = vadd.f32 0.0, %v4881
        %4883 = vmatmul.bf16.gmra.mxu0 %v4868
        %v4884 = vpop.f32.mrf.mxu0
        %v4885 = vadd.f32 0.0, %v4884
        %v4886 = vpop.f32.mrf.mxu0
        %4887 = vdwg.mxu0
        %v4888 = vadd.f32 %v4807, %v4880
        %v4889 = vadd.f32 %v4808, %v4882
        %v4890 = vadd.f32 %v4809, %v4885
        %v4891 = vld [vmem:[#allocation12 + $0xa0] sm:$0xf]
        %v4892 = vld [vmem:[#allocation12 + $0xa4] sm:$0xf]
        %v4893 = vld [vmem:[#allocation12 + $0xa8] sm:$0xf]
        %v4894 = vld [vmem:[#allocation12 + $0xac] sm:$0xf]
        %v4895 = vld [vmem:[#allocation12 + $0xb0] sm:$0xf]
        %v4896 = vld [vmem:[#allocation12 + $0xb4] sm:$0xf]
        %v4897 = vld [vmem:[#allocation12 + $0xb8] sm:$0xf]
        %v4898 = vld [vmem:[#allocation12 + $0xbc] sm:$0xf]
        %v4899 = vpack.c.b16 %v4752, %v4751
        %v4900 = vpack.c.b16 %v4820, %v4820
        %v4909 = vunpack.c.l.b16 %v4891
        %v4910 = vunpack.c.l.b16 %v4892
        %v4911 = vunpack.c.l.b16 %v4893
        %v4912 = vunpack.c.l.b16 %v4894
        %v4913 = vunpack.c.l.b16 %v4895
        %v4914 = vunpack.c.l.b16 %v4896
        %v4915 = vunpack.c.l.b16 %v4897
        %v4916 = vunpack.c.l.b16 %v4898
        %v4917 = vpack.c.b16 %v4910, %v4909
        %v4918 = vpack.c.b16 %v4912, %v4911
        %v4919 = vpack.c.b16 %v4914, %v4913
        %v4920 = vpack.c.b16 %v4916, %v4915
        %v4926 = vsel %vm4445, %v4899, 0
        %v4929 = vsel %vm4445, %v4900, 0
        %4931 = vmatpush.bf16.msra.mxu0 0
        %4932 = vmatpush.bf16.msra.mxu0 0
        %4933 = vmatpush.bf16.msra.mxu0 0
        %4934 = vmatpush.bf16.msra.mxu0 0
        %4935 = vmatpush.bf16.msra.mxu0 %v4920
        %4936 = vmatpush.bf16.msra.mxu0 %v4919
        %4937 = vmatpush.bf16.msra.mxu0 %v4918
        %4938 = vmatpush.bf16.msra.mxu0 %v4917
        %4939 = vmatmul.bf16.gmra.mxu0 %v4926
        %v4940 = vpop.f32.mrf.mxu0
        %v4941 = vadd.f32 0.0, %v4940
        %v4942 = vpop.f32.mrf.mxu0
        %v4943 = vadd.f32 0.0, %v4942
        %4944 = vmatmul.bf16.gmra.mxu0 %v4929
        %v4945 = vpop.f32.mrf.mxu0
        %v4946 = vadd.f32 0.0, %v4945
        %v4947 = vpop.f32.mrf.mxu0
        %4948 = vdwg.mxu0
        %v4949 = vadd.f32 %v4888, %v4941
        %v4950 = vadd.f32 %v4889, %v4943
        %v4951 = vadd.f32 %v4890, %v4946
        %v4952 = vld [vmem:[#allocation10 + $0x4] sm:$0xc]
        %v4953 = vld [vmem:[#allocation10 + $0x8] sm:$0xf]
        %v4954 = vld [vmem:[#allocation10 + $0xc] sm:$0xf]
        %v4955 = vld [vmem:[#allocation10 + $0x10] sm:$0x1]
        %v4956 = vld [vmem:[#allocation12 + $0xc0] sm:$0xf]
        %v4957 = vld [vmem:[#allocation12 + $0xc4] sm:$0xf]
        %v4958 = vld [vmem:[#allocation12 + $0xc8] sm:$0xf]
        %v4959 = vld [vmem:[#allocation12 + $0xcc] sm:$0xf]
        %v4960 = vld [vmem:[#allocation12 + $0xd0] sm:$0xf]
        %v4961 = vld [vmem:[#allocation12 + $0xd4] sm:$0xf]
        %v4962 = vld [vmem:[#allocation12 + $0xd8] sm:$0xf]
        %v4963 = vld [vmem:[#allocation12 + $0xdc] sm:$0xf]
        %v4968 = vunpack.c.l.b16 %v4952
        %v4969 = vunpack.c.l.b16 %v4953
        %v4970 = vunpack.c.l.b16 %v4954
        %v4971 = vunpack.c.l.b16 %v4955
        %v4972 = vpack.c.b16 %v4969, %v4968
        %v4973 = vpack.c.b16 %v4971, %v4970
        %v4974 = vrot.slane %v4972, 2
        %v4975 = vrot.slane %v4973, 2
        %v4976 = vsel %vm3990, %v4974, %v4975
        %v4985 = vunpack.c.l.b16 %v4956
        %v4986 = vunpack.c.l.b16 %v4957
        %v4987 = vunpack.c.l.b16 %v4958
        %v4988 = vunpack.c.l.b16 %v4959
        %v4989 = vunpack.c.l.b16 %v4960
        %v4990 = vunpack.c.l.b16 %v4961
        %v4991 = vunpack.c.l.b16 %v4962
        %v4992 = vunpack.c.l.b16 %v4963
        %v4993 = vpack.c.b16 %v4986, %v4985
        %v4994 = vpack.c.b16 %v4988, %v4987
        %v4995 = vpack.c.b16 %v4990, %v4989
        %v4996 = vpack.c.b16 %v4992, %v4991
        %v5002 = vsel %vm4445, %v4976, 0
        %v5005 = vsel %vm4445, %v4975, 0
        %5007 = vmatpush.bf16.msra.mxu0 0
        %5008 = vmatpush.bf16.msra.mxu0 0
        %5009 = vmatpush.bf16.msra.mxu0 0
        %5010 = vmatpush.bf16.msra.mxu0 0
        %5011 = vmatpush.bf16.msra.mxu0 %v4996
        %5012 = vmatpush.bf16.msra.mxu0 %v4995
        %5013 = vmatpush.bf16.msra.mxu0 %v4994
        %5014 = vmatpush.bf16.msra.mxu0 %v4993
        %5015 = vmatmul.bf16.gmra.mxu0 %v5002
        %v5016 = vpop.f32.mrf.mxu0
        %v5017 = vadd.f32 0.0, %v5016
        %v5018 = vpop.f32.mrf.mxu0
        %v5019 = vadd.f32 0.0, %v5018
        %5020 = vmatmul.bf16.gmra.mxu0 %v5005
        %v5021 = vpop.f32.mrf.mxu0
        %v5022 = vadd.f32 0.0, %v5021
        %v5023 = vpop.f32.mrf.mxu0
        %5024 = vdwg.mxu0
        %v5025 = vadd.f32 %v4949, %v5017
        %v5026 = vadd.f32 %v4950, %v5019
        %v5027 = vadd.f32 %v4951, %v5022
        %v5028 = vld [vmem:[#allocation10 + $0x10] sm:$0x3]
        %v5029 = vld [vmem:[#allocation12 + $0xe0] sm:$0xf]
        %v5030 = vld [vmem:[#allocation12 + $0xe4] sm:$0xf]
        %v5031 = vld [vmem:[#allocation12 + $0xe8] sm:$0xf]
        %v5032 = vld [vmem:[#allocation12 + $0xec] sm:$0xf]
        %v5033 = vld [vmem:[#allocation12 + $0xf0] sm:$0xf]
        %v5034 = vld [vmem:[#allocation12 + $0xf4] sm:$0xf]
        %v5035 = vld [vmem:[#allocation12 + $0xf8] sm:$0xf]
        %v5036 = vld [vmem:[#allocation12 + $0xfc] sm:$0xf]
        %v5038 = vunpack.c.l.b16 %v5028
        %v5039 = vpack.c.b16 %v5038, %v4970
        %v5041 = vshrl.u32 %v4972, 16
        %v5043 = vrot.slane %v5041, 2
        %v5044 = vshll.u32 %v4972, 16
        %v5046 = vrot.slane %v5044, 3
        %v5047 = vor.u32 %v5043, %v5046
        %v5049 = vshrl.u32 %v5039, 16
        %v5051 = vrot.slane %v5049, 2
        %v5052 = vshll.u32 %v5039, 16
        %v5054 = vrot.slane %v5052, 3
        %v5055 = vor.u32 %v5051, %v5054
        %v5056 = vsel %vm4206, %v5047, %v5055
        %v5065 = vunpack.c.l.b16 %v5029
        %v5066 = vunpack.c.l.b16 %v5030
        %v5067 = vunpack.c.l.b16 %v5031
        %v5068 = vunpack.c.l.b16 %v5032
        %v5069 = vunpack.c.l.b16 %v5033
        %v5070 = vunpack.c.l.b16 %v5034
        %v5071 = vunpack.c.l.b16 %v5035
        %v5072 = vunpack.c.l.b16 %v5036
        %v5073 = vpack.c.b16 %v5066, %v5065
        %v5074 = vpack.c.b16 %v5068, %v5067
        %v5075 = vpack.c.b16 %v5070, %v5069
        %v5076 = vpack.c.b16 %v5072, %v5071
        %v5082 = vsel %vm4445, %v5056, 0
        %v5085 = vsel %vm4445, %v5055, 0
        %5087 = vmatpush.bf16.msra.mxu0 0
        %5088 = vmatpush.bf16.msra.mxu0 0
        %5089 = vmatpush.bf16.msra.mxu0 0
        %5090 = vmatpush.bf16.msra.mxu0 0
        %5091 = vmatpush.bf16.msra.mxu0 %v5076
        %5092 = vmatpush.bf16.msra.mxu0 %v5075
        %5093 = vmatpush.bf16.msra.mxu0 %v5074
        %5094 = vmatpush.bf16.msra.mxu0 %v5073
        %5095 = vmatmul.bf16.gmra.mxu0 %v5082
        %v5096 = vpop.f32.mrf.mxu0
        %v5097 = vadd.f32 0.0, %v5096
        %v5098 = vpop.f32.mrf.mxu0
        %v5099 = vadd.f32 0.0, %v5098
        %5100 = vmatmul.bf16.gmra.mxu0 %v5085
        %v5101 = vpop.f32.mrf.mxu0
        %v5102 = vadd.f32 0.0, %v5101
        %v5103 = vpop.f32.mrf.mxu0
        %5104 = vdwg.mxu0
        %v5105 = vadd.f32 %v5025, %v5097
        %v5106 = vadd.f32 %v5026, %v5099
        %v5107 = vadd.f32 %v5027, %v5102
        %v5108 = vld [vmem:[#allocation10 + $0x4] sm:$0x8]
        %v5109 = vld [vmem:[#allocation12 + $0x100] sm:$0xf]
        %v5110 = vld [vmem:[#allocation12 + $0x104] sm:$0xf]
        %v5111 = vld [vmem:[#allocation12 + $0x108] sm:$0xf]
        %v5112 = vld [vmem:[#allocation12 + $0x10c] sm:$0xf]
        %v5113 = vld [vmem:[#allocation12 + $0x110] sm:$0xf]
        %v5114 = vld [vmem:[#allocation12 + $0x114] sm:$0xf]
        %v5115 = vld [vmem:[#allocation12 + $0x118] sm:$0xf]
        %v5116 = vld [vmem:[#allocation12 + $0x11c] sm:$0xf]
        %v5118 = vunpack.c.l.b16 %v5108
        %v5119 = vpack.c.b16 %v4969, %v5118
        %v5120 = vrot.slane %v5119, 3
        %v5121 = vrot.slane %v5039, 3
        %v5122 = vsel %vm4339, %v5120, %v5121
        %v5131 = vunpack.c.l.b16 %v5109
        %v5132 = vunpack.c.l.b16 %v5110
        %v5133 = vunpack.c.l.b16 %v5111
        %v5134 = vunpack.c.l.b16 %v5112
        %v5135 = vunpack.c.l.b16 %v5113
        %v5136 = vunpack.c.l.b16 %v5114
        %v5137 = vunpack.c.l.b16 %v5115
        %v5138 = vunpack.c.l.b16 %v5116
        %v5139 = vpack.c.b16 %v5132, %v5131
        %v5140 = vpack.c.b16 %v5134, %v5133
        %v5141 = vpack.c.b16 %v5136, %v5135
        %v5142 = vpack.c.b16 %v5138, %v5137
        %v5148 = vsel %vm4445, %v5122, 0
        %v5151 = vsel %vm4445, %v5121, 0
        %5153 = vmatpush.bf16.msra.mxu0 0
        %5154 = vmatpush.bf16.msra.mxu0 0
        %5155 = vmatpush.bf16.msra.mxu0 0
        %5156 = vmatpush.bf16.msra.mxu0 0
        %5157 = vmatpush.bf16.msra.mxu0 %v5142
        %5158 = vmatpush.bf16.msra.mxu0 %v5141
        %5159 = vmatpush.bf16.msra.mxu0 %v5140
        %5160 = vmatpush.bf16.msra.mxu0 %v5139
        %5161 = vmatmul.bf16.gmra.mxu0 %v5148
        %v5162 = vpop.f32.mrf.mxu0
        %v5163 = vadd.f32 0.0, %v5162
        %v5164 = vpop.f32.mrf.mxu0
        %v5165 = vadd.f32 0.0, %v5164
        %5166 = vmatmul.bf16.gmra.mxu0 %v5151
        %v5167 = vpop.f32.mrf.mxu0
        %v5168 = vadd.f32 0.0, %v5167
        %v5169 = vpop.f32.mrf.mxu0
        %5170 = vdwg.mxu0
        %v5171 = vadd.f32 %v5105, %v5163
        %v5172 = vadd.f32 %v5106, %v5165
        %v5173 = vadd.f32 %v5107, %v5168
        %v5175 = vperm.slane %v4526, 0
        %v5177 = vadd.f32 %v5171, %v5175
        %v5178 = vadd.f32 %v5172, %v5175
        %v5179 = vadd.f32 %v5173, %v5175
        %v5180 = vmax.f32 %v5177, 0.0
        %v5181 = vmax.f32 %v5178, 0.0
        %v5182 = vmax.f32 %v5179, 0.0
        %5183 = vst [vmem:[#allocation4] sm:$0xff] %v5180
        %5184 = vst [vmem:[#allocation4 + $0x8] sm:$0xff] %v5181
        %5185 = vst [vmem:[#allocation4 + $0x10] sm:$0x3f] %v5182
        %5186 = vst [vmem:[#allocation8] sm:$0xff] 0.0
        %5187 = vst [vmem:[#allocation8 + $0x8] sm:$0xff] 0.0
        %v5188 = vld [vmem:[#allocation4] ss:$2 sm:$0x3]
        %s5189 = scalar_lea.vmem [#allocation4], 1
        %v5190 = vld [vmem:[%s5189] ss:$2 sm:$0x3]
        %s5191 = scalar_lea.vmem [#allocation4], 6
        %v5192 = vld [vmem:[%s5191] ss:$2 sm:$0x3]
        %s5193 = scalar_lea.vmem [#allocation4], 7
        %v5194 = vld [vmem:[%s5193] ss:$2 sm:$0x3]
        %v5195 = vmax.f32 %v5188, %v5190
        %v5196 = vmax.f32 %v5192, %v5194
        %v5197 = vmax.f32 %v5195, %v5196
        %5198 = vst [vmem:[#allocation8 + $0x5] sm:$0x3] %v5197
        %s5199 = scalar_lea.vmem [#allocation4], 12
        %v5200 = vld [vmem:[%s5199] ss:$2 sm:$0x3]
        %s5201 = scalar_lea.vmem [#allocation4], 13
        %v5202 = vld [vmem:[%s5201] ss:$2 sm:$0x3]
        %s5203 = scalar_lea.vmem [#allocation4], 18
        %v5204 = vld [vmem:[%s5203] ss:$2 sm:$0x3]
        %s5205 = scalar_lea.vmem [#allocation4], 19
        %v5206 = vld [vmem:[%s5205] ss:$2 sm:$0x3]
        %v5207 = vmax.f32 %v5200, %v5202
        %v5208 = vmax.f32 %v5204, %v5206
        %v5209 = vmax.f32 %v5207, %v5208
        %5210 = vst [vmem:[#allocation8 + $0x9] sm:$0x3] %v5209
        %v5211 = vld [vmem:[#allocation8] sm:$0xff]
        %v5212 = vld [vmem:[#allocation8 + $0x8] sm:$0xff]
        %v5213 = vpack.c.bf16 %v5211, %v5211
        %v5214 = vpack.c.bf16 %v5212, %v5212
        %5215 = vst [vmem:[#allocation11] sm:$0xf] %v5213
        %5216 = vst [vmem:[#allocation11 + $0x4] sm:$0xf] %v5214
        %v5217 = vld [vmem:[%s8] sm:$0x3]
        %v5218 = vld [vmem:[#allocation11] sm:$0x7]
        %v5219 = vld [vmem:[#allocation15] sm:$0xff]
        %v5220 = vld [vmem:[#allocation15 + $0x8] sm:$0xff]
        %v5221 = vld [vmem:[#allocation15 + $0x10] sm:$0xff]
        %v5222 = vld [vmem:[#allocation15 + $0x18] sm:$0xff]
        %v5223 = vld [vmem:[#allocation15 + $0x20] sm:$0xff]
        %v5224 = vld [vmem:[#allocation15 + $0x28] sm:$0xff]
        %v5225 = vld [vmem:[#allocation15 + $0x30] sm:$0xff]
        %v5226 = vld [vmem:[#allocation15 + $0x38] sm:$0xff]
        %v5227 = vld [vmem:[#allocation15 + $0x40] sm:$0xff]
        %v5228 = vld [vmem:[#allocation15 + $0x48] sm:$0xff]
        %v5229 = vld [vmem:[#allocation15 + $0x50] sm:$0xff]
        %v5230 = vld [vmem:[#allocation15 + $0x58] sm:$0xff]
        %v5231 = vld [vmem:[#allocation15 + $0x60] sm:$0xff]
        %v5232 = vld [vmem:[#allocation15 + $0x68] sm:$0xff]
        %v5233 = vld [vmem:[#allocation15 + $0x70] sm:$0xff]
        %v5234 = vld [vmem:[#allocation15 + $0x78] sm:$0xff]
        %v5235 = vld [vmem:[#allocation11] sm:$0xf]
        %v5236 = vld [vmem:[#allocation15 + $0x80] sm:$0xff]
        %v5237 = vld [vmem:[#allocation15 + $0x88] sm:$0xff]
        %v5238 = vld [vmem:[#allocation15 + $0x90] sm:$0xff]
        %v5239 = vld [vmem:[#allocation15 + $0x98] sm:$0xff]
        %v5240 = vld [vmem:[#allocation15 + $0xa0] sm:$0xff]
        %v5241 = vld [vmem:[#allocation15 + $0xa8] sm:$0xff]
        %v5242 = vld [vmem:[#allocation15 + $0xb0] sm:$0xff]
        %v5243 = vld [vmem:[#allocation15 + $0xb8] sm:$0xff]
        %v5244 = vld [vmem:[#allocation15 + $0xc0] sm:$0xff]
        %v5245 = vld [vmem:[#allocation15 + $0xc8] sm:$0xff]
        %v5246 = vld [vmem:[#allocation15 + $0xd0] sm:$0xff]
        %v5247 = vld [vmem:[#allocation15 + $0xd8] sm:$0xff]
        %v5248 = vld [vmem:[#allocation15 + $0xe0] sm:$0xff]
        %v5249 = vld [vmem:[#allocation15 + $0xe8] sm:$0xff]
        %v5250 = vld [vmem:[#allocation15 + $0xf0] sm:$0xff]
        %v5251 = vld [vmem:[#allocation15 + $0xf8] sm:$0xff]
        %v5253 = vunpack.c.l.b16 %v5235
        %v5254 = vpack.c.b16 %v5253, %v5253
        %v5256 = vshrl.u32 %v5254, 16
        %v5258 = vshll.u32 %v5254, 16
        %v5260 = vrot.slane %v5258, 1
        %v5261 = vor.u32 %v5256, %v5260
        %v5279 = vunpack.c.l.b16 %v5236
        %v5280 = vunpack.c.h.b16 %v5236
        %v5281 = vunpack.c.l.b16 %v5237
        %v5282 = vunpack.c.h.b16 %v5237
        %v5283 = vunpack.c.l.b16 %v5238
        %v5284 = vunpack.c.h.b16 %v5238
        %v5285 = vunpack.c.l.b16 %v5239
        %v5286 = vunpack.c.h.b16 %v5239
        %v5287 = vunpack.c.l.b16 %v5240
        %v5288 = vunpack.c.h.b16 %v5240
        %v5289 = vunpack.c.l.b16 %v5241
        %v5290 = vunpack.c.h.b16 %v5241
        %v5291 = vunpack.c.l.b16 %v5242
        %v5292 = vunpack.c.h.b16 %v5242
        %v5293 = vunpack.c.l.b16 %v5243
        %v5294 = vunpack.c.h.b16 %v5243
        %v5295 = vunpack.c.l.b16 %v5244
        %v5296 = vunpack.c.h.b16 %v5244
        %v5297 = vunpack.c.l.b16 %v5245
        %v5298 = vunpack.c.h.b16 %v5245
        %v5299 = vunpack.c.l.b16 %v5246
        %v5300 = vunpack.c.h.b16 %v5246
        %v5301 = vunpack.c.l.b16 %v5247
        %v5302 = vunpack.c.h.b16 %v5247
        %v5303 = vunpack.c.l.b16 %v5248
        %v5304 = vunpack.c.h.b16 %v5248
        %v5305 = vunpack.c.l.b16 %v5249
        %v5306 = vunpack.c.h.b16 %v5249
        %v5307 = vunpack.c.l.b16 %v5250
        %v5308 = vunpack.c.h.b16 %v5250
        %v5309 = vunpack.c.l.b16 %v5251
        %v5310 = vunpack.c.h.b16 %v5251
        %v5311 = vpack.c.b16 %v5281, %v5279
        %v5312 = vpack.c.b16 %v5282, %v5280
        %v5313 = vpack.c.b16 %v5285, %v5283
        %v5314 = vpack.c.b16 %v5286, %v5284
        %v5315 = vpack.c.b16 %v5289, %v5287
        %v5316 = vpack.c.b16 %v5290, %v5288
        %v5317 = vpack.c.b16 %v5293, %v5291
        %v5318 = vpack.c.b16 %v5294, %v5292
        %v5319 = vpack.c.b16 %v5297, %v5295
        %v5320 = vpack.c.b16 %v5298, %v5296
        %v5321 = vpack.c.b16 %v5301, %v5299
        %v5322 = vpack.c.b16 %v5302, %v5300
        %v5323 = vpack.c.b16 %v5305, %v5303
        %v5324 = vpack.c.b16 %v5306, %v5304
        %v5325 = vpack.c.b16 %v5309, %v5307
        %v5326 = vpack.c.b16 %v5310, %v5308
        %5343 = vmatpush.bf16.msra.mxu0 %v5325
        %5344 = vmatpush.bf16.msra.mxu0 %v5323
        %5345 = vmatpush.bf16.msra.mxu0 %v5321
        %5346 = vmatpush.bf16.msra.mxu0 %v5319
        %5347 = vmatpush.bf16.msra.mxu0 %v5317
        %5348 = vmatpush.bf16.msra.mxu0 %v5315
        %5349 = vmatpush.bf16.msra.mxu0 %v5313
        %5350 = vmatpush.bf16.msra.mxu0 %v5311
        %5351 = vmatmul.bf16.gmra.mxu0 %v5261
        %v5352 = vpop.f32.mrf.mxu0
        %v5353 = vadd.f32 0.0, %v5352
        %v5354 = vpop.f32.mrf.mxu0
        %5355 = vdwg.mxu0
        %5356 = vmatpush.bf16.msra.mxu0 %v5326
        %5357 = vmatpush.bf16.msra.mxu0 %v5324
        %5358 = vmatpush.bf16.msra.mxu0 %v5322
        %5359 = vmatpush.bf16.msra.mxu0 %v5320
        %5360 = vmatpush.bf16.msra.mxu0 %v5318
        %5361 = vmatpush.bf16.msra.mxu0 %v5316
        %5362 = vmatpush.bf16.msra.mxu0 %v5314
        %5363 = vmatpush.bf16.msra.mxu0 %v5312
        %5364 = vmatmul.bf16.gmra.mxu0 %v5261
        %v5365 = vpop.f32.mrf.mxu0
        %v5366 = vadd.f32 0.0, %v5365
        %v5367 = vpop.f32.mrf.mxu0
        %5368 = vdwg.mxu0
        %v5385 = vunpack.c.l.b16 %v5219
        %v5386 = vunpack.c.h.b16 %v5219
        %v5387 = vunpack.c.l.b16 %v5220
        %v5388 = vunpack.c.h.b16 %v5220
        %v5389 = vunpack.c.l.b16 %v5221
        %v5390 = vunpack.c.h.b16 %v5221
        %v5391 = vunpack.c.l.b16 %v5222
        %v5392 = vunpack.c.h.b16 %v5222
        %v5393 = vunpack.c.l.b16 %v5223
        %v5394 = vunpack.c.h.b16 %v5223
        %v5395 = vunpack.c.l.b16 %v5224
        %v5396 = vunpack.c.h.b16 %v5224
        %v5397 = vunpack.c.l.b16 %v5225
        %v5398 = vunpack.c.h.b16 %v5225
        %v5399 = vunpack.c.l.b16 %v5226
        %v5400 = vunpack.c.h.b16 %v5226
        %v5401 = vunpack.c.l.b16 %v5227
        %v5402 = vunpack.c.h.b16 %v5227
        %v5403 = vunpack.c.l.b16 %v5228
        %v5404 = vunpack.c.h.b16 %v5228
        %v5405 = vunpack.c.l.b16 %v5229
        %v5406 = vunpack.c.h.b16 %v5229
        %v5407 = vunpack.c.l.b16 %v5230
        %v5408 = vunpack.c.h.b16 %v5230
        %v5409 = vunpack.c.l.b16 %v5231
        %v5410 = vunpack.c.h.b16 %v5231
        %v5411 = vunpack.c.l.b16 %v5232
        %v5412 = vunpack.c.h.b16 %v5232
        %v5413 = vunpack.c.l.b16 %v5233
        %v5414 = vunpack.c.h.b16 %v5233
        %v5415 = vunpack.c.l.b16 %v5234
        %v5416 = vunpack.c.h.b16 %v5234
        %v5417 = vpack.c.b16 %v5387, %v5385
        %v5418 = vpack.c.b16 %v5388, %v5386
        %v5419 = vpack.c.b16 %v5391, %v5389
        %v5420 = vpack.c.b16 %v5392, %v5390
        %v5421 = vpack.c.b16 %v5395, %v5393
        %v5422 = vpack.c.b16 %v5396, %v5394
        %v5423 = vpack.c.b16 %v5399, %v5397
        %v5424 = vpack.c.b16 %v5400, %v5398
        %v5425 = vpack.c.b16 %v5403, %v5401
        %v5426 = vpack.c.b16 %v5404, %v5402
        %v5427 = vpack.c.b16 %v5407, %v5405
        %v5428 = vpack.c.b16 %v5408, %v5406
        %v5429 = vpack.c.b16 %v5411, %v5409
        %v5430 = vpack.c.b16 %v5412, %v5410
        %v5431 = vpack.c.b16 %v5415, %v5413
        %v5432 = vpack.c.b16 %v5416, %v5414
        %5449 = vmatpush.bf16.msra.mxu0 %v5431
        %5450 = vmatpush.bf16.msra.mxu0 %v5429
        %5451 = vmatpush.bf16.msra.mxu0 %v5427
        %5452 = vmatpush.bf16.msra.mxu0 %v5425
        %5453 = vmatpush.bf16.msra.mxu0 %v5423
        %5454 = vmatpush.bf16.msra.mxu0 %v5421
        %5455 = vmatpush.bf16.msra.mxu0 %v5419
        %5456 = vmatpush.bf16.msra.mxu0 %v5417
        %5457 = vmatmul.bf16.gmra.mxu0 %v5218
        %v5458 = vpop.f32.mrf.mxu0
        %v5459 = vadd.f32 %v5353, %v5458
        %v5460 = vpop.f32.mrf.mxu0
        %5461 = vdwg.mxu0
        %5462 = vmatpush.bf16.msra.mxu0 %v5432
        %5463 = vmatpush.bf16.msra.mxu0 %v5430
        %5464 = vmatpush.bf16.msra.mxu0 %v5428
        %5465 = vmatpush.bf16.msra.mxu0 %v5426
        %5466 = vmatpush.bf16.msra.mxu0 %v5424
        %5467 = vmatpush.bf16.msra.mxu0 %v5422
        %5468 = vmatpush.bf16.msra.mxu0 %v5420
        %5469 = vmatpush.bf16.msra.mxu0 %v5418
        %5470 = vmatmul.bf16.gmra.mxu0 %v5218
        %v5471 = vpop.f32.mrf.mxu0
        %v5472 = vadd.f32 %v5366, %v5471
        %v5473 = vpop.f32.mrf.mxu0
        %5474 = vdwg.mxu0
        %v5475 = vld [vmem:[#allocation11] sm:$0xe]
        %v5476 = vld [vmem:[#allocation15 + $0x100] sm:$0xff]
        %v5477 = vld [vmem:[#allocation15 + $0x108] sm:$0xff]
        %v5478 = vld [vmem:[#allocation15 + $0x110] sm:$0xff]
        %v5479 = vld [vmem:[#allocation15 + $0x118] sm:$0xff]
        %v5480 = vld [vmem:[#allocation15 + $0x120] sm:$0xff]
        %v5481 = vld [vmem:[#allocation15 + $0x128] sm:$0xff]
        %v5482 = vld [vmem:[#allocation15 + $0x130] sm:$0xff]
        %v5483 = vld [vmem:[#allocation15 + $0x138] sm:$0xff]
        %v5484 = vld [vmem:[#allocation15 + $0x140] sm:$0xff]
        %v5485 = vld [vmem:[#allocation15 + $0x148] sm:$0xff]
        %v5486 = vld [vmem:[#allocation15 + $0x150] sm:$0xff]
        %v5487 = vld [vmem:[#allocation15 + $0x158] sm:$0xff]
        %v5488 = vld [vmem:[#allocation15 + $0x160] sm:$0xff]
        %v5489 = vld [vmem:[#allocation15 + $0x168] sm:$0xff]
        %v5490 = vld [vmem:[#allocation15 + $0x170] sm:$0xff]
        %v5491 = vld [vmem:[#allocation15 + $0x178] sm:$0xff]
        %v5493 = vunpack.c.l.b16 %v5475
        %v5494 = vpack.c.b16 %v5493, %v5493
        %v5495 = vrot.slane %v5494, 1
        %v5513 = vunpack.c.l.b16 %v5476
        %v5514 = vunpack.c.h.b16 %v5476
        %v5515 = vunpack.c.l.b16 %v5477
        %v5516 = vunpack.c.h.b16 %v5477
        %v5517 = vunpack.c.l.b16 %v5478
        %v5518 = vunpack.c.h.b16 %v5478
        %v5519 = vunpack.c.l.b16 %v5479
        %v5520 = vunpack.c.h.b16 %v5479
        %v5521 = vunpack.c.l.b16 %v5480
        %v5522 = vunpack.c.h.b16 %v5480
        %v5523 = vunpack.c.l.b16 %v5481
        %v5524 = vunpack.c.h.b16 %v5481
        %v5525 = vunpack.c.l.b16 %v5482
        %v5526 = vunpack.c.h.b16 %v5482
        %v5527 = vunpack.c.l.b16 %v5483
        %v5528 = vunpack.c.h.b16 %v5483
        %v5529 = vunpack.c.l.b16 %v5484
        %v5530 = vunpack.c.h.b16 %v5484
        %v5531 = vunpack.c.l.b16 %v5485
        %v5532 = vunpack.c.h.b16 %v5485
        %v5533 = vunpack.c.l.b16 %v5486
        %v5534 = vunpack.c.h.b16 %v5486
        %v5535 = vunpack.c.l.b16 %v5487
        %v5536 = vunpack.c.h.b16 %v5487
        %v5537 = vunpack.c.l.b16 %v5488
        %v5538 = vunpack.c.h.b16 %v5488
        %v5539 = vunpack.c.l.b16 %v5489
        %v5540 = vunpack.c.h.b16 %v5489
        %v5541 = vunpack.c.l.b16 %v5490
        %v5542 = vunpack.c.h.b16 %v5490
        %v5543 = vunpack.c.l.b16 %v5491
        %v5544 = vunpack.c.h.b16 %v5491
        %v5545 = vpack.c.b16 %v5515, %v5513
        %v5546 = vpack.c.b16 %v5516, %v5514
        %v5547 = vpack.c.b16 %v5519, %v5517
        %v5548 = vpack.c.b16 %v5520, %v5518
        %v5549 = vpack.c.b16 %v5523, %v5521
        %v5550 = vpack.c.b16 %v5524, %v5522
        %v5551 = vpack.c.b16 %v5527, %v5525
        %v5552 = vpack.c.b16 %v5528, %v5526
        %v5553 = vpack.c.b16 %v5531, %v5529
        %v5554 = vpack.c.b16 %v5532, %v5530
        %v5555 = vpack.c.b16 %v5535, %v5533
        %v5556 = vpack.c.b16 %v5536, %v5534
        %v5557 = vpack.c.b16 %v5539, %v5537
        %v5558 = vpack.c.b16 %v5540, %v5538
        %v5559 = vpack.c.b16 %v5543, %v5541
        %v5560 = vpack.c.b16 %v5544, %v5542
        %5577 = vmatpush.bf16.msra.mxu0 %v5559
        %5578 = vmatpush.bf16.msra.mxu0 %v5557
        %5579 = vmatpush.bf16.msra.mxu0 %v5555
        %5580 = vmatpush.bf16.msra.mxu0 %v5553
        %5581 = vmatpush.bf16.msra.mxu0 %v5551
        %5582 = vmatpush.bf16.msra.mxu0 %v5549
        %5583 = vmatpush.bf16.msra.mxu0 %v5547
        %5584 = vmatpush.bf16.msra.mxu0 %v5545
        %5585 = vmatmul.bf16.gmra.mxu0 %v5495
        %v5586 = vpop.f32.mrf.mxu0
        %v5587 = vadd.f32 0.0, %v5586
        %v5588 = vpop.f32.mrf.mxu0
        %5589 = vdwg.mxu0
        %5590 = vmatpush.bf16.msra.mxu0 %v5560
        %5591 = vmatpush.bf16.msra.mxu0 %v5558
        %5592 = vmatpush.bf16.msra.mxu0 %v5556
        %5593 = vmatpush.bf16.msra.mxu0 %v5554
        %5594 = vmatpush.bf16.msra.mxu0 %v5552
        %5595 = vmatpush.bf16.msra.mxu0 %v5550
        %5596 = vmatpush.bf16.msra.mxu0 %v5548
        %5597 = vmatpush.bf16.msra.mxu0 %v5546
        %5598 = vmatmul.bf16.gmra.mxu0 %v5495
        %v5599 = vpop.f32.mrf.mxu0
        %v5600 = vadd.f32 0.0, %v5599
        %v5601 = vpop.f32.mrf.mxu0
        %5602 = vdwg.mxu0
        %v5603 = vadd.f32 %v5459, %v5587
        %v5604 = vadd.f32 %v5472, %v5600
        %v5605 = vld [vmem:[#allocation11] sm:$0xc]
        %v5606 = vld [vmem:[#allocation11 + $0x4] sm:$0x1]
        %v5607 = vld [vmem:[#allocation15 + $0x180] sm:$0xff]
        %v5608 = vld [vmem:[#allocation15 + $0x188] sm:$0xff]
        %v5609 = vld [vmem:[#allocation15 + $0x190] sm:$0xff]
        %v5610 = vld [vmem:[#allocation15 + $0x198] sm:$0xff]
        %v5611 = vld [vmem:[#allocation15 + $0x1a0] sm:$0xff]
        %v5612 = vld [vmem:[#allocation15 + $0x1a8] sm:$0xff]
        %v5613 = vld [vmem:[#allocation15 + $0x1b0] sm:$0xff]
        %v5614 = vld [vmem:[#allocation15 + $0x1b8] sm:$0xff]
        %v5615 = vld [vmem:[#allocation15 + $0x1c0] sm:$0xff]
        %v5616 = vld [vmem:[#allocation15 + $0x1c8] sm:$0xff]
        %v5617 = vld [vmem:[#allocation15 + $0x1d0] sm:$0xff]
        %v5618 = vld [vmem:[#allocation15 + $0x1d8] sm:$0xff]
        %v5619 = vld [vmem:[#allocation15 + $0x1e0] sm:$0xff]
        %v5620 = vld [vmem:[#allocation15 + $0x1e8] sm:$0xff]
        %v5621 = vld [vmem:[#allocation15 + $0x1f0] sm:$0xff]
        %v5622 = vld [vmem:[#allocation15 + $0x1f8] sm:$0xff]
        %v5625 = vunpack.c.l.b16 %v5605
        %v5626 = vunpack.c.l.b16 %v5606
        %v5627 = vpack.c.b16 %v5626, %v5625
        %v5628 = vrot.slane %v5627, 2
        %v5646 = vunpack.c.l.b16 %v5607
        %v5647 = vunpack.c.h.b16 %v5607
        %v5648 = vunpack.c.l.b16 %v5608
        %v5649 = vunpack.c.h.b16 %v5608
        %v5650 = vunpack.c.l.b16 %v5609
        %v5651 = vunpack.c.h.b16 %v5609
        %v5652 = vunpack.c.l.b16 %v5610
        %v5653 = vunpack.c.h.b16 %v5610
        %v5654 = vunpack.c.l.b16 %v5611
        %v5655 = vunpack.c.h.b16 %v5611
        %v5656 = vunpack.c.l.b16 %v5612
        %v5657 = vunpack.c.h.b16 %v5612
        %v5658 = vunpack.c.l.b16 %v5613
        %v5659 = vunpack.c.h.b16 %v5613
        %v5660 = vunpack.c.l.b16 %v5614
        %v5661 = vunpack.c.h.b16 %v5614
        %v5662 = vunpack.c.l.b16 %v5615
        %v5663 = vunpack.c.h.b16 %v5615
        %v5664 = vunpack.c.l.b16 %v5616
        %v5665 = vunpack.c.h.b16 %v5616
        %v5666 = vunpack.c.l.b16 %v5617
        %v5667 = vunpack.c.h.b16 %v5617
        %v5668 = vunpack.c.l.b16 %v5618
        %v5669 = vunpack.c.h.b16 %v5618
        %v5670 = vunpack.c.l.b16 %v5619
        %v5671 = vunpack.c.h.b16 %v5619
        %v5672 = vunpack.c.l.b16 %v5620
        %v5673 = vunpack.c.h.b16 %v5620
        %v5674 = vunpack.c.l.b16 %v5621
        %v5675 = vunpack.c.h.b16 %v5621
        %v5676 = vunpack.c.l.b16 %v5622
        %v5677 = vunpack.c.h.b16 %v5622
        %v5678 = vpack.c.b16 %v5648, %v5646
        %v5679 = vpack.c.b16 %v5649, %v5647
        %v5680 = vpack.c.b16 %v5652, %v5650
        %v5681 = vpack.c.b16 %v5653, %v5651
        %v5682 = vpack.c.b16 %v5656, %v5654
        %v5683 = vpack.c.b16 %v5657, %v5655
        %v5684 = vpack.c.b16 %v5660, %v5658
        %v5685 = vpack.c.b16 %v5661, %v5659
        %v5686 = vpack.c.b16 %v5664, %v5662
        %v5687 = vpack.c.b16 %v5665, %v5663
        %v5688 = vpack.c.b16 %v5668, %v5666
        %v5689 = vpack.c.b16 %v5669, %v5667
        %v5690 = vpack.c.b16 %v5672, %v5670
        %v5691 = vpack.c.b16 %v5673, %v5671
        %v5692 = vpack.c.b16 %v5676, %v5674
        %v5693 = vpack.c.b16 %v5677, %v5675
        %5710 = vmatpush.bf16.msra.mxu0 %v5692
        %5711 = vmatpush.bf16.msra.mxu0 %v5690
        %5712 = vmatpush.bf16.msra.mxu0 %v5688
        %5713 = vmatpush.bf16.msra.mxu0 %v5686
        %5714 = vmatpush.bf16.msra.mxu0 %v5684
        %5715 = vmatpush.bf16.msra.mxu0 %v5682
        %5716 = vmatpush.bf16.msra.mxu0 %v5680
        %5717 = vmatpush.bf16.msra.mxu0 %v5678
        %5718 = vmatmul.bf16.gmra.mxu0 %v5628
        %v5719 = vpop.f32.mrf.mxu0
        %v5720 = vadd.f32 0.0, %v5719
        %v5721 = vpop.f32.mrf.mxu0
        %5722 = vdwg.mxu0
        %5723 = vmatpush.bf16.msra.mxu0 %v5693
        %5724 = vmatpush.bf16.msra.mxu0 %v5691
        %5725 = vmatpush.bf16.msra.mxu0 %v5689
        %5726 = vmatpush.bf16.msra.mxu0 %v5687
        %5727 = vmatpush.bf16.msra.mxu0 %v5685
        %5728 = vmatpush.bf16.msra.mxu0 %v5683
        %5729 = vmatpush.bf16.msra.mxu0 %v5681
        %5730 = vmatpush.bf16.msra.mxu0 %v5679
        %5731 = vmatmul.bf16.gmra.mxu0 %v5628
        %v5732 = vpop.f32.mrf.mxu0
        %v5733 = vadd.f32 0.0, %v5732
        %v5734 = vpop.f32.mrf.mxu0
        %5735 = vdwg.mxu0
        %v5736 = vadd.f32 %v5603, %v5720
        %v5737 = vadd.f32 %v5604, %v5733
        %v5738 = vld [vmem:[#allocation11 + $0x4] sm:$0x3]
        %v5739 = vld [vmem:[#allocation15 + $0x200] sm:$0xff]
        %v5740 = vld [vmem:[#allocation15 + $0x208] sm:$0xff]
        %v5741 = vld [vmem:[#allocation15 + $0x210] sm:$0xff]
        %v5742 = vld [vmem:[#allocation15 + $0x218] sm:$0xff]
        %v5743 = vld [vmem:[#allocation15 + $0x220] sm:$0xff]
        %v5744 = vld [vmem:[#allocation15 + $0x228] sm:$0xff]
        %v5745 = vld [vmem:[#allocation15 + $0x230] sm:$0xff]
        %v5746 = vld [vmem:[#allocation15 + $0x238] sm:$0xff]
        %v5747 = vld [vmem:[#allocation15 + $0x240] sm:$0xff]
        %v5748 = vld [vmem:[#allocation15 + $0x248] sm:$0xff]
        %v5749 = vld [vmem:[#allocation15 + $0x250] sm:$0xff]
        %v5750 = vld [vmem:[#allocation15 + $0x258] sm:$0xff]
        %v5751 = vld [vmem:[#allocation15 + $0x260] sm:$0xff]
        %v5752 = vld [vmem:[#allocation15 + $0x268] sm:$0xff]
        %v5753 = vld [vmem:[#allocation15 + $0x270] sm:$0xff]
        %v5754 = vld [vmem:[#allocation15 + $0x278] sm:$0xff]
        %v5756 = vunpack.c.l.b16 %v5738
        %v5757 = vpack.c.b16 %v5756, %v5625
        %v5759 = vshrl.u32 %v5757, 16
        %v5761 = vrot.slane %v5759, 2
        %v5762 = vshll.u32 %v5757, 16
        %v5764 = vrot.slane %v5762, 3
        %v5765 = vor.u32 %v5761, %v5764
        %v5783 = vunpack.c.l.b16 %v5739
        %v5784 = vunpack.c.h.b16 %v5739
        %v5785 = vunpack.c.l.b16 %v5740
        %v5786 = vunpack.c.h.b16 %v5740
        %v5787 = vunpack.c.l.b16 %v5741
        %v5788 = vunpack.c.h.b16 %v5741
        %v5789 = vunpack.c.l.b16 %v5742
        %v5790 = vunpack.c.h.b16 %v5742
        %v5791 = vunpack.c.l.b16 %v5743
        %v5792 = vunpack.c.h.b16 %v5743
        %v5793 = vunpack.c.l.b16 %v5744
        %v5794 = vunpack.c.h.b16 %v5744
        %v5795 = vunpack.c.l.b16 %v5745
        %v5796 = vunpack.c.h.b16 %v5745
        %v5797 = vunpack.c.l.b16 %v5746
        %v5798 = vunpack.c.h.b16 %v5746
        %v5799 = vunpack.c.l.b16 %v5747
        %v5800 = vunpack.c.h.b16 %v5747
        %v5801 = vunpack.c.l.b16 %v5748
        %v5802 = vunpack.c.h.b16 %v5748
        %v5803 = vunpack.c.l.b16 %v5749
        %v5804 = vunpack.c.h.b16 %v5749
        %v5805 = vunpack.c.l.b16 %v5750
        %v5806 = vunpack.c.h.b16 %v5750
        %v5807 = vunpack.c.l.b16 %v5751
        %v5808 = vunpack.c.h.b16 %v5751
        %v5809 = vunpack.c.l.b16 %v5752
        %v5810 = vunpack.c.h.b16 %v5752
        %v5811 = vunpack.c.l.b16 %v5753
        %v5812 = vunpack.c.h.b16 %v5753
        %v5813 = vunpack.c.l.b16 %v5754
        %v5814 = vunpack.c.h.b16 %v5754
        %v5815 = vpack.c.b16 %v5785, %v5783
        %v5816 = vpack.c.b16 %v5786, %v5784
        %v5817 = vpack.c.b16 %v5789, %v5787
        %v5818 = vpack.c.b16 %v5790, %v5788
        %v5819 = vpack.c.b16 %v5793, %v5791
        %v5820 = vpack.c.b16 %v5794, %v5792
        %v5821 = vpack.c.b16 %v5797, %v5795
        %v5822 = vpack.c.b16 %v5798, %v5796
        %v5823 = vpack.c.b16 %v5801, %v5799
        %v5824 = vpack.c.b16 %v5802, %v5800
        %v5825 = vpack.c.b16 %v5805, %v5803
        %v5826 = vpack.c.b16 %v5806, %v5804
        %v5827 = vpack.c.b16 %v5809, %v5807
        %v5828 = vpack.c.b16 %v5810, %v5808
        %v5829 = vpack.c.b16 %v5813, %v5811
        %v5830 = vpack.c.b16 %v5814, %v5812
        %5847 = vmatpush.bf16.msra.mxu0 %v5829
        %5848 = vmatpush.bf16.msra.mxu0 %v5827
        %5849 = vmatpush.bf16.msra.mxu0 %v5825
        %5850 = vmatpush.bf16.msra.mxu0 %v5823
        %5851 = vmatpush.bf16.msra.mxu0 %v5821
        %5852 = vmatpush.bf16.msra.mxu0 %v5819
        %5853 = vmatpush.bf16.msra.mxu0 %v5817
        %5854 = vmatpush.bf16.msra.mxu0 %v5815
        %5855 = vmatmul.bf16.gmra.mxu0 %v5765
        %v5856 = vpop.f32.mrf.mxu0
        %v5857 = vadd.f32 0.0, %v5856
        %v5858 = vpop.f32.mrf.mxu0
        %5859 = vdwg.mxu0
        %5860 = vmatpush.bf16.msra.mxu0 %v5830
        %5861 = vmatpush.bf16.msra.mxu0 %v5828
        %5862 = vmatpush.bf16.msra.mxu0 %v5826
        %5863 = vmatpush.bf16.msra.mxu0 %v5824
        %5864 = vmatpush.bf16.msra.mxu0 %v5822
        %5865 = vmatpush.bf16.msra.mxu0 %v5820
        %5866 = vmatpush.bf16.msra.mxu0 %v5818
        %5867 = vmatpush.bf16.msra.mxu0 %v5816
        %5868 = vmatmul.bf16.gmra.mxu0 %v5765
        %v5869 = vpop.f32.mrf.mxu0
        %v5870 = vadd.f32 0.0, %v5869
        %v5871 = vpop.f32.mrf.mxu0
        %5872 = vdwg.mxu0
        %v5873 = vadd.f32 %v5736, %v5857
        %v5874 = vadd.f32 %v5737, %v5870
        %v5875 = vld [vmem:[#allocation11] sm:$0x8]
        %v5876 = vld [vmem:[#allocation15 + $0x280] sm:$0xff]
        %v5877 = vld [vmem:[#allocation15 + $0x288] sm:$0xff]
        %v5878 = vld [vmem:[#allocation15 + $0x290] sm:$0xff]
        %v5879 = vld [vmem:[#allocation15 + $0x298] sm:$0xff]
        %v5880 = vld [vmem:[#allocation15 + $0x2a0] sm:$0xff]
        %v5881 = vld [vmem:[#allocation15 + $0x2a8] sm:$0xff]
        %v5882 = vld [vmem:[#allocation15 + $0x2b0] sm:$0xff]
        %v5883 = vld [vmem:[#allocation15 + $0x2b8] sm:$0xff]
        %v5884 = vld [vmem:[#allocation15 + $0x2c0] sm:$0xff]
        %v5885 = vld [vmem:[#allocation15 + $0x2c8] sm:$0xff]
        %v5886 = vld [vmem:[#allocation15 + $0x2d0] sm:$0xff]
        %v5887 = vld [vmem:[#allocation15 + $0x2d8] sm:$0xff]
        %v5888 = vld [vmem:[#allocation15 + $0x2e0] sm:$0xff]
        %v5889 = vld [vmem:[#allocation15 + $0x2e8] sm:$0xff]
        %v5890 = vld [vmem:[#allocation15 + $0x2f0] sm:$0xff]
        %v5891 = vld [vmem:[#allocation15 + $0x2f8] sm:$0xff]
        %v5893 = vunpack.c.l.b16 %v5875
        %v5894 = vpack.c.b16 %v5756, %v5893
        %v5895 = vrot.slane %v5894, 3
        %v5913 = vunpack.c.l.b16 %v5876
        %v5914 = vunpack.c.h.b16 %v5876
        %v5915 = vunpack.c.l.b16 %v5877
        %v5916 = vunpack.c.h.b16 %v5877
        %v5917 = vunpack.c.l.b16 %v5878
        %v5918 = vunpack.c.h.b16 %v5878
        %v5919 = vunpack.c.l.b16 %v5879
        %v5920 = vunpack.c.h.b16 %v5879
        %v5921 = vunpack.c.l.b16 %v5880
        %v5922 = vunpack.c.h.b16 %v5880
        %v5923 = vunpack.c.l.b16 %v5881
        %v5924 = vunpack.c.h.b16 %v5881
        %v5925 = vunpack.c.l.b16 %v5882
        %v5926 = vunpack.c.h.b16 %v5882
        %v5927 = vunpack.c.l.b16 %v5883
        %v5928 = vunpack.c.h.b16 %v5883
        %v5929 = vunpack.c.l.b16 %v5884
        %v5930 = vunpack.c.h.b16 %v5884
        %v5931 = vunpack.c.l.b16 %v5885
        %v5932 = vunpack.c.h.b16 %v5885
        %v5933 = vunpack.c.l.b16 %v5886
        %v5934 = vunpack.c.h.b16 %v5886
        %v5935 = vunpack.c.l.b16 %v5887
        %v5936 = vunpack.c.h.b16 %v5887
        %v5937 = vunpack.c.l.b16 %v5888
        %v5938 = vunpack.c.h.b16 %v5888
        %v5939 = vunpack.c.l.b16 %v5889
        %v5940 = vunpack.c.h.b16 %v5889
        %v5941 = vunpack.c.l.b16 %v5890
        %v5942 = vunpack.c.h.b16 %v5890
        %v5943 = vunpack.c.l.b16 %v5891
        %v5944 = vunpack.c.h.b16 %v5891
        %v5945 = vpack.c.b16 %v5915, %v5913
        %v5946 = vpack.c.b16 %v5916, %v5914
        %v5947 = vpack.c.b16 %v5919, %v5917
        %v5948 = vpack.c.b16 %v5920, %v5918
        %v5949 = vpack.c.b16 %v5923, %v5921
        %v5950 = vpack.c.b16 %v5924, %v5922
        %v5951 = vpack.c.b16 %v5927, %v5925
        %v5952 = vpack.c.b16 %v5928, %v5926
        %v5953 = vpack.c.b16 %v5931, %v5929
        %v5954 = vpack.c.b16 %v5932, %v5930
        %v5955 = vpack.c.b16 %v5935, %v5933
        %v5956 = vpack.c.b16 %v5936, %v5934
        %v5957 = vpack.c.b16 %v5939, %v5937
        %v5958 = vpack.c.b16 %v5940, %v5938
        %v5959 = vpack.c.b16 %v5943, %v5941
        %v5960 = vpack.c.b16 %v5944, %v5942
        %5977 = vmatpush.bf16.msra.mxu0 %v5959
        %5978 = vmatpush.bf16.msra.mxu0 %v5957
        %5979 = vmatpush.bf16.msra.mxu0 %v5955
        %5980 = vmatpush.bf16.msra.mxu0 %v5953
        %5981 = vmatpush.bf16.msra.mxu0 %v5951
        %5982 = vmatpush.bf16.msra.mxu0 %v5949
        %5983 = vmatpush.bf16.msra.mxu0 %v5947
        %5984 = vmatpush.bf16.msra.mxu0 %v5945
        %5985 = vmatmul.bf16.gmra.mxu0 %v5895
        %v5986 = vpop.f32.mrf.mxu0
        %v5987 = vadd.f32 0.0, %v5986
        %v5988 = vpop.f32.mrf.mxu0
        %5989 = vdwg.mxu0
        %5990 = vmatpush.bf16.msra.mxu0 %v5960
        %5991 = vmatpush.bf16.msra.mxu0 %v5958
        %5992 = vmatpush.bf16.msra.mxu0 %v5956
        %5993 = vmatpush.bf16.msra.mxu0 %v5954
        %5994 = vmatpush.bf16.msra.mxu0 %v5952
        %5995 = vmatpush.bf16.msra.mxu0 %v5950
        %5996 = vmatpush.bf16.msra.mxu0 %v5948
        %5997 = vmatpush.bf16.msra.mxu0 %v5946
        %5998 = vmatmul.bf16.gmra.mxu0 %v5895
        %v5999 = vpop.f32.mrf.mxu0
        %v6000 = vadd.f32 0.0, %v5999
        %v6001 = vpop.f32.mrf.mxu0
        %6002 = vdwg.mxu0
        %v6003 = vadd.f32 %v5873, %v5987
        %v6004 = vadd.f32 %v5874, %v6000
        %v6005 = vld [vmem:[#allocation11 + $0x4] sm:$0x7]
        %v6006 = vld [vmem:[#allocation15 + $0x300] sm:$0xff]
        %v6007 = vld [vmem:[#allocation15 + $0x308] sm:$0xff]
        %v6008 = vld [vmem:[#allocation15 + $0x310] sm:$0xff]
        %v6009 = vld [vmem:[#allocation15 + $0x318] sm:$0xff]
        %v6010 = vld [vmem:[#allocation15 + $0x320] sm:$0xff]
        %v6011 = vld [vmem:[#allocation15 + $0x328] sm:$0xff]
        %v6012 = vld [vmem:[#allocation15 + $0x330] sm:$0xff]
        %v6013 = vld [vmem:[#allocation15 + $0x338] sm:$0xff]
        %v6014 = vld [vmem:[#allocation15 + $0x340] sm:$0xff]
        %v6015 = vld [vmem:[#allocation15 + $0x348] sm:$0xff]
        %v6016 = vld [vmem:[#allocation15 + $0x350] sm:$0xff]
        %v6017 = vld [vmem:[#allocation15 + $0x358] sm:$0xff]
        %v6018 = vld [vmem:[#allocation15 + $0x360] sm:$0xff]
        %v6019 = vld [vmem:[#allocation15 + $0x368] sm:$0xff]
        %v6020 = vld [vmem:[#allocation15 + $0x370] sm:$0xff]
        %v6021 = vld [vmem:[#allocation15 + $0x378] sm:$0xff]
        %v6038 = vunpack.c.l.b16 %v6006
        %v6039 = vunpack.c.h.b16 %v6006
        %v6040 = vunpack.c.l.b16 %v6007
        %v6041 = vunpack.c.h.b16 %v6007
        %v6042 = vunpack.c.l.b16 %v6008
        %v6043 = vunpack.c.h.b16 %v6008
        %v6044 = vunpack.c.l.b16 %v6009
        %v6045 = vunpack.c.h.b16 %v6009
        %v6046 = vunpack.c.l.b16 %v6010
        %v6047 = vunpack.c.h.b16 %v6010
        %v6048 = vunpack.c.l.b16 %v6011
        %v6049 = vunpack.c.h.b16 %v6011
        %v6050 = vunpack.c.l.b16 %v6012
        %v6051 = vunpack.c.h.b16 %v6012
        %v6052 = vunpack.c.l.b16 %v6013
        %v6053 = vunpack.c.h.b16 %v6013
        %v6054 = vunpack.c.l.b16 %v6014
        %v6055 = vunpack.c.h.b16 %v6014
        %v6056 = vunpack.c.l.b16 %v6015
        %v6057 = vunpack.c.h.b16 %v6015
        %v6058 = vunpack.c.l.b16 %v6016
        %v6059 = vunpack.c.h.b16 %v6016
        %v6060 = vunpack.c.l.b16 %v6017
        %v6061 = vunpack.c.h.b16 %v6017
        %v6062 = vunpack.c.l.b16 %v6018
        %v6063 = vunpack.c.h.b16 %v6018
        %v6064 = vunpack.c.l.b16 %v6019
        %v6065 = vunpack.c.h.b16 %v6019
        %v6066 = vunpack.c.l.b16 %v6020
        %v6067 = vunpack.c.h.b16 %v6020
        %v6068 = vunpack.c.l.b16 %v6021
        %v6069 = vunpack.c.h.b16 %v6021
        %v6070 = vpack.c.b16 %v6040, %v6038
        %v6071 = vpack.c.b16 %v6041, %v6039
        %v6072 = vpack.c.b16 %v6044, %v6042
        %v6073 = vpack.c.b16 %v6045, %v6043
        %v6074 = vpack.c.b16 %v6048, %v6046
        %v6075 = vpack.c.b16 %v6049, %v6047
        %v6076 = vpack.c.b16 %v6052, %v6050
        %v6077 = vpack.c.b16 %v6053, %v6051
        %v6078 = vpack.c.b16 %v6056, %v6054
        %v6079 = vpack.c.b16 %v6057, %v6055
        %v6080 = vpack.c.b16 %v6060, %v6058
        %v6081 = vpack.c.b16 %v6061, %v6059
        %v6082 = vpack.c.b16 %v6064, %v6062
        %v6083 = vpack.c.b16 %v6065, %v6063
        %v6084 = vpack.c.b16 %v6068, %v6066
        %v6085 = vpack.c.b16 %v6069, %v6067
        %6102 = vmatpush.bf16.msra.mxu0 %v6084
        %6103 = vmatpush.bf16.msra.mxu0 %v6082
        %6104 = vmatpush.bf16.msra.mxu0 %v6080
        %6105 = vmatpush.bf16.msra.mxu0 %v6078
        %6106 = vmatpush.bf16.msra.mxu0 %v6076
        %6107 = vmatpush.bf16.msra.mxu0 %v6074
        %6108 = vmatpush.bf16.msra.mxu0 %v6072
        %6109 = vmatpush.bf16.msra.mxu0 %v6070
        %6110 = vmatmul.bf16.gmra.mxu0 %v6005
        %v6111 = vpop.f32.mrf.mxu0
        %v6112 = vadd.f32 0.0, %v6111
        %v6113 = vpop.f32.mrf.mxu0
        %6114 = vdwg.mxu0
        %6115 = vmatpush.bf16.msra.mxu0 %v6085
        %6116 = vmatpush.bf16.msra.mxu0 %v6083
        %6117 = vmatpush.bf16.msra.mxu0 %v6081
        %6118 = vmatpush.bf16.msra.mxu0 %v6079
        %6119 = vmatpush.bf16.msra.mxu0 %v6077
        %6120 = vmatpush.bf16.msra.mxu0 %v6075
        %6121 = vmatpush.bf16.msra.mxu0 %v6073
        %6122 = vmatpush.bf16.msra.mxu0 %v6071
        %6123 = vmatmul.bf16.gmra.mxu0 %v6005
        %v6124 = vpop.f32.mrf.mxu0
        %v6125 = vadd.f32 0.0, %v6124
        %v6126 = vpop.f32.mrf.mxu0
        %6127 = vdwg.mxu0
        %v6128 = vadd.f32 %v6003, %v6112
        %v6129 = vadd.f32 %v6004, %v6125
        %v6130 = vld [vmem:[#allocation11 + $0x4] sm:$0xf]
        %v6131 = vld [vmem:[#allocation15 + $0x380] sm:$0xff]
        %v6132 = vld [vmem:[#allocation15 + $0x388] sm:$0xff]
        %v6133 = vld [vmem:[#allocation15 + $0x390] sm:$0xff]
        %v6134 = vld [vmem:[#allocation15 + $0x398] sm:$0xff]
        %v6135 = vld [vmem:[#allocation15 + $0x3a0] sm:$0xff]
        %v6136 = vld [vmem:[#allocation15 + $0x3a8] sm:$0xff]
        %v6137 = vld [vmem:[#allocation15 + $0x3b0] sm:$0xff]
        %v6138 = vld [vmem:[#allocation15 + $0x3b8] sm:$0xff]
        %v6139 = vld [vmem:[#allocation15 + $0x3c0] sm:$0xff]
        %v6140 = vld [vmem:[#allocation15 + $0x3c8] sm:$0xff]
        %v6141 = vld [vmem:[#allocation15 + $0x3d0] sm:$0xff]
        %v6142 = vld [vmem:[#allocation15 + $0x3d8] sm:$0xff]
        %v6143 = vld [vmem:[#allocation15 + $0x3e0] sm:$0xff]
        %v6144 = vld [vmem:[#allocation15 + $0x3e8] sm:$0xff]
        %v6145 = vld [vmem:[#allocation15 + $0x3f0] sm:$0xff]
        %v6146 = vld [vmem:[#allocation15 + $0x3f8] sm:$0xff]
        %v6148 = vunpack.c.l.b16 %v6130
        %v6149 = vpack.c.b16 %v6148, %v6148
        %v6151 = vshrl.u32 %v6149, 16
        %v6153 = vshll.u32 %v6149, 16
        %v6155 = vrot.slane %v6153, 1
        %v6156 = vor.u32 %v6151, %v6155
        %v6174 = vunpack.c.l.b16 %v6131
        %v6175 = vunpack.c.h.b16 %v6131
        %v6176 = vunpack.c.l.b16 %v6132
        %v6177 = vunpack.c.h.b16 %v6132
        %v6178 = vunpack.c.l.b16 %v6133
        %v6179 = vunpack.c.h.b16 %v6133
        %v6180 = vunpack.c.l.b16 %v6134
        %v6181 = vunpack.c.h.b16 %v6134
        %v6182 = vunpack.c.l.b16 %v6135
        %v6183 = vunpack.c.h.b16 %v6135
        %v6184 = vunpack.c.l.b16 %v6136
        %v6185 = vunpack.c.h.b16 %v6136
        %v6186 = vunpack.c.l.b16 %v6137
        %v6187 = vunpack.c.h.b16 %v6137
        %v6188 = vunpack.c.l.b16 %v6138
        %v6189 = vunpack.c.h.b16 %v6138
        %v6190 = vunpack.c.l.b16 %v6139
        %v6191 = vunpack.c.h.b16 %v6139
        %v6192 = vunpack.c.l.b16 %v6140
        %v6193 = vunpack.c.h.b16 %v6140
        %v6194 = vunpack.c.l.b16 %v6141
        %v6195 = vunpack.c.h.b16 %v6141
        %v6196 = vunpack.c.l.b16 %v6142
        %v6197 = vunpack.c.h.b16 %v6142
        %v6198 = vunpack.c.l.b16 %v6143
        %v6199 = vunpack.c.h.b16 %v6143
        %v6200 = vunpack.c.l.b16 %v6144
        %v6201 = vunpack.c.h.b16 %v6144
        %v6202 = vunpack.c.l.b16 %v6145
        %v6203 = vunpack.c.h.b16 %v6145
        %v6204 = vunpack.c.l.b16 %v6146
        %v6205 = vunpack.c.h.b16 %v6146
        %v6206 = vpack.c.b16 %v6176, %v6174
        %v6207 = vpack.c.b16 %v6177, %v6175
        %v6208 = vpack.c.b16 %v6180, %v6178
        %v6209 = vpack.c.b16 %v6181, %v6179
        %v6210 = vpack.c.b16 %v6184, %v6182
        %v6211 = vpack.c.b16 %v6185, %v6183
        %v6212 = vpack.c.b16 %v6188, %v6186
        %v6213 = vpack.c.b16 %v6189, %v6187
        %v6214 = vpack.c.b16 %v6192, %v6190
        %v6215 = vpack.c.b16 %v6193, %v6191
        %v6216 = vpack.c.b16 %v6196, %v6194
        %v6217 = vpack.c.b16 %v6197, %v6195
        %v6218 = vpack.c.b16 %v6200, %v6198
        %v6219 = vpack.c.b16 %v6201, %v6199
        %v6220 = vpack.c.b16 %v6204, %v6202
        %v6221 = vpack.c.b16 %v6205, %v6203
        %6238 = vmatpush.bf16.msra.mxu0 %v6220
        %6239 = vmatpush.bf16.msra.mxu0 %v6218
        %6240 = vmatpush.bf16.msra.mxu0 %v6216
        %6241 = vmatpush.bf16.msra.mxu0 %v6214
        %6242 = vmatpush.bf16.msra.mxu0 %v6212
        %6243 = vmatpush.bf16.msra.mxu0 %v6210
        %6244 = vmatpush.bf16.msra.mxu0 %v6208
        %6245 = vmatpush.bf16.msra.mxu0 %v6206
        %6246 = vmatmul.bf16.gmra.mxu0 %v6156
        %v6247 = vpop.f32.mrf.mxu0
        %v6248 = vadd.f32 0.0, %v6247
        %v6249 = vpop.f32.mrf.mxu0
        %6250 = vdwg.mxu0
        %6251 = vmatpush.bf16.msra.mxu0 %v6221
        %6252 = vmatpush.bf16.msra.mxu0 %v6219
        %6253 = vmatpush.bf16.msra.mxu0 %v6217
        %6254 = vmatpush.bf16.msra.mxu0 %v6215
        %6255 = vmatpush.bf16.msra.mxu0 %v6213
        %6256 = vmatpush.bf16.msra.mxu0 %v6211
        %6257 = vmatpush.bf16.msra.mxu0 %v6209
        %6258 = vmatpush.bf16.msra.mxu0 %v6207
        %6259 = vmatmul.bf16.gmra.mxu0 %v6156
        %v6260 = vpop.f32.mrf.mxu0
        %v6261 = vadd.f32 0.0, %v6260
        %v6262 = vpop.f32.mrf.mxu0
        %6263 = vdwg.mxu0
        %v6264 = vadd.f32 %v6128, %v6248
        %v6265 = vadd.f32 %v6129, %v6261
        %v6266 = vld [vmem:[#allocation11 + $0x4] sm:$0xe]
        %v6267 = vld [vmem:[#allocation15 + $0x400] sm:$0xff]
        %v6268 = vld [vmem:[#allocation15 + $0x408] sm:$0xff]
        %v6269 = vld [vmem:[#allocation15 + $0x410] sm:$0xff]
        %v6270 = vld [vmem:[#allocation15 + $0x418] sm:$0xff]
        %v6271 = vld [vmem:[#allocation15 + $0x420] sm:$0xff]
        %v6272 = vld [vmem:[#allocation15 + $0x428] sm:$0xff]
        %v6273 = vld [vmem:[#allocation15 + $0x430] sm:$0xff]
        %v6274 = vld [vmem:[#allocation15 + $0x438] sm:$0xff]
        %v6275 = vld [vmem:[#allocation15 + $0x440] sm:$0xff]
        %v6276 = vld [vmem:[#allocation15 + $0x448] sm:$0xff]
        %v6277 = vld [vmem:[#allocation15 + $0x450] sm:$0xff]
        %v6278 = vld [vmem:[#allocation15 + $0x458] sm:$0xff]
        %v6279 = vld [vmem:[#allocation15 + $0x460] sm:$0xff]
        %v6280 = vld [vmem:[#allocation15 + $0x468] sm:$0xff]
        %v6281 = vld [vmem:[#allocation15 + $0x470] sm:$0xff]
        %v6282 = vld [vmem:[#allocation15 + $0x478] sm:$0xff]
        %v6284 = vunpack.c.l.b16 %v6266
        %v6285 = vpack.c.b16 %v6284, %v6284
        %v6286 = vrot.slane %v6285, 1
        %v6304 = vunpack.c.l.b16 %v6267
        %v6305 = vunpack.c.h.b16 %v6267
        %v6306 = vunpack.c.l.b16 %v6268
        %v6307 = vunpack.c.h.b16 %v6268
        %v6308 = vunpack.c.l.b16 %v6269
        %v6309 = vunpack.c.h.b16 %v6269
        %v6310 = vunpack.c.l.b16 %v6270
        %v6311 = vunpack.c.h.b16 %v6270
        %v6312 = vunpack.c.l.b16 %v6271
        %v6313 = vunpack.c.h.b16 %v6271
        %v6314 = vunpack.c.l.b16 %v6272
        %v6315 = vunpack.c.h.b16 %v6272
        %v6316 = vunpack.c.l.b16 %v6273
        %v6317 = vunpack.c.h.b16 %v6273
        %v6318 = vunpack.c.l.b16 %v6274
        %v6319 = vunpack.c.h.b16 %v6274
        %v6320 = vunpack.c.l.b16 %v6275
        %v6321 = vunpack.c.h.b16 %v6275
        %v6322 = vunpack.c.l.b16 %v6276
        %v6323 = vunpack.c.h.b16 %v6276
        %v6324 = vunpack.c.l.b16 %v6277
        %v6325 = vunpack.c.h.b16 %v6277
        %v6326 = vunpack.c.l.b16 %v6278
        %v6327 = vunpack.c.h.b16 %v6278
        %v6328 = vunpack.c.l.b16 %v6279
        %v6329 = vunpack.c.h.b16 %v6279
        %v6330 = vunpack.c.l.b16 %v6280
        %v6331 = vunpack.c.h.b16 %v6280
        %v6332 = vunpack.c.l.b16 %v6281
        %v6333 = vunpack.c.h.b16 %v6281
        %v6334 = vunpack.c.l.b16 %v6282
        %v6335 = vunpack.c.h.b16 %v6282
        %v6336 = vpack.c.b16 %v6306, %v6304
        %v6337 = vpack.c.b16 %v6307, %v6305
        %v6338 = vpack.c.b16 %v6310, %v6308
        %v6339 = vpack.c.b16 %v6311, %v6309
        %v6340 = vpack.c.b16 %v6314, %v6312
        %v6341 = vpack.c.b16 %v6315, %v6313
        %v6342 = vpack.c.b16 %v6318, %v6316
        %v6343 = vpack.c.b16 %v6319, %v6317
        %v6344 = vpack.c.b16 %v6322, %v6320
        %v6345 = vpack.c.b16 %v6323, %v6321
        %v6346 = vpack.c.b16 %v6326, %v6324
        %v6347 = vpack.c.b16 %v6327, %v6325
        %v6348 = vpack.c.b16 %v6330, %v6328
        %v6349 = vpack.c.b16 %v6331, %v6329
        %v6350 = vpack.c.b16 %v6334, %v6332
        %v6351 = vpack.c.b16 %v6335, %v6333
        %6368 = vmatpush.bf16.msra.mxu0 %v6350
        %6369 = vmatpush.bf16.msra.mxu0 %v6348
        %6370 = vmatpush.bf16.msra.mxu0 %v6346
        %6371 = vmatpush.bf16.msra.mxu0 %v6344
        %6372 = vmatpush.bf16.msra.mxu0 %v6342
        %6373 = vmatpush.bf16.msra.mxu0 %v6340
        %6374 = vmatpush.bf16.msra.mxu0 %v6338
        %6375 = vmatpush.bf16.msra.mxu0 %v6336
        %6376 = vmatmul.bf16.gmra.mxu0 %v6286
        %v6377 = vpop.f32.mrf.mxu0
        %v6378 = vadd.f32 0.0, %v6377
        %v6379 = vpop.f32.mrf.mxu0
        %6380 = vdwg.mxu0
        %6381 = vmatpush.bf16.msra.mxu0 %v6351
        %6382 = vmatpush.bf16.msra.mxu0 %v6349
        %6383 = vmatpush.bf16.msra.mxu0 %v6347
        %6384 = vmatpush.bf16.msra.mxu0 %v6345
        %6385 = vmatpush.bf16.msra.mxu0 %v6343
        %6386 = vmatpush.bf16.msra.mxu0 %v6341
        %6387 = vmatpush.bf16.msra.mxu0 %v6339
        %6388 = vmatpush.bf16.msra.mxu0 %v6337
        %6389 = vmatmul.bf16.gmra.mxu0 %v6286
        %v6390 = vpop.f32.mrf.mxu0
        %v6391 = vadd.f32 0.0, %v6390
        %v6392 = vpop.f32.mrf.mxu0
        %6393 = vdwg.mxu0
        %v6394 = vadd.f32 %v6264, %v6378
        %v6395 = vadd.f32 %v6265, %v6391
        %v6397 = vperm.slane %v5217, 0
        %v6398 = vperm.slane %v5217, 1
        %v6401 = vadd.f32 %v6394, %v6397
        %v6402 = vadd.f32 %v6395, %v6398
        %v6403 = vmax.f32 %v6401, 0.0
        %v6404 = vmax.f32 %v6402, 0.0
        %6405 = vst [vmem:[#allocation5] sm:$0x3f] %v6403
        %6406 = vst [vmem:[#allocation5 + $0x8] sm:$0x3f] %v6404
        %v6407 = vld [vmem:[#allocation5] ss:$8 sm:$0x3]
        %s6408 = scalar_lea.vmem [#allocation5], 1
        %v6409 = vld [vmem:[%s6408] ss:$8 sm:$0x3]
        %s6410 = scalar_lea.vmem [#allocation5], 4
        %v6411 = vld [vmem:[%s6410] ss:$8 sm:$0x3]
        %s6412 = scalar_lea.vmem [#allocation5], 5
        %v6413 = vld [vmem:[%s6412] ss:$8 sm:$0x3]
        %v6414 = vmax.f32 %v6407, %v6409
        %v6415 = vmax.f32 %v6411, %v6413
        %v6416 = vmax.f32 %v6414, %v6415
        %v6418 = vperm.slane %v6416, 0
        %v6419 = vperm.slane %v6416, 1
        %v6422 = vpack.c.bf16 %v6418, %v6418
        %v6423 = vpack.c.bf16 %v6419, %v6419
        %v6424 = vld [vmem:[%s9] sm:$0xff]
        %v6425 = vld [vmem:[%s9 + $0x8] sm:$0xff]
        %v6426 = vld [vmem:[%s9 + $0x10] sm:$0xff]
        %v6427 = vld [vmem:[%s9 + $0x18] sm:$0xff]
        %v6428 = vld [vmem:[%s9 + $0x20] sm:$0xff]
        %v6429 = vld [vmem:[%s9 + $0x28] sm:$0xff]
        %v6430 = vld [vmem:[%s9 + $0x30] sm:$0xff]
        %v6431 = vld [vmem:[%s9 + $0x38] sm:$0xff]
        %v6432 = vld [vmem:[%s9 + $0x40] sm:$0xff]
        %v6433 = vld [vmem:[%s9 + $0x48] sm:$0xff]
        %v6434 = vld [vmem:[%s9 + $0x50] sm:$0xff]
        %v6435 = vld [vmem:[%s9 + $0x58] sm:$0xff]
        %v6436 = vld [vmem:[%s9 + $0x60] sm:$0xff]
        %v6437 = vld [vmem:[%s9 + $0x68] sm:$0xff]
        %v6438 = vld [vmem:[%s9 + $0x70] sm:$0xff]
        %v6439 = vld [vmem:[%s9 + $0x78] sm:$0xff]
        %v6440 = vld [vmem:[%s9 + $0x80] sm:$0xff]
        %v6441 = vld [vmem:[%s9 + $0x88] sm:$0xff]
        %v6442 = vld [vmem:[%s9 + $0x90] sm:$0xff]
        %v6443 = vld [vmem:[%s9 + $0x98] sm:$0xff]
        %v6444 = vld [vmem:[%s9 + $0xa0] sm:$0xff]
        %v6445 = vld [vmem:[%s9 + $0xa8] sm:$0xff]
        %v6446 = vld [vmem:[%s9 + $0xb0] sm:$0xff]
        %v6447 = vld [vmem:[%s9 + $0xb8] sm:$0xff]
        %v6448 = vld [vmem:[%s9 + $0xc0] sm:$0xff]
        %v6449 = vld [vmem:[%s9 + $0xc8] sm:$0xff]
        %v6450 = vld [vmem:[%s9 + $0xd0] sm:$0xff]
        %v6451 = vld [vmem:[%s9 + $0xd8] sm:$0xff]
        %v6452 = vld [vmem:[%s9 + $0xe0] sm:$0xff]
        %v6453 = vld [vmem:[%s9 + $0xe8] sm:$0xff]
        %v6454 = vld [vmem:[%s9 + $0xf0] sm:$0xff]
        %v6455 = vld [vmem:[%s9 + $0xf8] sm:$0xff]
        %v6456 = vld [vmem:[%s9 + $0x100] sm:$0xff]
        %v6457 = vld [vmem:[%s9 + $0x108] sm:$0xff]
        %v6458 = vld [vmem:[%s9 + $0x110] sm:$0xff]
        %v6459 = vld [vmem:[%s9 + $0x118] sm:$0xff]
        %v6460 = vld [vmem:[%s9 + $0x120] sm:$0xff]
        %v6461 = vld [vmem:[%s9 + $0x128] sm:$0xff]
        %v6462 = vld [vmem:[%s9 + $0x130] sm:$0xff]
        %v6463 = vld [vmem:[%s9 + $0x138] sm:$0xff]
        %v6464 = vld [vmem:[%s9 + $0x140] sm:$0xff]
        %v6465 = vld [vmem:[%s9 + $0x148] sm:$0xff]
        %v6466 = vld [vmem:[%s9 + $0x150] sm:$0xff]
        %v6467 = vld [vmem:[%s9 + $0x158] sm:$0xff]
        %v6468 = vld [vmem:[%s9 + $0x160] sm:$0xff]
        %v6469 = vld [vmem:[%s9 + $0x168] sm:$0xff]
        %v6470 = vld [vmem:[%s9 + $0x170] sm:$0xff]
        %v6471 = vld [vmem:[%s9 + $0x178] sm:$0xff]
        %v6472 = vld [vmem:[%s9 + $0x180] sm:$0xff]
        %v6473 = vld [vmem:[%s9 + $0x188] sm:$0xff]
        %v6474 = vld [vmem:[%s9 + $0x190] sm:$0xff]
        %v6475 = vld [vmem:[%s9 + $0x198] sm:$0xff]
        %v6476 = vld [vmem:[%s9 + $0x1a0] sm:$0xff]
        %v6477 = vld [vmem:[%s9 + $0x1a8] sm:$0xff]
        %v6478 = vld [vmem:[%s9 + $0x1b0] sm:$0xff]
        %v6479 = vld [vmem:[%s9 + $0x1b8] sm:$0xff]
        %v6480 = vld [vmem:[%s9 + $0x1c0] sm:$0xff]
        %v6481 = vld [vmem:[%s9 + $0x1c8] sm:$0xff]
        %v6482 = vld [vmem:[%s9 + $0x1d0] sm:$0xff]
        %v6483 = vld [vmem:[%s9 + $0x1d8] sm:$0xff]
        %v6484 = vld [vmem:[%s9 + $0x1e0] sm:$0xff]
        %v6485 = vld [vmem:[%s9 + $0x1e8] sm:$0xff]
        %v6486 = vld [vmem:[%s9 + $0x1f0] sm:$0xff]
        %v6487 = vld [vmem:[%s9 + $0x1f8] sm:$0xff]
        %v6488 = vld [vmem:[%s12] sm:$0xf]
        %v6553 = vunpack.c.l.b16 %v6424
        %v6554 = vunpack.c.h.b16 %v6424
        %v6555 = vunpack.c.l.b16 %v6425
        %v6556 = vunpack.c.h.b16 %v6425
        %v6557 = vunpack.c.l.b16 %v6426
        %v6558 = vunpack.c.h.b16 %v6426
        %v6559 = vunpack.c.l.b16 %v6427
        %v6560 = vunpack.c.h.b16 %v6427
        %v6561 = vunpack.c.l.b16 %v6428
        %v6562 = vunpack.c.h.b16 %v6428
        %v6563 = vunpack.c.l.b16 %v6429
        %v6564 = vunpack.c.h.b16 %v6429
        %v6565 = vunpack.c.l.b16 %v6430
        %v6566 = vunpack.c.h.b16 %v6430
        %v6567 = vunpack.c.l.b16 %v6431
        %v6568 = vunpack.c.h.b16 %v6431
        %v6569 = vunpack.c.l.b16 %v6432
        %v6570 = vunpack.c.h.b16 %v6432
        %v6571 = vunpack.c.l.b16 %v6433
        %v6572 = vunpack.c.h.b16 %v6433
        %v6573 = vunpack.c.l.b16 %v6434
        %v6574 = vunpack.c.h.b16 %v6434
        %v6575 = vunpack.c.l.b16 %v6435
        %v6576 = vunpack.c.h.b16 %v6435
        %v6577 = vunpack.c.l.b16 %v6436
        %v6578 = vunpack.c.h.b16 %v6436
        %v6579 = vunpack.c.l.b16 %v6437
        %v6580 = vunpack.c.h.b16 %v6437
        %v6581 = vunpack.c.l.b16 %v6438
        %v6582 = vunpack.c.h.b16 %v6438
        %v6583 = vunpack.c.l.b16 %v6439
        %v6584 = vunpack.c.h.b16 %v6439
        %v6585 = vunpack.c.l.b16 %v6440
        %v6586 = vunpack.c.h.b16 %v6440
        %v6587 = vunpack.c.l.b16 %v6441
        %v6588 = vunpack.c.h.b16 %v6441
        %v6589 = vunpack.c.l.b16 %v6442
        %v6590 = vunpack.c.h.b16 %v6442
        %v6591 = vunpack.c.l.b16 %v6443
        %v6592 = vunpack.c.h.b16 %v6443
        %v6593 = vunpack.c.l.b16 %v6444
        %v6594 = vunpack.c.h.b16 %v6444
        %v6595 = vunpack.c.l.b16 %v6445
        %v6596 = vunpack.c.h.b16 %v6445
        %v6597 = vunpack.c.l.b16 %v6446
        %v6598 = vunpack.c.h.b16 %v6446
        %v6599 = vunpack.c.l.b16 %v6447
        %v6600 = vunpack.c.h.b16 %v6447
        %v6601 = vunpack.c.l.b16 %v6448
        %v6602 = vunpack.c.h.b16 %v6448
        %v6603 = vunpack.c.l.b16 %v6449
        %v6604 = vunpack.c.h.b16 %v6449
        %v6605 = vunpack.c.l.b16 %v6450
        %v6606 = vunpack.c.h.b16 %v6450
        %v6607 = vunpack.c.l.b16 %v6451
        %v6608 = vunpack.c.h.b16 %v6451
        %v6609 = vunpack.c.l.b16 %v6452
        %v6610 = vunpack.c.h.b16 %v6452
        %v6611 = vunpack.c.l.b16 %v6453
        %v6612 = vunpack.c.h.b16 %v6453
        %v6613 = vunpack.c.l.b16 %v6454
        %v6614 = vunpack.c.h.b16 %v6454
        %v6615 = vunpack.c.l.b16 %v6455
        %v6616 = vunpack.c.h.b16 %v6455
        %v6617 = vunpack.c.l.b16 %v6456
        %v6618 = vunpack.c.h.b16 %v6456
        %v6619 = vunpack.c.l.b16 %v6457
        %v6620 = vunpack.c.h.b16 %v6457
        %v6621 = vunpack.c.l.b16 %v6458
        %v6622 = vunpack.c.h.b16 %v6458
        %v6623 = vunpack.c.l.b16 %v6459
        %v6624 = vunpack.c.h.b16 %v6459
        %v6625 = vunpack.c.l.b16 %v6460
        %v6626 = vunpack.c.h.b16 %v6460
        %v6627 = vunpack.c.l.b16 %v6461
        %v6628 = vunpack.c.h.b16 %v6461
        %v6629 = vunpack.c.l.b16 %v6462
        %v6630 = vunpack.c.h.b16 %v6462
        %v6631 = vunpack.c.l.b16 %v6463
        %v6632 = vunpack.c.h.b16 %v6463
        %v6633 = vunpack.c.l.b16 %v6464
        %v6634 = vunpack.c.h.b16 %v6464
        %v6635 = vunpack.c.l.b16 %v6465
        %v6636 = vunpack.c.h.b16 %v6465
        %v6637 = vunpack.c.l.b16 %v6466
        %v6638 = vunpack.c.h.b16 %v6466
        %v6639 = vunpack.c.l.b16 %v6467
        %v6640 = vunpack.c.h.b16 %v6467
        %v6641 = vunpack.c.l.b16 %v6468
        %v6642 = vunpack.c.h.b16 %v6468
        %v6643 = vunpack.c.l.b16 %v6469
        %v6644 = vunpack.c.h.b16 %v6469
        %v6645 = vunpack.c.l.b16 %v6470
        %v6646 = vunpack.c.h.b16 %v6470
        %v6647 = vunpack.c.l.b16 %v6471
        %v6648 = vunpack.c.h.b16 %v6471
        %v6649 = vunpack.c.l.b16 %v6472
        %v6650 = vunpack.c.h.b16 %v6472
        %v6651 = vunpack.c.l.b16 %v6473
        %v6652 = vunpack.c.h.b16 %v6473
        %v6653 = vunpack.c.l.b16 %v6474
        %v6654 = vunpack.c.h.b16 %v6474
        %v6655 = vunpack.c.l.b16 %v6475
        %v6656 = vunpack.c.h.b16 %v6475
        %v6657 = vunpack.c.l.b16 %v6476
        %v6658 = vunpack.c.h.b16 %v6476
        %v6659 = vunpack.c.l.b16 %v6477
        %v6660 = vunpack.c.h.b16 %v6477
        %v6661 = vunpack.c.l.b16 %v6478
        %v6662 = vunpack.c.h.b16 %v6478
        %v6663 = vunpack.c.l.b16 %v6479
        %v6664 = vunpack.c.h.b16 %v6479
        %v6665 = vunpack.c.l.b16 %v6480
        %v6666 = vunpack.c.h.b16 %v6480
        %v6667 = vunpack.c.l.b16 %v6481
        %v6668 = vunpack.c.h.b16 %v6481
        %v6669 = vunpack.c.l.b16 %v6482
        %v6670 = vunpack.c.h.b16 %v6482
        %v6671 = vunpack.c.l.b16 %v6483
        %v6672 = vunpack.c.h.b16 %v6483
        %v6673 = vunpack.c.l.b16 %v6484
        %v6674 = vunpack.c.h.b16 %v6484
        %v6675 = vunpack.c.l.b16 %v6485
        %v6676 = vunpack.c.h.b16 %v6485
        %v6677 = vunpack.c.l.b16 %v6486
        %v6678 = vunpack.c.h.b16 %v6486
        %v6679 = vunpack.c.l.b16 %v6487
        %v6680 = vunpack.c.h.b16 %v6487
        %v6681 = vpack.c.b16 %v6557, %v6553
        %v6682 = vpack.c.b16 %v6558, %v6554
        %v6683 = vpack.c.b16 %v6559, %v6555
        %v6684 = vpack.c.b16 %v6560, %v6556
        %v6685 = vpack.c.b16 %v6565, %v6561
        %v6686 = vpack.c.b16 %v6566, %v6562
        %v6687 = vpack.c.b16 %v6567, %v6563
        %v6688 = vpack.c.b16 %v6568, %v6564
        %v6689 = vpack.c.b16 %v6573, %v6569
        %v6690 = vpack.c.b16 %v6574, %v6570
        %v6691 = vpack.c.b16 %v6575, %v6571
        %v6692 = vpack.c.b16 %v6576, %v6572
        %v6693 = vpack.c.b16 %v6581, %v6577
        %v6694 = vpack.c.b16 %v6582, %v6578
        %v6695 = vpack.c.b16 %v6583, %v6579
        %v6696 = vpack.c.b16 %v6584, %v6580
        %v6697 = vpack.c.b16 %v6589, %v6585
        %v6698 = vpack.c.b16 %v6590, %v6586
        %v6699 = vpack.c.b16 %v6591, %v6587
        %v6700 = vpack.c.b16 %v6592, %v6588
        %v6701 = vpack.c.b16 %v6597, %v6593
        %v6702 = vpack.c.b16 %v6598, %v6594
        %v6703 = vpack.c.b16 %v6599, %v6595
        %v6704 = vpack.c.b16 %v6600, %v6596
        %v6705 = vpack.c.b16 %v6605, %v6601
        %v6706 = vpack.c.b16 %v6606, %v6602
        %v6707 = vpack.c.b16 %v6607, %v6603
        %v6708 = vpack.c.b16 %v6608, %v6604
        %v6709 = vpack.c.b16 %v6613, %v6609
        %v6710 = vpack.c.b16 %v6614, %v6610
        %v6711 = vpack.c.b16 %v6615, %v6611
        %v6712 = vpack.c.b16 %v6616, %v6612
        %v6713 = vpack.c.b16 %v6621, %v6617
        %v6714 = vpack.c.b16 %v6622, %v6618
        %v6715 = vpack.c.b16 %v6623, %v6619
        %v6716 = vpack.c.b16 %v6624, %v6620
        %v6717 = vpack.c.b16 %v6629, %v6625
        %v6718 = vpack.c.b16 %v6630, %v6626
        %v6719 = vpack.c.b16 %v6631, %v6627
        %v6720 = vpack.c.b16 %v6632, %v6628
        %v6721 = vpack.c.b16 %v6637, %v6633
        %v6722 = vpack.c.b16 %v6638, %v6634
        %v6723 = vpack.c.b16 %v6639, %v6635
        %v6724 = vpack.c.b16 %v6640, %v6636
        %v6725 = vpack.c.b16 %v6645, %v6641
        %v6726 = vpack.c.b16 %v6646, %v6642
        %v6727 = vpack.c.b16 %v6647, %v6643
        %v6728 = vpack.c.b16 %v6648, %v6644
        %v6729 = vpack.c.b16 %v6653, %v6649
        %v6730 = vpack.c.b16 %v6654, %v6650
        %v6731 = vpack.c.b16 %v6655, %v6651
        %v6732 = vpack.c.b16 %v6656, %v6652
        %v6733 = vpack.c.b16 %v6661, %v6657
        %v6734 = vpack.c.b16 %v6662, %v6658
        %v6735 = vpack.c.b16 %v6663, %v6659
        %v6736 = vpack.c.b16 %v6664, %v6660
        %v6737 = vpack.c.b16 %v6669, %v6665
        %v6738 = vpack.c.b16 %v6670, %v6666
        %v6739 = vpack.c.b16 %v6671, %v6667
        %v6740 = vpack.c.b16 %v6672, %v6668
        %v6741 = vpack.c.b16 %v6677, %v6673
        %v6742 = vpack.c.b16 %v6678, %v6674
        %v6743 = vpack.c.b16 %v6679, %v6675
        %v6744 = vpack.c.b16 %v6680, %v6676
        %v6810 = vperm.slane %v6488, 0
        %v6811 = vperm.slane %v6488, 1
        %v6812 = vperm.slane %v6488, 2
        %v6813 = vperm.slane %v6488, 3
        %6818 = vmatpush.bf16.msra.mxu0 %v6709
        %6819 = vmatpush.bf16.msra.mxu0 %v6705
        %6820 = vmatpush.bf16.msra.mxu0 %v6701
        %6821 = vmatpush.bf16.msra.mxu0 %v6697
        %6822 = vmatpush.bf16.msra.mxu0 %v6693
        %6823 = vmatpush.bf16.msra.mxu0 %v6689
        %6824 = vmatpush.bf16.msra.mxu0 %v6685
        %6825 = vmatpush.bf16.msra.mxu0 %v6681
        %6826 = vmatmul.bf16.gmra.mxu0 %v6422
        %v6827 = vpop.f32.mrf.mxu0
        %v6828 = vadd.f32 %v6810, %v6827
        %v6829 = vpop.f32.mrf.mxu0
        %6830 = vdwg.mxu0
        %6831 = vmatpush.bf16.msra.mxu0 %v6741
        %6832 = vmatpush.bf16.msra.mxu0 %v6737
        %6833 = vmatpush.bf16.msra.mxu0 %v6733
        %6834 = vmatpush.bf16.msra.mxu0 %v6729
        %6835 = vmatpush.bf16.msra.mxu0 %v6725
        %6836 = vmatpush.bf16.msra.mxu0 %v6721
        %6837 = vmatpush.bf16.msra.mxu0 %v6717
        %6838 = vmatpush.bf16.msra.mxu0 %v6713
        %6839 = vmatmul.bf16.gmra.mxu0 %v6423
        %v6840 = vpop.f32.mrf.mxu0
        %v6841 = vadd.f32 %v6828, %v6840
        %v6842 = vpop.f32.mrf.mxu0
        %6843 = vdwg.mxu0
        %6844 = vmatpush.bf16.msra.mxu0 %v6710
        %6845 = vmatpush.bf16.msra.mxu0 %v6706
        %6846 = vmatpush.bf16.msra.mxu0 %v6702
        %6847 = vmatpush.bf16.msra.mxu0 %v6698
        %6848 = vmatpush.bf16.msra.mxu0 %v6694
        %6849 = vmatpush.bf16.msra.mxu0 %v6690
        %6850 = vmatpush.bf16.msra.mxu0 %v6686
        %6851 = vmatpush.bf16.msra.mxu0 %v6682
        %6852 = vmatmul.bf16.gmra.mxu0 %v6422
        %v6853 = vpop.f32.mrf.mxu0
        %v6854 = vadd.f32 %v6811, %v6853
        %v6855 = vpop.f32.mrf.mxu0
        %6856 = vdwg.mxu0
        %6857 = vmatpush.bf16.msra.mxu0 %v6742
        %6858 = vmatpush.bf16.msra.mxu0 %v6738
        %6859 = vmatpush.bf16.msra.mxu0 %v6734
        %6860 = vmatpush.bf16.msra.mxu0 %v6730
        %6861 = vmatpush.bf16.msra.mxu0 %v6726
        %6862 = vmatpush.bf16.msra.mxu0 %v6722
        %6863 = vmatpush.bf16.msra.mxu0 %v6718
        %6864 = vmatpush.bf16.msra.mxu0 %v6714
        %6865 = vmatmul.bf16.gmra.mxu0 %v6423
        %v6866 = vpop.f32.mrf.mxu0
        %v6867 = vadd.f32 %v6854, %v6866
        %v6868 = vpop.f32.mrf.mxu0
        %6869 = vdwg.mxu0
        %6870 = vmatpush.bf16.msra.mxu0 %v6711
        %6871 = vmatpush.bf16.msra.mxu0 %v6707
        %6872 = vmatpush.bf16.msra.mxu0 %v6703
        %6873 = vmatpush.bf16.msra.mxu0 %v6699
        %6874 = vmatpush.bf16.msra.mxu0 %v6695
        %6875 = vmatpush.bf16.msra.mxu0 %v6691
        %6876 = vmatpush.bf16.msra.mxu0 %v6687
        %6877 = vmatpush.bf16.msra.mxu0 %v6683
        %6878 = vmatmul.bf16.gmra.mxu0 %v6422
        %v6879 = vpop.f32.mrf.mxu0
        %v6880 = vadd.f32 %v6812, %v6879
        %v6881 = vpop.f32.mrf.mxu0
        %6882 = vdwg.mxu0
        %6883 = vmatpush.bf16.msra.mxu0 %v6743
        %6884 = vmatpush.bf16.msra.mxu0 %v6739
        %6885 = vmatpush.bf16.msra.mxu0 %v6735
        %6886 = vmatpush.bf16.msra.mxu0 %v6731
        %6887 = vmatpush.bf16.msra.mxu0 %v6727
        %6888 = vmatpush.bf16.msra.mxu0 %v6723
        %6889 = vmatpush.bf16.msra.mxu0 %v6719
        %6890 = vmatpush.bf16.msra.mxu0 %v6715
        %6891 = vmatmul.bf16.gmra.mxu0 %v6423
        %v6892 = vpop.f32.mrf.mxu0
        %v6893 = vadd.f32 %v6880, %v6892
        %v6894 = vpop.f32.mrf.mxu0
        %6895 = vdwg.mxu0
        %6896 = vmatpush.bf16.msra.mxu0 %v6712
        %6897 = vmatpush.bf16.msra.mxu0 %v6708
        %6898 = vmatpush.bf16.msra.mxu0 %v6704
        %6899 = vmatpush.bf16.msra.mxu0 %v6700
        %6900 = vmatpush.bf16.msra.mxu0 %v6696
        %6901 = vmatpush.bf16.msra.mxu0 %v6692
        %6902 = vmatpush.bf16.msra.mxu0 %v6688
        %6903 = vmatpush.bf16.msra.mxu0 %v6684
        %6904 = vmatmul.bf16.gmra.mxu0 %v6422
        %v6905 = vpop.f32.mrf.mxu0
        %v6906 = vadd.f32 %v6813, %v6905
        %v6907 = vpop.f32.mrf.mxu0
        %6908 = vdwg.mxu0
        %6909 = vmatpush.bf16.msra.mxu0 %v6744
        %6910 = vmatpush.bf16.msra.mxu0 %v6740
        %6911 = vmatpush.bf16.msra.mxu0 %v6736
        %6912 = vmatpush.bf16.msra.mxu0 %v6732
        %6913 = vmatpush.bf16.msra.mxu0 %v6728
        %6914 = vmatpush.bf16.msra.mxu0 %v6724
        %6915 = vmatpush.bf16.msra.mxu0 %v6720
        %6916 = vmatpush.bf16.msra.mxu0 %v6716
        %6917 = vmatmul.bf16.gmra.mxu0 %v6423
        %v6918 = vpop.f32.mrf.mxu0
        %v6919 = vadd.f32 %v6906, %v6918
        %v6920 = vpop.f32.mrf.mxu0
        %6921 = vdwg.mxu0
        %v6922 = vmax.f32 %v6841, 0.0
        %v6923 = vmax.f32 %v6867, 0.0
        %v6924 = vmax.f32 %v6893, 0.0
        %v6925 = vmax.f32 %v6919, 0.0
        %v6926 = vpack.c.bf16 %v6922, %v6922
        %v6927 = vpack.c.bf16 %v6923, %v6923
        %v6928 = vpack.c.bf16 %v6924, %v6924
        %v6929 = vpack.c.bf16 %v6925, %v6925
        %v6930 = vld [vmem:[%s10] sm:$0xff]
        %v6931 = vld [vmem:[%s10 + $0x8] sm:$0xff]
        %v6932 = vld [vmem:[%s10 + $0x10] sm:$0xff]
        %v6933 = vld [vmem:[%s10 + $0x18] sm:$0xff]
        %v6934 = vld [vmem:[%s10 + $0x20] sm:$0xff]
        %v6935 = vld [vmem:[%s10 + $0x28] sm:$0xff]
        %v6936 = vld [vmem:[%s10 + $0x30] sm:$0xff]
        %v6937 = vld [vmem:[%s10 + $0x38] sm:$0xff]
        %v6938 = vld [vmem:[%s10 + $0x40] sm:$0xff]
        %v6939 = vld [vmem:[%s10 + $0x48] sm:$0xff]
        %v6940 = vld [vmem:[%s10 + $0x50] sm:$0xff]
        %v6941 = vld [vmem:[%s10 + $0x58] sm:$0xff]
        %v6942 = vld [vmem:[%s10 + $0x60] sm:$0xff]
        %v6943 = vld [vmem:[%s10 + $0x68] sm:$0xff]
        %v6944 = vld [vmem:[%s10 + $0x70] sm:$0xff]
        %v6945 = vld [vmem:[%s10 + $0x78] sm:$0xff]
        %v6946 = vld [vmem:[%s10 + $0x80] sm:$0xff]
        %v6947 = vld [vmem:[%s10 + $0x88] sm:$0xff]
        %v6948 = vld [vmem:[%s10 + $0x90] sm:$0xff]
        %v6949 = vld [vmem:[%s10 + $0x98] sm:$0xff]
        %v6950 = vld [vmem:[%s10 + $0xa0] sm:$0xff]
        %v6951 = vld [vmem:[%s10 + $0xa8] sm:$0xff]
        %v6952 = vld [vmem:[%s10 + $0xb0] sm:$0xff]
        %v6953 = vld [vmem:[%s10 + $0xb8] sm:$0xff]
        %v6954 = vld [vmem:[%s10 + $0xc0] sm:$0xff]
        %v6955 = vld [vmem:[%s10 + $0xc8] sm:$0xff]
        %v6956 = vld [vmem:[%s10 + $0xd0] sm:$0xff]
        %v6957 = vld [vmem:[%s10 + $0xd8] sm:$0xff]
        %v6958 = vld [vmem:[%s10 + $0xe0] sm:$0xff]
        %v6959 = vld [vmem:[%s10 + $0xe8] sm:$0xff]
        %v6960 = vld [vmem:[%s10 + $0xf0] sm:$0xff]
        %v6961 = vld [vmem:[%s10 + $0xf8] sm:$0xff]
        %v6962 = vld [vmem:[%s10 + $0x100] sm:$0xff]
        %v6963 = vld [vmem:[%s10 + $0x108] sm:$0xff]
        %v6964 = vld [vmem:[%s10 + $0x110] sm:$0xff]
        %v6965 = vld [vmem:[%s10 + $0x118] sm:$0xff]
        %v6966 = vld [vmem:[%s10 + $0x120] sm:$0xff]
        %v6967 = vld [vmem:[%s10 + $0x128] sm:$0xff]
        %v6968 = vld [vmem:[%s10 + $0x130] sm:$0xff]
        %v6969 = vld [vmem:[%s10 + $0x138] sm:$0xff]
        %v6970 = vld [vmem:[%s10 + $0x140] sm:$0xff]
        %v6971 = vld [vmem:[%s10 + $0x148] sm:$0xff]
        %v6972 = vld [vmem:[%s10 + $0x150] sm:$0xff]
        %v6973 = vld [vmem:[%s10 + $0x158] sm:$0xff]
        %v6974 = vld [vmem:[%s10 + $0x160] sm:$0xff]
        %v6975 = vld [vmem:[%s10 + $0x168] sm:$0xff]
        %v6976 = vld [vmem:[%s10 + $0x170] sm:$0xff]
        %v6977 = vld [vmem:[%s10 + $0x178] sm:$0xff]
        %v6978 = vld [vmem:[%s10 + $0x180] sm:$0xff]
        %v6979 = vld [vmem:[%s10 + $0x188] sm:$0xff]
        %v6980 = vld [vmem:[%s10 + $0x190] sm:$0xff]
        %v6981 = vld [vmem:[%s10 + $0x198] sm:$0xff]
        %v6982 = vld [vmem:[%s10 + $0x1a0] sm:$0xff]
        %v6983 = vld [vmem:[%s10 + $0x1a8] sm:$0xff]
        %v6984 = vld [vmem:[%s10 + $0x1b0] sm:$0xff]
        %v6985 = vld [vmem:[%s10 + $0x1b8] sm:$0xff]
        %v6986 = vld [vmem:[%s10 + $0x1c0] sm:$0xff]
        %v6987 = vld [vmem:[%s10 + $0x1c8] sm:$0xff]
        %v6988 = vld [vmem:[%s10 + $0x1d0] sm:$0xff]
        %v6989 = vld [vmem:[%s10 + $0x1d8] sm:$0xff]
        %v6990 = vld [vmem:[%s10 + $0x1e0] sm:$0xff]
        %v6991 = vld [vmem:[%s10 + $0x1e8] sm:$0xff]
        %v6992 = vld [vmem:[%s10 + $0x1f0] sm:$0xff]
        %v6993 = vld [vmem:[%s10 + $0x1f8] sm:$0xff]
        %v6994 = vld [vmem:[%s13] sm:$0x3]
        %v7059 = vunpack.c.l.b16 %v6930
        %v7060 = vunpack.c.h.b16 %v6930
        %v7061 = vunpack.c.l.b16 %v6931
        %v7062 = vunpack.c.h.b16 %v6931
        %v7063 = vunpack.c.l.b16 %v6932
        %v7064 = vunpack.c.h.b16 %v6932
        %v7065 = vunpack.c.l.b16 %v6933
        %v7066 = vunpack.c.h.b16 %v6933
        %v7067 = vunpack.c.l.b16 %v6934
        %v7068 = vunpack.c.h.b16 %v6934
        %v7069 = vunpack.c.l.b16 %v6935
        %v7070 = vunpack.c.h.b16 %v6935
        %v7071 = vunpack.c.l.b16 %v6936
        %v7072 = vunpack.c.h.b16 %v6936
        %v7073 = vunpack.c.l.b16 %v6937
        %v7074 = vunpack.c.h.b16 %v6937
        %v7075 = vunpack.c.l.b16 %v6938
        %v7076 = vunpack.c.h.b16 %v6938
        %v7077 = vunpack.c.l.b16 %v6939
        %v7078 = vunpack.c.h.b16 %v6939
        %v7079 = vunpack.c.l.b16 %v6940
        %v7080 = vunpack.c.h.b16 %v6940
        %v7081 = vunpack.c.l.b16 %v6941
        %v7082 = vunpack.c.h.b16 %v6941
        %v7083 = vunpack.c.l.b16 %v6942
        %v7084 = vunpack.c.h.b16 %v6942
        %v7085 = vunpack.c.l.b16 %v6943
        %v7086 = vunpack.c.h.b16 %v6943
        %v7087 = vunpack.c.l.b16 %v6944
        %v7088 = vunpack.c.h.b16 %v6944
        %v7089 = vunpack.c.l.b16 %v6945
        %v7090 = vunpack.c.h.b16 %v6945
        %v7091 = vunpack.c.l.b16 %v6946
        %v7092 = vunpack.c.h.b16 %v6946
        %v7093 = vunpack.c.l.b16 %v6947
        %v7094 = vunpack.c.h.b16 %v6947
        %v7095 = vunpack.c.l.b16 %v6948
        %v7096 = vunpack.c.h.b16 %v6948
        %v7097 = vunpack.c.l.b16 %v6949
        %v7098 = vunpack.c.h.b16 %v6949
        %v7099 = vunpack.c.l.b16 %v6950
        %v7100 = vunpack.c.h.b16 %v6950
        %v7101 = vunpack.c.l.b16 %v6951
        %v7102 = vunpack.c.h.b16 %v6951
        %v7103 = vunpack.c.l.b16 %v6952
        %v7104 = vunpack.c.h.b16 %v6952
        %v7105 = vunpack.c.l.b16 %v6953
        %v7106 = vunpack.c.h.b16 %v6953
        %v7107 = vunpack.c.l.b16 %v6954
        %v7108 = vunpack.c.h.b16 %v6954
        %v7109 = vunpack.c.l.b16 %v6955
        %v7110 = vunpack.c.h.b16 %v6955
        %v7111 = vunpack.c.l.b16 %v6956
        %v7112 = vunpack.c.h.b16 %v6956
        %v7113 = vunpack.c.l.b16 %v6957
        %v7114 = vunpack.c.h.b16 %v6957
        %v7115 = vunpack.c.l.b16 %v6958
        %v7116 = vunpack.c.h.b16 %v6958
        %v7117 = vunpack.c.l.b16 %v6959
        %v7118 = vunpack.c.h.b16 %v6959
        %v7119 = vunpack.c.l.b16 %v6960
        %v7120 = vunpack.c.h.b16 %v6960
        %v7121 = vunpack.c.l.b16 %v6961
        %v7122 = vunpack.c.h.b16 %v6961
        %v7123 = vunpack.c.l.b16 %v6962
        %v7124 = vunpack.c.h.b16 %v6962
        %v7125 = vunpack.c.l.b16 %v6963
        %v7126 = vunpack.c.h.b16 %v6963
        %v7127 = vunpack.c.l.b16 %v6964
        %v7128 = vunpack.c.h.b16 %v6964
        %v7129 = vunpack.c.l.b16 %v6965
        %v7130 = vunpack.c.h.b16 %v6965
        %v7131 = vunpack.c.l.b16 %v6966
        %v7132 = vunpack.c.h.b16 %v6966
        %v7133 = vunpack.c.l.b16 %v6967
        %v7134 = vunpack.c.h.b16 %v6967
        %v7135 = vunpack.c.l.b16 %v6968
        %v7136 = vunpack.c.h.b16 %v6968
        %v7137 = vunpack.c.l.b16 %v6969
        %v7138 = vunpack.c.h.b16 %v6969
        %v7139 = vunpack.c.l.b16 %v6970
        %v7140 = vunpack.c.h.b16 %v6970
        %v7141 = vunpack.c.l.b16 %v6971
        %v7142 = vunpack.c.h.b16 %v6971
        %v7143 = vunpack.c.l.b16 %v6972
        %v7144 = vunpack.c.h.b16 %v6972
        %v7145 = vunpack.c.l.b16 %v6973
        %v7146 = vunpack.c.h.b16 %v6973
        %v7147 = vunpack.c.l.b16 %v6974
        %v7148 = vunpack.c.h.b16 %v6974
        %v7149 = vunpack.c.l.b16 %v6975
        %v7150 = vunpack.c.h.b16 %v6975
        %v7151 = vunpack.c.l.b16 %v6976
        %v7152 = vunpack.c.h.b16 %v6976
        %v7153 = vunpack.c.l.b16 %v6977
        %v7154 = vunpack.c.h.b16 %v6977
        %v7155 = vunpack.c.l.b16 %v6978
        %v7156 = vunpack.c.h.b16 %v6978
        %v7157 = vunpack.c.l.b16 %v6979
        %v7158 = vunpack.c.h.b16 %v6979
        %v7159 = vunpack.c.l.b16 %v6980
        %v7160 = vunpack.c.h.b16 %v6980
        %v7161 = vunpack.c.l.b16 %v6981
        %v7162 = vunpack.c.h.b16 %v6981
        %v7163 = vunpack.c.l.b16 %v6982
        %v7164 = vunpack.c.h.b16 %v6982
        %v7165 = vunpack.c.l.b16 %v6983
        %v7166 = vunpack.c.h.b16 %v6983
        %v7167 = vunpack.c.l.b16 %v6984
        %v7168 = vunpack.c.h.b16 %v6984
        %v7169 = vunpack.c.l.b16 %v6985
        %v7170 = vunpack.c.h.b16 %v6985
        %v7171 = vunpack.c.l.b16 %v6986
        %v7172 = vunpack.c.h.b16 %v6986
        %v7173 = vunpack.c.l.b16 %v6987
        %v7174 = vunpack.c.h.b16 %v6987
        %v7175 = vunpack.c.l.b16 %v6988
        %v7176 = vunpack.c.h.b16 %v6988
        %v7177 = vunpack.c.l.b16 %v6989
        %v7178 = vunpack.c.h.b16 %v6989
        %v7179 = vunpack.c.l.b16 %v6990
        %v7180 = vunpack.c.h.b16 %v6990
        %v7181 = vunpack.c.l.b16 %v6991
        %v7182 = vunpack.c.h.b16 %v6991
        %v7183 = vunpack.c.l.b16 %v6992
        %v7184 = vunpack.c.h.b16 %v6992
        %v7185 = vunpack.c.l.b16 %v6993
        %v7186 = vunpack.c.h.b16 %v6993
        %v7187 = vpack.c.b16 %v7061, %v7059
        %v7188 = vpack.c.b16 %v7062, %v7060
        %v7189 = vpack.c.b16 %v7065, %v7063
        %v7190 = vpack.c.b16 %v7066, %v7064
        %v7191 = vpack.c.b16 %v7069, %v7067
        %v7192 = vpack.c.b16 %v7070, %v7068
        %v7193 = vpack.c.b16 %v7073, %v7071
        %v7194 = vpack.c.b16 %v7074, %v7072
        %v7195 = vpack.c.b16 %v7077, %v7075
        %v7196 = vpack.c.b16 %v7078, %v7076
        %v7197 = vpack.c.b16 %v7081, %v7079
        %v7198 = vpack.c.b16 %v7082, %v7080
        %v7199 = vpack.c.b16 %v7085, %v7083
        %v7200 = vpack.c.b16 %v7086, %v7084
        %v7201 = vpack.c.b16 %v7089, %v7087
        %v7202 = vpack.c.b16 %v7090, %v7088
        %v7203 = vpack.c.b16 %v7093, %v7091
        %v7204 = vpack.c.b16 %v7094, %v7092
        %v7205 = vpack.c.b16 %v7097, %v7095
        %v7206 = vpack.c.b16 %v7098, %v7096
        %v7207 = vpack.c.b16 %v7101, %v7099
        %v7208 = vpack.c.b16 %v7102, %v7100
        %v7209 = vpack.c.b16 %v7105, %v7103
        %v7210 = vpack.c.b16 %v7106, %v7104
        %v7211 = vpack.c.b16 %v7109, %v7107
        %v7212 = vpack.c.b16 %v7110, %v7108
        %v7213 = vpack.c.b16 %v7113, %v7111
        %v7214 = vpack.c.b16 %v7114, %v7112
        %v7215 = vpack.c.b16 %v7117, %v7115
        %v7216 = vpack.c.b16 %v7118, %v7116
        %v7217 = vpack.c.b16 %v7121, %v7119
        %v7218 = vpack.c.b16 %v7122, %v7120
        %v7219 = vpack.c.b16 %v7125, %v7123
        %v7220 = vpack.c.b16 %v7126, %v7124
        %v7221 = vpack.c.b16 %v7129, %v7127
        %v7222 = vpack.c.b16 %v7130, %v7128
        %v7223 = vpack.c.b16 %v7133, %v7131
        %v7224 = vpack.c.b16 %v7134, %v7132
        %v7225 = vpack.c.b16 %v7137, %v7135
        %v7226 = vpack.c.b16 %v7138, %v7136
        %v7227 = vpack.c.b16 %v7141, %v7139
        %v7228 = vpack.c.b16 %v7142, %v7140
        %v7229 = vpack.c.b16 %v7145, %v7143
        %v7230 = vpack.c.b16 %v7146, %v7144
        %v7231 = vpack.c.b16 %v7149, %v7147
        %v7232 = vpack.c.b16 %v7150, %v7148
        %v7233 = vpack.c.b16 %v7153, %v7151
        %v7234 = vpack.c.b16 %v7154, %v7152
        %v7235 = vpack.c.b16 %v7157, %v7155
        %v7236 = vpack.c.b16 %v7158, %v7156
        %v7237 = vpack.c.b16 %v7161, %v7159
        %v7238 = vpack.c.b16 %v7162, %v7160
        %v7239 = vpack.c.b16 %v7165, %v7163
        %v7240 = vpack.c.b16 %v7166, %v7164
        %v7241 = vpack.c.b16 %v7169, %v7167
        %v7242 = vpack.c.b16 %v7170, %v7168
        %v7243 = vpack.c.b16 %v7173, %v7171
        %v7244 = vpack.c.b16 %v7174, %v7172
        %v7245 = vpack.c.b16 %v7177, %v7175
        %v7246 = vpack.c.b16 %v7178, %v7176
        %v7247 = vpack.c.b16 %v7181, %v7179
        %v7248 = vpack.c.b16 %v7182, %v7180
        %v7249 = vpack.c.b16 %v7185, %v7183
        %v7250 = vpack.c.b16 %v7186, %v7184
        %v7316 = vperm.slane %v6994, 0
        %v7317 = vperm.slane %v6994, 1
        %7320 = vmatpush.bf16.msra.mxu0 %v7201
        %7321 = vmatpush.bf16.msra.mxu0 %v7199
        %7322 = vmatpush.bf16.msra.mxu0 %v7197
        %7323 = vmatpush.bf16.msra.mxu0 %v7195
        %7324 = vmatpush.bf16.msra.mxu0 %v7193
        %7325 = vmatpush.bf16.msra.mxu0 %v7191
        %7326 = vmatpush.bf16.msra.mxu0 %v7189
        %7327 = vmatpush.bf16.msra.mxu0 %v7187
        %7328 = vmatmul.bf16.gmra.mxu0 %v6926
        %v7329 = vpop.f32.mrf.mxu0
        %v7330 = vadd.f32 %v7316, %v7329
        %v7331 = vpop.f32.mrf.mxu0
        %7332 = vdwg.mxu0
        %7333 = vmatpush.bf16.msra.mxu0 %v7217
        %7334 = vmatpush.bf16.msra.mxu0 %v7215
        %7335 = vmatpush.bf16.msra.mxu0 %v7213
        %7336 = vmatpush.bf16.msra.mxu0 %v7211
        %7337 = vmatpush.bf16.msra.mxu0 %v7209
        %7338 = vmatpush.bf16.msra.mxu0 %v7207
        %7339 = vmatpush.bf16.msra.mxu0 %v7205
        %7340 = vmatpush.bf16.msra.mxu0 %v7203
        %7341 = vmatmul.bf16.gmra.mxu0 %v6927
        %v7342 = vpop.f32.mrf.mxu0
        %v7343 = vadd.f32 %v7330, %v7342
        %v7344 = vpop.f32.mrf.mxu0
        %7345 = vdwg.mxu0
        %7346 = vmatpush.bf16.msra.mxu0 %v7233
        %7347 = vmatpush.bf16.msra.mxu0 %v7231
        %7348 = vmatpush.bf16.msra.mxu0 %v7229
        %7349 = vmatpush.bf16.msra.mxu0 %v7227
        %7350 = vmatpush.bf16.msra.mxu0 %v7225
        %7351 = vmatpush.bf16.msra.mxu0 %v7223
        %7352 = vmatpush.bf16.msra.mxu0 %v7221
        %7353 = vmatpush.bf16.msra.mxu0 %v7219
        %7354 = vmatmul.bf16.gmra.mxu0 %v6928
        %v7355 = vpop.f32.mrf.mxu0
        %v7356 = vadd.f32 %v7343, %v7355
        %v7357 = vpop.f32.mrf.mxu0
        %7358 = vdwg.mxu0
        %7359 = vmatpush.bf16.msra.mxu0 %v7249
        %7360 = vmatpush.bf16.msra.mxu0 %v7247
        %7361 = vmatpush.bf16.msra.mxu0 %v7245
        %7362 = vmatpush.bf16.msra.mxu0 %v7243
        %7363 = vmatpush.bf16.msra.mxu0 %v7241
        %7364 = vmatpush.bf16.msra.mxu0 %v7239
        %7365 = vmatpush.bf16.msra.mxu0 %v7237
        %7366 = vmatpush.bf16.msra.mxu0 %v7235
        %7367 = vmatmul.bf16.gmra.mxu0 %v6929
        %v7368 = vpop.f32.mrf.mxu0
        %v7369 = vadd.f32 %v7356, %v7368
        %v7370 = vpop.f32.mrf.mxu0
        %7371 = vdwg.mxu0
        %7372 = vmatpush.bf16.msra.mxu0 %v7202
        %7373 = vmatpush.bf16.msra.mxu0 %v7200
        %7374 = vmatpush.bf16.msra.mxu0 %v7198
        %7375 = vmatpush.bf16.msra.mxu0 %v7196
        %7376 = vmatpush.bf16.msra.mxu0 %v7194
        %7377 = vmatpush.bf16.msra.mxu0 %v7192
        %7378 = vmatpush.bf16.msra.mxu0 %v7190
        %7379 = vmatpush.bf16.msra.mxu0 %v7188
        %7380 = vmatmul.bf16.gmra.mxu0 %v6926
        %v7381 = vpop.f32.mrf.mxu0
        %v7382 = vadd.f32 %v7317, %v7381
        %v7383 = vpop.f32.mrf.mxu0
        %7384 = vdwg.mxu0
        %7385 = vmatpush.bf16.msra.mxu0 %v7218
        %7386 = vmatpush.bf16.msra.mxu0 %v7216
        %7387 = vmatpush.bf16.msra.mxu0 %v7214
        %7388 = vmatpush.bf16.msra.mxu0 %v7212
        %7389 = vmatpush.bf16.msra.mxu0 %v7210
        %7390 = vmatpush.bf16.msra.mxu0 %v7208
        %7391 = vmatpush.bf16.msra.mxu0 %v7206
        %7392 = vmatpush.bf16.msra.mxu0 %v7204
        %7393 = vmatmul.bf16.gmra.mxu0 %v6927
        %v7394 = vpop.f32.mrf.mxu0
        %v7395 = vadd.f32 %v7382, %v7394
        %v7396 = vpop.f32.mrf.mxu0
        %7397 = vdwg.mxu0
        %7398 = vmatpush.bf16.msra.mxu0 %v7234
        %7399 = vmatpush.bf16.msra.mxu0 %v7232
        %7400 = vmatpush.bf16.msra.mxu0 %v7230
        %7401 = vmatpush.bf16.msra.mxu0 %v7228
        %7402 = vmatpush.bf16.msra.mxu0 %v7226
        %7403 = vmatpush.bf16.msra.mxu0 %v7224
        %7404 = vmatpush.bf16.msra.mxu0 %v7222
        %7405 = vmatpush.bf16.msra.mxu0 %v7220
        %7406 = vmatmul.bf16.gmra.mxu0 %v6928
        %v7407 = vpop.f32.mrf.mxu0
        %v7408 = vadd.f32 %v7395, %v7407
        %v7409 = vpop.f32.mrf.mxu0
        %7410 = vdwg.mxu0
        %7411 = vmatpush.bf16.msra.mxu0 %v7250
        %7412 = vmatpush.bf16.msra.mxu0 %v7248
        %7413 = vmatpush.bf16.msra.mxu0 %v7246
        %7414 = vmatpush.bf16.msra.mxu0 %v7244
        %7415 = vmatpush.bf16.msra.mxu0 %v7242
        %7416 = vmatpush.bf16.msra.mxu0 %v7240
        %7417 = vmatpush.bf16.msra.mxu0 %v7238
        %7418 = vmatpush.bf16.msra.mxu0 %v7236
        %7419 = vmatmul.bf16.gmra.mxu0 %v6929
        %v7420 = vpop.f32.mrf.mxu0
        %v7421 = vadd.f32 %v7408, %v7420
        %v7422 = vpop.f32.mrf.mxu0
        %7423 = vdwg.mxu0
        %v7424 = vmax.f32 %v7369, 0.0
        %v7425 = vmax.f32 %v7421, 0.0
        %v7426 = vpack.c.bf16 %v7424, %v7424
        %v7427 = vpack.c.bf16 %v7425, %v7425
        %v7428 = vld [vmem:[#allocation18] sm:$0xf]
        %v7429 = vld [vmem:[#allocation18 + $0x4] sm:$0xf]
        %v7430 = vld [vmem:[#allocation18 + $0x8] sm:$0xf]
        %v7431 = vld [vmem:[#allocation18 + $0xc] sm:$0xf]
        %v7432 = vld [vmem:[#allocation18 + $0x10] sm:$0xf]
        %v7433 = vld [vmem:[#allocation18 + $0x14] sm:$0xf]
        %v7434 = vld [vmem:[#allocation18 + $0x18] sm:$0xf]
        %v7435 = vld [vmem:[#allocation18 + $0x1c] sm:$0xf]
        %v7436 = vld [vmem:[#allocation18 + $0x20] sm:$0xf]
        %v7437 = vld [vmem:[#allocation18 + $0x24] sm:$0xf]
        %v7438 = vld [vmem:[#allocation18 + $0x28] sm:$0xf]
        %v7439 = vld [vmem:[#allocation18 + $0x2c] sm:$0xf]
        %v7440 = vld [vmem:[#allocation18 + $0x30] sm:$0xf]
        %v7441 = vld [vmem:[#allocation18 + $0x34] sm:$0xf]
        %v7442 = vld [vmem:[#allocation18 + $0x38] sm:$0xf]
        %v7443 = vld [vmem:[#allocation18 + $0x3c] sm:$0xf]
        %v7444 = vld [vmem:[#allocation18 + $0x40] sm:$0xf]
        %v7445 = vld [vmem:[#allocation18 + $0x44] sm:$0xf]
        %v7446 = vld [vmem:[#allocation18 + $0x48] sm:$0xf]
        %v7447 = vld [vmem:[#allocation18 + $0x4c] sm:$0xf]
        %v7448 = vld [vmem:[#allocation18 + $0x50] sm:$0xf]
        %v7449 = vld [vmem:[#allocation18 + $0x54] sm:$0xf]
        %v7450 = vld [vmem:[#allocation18 + $0x58] sm:$0xf]
        %v7451 = vld [vmem:[#allocation18 + $0x5c] sm:$0xf]
        %v7452 = vld [vmem:[#allocation18 + $0x60] sm:$0xf]
        %v7453 = vld [vmem:[#allocation18 + $0x64] sm:$0xf]
        %v7454 = vld [vmem:[#allocation18 + $0x68] sm:$0xf]
        %v7455 = vld [vmem:[#allocation18 + $0x6c] sm:$0xf]
        %v7456 = vld [vmem:[#allocation18 + $0x70] sm:$0xf]
        %v7457 = vld [vmem:[#allocation18 + $0x74] sm:$0xf]
        %v7458 = vld [vmem:[#allocation18 + $0x78] sm:$0xf]
        %v7459 = vld [vmem:[#allocation18 + $0x7c] sm:$0xf]
        %v7460 = vld [vmem:[#allocation20] sm:$0x1]
        %v7493 = vunpack.c.l.b16 %v7428
        %v7494 = vunpack.c.l.b16 %v7429
        %v7495 = vunpack.c.l.b16 %v7430
        %v7496 = vunpack.c.l.b16 %v7431
        %v7497 = vunpack.c.l.b16 %v7432
        %v7498 = vunpack.c.l.b16 %v7433
        %v7499 = vunpack.c.l.b16 %v7434
        %v7500 = vunpack.c.l.b16 %v7435
        %v7501 = vunpack.c.l.b16 %v7436
        %v7502 = vunpack.c.l.b16 %v7437
        %v7503 = vunpack.c.l.b16 %v7438
        %v7504 = vunpack.c.l.b16 %v7439
        %v7505 = vunpack.c.l.b16 %v7440
        %v7506 = vunpack.c.l.b16 %v7441
        %v7507 = vunpack.c.l.b16 %v7442
        %v7508 = vunpack.c.l.b16 %v7443
        %v7509 = vunpack.c.l.b16 %v7444
        %v7510 = vunpack.c.l.b16 %v7445
        %v7511 = vunpack.c.l.b16 %v7446
        %v7512 = vunpack.c.l.b16 %v7447
        %v7513 = vunpack.c.l.b16 %v7448
        %v7514 = vunpack.c.l.b16 %v7449
        %v7515 = vunpack.c.l.b16 %v7450
        %v7516 = vunpack.c.l.b16 %v7451
        %v7517 = vunpack.c.l.b16 %v7452
        %v7518 = vunpack.c.l.b16 %v7453
        %v7519 = vunpack.c.l.b16 %v7454
        %v7520 = vunpack.c.l.b16 %v7455
        %v7521 = vunpack.c.l.b16 %v7456
        %v7522 = vunpack.c.l.b16 %v7457
        %v7523 = vunpack.c.l.b16 %v7458
        %v7524 = vunpack.c.l.b16 %v7459
        %v7525 = vpack.c.b16 %v7494, %v7493
        %v7526 = vpack.c.b16 %v7496, %v7495
        %v7527 = vpack.c.b16 %v7498, %v7497
        %v7528 = vpack.c.b16 %v7500, %v7499
        %v7529 = vpack.c.b16 %v7502, %v7501
        %v7530 = vpack.c.b16 %v7504, %v7503
        %v7531 = vpack.c.b16 %v7506, %v7505
        %v7532 = vpack.c.b16 %v7508, %v7507
        %v7533 = vpack.c.b16 %v7510, %v7509
        %v7534 = vpack.c.b16 %v7512, %v7511
        %v7535 = vpack.c.b16 %v7514, %v7513
        %v7536 = vpack.c.b16 %v7516, %v7515
        %v7537 = vpack.c.b16 %v7518, %v7517
        %v7538 = vpack.c.b16 %v7520, %v7519
        %v7539 = vpack.c.b16 %v7522, %v7521
        %v7540 = vpack.c.b16 %v7524, %v7523
        %7557 = vmatpush.bf16.msra.mxu0 %v7532
        %7558 = vmatpush.bf16.msra.mxu0 %v7531
        %7559 = vmatpush.bf16.msra.mxu0 %v7530
        %7560 = vmatpush.bf16.msra.mxu0 %v7529
        %7561 = vmatpush.bf16.msra.mxu0 %v7528
        %7562 = vmatpush.bf16.msra.mxu0 %v7527
        %7563 = vmatpush.bf16.msra.mxu0 %v7526
        %7564 = vmatpush.bf16.msra.mxu0 %v7525
        %7565 = vmatmul.bf16.gmra.mxu0 %v7426
        %v7566 = vpop.f32.mrf.mxu0
        %v7567 = vadd.f32 %v7460, %v7566
        %v7568 = vpop.f32.mrf.mxu0
        %7569 = vdwg.mxu0
        %7570 = vmatpush.bf16.msra.mxu0 %v7540
        %7571 = vmatpush.bf16.msra.mxu0 %v7539
        %7572 = vmatpush.bf16.msra.mxu0 %v7538
        %7573 = vmatpush.bf16.msra.mxu0 %v7537
        %7574 = vmatpush.bf16.msra.mxu0 %v7536
        %7575 = vmatpush.bf16.msra.mxu0 %v7535
        %7576 = vmatpush.bf16.msra.mxu0 %v7534
        %7577 = vmatpush.bf16.msra.mxu0 %v7533
        %7578 = vmatmul.bf16.gmra.mxu0 %v7427
        %v7579 = vpop.f32.mrf.mxu0
        %v7580 = vadd.f32 %v7567, %v7579
        %v7581 = vpop.f32.mrf.mxu0
        %7582 = vdwg.mxu0
        %7583 = vst [vmem:[%s566] sm:$0x1] %v7580
        %s7584 = sand.u32 %s360, 1
        %s7585 = scalar_lea.sflag [#allocation14], %s7584
        %s7586 = sand.u32 %s360, 1
        %s7587 = scalar_lea.vmem [#allocation21], %s7586
        // Predicated region
        $region101: #{_lambda_.1} parent=79 // pred_check
          %p7588 = pneg %p370
        $region102: #{_lambda_.1} parent=79 // pred_check_branch
          %7590 = sbr.rel (%p7588) target = $region104
        $region103: #{_lambda_.1} parent=79 // pred_region
          %7592 = vsyncadd %s7585, 0
          %s7593 = scalar_lea.hbm %s15, %s32
          %s7595 = sshll.u32 %s7587, 4
          %s7596 = int_to_ptr.vmem [resolvable:$true] %s7595
          %s7597 = sshll.u32 %s7593, 4
          %s7598 = int_to_ptr.hbm [resolvable:$true] %s7597
          %7600 = dma.vmem_to_hbm [thread:$0]  %s7596, 16, %s7598, %s7585
        $region104: #{_lambda_.1} parent=79 // pred_fallthru
          _
      $region80: #{_lambda_.1} parent=5 // pred_fallthru
        _
      %p7601 = scmp.le.s32.totalorder 2, %s27
      // Predicated region
      $region105: #{_lambda_.1} parent=5 // pred_check
        %p7602 = pneg %p7601
      $region106: #{_lambda_.1} parent=5 // pred_check_branch
        %7604 = sbr.rel (%p7602) target = $region108
      $region107: #{_lambda_.1} parent=5 // pred_region
        %s7605 = ssub.s32 %s27, 2
        // Predicated region
        $region109: #{_lambda_.1} parent=107 // pred_check
          %p7606 = pneg %p376
        $region110: #{_lambda_.1} parent=107 // pred_check_branch
          %7608 = sbr.rel (%p7606) target = $region112
        $region111: #{_lambda_.1} parent=107 // pred_region
          %s7609 = sand.u32 %s361, 1
          %s7610 = scalar_lea.sflag [#allocation14], %s7609
          %s7611 = sand.u32 %s361, 1
          %s7612 = scalar_lea.vmem [#allocation21], %s7611
          %7614 = dma.done %s7610, 16
        $region112: #{_lambda_.1} parent=107 // pred_fallthru
          _
      $region108: #{_lambda_.1} parent=5 // pred_fallthru
        _
    $region6: #{_lambda_.1} parent=1 // loop_footer
      %s31 = sadd.s32 1, %s27
    $region7: #{_lambda_.1} parent=1 // loop_footer_branch
      %26 = sbr.rel target = $region3
    $region8: #{_lambda_.1} parent=1 // loop_exit
      _
    %7615 = vsyncpa [#allocation13], 1
    %s7616 = scalar_lea.sflag [#allocation13], 1
    %7617 = vsyncpa %s7616, 1
    %7618 = vsyncpa [#allocation16], 1
    %7619 = vsyncpa [#allocation19], 1
    %7620 = vsyncpa [#allocation14], 1
    %s7621 = scalar_lea.sflag [#allocation14], 1
    %7622 = vsyncpa %s7621, 1

</llo_original>
